<compile_context>
chip_gen: v7x
topology: tpu7x:2x2x1
jax: 0.10.0
libtpu: 0.0.40
codegen_flags: <defaults>
</compile_context>

<pallas_src>
import jax
import jax.numpy as jnp
import numpy as np
from jax.experimental import pallas as pl
from jax.experimental.pallas import tpu as pltpu

_VMEM = pltpu.MemorySpace.VMEM
_F32 = jnp.float32

TB = 16           # images per grid step, packed into lanes
C1 = 8            # conv1 out-channels padded 6 -> 8   (C1*TB = 128 dense lanes)
C2 = 16           # conv2 out-channels                  (C2*TB = 256 lanes)
N1 = 24 * 24      # conv1 rows per image  (row = i*24 + j)
NP1 = 12 * 12     # pool1 rows per image  (row = i*12 + j)
N2 = 92           # conv2 rows computed (covers every needed row i*12+j <= 91)
NU1 = 551         # pool1 shifted-max rows (max selected row 550 reads z1[575])
NU2 = 79          # pool2 shifted-max rows (max selected row 78 reads z2[91])


# ------------------------- hoisted one-hot pool selectors --------------------
def _pool_selector(out_side, row_stride, n_cols):
    """One-hot (out_side^2, n_cols): picks row (2*pi)*row_stride + 2*pj."""
    sel = np.zeros((out_side * out_side, n_cols), np.float32)
    for pi in range(out_side):
        for pj in range(out_side):
            sel[pi * out_side + pj, 2 * pi * row_stride + 2 * pj] = 1.0
    return sel


_S1_NP = _pool_selector(12, 24, NU1)   # (144, 551): pool1 compaction
_S2_NP = _pool_selector(4, 12, NU2)    # (16, 79):   pool2 compaction


# ------------------------------ fused kernel ---------------------------------
def _lenet_kernel(xc_ref, w1_ref, b1_ref, s1_ref, w2_ref, b2_ref, s2_ref,
                  wf1_ref, bf1_ref, wf2_ref, bf2_ref, wf3_ref, bf3_ref,
                  o_ref, z1s, p1s, c2s):
    # xc_ref : (1, 576, 25*TB)  im2col patches, lane = tap*TB + b
    # w1_ref : (25*TB, 128)     block-diag conv1 weight -> lanes (oc, b)
    # w2_ref : (3200, 256)      block-diag conv2 weight over (tap, ic, b)
    # wf*    : FC weights as LHS (out, in), zero padded; batch stays in lanes
    # o_ref  : (1, 128, TB)     rows = padded logits, lanes = batch

    # ---- conv1 + ReLU: one MXU matmul, all TB images at once ----
    z1s[...] = jnp.maximum(
        jnp.dot(xc_ref[0], w1_ref[...], preferred_element_type=_F32)
        + b1_ref[...], 0.0)                                      # (576, 128)

    # ---- pool1 (2x2/2): shifted max + one-hot compaction matmul ----
    u1 = jnp.maximum(jnp.maximum(z1s[0:NU1, :], z1s[1:NU1 + 1, :]),
                     jnp.maximum(z1s[24:NU1 + 24, :], z1s[25:NU1 + 25, :]))
    p1s[...] = jnp.dot(s1_ref[...], u1, preferred_element_type=_F32)  # (144,128)

    # ---- conv2 + ReLU: lane-stacked im2col (25 taps x 128 lanes), ONE matmul
    for kh in range(5):
        for kw in range(5):
            t = kh * 5 + kw
            off = kh * 12 + kw
            c2s[:, t * (C1 * TB):(t + 1) * (C1 * TB)] = p1s[off:off + N2, :]
    z2 = jnp.maximum(
        jnp.dot(c2s[...], w2_ref[...], preferred_element_type=_F32)
        + b2_ref[...], 0.0)                                      # (92, 256)

    # ---- pool2: shifted max + compaction -> (16 q, (oc, b)) ----
    u2 = jnp.maximum(jnp.maximum(z2[0:NU2, :], z2[1:NU2 + 1, :]),
                     jnp.maximum(z2[12:NU2 + 12, :], z2[13:NU2 + 13, :]))
    f = jnp.dot(s2_ref[...], u2, preferred_element_type=_F32)    # (16, 256)

    # ---- flatten: (16 q, (oc,b) lanes) -> (256 = oc*16+q rows, TB lanes) ----
    g = jnp.concatenate([f[:, oc * TB:(oc + 1) * TB] for oc in range(C2)],
                        axis=0)                                  # torch order

    # ---- fc1 / fc2 / fc3: weights as LHS, batch in lanes, single dots ----
    h = jnp.maximum(jnp.dot(wf1_ref[...], g, preferred_element_type=_F32)
                    + bf1_ref[...], 0.0)                         # (128, TB)
    h = jnp.maximum(jnp.dot(wf2_ref[...], h, preferred_element_type=_F32)
                    + bf2_ref[...], 0.0)
    o_ref[0] = (jnp.dot(wf3_ref[...], h, preferred_element_type=_F32)
                + bf3_ref[...])                                  # (128, TB)


# ------------------------------ wrappers --------------------------------------
def _im2col_conv1(x, tb):
    """(B,1,28,28) -> (B//tb, 576, 25*tb); row = i*24+j, lane = tap*tb + b."""
    # TODO(synk): build these patches in-kernel from the raw (28,28) images to
    # cut the ~18x input-DMA inflation (negligible at this batch size).
    B = x.shape[0]
    ns = B // tb
    x4 = x.reshape(ns, tb, 28, 28)
    cols = [x4[:, :, kh:kh + 24, kw:kw + 24].reshape(ns, tb, 576)
            for kh in range(5) for kw in range(5)]
    xc = jnp.stack(cols, axis=2)                    # (ns, tb, 25, 576)
    return xc.transpose(0, 3, 2, 1).reshape(ns, 576, 25 * tb)


def pack_params(p, tb=TB):
    """One-time repack of torch-layout params into lane-batched kernel layouts."""
    eye = np.eye(tb, dtype=np.float32)

    w1 = np.asarray(p["w_conv1"], np.float32).reshape(6, 25)       # (oc, tap)
    w1 = np.pad(w1, ((0, C1 - 6), (0, 0)))                         # (8, 25)
    W1 = np.einsum("ot,bc->tboc", w1, eye).reshape(25 * tb, C1 * tb)
    B1 = np.repeat(np.pad(np.asarray(p["b_conv1"], np.float32), (0, C1 - 6)),
                   tb)[None, :]

    w2 = np.asarray(p["w_conv2"], np.float32)                      # (16,6,5,5)
    w2 = np.transpose(w2, (2, 3, 1, 0)).reshape(25, 6, 16)         # (tap,ic,oc)
    w2 = np.pad(w2, ((0, 0), (0, C1 - 6), (0, 0)))                 # (25,8,16)
    W2 = np.einsum("tio,bc->tiboc", w2, eye).reshape(25 * C1 * tb, C2 * tb)
    B2 = np.repeat(np.asarray(p["b_conv2"], np.float32), tb)[None, :]

    # fc weights stored as (in, out); kernel uses (out, in) as matmul LHS.
    Wf1 = np.pad(np.asarray(p["w_fc1"], np.float32).T, ((0, 8), (0, 0)))
    Bf1 = np.pad(np.asarray(p["b_fc1"], np.float32), (0, 8))[:, None]
    Wf2 = np.pad(np.asarray(p["w_fc2"], np.float32).T, ((0, 44), (0, 8)))
    Bf2 = np.pad(np.asarray(p["b_fc2"], np.float32), (0, 44))[:, None]
    Wf3 = np.pad(np.asarray(p["w_fc3"], np.float32).T, ((0, 118), (0, 44)))
    Bf3 = np.pad(np.asarray(p["b_fc3"], np.float32), (0, 118))[:, None]

    raw = dict(w1=W1, b1=B1, s1=_S1_NP, w2=W2, b2=B2, s2=_S2_NP,
               wf1=Wf1, bf1=Bf1, wf2=Wf2, bf2=Bf2, wf3=Wf3, bf3=Bf3)
    return {k: jnp.asarray(v) for k, v in raw.items()}


def lenet5_forward(x, pk):
    B = x.shape[0]
    assert B % TB == 0, "batch must be a multiple of TB"
    ns = B // TB
    xc = _im2col_conv1(x.astype(_F32), TB)                         # (ns,576,400)

    out = pl.pallas_call(
        _lenet_kernel,
        out_shape=jax.ShapeDtypeStruct((ns, 128, TB), _F32),
        grid=(ns,),
        in_specs=[
            pl.BlockSpec((1, N1, 25 * TB), lambda s: (s, 0, 0), memory_space=_VMEM),
            pl.BlockSpec((25 * TB, C1 * TB), lambda s: (0, 0), memory_space=_VMEM),
            pl.BlockSpec((1, C1 * TB), lambda s: (0, 0), memory_space=_VMEM),
            pl.BlockSpec((NP1, NU1), lambda s: (0, 0), memory_space=_VMEM),
            pl.BlockSpec((25 * C1 * TB, C2 * TB), lambda s: (0, 0), memory_space=_VMEM),
            pl.BlockSpec((1, C2 * TB), lambda s: (0, 0), memory_space=_VMEM),
            pl.BlockSpec((16, NU2), lambda s: (0, 0), memory_space=_VMEM),
            pl.BlockSpec((128, 256), lambda s: (0, 0), memory_space=_VMEM),
            pl.BlockSpec((128, 1), lambda s: (0, 0), memory_space=_VMEM),
            pl.BlockSpec((128, 128), lambda s: (0, 0), memory_space=_VMEM),
            pl.BlockSpec((128, 1), lambda s: (0, 0), memory_space=_VMEM),
            pl.BlockSpec((128, 128), lambda s: (0, 0), memory_space=_VMEM),
            pl.BlockSpec((128, 1), lambda s: (0, 0), memory_space=_VMEM),
        ],
        out_specs=pl.BlockSpec((1, 128, TB), lambda s: (s, 0, 0),
                               memory_space=_VMEM),
        scratch_shapes=[
            pltpu.VMEM((N1, C1 * TB), _F32),        # conv1/relu map (576,128)
            pltpu.VMEM((NP1, C1 * TB), _F32),       # pool1 output   (144,128)
            pltpu.VMEM((N2, 25 * C1 * TB), _F32),   # conv2 im2col   (92,3200)
        ],
        compiler_params=pltpu.CompilerParams(
            dimension_semantics=("parallel",),
            vmem_limit_bytes=32 * 1024 * 1024),
    )(xc, pk["w1"], pk["b1"], pk["s1"], pk["w2"], pk["b2"], pk["s2"],
      pk["wf1"], pk["bf1"], pk["wf2"], pk["bf2"], pk["wf3"], pk["bf3"])

    # (ns, 128 padded-logits, TB) -> (B, 10)
    return out.transpose(0, 2, 1).reshape(B, 128)[:, :10]


# ------------------------------ params / reference ---------------------------
def init_params(key):
    keys = jax.random.split(key, 10)

    def u(k, shape, fan_in):
        bound = 1.0 / np.sqrt(fan_in)
        return jax.random.uniform(k, shape, _F32, -bound, bound)

    return {
        "w_conv1": u(keys[0], (6, 1, 5, 5), 1 * 5 * 5),
        "b_conv1": u(keys[1], (6,), 1 * 5 * 5),
        "w_conv2": u(keys[2], (16, 6, 5, 5), 6 * 5 * 5),
        "b_conv2": u(keys[3], (16,), 6 * 5 * 5),
        # fc weights stored as (in, out) == torch weight.T
        "w_fc1": u(keys[4], (16 * 4 * 4, 120), 16 * 4 * 4),
        "b_fc1": u(keys[5], (120,), 16 * 4 * 4),
        "w_fc2": u(keys[6], (120, 84), 120),
        "b_fc2": u(keys[7], (84,), 120),
        "w_fc3": u(keys[8], (84, 10), 84),
        "b_fc3": u(keys[9], (10,), 84),
    }


def reference_forward(x, p):
    def conv(x, w, b):
        y = jax.lax.conv_general_dilated(
            x, w, (1, 1), "VALID", dimension_numbers=("NCHW", "OIHW", "NCHW"))
        return y + b.reshape(1, -1, 1, 1)

    def pool(x):
        return jax.lax.reduce_window(x, -jnp.inf, jax.lax.max,
                                     (1, 1, 2, 2), (1, 1, 2, 2), "VALID")

    h = pool(jax.nn.relu(conv(x, p["w_conv1"], p["b_conv1"])))
    h = pool(jax.nn.relu(conv(h, p["w_conv2"], p["b_conv2"])))
    h = h.reshape(h.shape[0], -1)
    h = jax.nn.relu(h @ p["w_fc1"] + p["b_fc1"])
    h = jax.nn.relu(h @ p["w_fc2"] + p["b_fc2"])
    return h @ p["w_fc3"] + p["b_fc3"]


if __name__ == "__main__":
    key = jax.random.PRNGKey(0)
    kx, kp = jax.random.split(key)
    # LeNet-5 forward implies 1x28x28 inputs (flatten == 16*4*4); batch = 2*TB
    # so the grid has 2 "parallel" steps (one per v7x TensorCore).
    B = 2 * TB
    x = jax.random.normal(kx, (B, 1, 28, 28), dtype=jnp.float32)
    params = init_params(kp)
    packed = pack_params(params)

    fwd = jax.jit(lenet5_forward)
    out = jax.block_until_ready(fwd(x, packed))

    ref = reference_forward(x, params)
    assert out.shape == (B, 10) and out.dtype == jnp.float32
    np.testing.assert_allclose(np.asarray(out), np.asarray(ref),
                               rtol=2e-3, atol=2e-3)
    print("KERNEL_OK")
</pallas_src>

<mosaic_0001>
module attributes {stable_mosaic.version = 11 : i64} {
  func.func @_lenet_kernel(%arg0: i32, %arg1: memref<1x576x400xf32, #tpu.memory_space<vmem>>, %arg2: memref<400x128xf32, #tpu.memory_space<vmem>>, %arg3: memref<1x128xf32, #tpu.memory_space<vmem>>, %arg4: memref<144x551xf32, #tpu.memory_space<vmem>>, %arg5: memref<3200x256xf32, #tpu.memory_space<vmem>>, %arg6: memref<1x256xf32, #tpu.memory_space<vmem>>, %arg7: memref<16x79xf32, #tpu.memory_space<vmem>>, %arg8: memref<128x256xf32, #tpu.memory_space<vmem>>, %arg9: memref<128x1xf32, #tpu.memory_space<vmem>>, %arg10: memref<128x128xf32, #tpu.memory_space<vmem>>, %arg11: memref<128x1xf32, #tpu.memory_space<vmem>>, %arg12: memref<128x128xf32, #tpu.memory_space<vmem>>, %arg13: memref<128x1xf32, #tpu.memory_space<vmem>>, %arg14: memref<1x128x16xf32, #tpu.memory_space<vmem>>, %arg15: memref<576x128xf32, #tpu.memory_space<vmem>>, %arg16: memref<144x128xf32, #tpu.memory_space<vmem>>, %arg17: memref<92x3200xf32, #tpu.memory_space<vmem>>) attributes {dimension_semantics = [#tpu.dimension_semantics<parallel>], iteration_bounds = array<i64: 2>, scalar_prefetch = 0 : i64, scratch_operands = 3 : i64, tpu.core_type = #tpu.core_type<tc>, window_params = [{transform_indices = @transform_0, window_bounds = array<i64: 1, 576, 400>}, {pipeline_mode = #tpu.pipeline_mode<synchronous>, transform_indices = @transform_1, window_bounds = array<i64: 400, 128>}, {pipeline_mode = #tpu.pipeline_mode<synchronous>, transform_indices = @transform_2, window_bounds = array<i64: 1, 128>}, {pipeline_mode = #tpu.pipeline_mode<synchronous>, transform_indices = @transform_3, window_bounds = array<i64: 144, 551>}, {pipeline_mode = #tpu.pipeline_mode<synchronous>, transform_indices = @transform_4, window_bounds = array<i64: 3200, 256>}, {pipeline_mode = #tpu.pipeline_mode<synchronous>, transform_indices = @transform_5, window_bounds = array<i64: 1, 256>}, {pipeline_mode = #tpu.pipeline_mode<synchronous>, transform_indices = @transform_6, window_bounds = array<i64: 16, 79>}, {pipeline_mode = #tpu.pipeline_mode<synchronous>, transform_indices = @transform_7, window_bounds = array<i64: 128, 256>}, {pipeline_mode = #tpu.pipeline_mode<synchronous>, transform_indices = @transform_8, window_bounds = array<i64: 128, 1>}, {pipeline_mode = #tpu.pipeline_mode<synchronous>, transform_indices = @transform_9, window_bounds = array<i64: 128, 128>}, {pipeline_mode = #tpu.pipeline_mode<synchronous>, transform_indices = @transform_10, window_bounds = array<i64: 128, 1>}, {pipeline_mode = #tpu.pipeline_mode<synchronous>, transform_indices = @transform_11, window_bounds = array<i64: 128, 128>}, {pipeline_mode = #tpu.pipeline_mode<synchronous>, transform_indices = @transform_12, window_bounds = array<i64: 128, 1>}, {transform_indices = @transform_13, window_bounds = array<i64: 1, 128, 16>}]} {
    %c0 = arith.constant 0 : index
    %c0_0 = arith.constant 0 : index
    %c0_1 = arith.constant 0 : index
    %0 = vector.load %arg1[%c0, %c0_0, %c0_1] : memref<1x576x400xf32, #tpu.memory_space<vmem>>, vector<1x576x400xf32>
    %1 = vector.shape_cast %0 : vector<1x576x400xf32> to vector<576x400xf32>
    %c0_2 = arith.constant 0 : index
    %c0_3 = arith.constant 0 : index
    %2 = vector.load %arg2[%c0_2, %c0_3] : memref<400x128xf32, #tpu.memory_space<vmem>>, vector<400x128xf32>
    %cst = arith.constant dense<0.000000e+00> : vector<576x128xf32>
    %3 = tpu.matmul %1, %2, %cst {dimension_numbers = #tpu.dot_dimension_numbers<[1], [0], [0], [1], [0, 0, 1, 1], [], []>} : vector<576x400xf32>, vector<400x128xf32>, vector<576x128xf32> -> vector<576x128xf32>
    %c0_4 = arith.constant 0 : index
    %c0_5 = arith.constant 0 : index
    %4 = vector.load %arg3[%c0_4, %c0_5] : memref<1x128xf32, #tpu.memory_space<vmem>>, vector<1x128xf32>
    %5 = vector.broadcast %4 : vector<1x128xf32> to vector<576x128xf32>
    %6 = arith.addf %3, %5 : vector<576x128xf32>
    %cst_6 = arith.constant 0.000000e+00 : f32
    %7 = vector.broadcast %cst_6 : f32 to vector<576x128xf32>
    %8 = arith.maximumf %6, %7 : vector<576x128xf32>
    %c0_7 = arith.constant 0 : index
    %c0_8 = arith.constant 0 : index
    %9 = vector.load %arg15[%c0_7, %c0_8] : memref<576x128xf32, #tpu.memory_space<vmem>>, vector<576x128xf32>
    tpu.vector_store %arg15[%c0_7, %c0_8], %8 {strides = array<i32>} : memref<576x128xf32, #tpu.memory_space<vmem>>, vector<576x128xf32>,
    %c0_9 = arith.constant 0 : index
    %c0_10 = arith.constant 0 : index
    %10 = vector.load %arg15[%c0_9, %c0_10] : memref<576x128xf32, #tpu.memory_space<vmem>>, vector<551x128xf32>
    %c1 = arith.constant 1 : index
    %c0_11 = arith.constant 0 : index
    %11 = vector.load %arg15[%c1, %c0_11] : memref<576x128xf32, #tpu.memory_space<vmem>>, vector<551x128xf32>
    %12 = arith.maximumf %10, %11 : vector<551x128xf32>
    %c24 = arith.constant 24 : index
    %c0_12 = arith.constant 0 : index
    %13 = vector.load %arg15[%c24, %c0_12] : memref<576x128xf32, #tpu.memory_space<vmem>>, vector<551x128xf32>
    %c25 = arith.constant 25 : index
    %c0_13 = arith.constant 0 : index
    %14 = vector.load %arg15[%c25, %c0_13] : memref<576x128xf32, #tpu.memory_space<vmem>>, vector<551x128xf32>
    %15 = arith.maximumf %13, %14 : vector<551x128xf32>
    %16 = arith.maximumf %12, %15 : vector<551x128xf32>
    %c0_14 = arith.constant 0 : index
    %c0_15 = arith.constant 0 : index
    %17 = vector.load %arg4[%c0_14, %c0_15] : memref<144x551xf32, #tpu.memory_space<vmem>>, vector<144x551xf32>
    %cst_16 = arith.constant dense<0.000000e+00> : vector<144x128xf32>
    %18 = tpu.matmul %17, %16, %cst_16 {dimension_numbers = #tpu.dot_dimension_numbers<[1], [0], [0], [1], [0, 0, 1, 1], [], []>} : vector<144x551xf32>, vector<551x128xf32>, vector<144x128xf32> -> vector<144x128xf32>
    %c0_17 = arith.constant 0 : index
    %c0_18 = arith.constant 0 : index
    %19 = vector.load %arg16[%c0_17, %c0_18] : memref<144x128xf32, #tpu.memory_space<vmem>>, vector<144x128xf32>
    tpu.vector_store %arg16[%c0_17, %c0_18], %18 {strides = array<i32>} : memref<144x128xf32, #tpu.memory_space<vmem>>, vector<144x128xf32>,
    %c0_19 = arith.constant 0 : index
    %c0_20 = arith.constant 0 : index
    %20 = vector.load %arg16[%c0_19, %c0_20] : memref<144x128xf32, #tpu.memory_space<vmem>>, vector<92x128xf32>
    %c0_21 = arith.constant 0 : index
    %c0_22 = arith.constant 0 : index
    %21 = vector.load %arg17[%c0_21, %c0_22] : memref<92x3200xf32, #tpu.memory_space<vmem>>, vector<92x128xf32>
    tpu.vector_store %arg17[%c0_21, %c0_22], %20 {strides = array<i32>} : memref<92x3200xf32, #tpu.memory_space<vmem>>, vector<92x128xf32>,
    %c1_23 = arith.constant 1 : index
    %c0_24 = arith.constant 0 : index
    %22 = vector.load %arg16[%c1_23, %c0_24] : memref<144x128xf32, #tpu.memory_space<vmem>>, vector<92x128xf32>
    %c0_25 = arith.constant 0 : index
    %c128 = arith.constant 128 : index
    %23 = vector.load %arg17[%c0_25, %c128] : memref<92x3200xf32, #tpu.memory_space<vmem>>, vector<92x128xf32>
    tpu.vector_store %arg17[%c0_25, %c128], %22 {strides = array<i32>} : memref<92x3200xf32, #tpu.memory_space<vmem>>, vector<92x128xf32>,
    %c2 = arith.constant 2 : index
    %c0_26 = arith.constant 0 : index
    %24 = vector.load %arg16[%c2, %c0_26] : memref<144x128xf32, #tpu.memory_space<vmem>>, vector<92x128xf32>
    %c0_27 = arith.constant 0 : index
    %c256 = arith.constant 256 : index
    %25 = vector.load %arg17[%c0_27, %c256] : memref<92x3200xf32, #tpu.memory_space<vmem>>, vector<92x128xf32>
    tpu.vector_store %arg17[%c0_27, %c256], %24 {strides = array<i32>} : memref<92x3200xf32, #tpu.memory_space<vmem>>, vector<92x128xf32>,
    %c3 = arith.constant 3 : index
    %c0_28 = arith.constant 0 : index
    %26 = vector.load %arg16[%c3, %c0_28] : memref<144x128xf32, #tpu.memory_space<vmem>>, vector<92x128xf32>
    %c0_29 = arith.constant 0 : index
    %c384 = arith.constant 384 : index
    %27 = vector.load %arg17[%c0_29, %c384] : memref<92x3200xf32, #tpu.memory_space<vmem>>, vector<92x128xf32>
    tpu.vector_store %arg17[%c0_29, %c384], %26 {strides = array<i32>} : memref<92x3200xf32, #tpu.memory_space<vmem>>, vector<92x128xf32>,
    %c4 = arith.constant 4 : index
    %c0_30 = arith.constant 0 : index
    %28 = vector.load %arg16[%c4, %c0_30] : memref<144x128xf32, #tpu.memory_space<vmem>>, vector<92x128xf32>
    %c0_31 = arith.constant 0 : index
    %c512 = arith.constant 512 : index
    %29 = vector.load %arg17[%c0_31, %c512] : memref<92x3200xf32, #tpu.memory_space<vmem>>, vector<92x128xf32>
    tpu.vector_store %arg17[%c0_31, %c512], %28 {strides = array<i32>} : memref<92x3200xf32, #tpu.memory_space<vmem>>, vector<92x128xf32>,
    %c12 = arith.constant 12 : index
    %c0_32 = arith.constant 0 : index
    %30 = vector.load %arg16[%c12, %c0_32] : memref<144x128xf32, #tpu.memory_space<vmem>>, vector<92x128xf32>
    %c0_33 = arith.constant 0 : index
    %c640 = arith.constant 640 : index
    %31 = vector.load %arg17[%c0_33, %c640] : memref<92x3200xf32, #tpu.memory_space<vmem>>, vector<92x128xf32>
    tpu.vector_store %arg17[%c0_33, %c640], %30 {strides = array<i32>} : memref<92x3200xf32, #tpu.memory_space<vmem>>, vector<92x128xf32>,
    %c13 = arith.constant 13 : index
    %c0_34 = arith.constant 0 : index
    %32 = vector.load %arg16[%c13, %c0_34] : memref<144x128xf32, #tpu.memory_space<vmem>>, vector<92x128xf32>
    %c0_35 = arith.constant 0 : index
    %c768 = arith.constant 768 : index
    %33 = vector.load %arg17[%c0_35, %c768] : memref<92x3200xf32, #tpu.memory_space<vmem>>, vector<92x128xf32>
    tpu.vector_store %arg17[%c0_35, %c768], %32 {strides = array<i32>} : memref<92x3200xf32, #tpu.memory_space<vmem>>, vector<92x128xf32>,
    %c14 = arith.constant 14 : index
    %c0_36 = arith.constant 0 : index
    %34 = vector.load %arg16[%c14, %c0_36] : memref<144x128xf32, #tpu.memory_space<vmem>>, vector<92x128xf32>
    %c0_37 = arith.constant 0 : index
    %c896 = arith.constant 896 : index
    %35 = vector.load %arg17[%c0_37, %c896] : memref<92x3200xf32, #tpu.memory_space<vmem>>, vector<92x128xf32>
    tpu.vector_store %arg17[%c0_37, %c896], %34 {strides = array<i32>} : memref<92x3200xf32, #tpu.memory_space<vmem>>, vector<92x128xf32>,
    %c15 = arith.constant 15 : index
    %c0_38 = arith.constant 0 : index
    %36 = vector.load %arg16[%c15, %c0_38] : memref<144x128xf32, #tpu.memory_space<vmem>>, vector<92x128xf32>
    %c0_39 = arith.constant 0 : index
    %c1024 = arith.constant 1024 : index
    %37 = vector.load %arg17[%c0_39, %c1024] : memref<92x3200xf32, #tpu.memory_space<vmem>>, vector<92x128xf32>
    tpu.vector_store %arg17[%c0_39, %c1024], %36 {strides = array<i32>} : memref<92x3200xf32, #tpu.memory_space<vmem>>, vector<92x128xf32>,
    %c16 = arith.constant 16 : index
    %c0_40 = arith.constant 0 : index
    %38 = vector.load %arg16[%c16, %c0_40] : memref<144x128xf32, #tpu.memory_space<vmem>>, vector<92x128xf32>
    %c0_41 = arith.constant 0 : index
    %c1152 = arith.constant 1152 : index
    %39 = vector.load %arg17[%c0_41, %c1152] : memref<92x3200xf32, #tpu.memory_space<vmem>>, vector<92x128xf32>
    tpu.vector_store %arg17[%c0_41, %c1152], %38 {strides = array<i32>} : memref<92x3200xf32, #tpu.memory_space<vmem>>, vector<92x128xf32>,
    %c24_42 = arith.constant 24 : index
    %c0_43 = arith.constant 0 : index
    %40 = vector.load %arg16[%c24_42, %c0_43] : memref<144x128xf32, #tpu.memory_space<vmem>>, vector<92x128xf32>
    %c0_44 = arith.constant 0 : index
    %c1280 = arith.constant 1280 : index
    %41 = vector.load %arg17[%c0_44, %c1280] : memref<92x3200xf32, #tpu.memory_space<vmem>>, vector<92x128xf32>
    tpu.vector_store %arg17[%c0_44, %c1280], %40 {strides = array<i32>} : memref<92x3200xf32, #tpu.memory_space<vmem>>, vector<92x128xf32>,
    %c25_45 = arith.constant 25 : index
    %c0_46 = arith.constant 0 : index
    %42 = vector.load %arg16[%c25_45, %c0_46] : memref<144x128xf32, #tpu.memory_space<vmem>>, vector<92x128xf32>
    %c0_47 = arith.constant 0 : index
    %c1408 = arith.constant 1408 : index
    %43 = vector.load %arg17[%c0_47, %c1408] : memref<92x3200xf32, #tpu.memory_space<vmem>>, vector<92x128xf32>
    tpu.vector_store %arg17[%c0_47, %c1408], %42 {strides = array<i32>} : memref<92x3200xf32, #tpu.memory_space<vmem>>, vector<92x128xf32>,
    %c26 = arith.constant 26 : index
    %c0_48 = arith.constant 0 : index
    %44 = vector.load %arg16[%c26, %c0_48] : memref<144x128xf32, #tpu.memory_space<vmem>>, vector<92x128xf32>
    %c0_49 = arith.constant 0 : index
    %c1536 = arith.constant 1536 : index
    %45 = vector.load %arg17[%c0_49, %c1536] : memref<92x3200xf32, #tpu.memory_space<vmem>>, vector<92x128xf32>
    tpu.vector_store %arg17[%c0_49, %c1536], %44 {strides = array<i32>} : memref<92x3200xf32, #tpu.memory_space<vmem>>, vector<92x128xf32>,
    %c27 = arith.constant 27 : index
    %c0_50 = arith.constant 0 : index
    %46 = vector.load %arg16[%c27, %c0_50] : memref<144x128xf32, #tpu.memory_space<vmem>>, vector<92x128xf32>
    %c0_51 = arith.constant 0 : index
    %c1664 = arith.constant 1664 : index
    %47 = vector.load %arg17[%c0_51, %c1664] : memref<92x3200xf32, #tpu.memory_space<vmem>>, vector<92x128xf32>
    tpu.vector_store %arg17[%c0_51, %c1664], %46 {strides = array<i32>} : memref<92x3200xf32, #tpu.memory_space<vmem>>, vector<92x128xf32>,
    %c28 = arith.constant 28 : index
    %c0_52 = arith.constant 0 : index
    %48 = vector.load %arg16[%c28, %c0_52] : memref<144x128xf32, #tpu.memory_space<vmem>>, vector<92x128xf32>
    %c0_53 = arith.constant 0 : index
    %c1792 = arith.constant 1792 : index
    %49 = vector.load %arg17[%c0_53, %c1792] : memref<92x3200xf32, #tpu.memory_space<vmem>>, vector<92x128xf32>
    tpu.vector_store %arg17[%c0_53, %c1792], %48 {strides = array<i32>} : memref<92x3200xf32, #tpu.memory_space<vmem>>, vector<92x128xf32>,
    %c36 = arith.constant 36 : index
    %c0_54 = arith.constant 0 : index
    %50 = vector.load %arg16[%c36, %c0_54] : memref<144x128xf32, #tpu.memory_space<vmem>>, vector<92x128xf32>
    %c0_55 = arith.constant 0 : index
    %c1920 = arith.constant 1920 : index
    %51 = vector.load %arg17[%c0_55, %c1920] : memref<92x3200xf32, #tpu.memory_space<vmem>>, vector<92x128xf32>
    tpu.vector_store %arg17[%c0_55, %c1920], %50 {strides = array<i32>} : memref<92x3200xf32, #tpu.memory_space<vmem>>, vector<92x128xf32>,
    %c37 = arith.constant 37 : index
    %c0_56 = arith.constant 0 : index
    %52 = vector.load %arg16[%c37, %c0_56] : memref<144x128xf32, #tpu.memory_space<vmem>>, vector<92x128xf32>
    %c0_57 = arith.constant 0 : index
    %c2048 = arith.constant 2048 : index
    %53 = vector.load %arg17[%c0_57, %c2048] : memref<92x3200xf32, #tpu.memory_space<vmem>>, vector<92x128xf32>
    tpu.vector_store %arg17[%c0_57, %c2048], %52 {strides = array<i32>} : memref<92x3200xf32, #tpu.memory_space<vmem>>, vector<92x128xf32>,
    %c38 = arith.constant 38 : index
    %c0_58 = arith.constant 0 : index
    %54 = vector.load %arg16[%c38, %c0_58] : memref<144x128xf32, #tpu.memory_space<vmem>>, vector<92x128xf32>
    %c0_59 = arith.constant 0 : index
    %c2176 = arith.constant 2176 : index
    %55 = vector.load %arg17[%c0_59, %c2176] : memref<92x3200xf32, #tpu.memory_space<vmem>>, vector<92x128xf32>
    tpu.vector_store %arg17[%c0_59, %c2176], %54 {strides = array<i32>} : memref<92x3200xf32, #tpu.memory_space<vmem>>, vector<92x128xf32>,
    %c39 = arith.constant 39 : index
    %c0_60 = arith.constant 0 : index
    %56 = vector.load %arg16[%c39, %c0_60] : memref<144x128xf32, #tpu.memory_space<vmem>>, vector<92x128xf32>
    %c0_61 = arith.constant 0 : index
    %c2304 = arith.constant 2304 : index
    %57 = vector.load %arg17[%c0_61, %c2304] : memref<92x3200xf32, #tpu.memory_space<vmem>>, vector<92x128xf32>
    tpu.vector_store %arg17[%c0_61, %c2304], %56 {strides = array<i32>} : memref<92x3200xf32, #tpu.memory_space<vmem>>, vector<92x128xf32>,
    %c40 = arith.constant 40 : index
    %c0_62 = arith.constant 0 : index
    %58 = vector.load %arg16[%c40, %c0_62] : memref<144x128xf32, #tpu.memory_space<vmem>>, vector<92x128xf32>
    %c0_63 = arith.constant 0 : index
    %c2432 = arith.constant 2432 : index
    %59 = vector.load %arg17[%c0_63, %c2432] : memref<92x3200xf32, #tpu.memory_space<vmem>>, vector<92x128xf32>
    tpu.vector_store %arg17[%c0_63, %c2432], %58 {strides = array<i32>} : memref<92x3200xf32, #tpu.memory_space<vmem>>, vector<92x128xf32>,
    %c48 = arith.constant 48 : index
    %c0_64 = arith.constant 0 : index
    %60 = vector.load %arg16[%c48, %c0_64] : memref<144x128xf32, #tpu.memory_space<vmem>>, vector<92x128xf32>
    %c0_65 = arith.constant 0 : index
    %c2560 = arith.constant 2560 : index
    %61 = vector.load %arg17[%c0_65, %c2560] : memref<92x3200xf32, #tpu.memory_space<vmem>>, vector<92x128xf32>
    tpu.vector_store %arg17[%c0_65, %c2560], %60 {strides = array<i32>} : memref<92x3200xf32, #tpu.memory_space<vmem>>, vector<92x128xf32>,
    %c49 = arith.constant 49 : index
    %c0_66 = arith.constant 0 : index
    %62 = vector.load %arg16[%c49, %c0_66] : memref<144x128xf32, #tpu.memory_space<vmem>>, vector<92x128xf32>
    %c0_67 = arith.constant 0 : index
    %c2688 = arith.constant 2688 : index
    %63 = vector.load %arg17[%c0_67, %c2688] : memref<92x3200xf32, #tpu.memory_space<vmem>>, vector<92x128xf32>
    tpu.vector_store %arg17[%c0_67, %c2688], %62 {strides = array<i32>} : memref<92x3200xf32, #tpu.memory_space<vmem>>, vector<92x128xf32>,
    %c50 = arith.constant 50 : index
    %c0_68 = arith.constant 0 : index
    %64 = vector.load %arg16[%c50, %c0_68] : memref<144x128xf32, #tpu.memory_space<vmem>>, vector<92x128xf32>
    %c0_69 = arith.constant 0 : index
    %c2816 = arith.constant 2816 : index
    %65 = vector.load %arg17[%c0_69, %c2816] : memref<92x3200xf32, #tpu.memory_space<vmem>>, vector<92x128xf32>
    tpu.vector_store %arg17[%c0_69, %c2816], %64 {strides = array<i32>} : memref<92x3200xf32, #tpu.memory_space<vmem>>, vector<92x128xf32>,
    %c51 = arith.constant 51 : index
    %c0_70 = arith.constant 0 : index
    %66 = vector.load %arg16[%c51, %c0_70] : memref<144x128xf32, #tpu.memory_space<vmem>>, vector<92x128xf32>
    %c0_71 = arith.constant 0 : index
    %c2944 = arith.constant 2944 : index
    %67 = vector.load %arg17[%c0_71, %c2944] : memref<92x3200xf32, #tpu.memory_space<vmem>>, vector<92x128xf32>
    tpu.vector_store %arg17[%c0_71, %c2944], %66 {strides = array<i32>} : memref<92x3200xf32, #tpu.memory_space<vmem>>, vector<92x128xf32>,
    %c52 = arith.constant 52 : index
    %c0_72 = arith.constant 0 : index
    %68 = vector.load %arg16[%c52, %c0_72] : memref<144x128xf32, #tpu.memory_space<vmem>>, vector<92x128xf32>
    %c0_73 = arith.constant 0 : index
    %c3072 = arith.constant 3072 : index
    %69 = vector.load %arg17[%c0_73, %c3072] : memref<92x3200xf32, #tpu.memory_space<vmem>>, vector<92x128xf32>
    tpu.vector_store %arg17[%c0_73, %c3072], %68 {strides = array<i32>} : memref<92x3200xf32, #tpu.memory_space<vmem>>, vector<92x128xf32>,
    %c0_74 = arith.constant 0 : index
    %c0_75 = arith.constant 0 : index
    %70 = vector.load %arg17[%c0_74, %c0_75] : memref<92x3200xf32, #tpu.memory_space<vmem>>, vector<92x3200xf32>
    %c0_76 = arith.constant 0 : index
    %c0_77 = arith.constant 0 : index
    %71 = vector.load %arg5[%c0_76, %c0_77] : memref<3200x256xf32, #tpu.memory_space<vmem>>, vector<3200x256xf32>
    %cst_78 = arith.constant dense<0.000000e+00> : vector<92x256xf32>
    %72 = tpu.matmul %70, %71, %cst_78 {dimension_numbers = #tpu.dot_dimension_numbers<[1], [0], [0], [1], [0, 0, 1, 1], [], []>} : vector<92x3200xf32>, vector<3200x256xf32>, vector<92x256xf32> -> vector<92x256xf32>
    %c0_79 = arith.constant 0 : index
    %c0_80 = arith.constant 0 : index
    %73 = vector.load %arg6[%c0_79, %c0_80] : memref<1x256xf32, #tpu.memory_space<vmem>>, vector<1x256xf32>
    %74 = vector.broadcast %73 : vector<1x256xf32> to vector<92x256xf32>
    %75 = arith.addf %72, %74 : vector<92x256xf32>
    %cst_81 = arith.constant 0.000000e+00 : f32
    %76 = vector.broadcast %cst_81 : f32 to vector<92x256xf32>
    %77 = arith.maximumf %75, %76 : vector<92x256xf32>
    %78 = vector.extract_strided_slice %77 {offsets = [0, 0], sizes = [79, 256], strides = [1, 1]} : vector<92x256xf32> to vector<79x256xf32>
    %79 = vector.extract_strided_slice %77 {offsets = [1, 0], sizes = [79, 256], strides = [1, 1]} : vector<92x256xf32> to vector<79x256xf32>
    %80 = arith.maximumf %78, %79 : vector<79x256xf32>
    %81 = vector.extract_strided_slice %77 {offsets = [12, 0], sizes = [79, 256], strides = [1, 1]} : vector<92x256xf32> to vector<79x256xf32>
    %82 = vector.extract_strided_slice %77 {offsets = [13, 0], sizes = [79, 256], strides = [1, 1]} : vector<92x256xf32> to vector<79x256xf32>
    %83 = arith.maximumf %81, %82 : vector<79x256xf32>
    %84 = arith.maximumf %80, %83 : vector<79x256xf32>
    %c0_82 = arith.constant 0 : index
    %c0_83 = arith.constant 0 : index
    %85 = vector.load %arg7[%c0_82, %c0_83] : memref<16x79xf32, #tpu.memory_space<vmem>>, vector<16x79xf32>
    %cst_84 = arith.constant dense<0.000000e+00> : vector<16x256xf32>
    %86 = tpu.matmul %85, %84, %cst_84 {dimension_numbers = #tpu.dot_dimension_numbers<[1], [0], [0], [1], [0, 0, 1, 1], [], []>} : vector<16x79xf32>, vector<79x256xf32>, vector<16x256xf32> -> vector<16x256xf32>
    %87 = vector.extract_strided_slice %86 {offsets = [0, 0], sizes = [16, 16], strides = [1, 1]} : vector<16x256xf32> to vector<16x16xf32>
    %88 = vector.extract_strided_slice %86 {offsets = [0, 16], sizes = [16, 16], strides = [1, 1]} : vector<16x256xf32> to vector<16x16xf32>
    %89 = vector.extract_strided_slice %86 {offsets = [0, 32], sizes = [16, 16], strides = [1, 1]} : vector<16x256xf32> to vector<16x16xf32>
    %90 = vector.extract_strided_slice %86 {offsets = [0, 48], sizes = [16, 16], strides = [1, 1]} : vector<16x256xf32> to vector<16x16xf32>
    %91 = vector.extract_strided_slice %86 {offsets = [0, 64], sizes = [16, 16], strides = [1, 1]} : vector<16x256xf32> to vector<16x16xf32>
    %92 = vector.extract_strided_slice %86 {offsets = [0, 80], sizes = [16, 16], strides = [1, 1]} : vector<16x256xf32> to vector<16x16xf32>
    %93 = vector.extract_strided_slice %86 {offsets = [0, 96], sizes = [16, 16], strides = [1, 1]} : vector<16x256xf32> to vector<16x16xf32>
    %94 = vector.extract_strided_slice %86 {offsets = [0, 112], sizes = [16, 16], strides = [1, 1]} : vector<16x256xf32> to vector<16x16xf32>
    %95 = vector.extract_strided_slice %86 {offsets = [0, 128], sizes = [16, 16], strides = [1, 1]} : vector<16x256xf32> to vector<16x16xf32>
    %96 = vector.extract_strided_slice %86 {offsets = [0, 144], sizes = [16, 16], strides = [1, 1]} : vector<16x256xf32> to vector<16x16xf32>
    %97 = vector.extract_strided_slice %86 {offsets = [0, 160], sizes = [16, 16], strides = [1, 1]} : vector<16x256xf32> to vector<16x16xf32>
    %98 = vector.extract_strided_slice %86 {offsets = [0, 176], sizes = [16, 16], strides = [1, 1]} : vector<16x256xf32> to vector<16x16xf32>
    %99 = vector.extract_strided_slice %86 {offsets = [0, 192], sizes = [16, 16], strides = [1, 1]} : vector<16x256xf32> to vector<16x16xf32>
    %100 = vector.extract_strided_slice %86 {offsets = [0, 208], sizes = [16, 16], strides = [1, 1]} : vector<16x256xf32> to vector<16x16xf32>
    %101 = vector.extract_strided_slice %86 {offsets = [0, 224], sizes = [16, 16], strides = [1, 1]} : vector<16x256xf32> to vector<16x16xf32>
    %102 = vector.extract_strided_slice %86 {offsets = [0, 240], sizes = [16, 16], strides = [1, 1]} : vector<16x256xf32> to vector<16x16xf32>
    %103 = tpu.concatenate %87, %88, %89, %90, %91, %92, %93, %94, %95, %96, %97, %98, %99, %100, %101, %102 in 0 : vector<16x16xf32>, vector<16x16xf32>, vector<16x16xf32>, vector<16x16xf32>, vector<16x16xf32>, vector<16x16xf32>, vector<16x16xf32>, vector<16x16xf32>, vector<16x16xf32>, vector<16x16xf32>, vector<16x16xf32>, vector<16x16xf32>, vector<16x16xf32>, vector<16x16xf32>, vector<16x16xf32>, vector<16x16xf32> -> vector<256x16xf32>
    %c0_85 = arith.constant 0 : index
    %c0_86 = arith.constant 0 : index
    %104 = vector.load %arg8[%c0_85, %c0_86] : memref<128x256xf32, #tpu.memory_space<vmem>>, vector<128x256xf32>
    %cst_87 = arith.constant dense<0.000000e+00> : vector<128x16xf32>
    %105 = tpu.matmul %104, %103, %cst_87 {dimension_numbers = #tpu.dot_dimension_numbers<[1], [0], [0], [1], [0, 0, 1, 1], [], []>} : vector<128x256xf32>, vector<256x16xf32>, vector<128x16xf32> -> vector<128x16xf32>
    %c0_88 = arith.constant 0 : index
    %c0_89 = arith.constant 0 : index
    %106 = vector.load %arg9[%c0_88, %c0_89] : memref<128x1xf32, #tpu.memory_space<vmem>>, vector<128x1xf32>
    %107 = vector.broadcast %106 : vector<128x1xf32> to vector<128x16xf32>
    %108 = arith.addf %105, %107 : vector<128x16xf32>
    %cst_90 = arith.constant 0.000000e+00 : f32
    %109 = vector.broadcast %cst_90 : f32 to vector<128x16xf32>
    %110 = arith.maximumf %108, %109 : vector<128x16xf32>
    %c0_91 = arith.constant 0 : index
    %c0_92 = arith.constant 0 : index
    %111 = vector.load %arg10[%c0_91, %c0_92] : memref<128x128xf32, #tpu.memory_space<vmem>>, vector<128x128xf32>
    %cst_93 = arith.constant dense<0.000000e+00> : vector<128x16xf32>
    %112 = tpu.matmul %111, %110, %cst_93 {dimension_numbers = #tpu.dot_dimension_numbers<[1], [0], [0], [1], [0, 0, 1, 1], [], []>} : vector<128x128xf32>, vector<128x16xf32>, vector<128x16xf32> -> vector<128x16xf32>
    %c0_94 = arith.constant 0 : index
    %c0_95 = arith.constant 0 : index
    %113 = vector.load %arg11[%c0_94, %c0_95] : memref<128x1xf32, #tpu.memory_space<vmem>>, vector<128x1xf32>
    %114 = vector.broadcast %113 : vector<128x1xf32> to vector<128x16xf32>
    %115 = arith.addf %112, %114 : vector<128x16xf32>
    %cst_96 = arith.constant 0.000000e+00 : f32
    %116 = vector.broadcast %cst_96 : f32 to vector<128x16xf32>
    %117 = arith.maximumf %115, %116 : vector<128x16xf32>
    %c0_97 = arith.constant 0 : index
    %c0_98 = arith.constant 0 : index
    %118 = vector.load %arg12[%c0_97, %c0_98] : memref<128x128xf32, #tpu.memory_space<vmem>>, vector<128x128xf32>
    %cst_99 = arith.constant dense<0.000000e+00> : vector<128x16xf32>
    %119 = tpu.matmul %118, %117, %cst_99 {dimension_numbers = #tpu.dot_dimension_numbers<[1], [0], [0], [1], [0, 0, 1, 1], [], []>} : vector<128x128xf32>, vector<128x16xf32>, vector<128x16xf32> -> vector<128x16xf32>
    %c0_100 = arith.constant 0 : index
    %c0_101 = arith.constant 0 : index
    %120 = vector.load %arg13[%c0_100, %c0_101] : memref<128x1xf32, #tpu.memory_space<vmem>>, vector<128x1xf32>
    %121 = vector.broadcast %120 : vector<128x1xf32> to vector<128x16xf32>
    %122 = arith.addf %119, %121 : vector<128x16xf32>
    %c0_102 = arith.constant 0 : index
    %c0_103 = arith.constant 0 : index
    %c0_104 = arith.constant 0 : index
    %123 = vector.load %arg14[%c0_102, %c0_103, %c0_104] : memref<1x128x16xf32, #tpu.memory_space<vmem>>, vector<1x128x16xf32>
    %124 = vector.shape_cast %123 : vector<1x128x16xf32> to vector<128x16xf32>
    %125 = vector.shape_cast %122 : vector<128x16xf32> to vector<1x128x16xf32>
    tpu.vector_store %arg14[%c0_102, %c0_103, %c0_104], %125 {strides = array<i32>} : memref<1x128x16xf32, #tpu.memory_space<vmem>>, vector<1x128x16xf32>,
    return
  }
  func.func @transform_0(%arg0: i32) -> (i32, i32, i32) {
    %c0_i32 = arith.constant 0 : i32
    %c0_i32_0 = arith.constant 0 : i32
    %c0_i32_1 = arith.constant 0 : i32
    return %arg0, %c0_i32, %c0_i32_0 : i32, i32, i32
  }
  func.func @transform_1(%arg0: i32) -> (i32, i32) {
    %c0_i32 = arith.constant 0 : i32
    %c0_i32_0 = arith.constant 0 : i32
    %c0_i32_1 = arith.constant 0 : i32
    return %c0_i32, %c0_i32_0 : i32, i32
  }
  func.func @transform_2(%arg0: i32) -> (i32, i32) {
    %c0_i32 = arith.constant 0 : i32
    %c0_i32_0 = arith.constant 0 : i32
    %c0_i32_1 = arith.constant 0 : i32
    return %c0_i32, %c0_i32_0 : i32, i32
  }
  func.func @transform_3(%arg0: i32) -> (i32, i32) {
    %c0_i32 = arith.constant 0 : i32
    %c0_i32_0 = arith.constant 0 : i32
    %c0_i32_1 = arith.constant 0 : i32
    return %c0_i32, %c0_i32_0 : i32, i32
  }
  func.func @transform_4(%arg0: i32) -> (i32, i32) {
    %c0_i32 = arith.constant 0 : i32
    %c0_i32_0 = arith.constant 0 : i32
    %c0_i32_1 = arith.constant 0 : i32
    return %c0_i32, %c0_i32_0 : i32, i32
  }
  func.func @transform_5(%arg0: i32) -> (i32, i32) {
    %c0_i32 = arith.constant 0 : i32
    %c0_i32_0 = arith.constant 0 : i32
    %c0_i32_1 = arith.constant 0 : i32
    return %c0_i32, %c0_i32_0 : i32, i32
  }
  func.func @transform_6(%arg0: i32) -> (i32, i32) {
    %c0_i32 = arith.constant 0 : i32
    %c0_i32_0 = arith.constant 0 : i32
    %c0_i32_1 = arith.constant 0 : i32
    return %c0_i32, %c0_i32_0 : i32, i32
  }
  func.func @transform_7(%arg0: i32) -> (i32, i32) {
    %c0_i32 = arith.constant 0 : i32
    %c0_i32_0 = arith.constant 0 : i32
    %c0_i32_1 = arith.constant 0 : i32
    return %c0_i32, %c0_i32_0 : i32, i32
  }
  func.func @transform_8(%arg0: i32) -> (i32, i32) {
    %c0_i32 = arith.constant 0 : i32
    %c0_i32_0 = arith.constant 0 : i32
    %c0_i32_1 = arith.constant 0 : i32
    return %c0_i32, %c0_i32_0 : i32, i32
  }
  func.func @transform_9(%arg0: i32) -> (i32, i32) {
    %c0_i32 = arith.constant 0 : i32
    %c0_i32_0 = arith.constant 0 : i32
    %c0_i32_1 = arith.constant 0 : i32
    return %c0_i32, %c0_i32_0 : i32, i32
  }
  func.func @transform_10(%arg0: i32) -> (i32, i32) {
    %c0_i32 = arith.constant 0 : i32
    %c0_i32_0 = arith.constant 0 : i32
    %c0_i32_1 = arith.constant 0 : i32
    return %c0_i32, %c0_i32_0 : i32, i32
  }
  func.func @transform_11(%arg0: i32) -> (i32, i32) {
    %c0_i32 = arith.constant 0 : i32
    %c0_i32_0 = arith.constant 0 : i32
    %c0_i32_1 = arith.constant 0 : i32
    return %c0_i32, %c0_i32_0 : i32, i32
  }
  func.func @transform_12(%arg0: i32) -> (i32, i32) {
    %c0_i32 = arith.constant 0 : i32
    %c0_i32_0 = arith.constant 0 : i32
    %c0_i32_1 = arith.constant 0 : i32
    return %c0_i32, %c0_i32_0 : i32, i32
  }
  func.func @transform_13(%arg0: i32) -> (i32, i32, i32) {
    %c0_i32 = arith.constant 0 : i32
    %c0_i32_0 = arith.constant 0 : i32
    %c0_i32_1 = arith.constant 0 : i32
    return %arg0, %c0_i32, %c0_i32_0 : i32, i32, i32
  }
}

</mosaic_0001>

<llo_original>
// kernel: lenet5_forward.1
$region0: #{lenet5_forward.1}
  #allocation0 [shape = 'u32[]', space=smem, size = 0x4, offset = 0x4, fixed_abs, tag = 'smem constant byte address 0x4 - core index']
  #allocation1 [shape = 'u32[144,128]{1,0:T(1,128)}', space=vmem, size = 0x12000, scoped, tag = 'internal scratch']
  #allocation2 [shape = 'f32[576,128]{1,0:T(8,128)}', space=vmem, size = 0x48000, scoped, tag = 'scratch operand']
  #allocation3 [shape = 'f32[144,128]{1,0:T(8,128)}', space=vmem, size = 0x12000, scoped, tag = 'scratch operand']
  #allocation4 [shape = 'f32[92,3200]{1,0:T(8,128)}', space=vmem, size = 0x12c000, scoped, tag = 'scratch operand']
  %s0 = inlined_call_operand.vmem [shape: f32[2,576,400], index: 0, kind: input, shape index: {}]
  %s1 = inlined_call_operand.vmem [shape: f32[400,128], index: 1, kind: input, shape index: {}]
  %s2 = inlined_call_operand.vmem [shape: f32[1,128], index: 2, kind: input, shape index: {}]
  %s3 = inlined_call_operand.vmem [shape: f32[144,551], index: 3, kind: input, shape index: {}]
  %s4 = inlined_call_operand.vmem [shape: f32[3200,256], index: 4, kind: input, shape index: {}]
  %s5 = inlined_call_operand.vmem [shape: f32[1,256], index: 5, kind: input, shape index: {}]
  %s6 = inlined_call_operand.vmem [shape: f32[16,79], index: 6, kind: input, shape index: {}]
  %s7 = inlined_call_operand.vmem [shape: f32[128,256], index: 7, kind: input, shape index: {}]
  %s8 = inlined_call_operand.vmem [shape: f32[128,1], index: 8, kind: input, shape index: {}]
  %s9 = inlined_call_operand.vmem [shape: f32[128,128], index: 9, kind: input, shape index: {}]
  %s10 = inlined_call_operand.vmem [shape: f32[128,1], index: 10, kind: input, shape index: {}]
  %s11 = inlined_call_operand.vmem [shape: f32[128,128], index: 11, kind: input, shape index: {}]
  %s12 = inlined_call_operand.vmem [shape: f32[128,1], index: 12, kind: input, shape index: {}]
  %s13 = inlined_call_operand.vmem [shape: f32[2,128,16], index: 13, kind: output, shape index: {}]
  %s14 = sld [smem:[#allocation0]]
  $region85: #{lenet5_forward.1} parent=0
    _
  %s16 = ssub.s32 1, %s14
  %s17 = scalar_select 0, %s16, %s14
  loop: start=0, step=1, limit=4
  $region2: #{lenet5_forward.1} parent=0 // loop_pre_header
    _
  $region3: #{lenet5_forward.1} parent=0 // loop_header
    %s19 = sphi 0, %s23
    %p20 = scmp.ge.s32.totalorder %s19, 4
    %s29 = sphi 0, %s31
    %s32 = sphi 0, %s29
    %s33 = sphi 0, %s32
    %s49 = sphi 0, %s33
    %s53 = sphi 0, %s53
    %s55 = sphi 0, %s53
    %s56 = sphi 0, %s55
    %s70 = sphi 0, %s56
    %s74 = sphi 0, %s74
    %s76 = sphi 0, %s74
    %s77 = sphi 0, %s76
    %s91 = sphi 0, %s77
    %s95 = sphi 0, %s95
    %s97 = sphi 0, %s95
    %s98 = sphi 0, %s97
    %s112 = sphi 0, %s98
    %s116 = sphi 0, %s116
    %s118 = sphi 0, %s116
    %s119 = sphi 0, %s118
    %s133 = sphi 0, %s119
    %s137 = sphi 0, %s137
    %s139 = sphi 0, %s137
    %s140 = sphi 0, %s139
    %s154 = sphi 0, %s140
    %s158 = sphi 0, %s158
    %s160 = sphi 0, %s158
    %s161 = sphi 0, %s160
    %s175 = sphi 0, %s161
    %s179 = sphi 0, %s179
    %s181 = sphi 0, %s179
    %s182 = sphi 0, %s181
    %s196 = sphi 0, %s182
    %s200 = sphi 0, %s200
    %s202 = sphi 0, %s200
    %s203 = sphi 0, %s202
    %s217 = sphi 0, %s203
    %s221 = sphi 0, %s221
    %s223 = sphi 0, %s221
    %s224 = sphi 0, %s223
    %s238 = sphi 0, %s224
    %s242 = sphi 0, %s242
    %s244 = sphi 0, %s242
    %s245 = sphi 0, %s244
    %s259 = sphi 0, %s245
    %s263 = sphi 0, %s263
    %s265 = sphi 0, %s263
    %s266 = sphi 0, %s265
    %s280 = sphi 0, %s266
    %s284 = sphi 0, %s284
    %s286 = sphi 0, %s284
    %s287 = sphi 0, %s286
    %s301 = sphi 0, %s287
    %s307 = sphi 0, %s309
    %s310 = sphi 0, %s307
    %s311 = sphi 0, %s310
    %s327 = sphi 0, %s311
  $region4: #{lenet5_forward.1} parent=0 // loop_header_branch
    %22 = sbr.rel (%p20) target = $region8
  $region5: #{lenet5_forward.1} parent=0 // loop_body
    %s24 = ssub.s32 %s19, 1
    %s25 = ssub.s32 %s19, 2
    %s26 = sadd.s32 %s19, 1
    %s27 = ssub.s32 %s19, %s26
    %p28 = scmp.eq.s32.totalorder %s27, 0
    %s30 = sadd.s32 %s29, 1
    %s31 = scalar_select %p28, %s29, %s30
    %p34 = pneg %p28
    %p35 = scmp.eq.s32.totalorder %s19, 1
    %p36 = por %p34, %p35
    %p37 = scmp.ne.s32.totalorder %s29, %s32
    %p38 = scmp.eq.s32.totalorder %s19, 0
    %p39 = por %p37, %p38
    %p40 = scmp.ne.s32.totalorder %s29, %s32
    %p41 = scmp.eq.s32.totalorder %s24, 1
    %p42 = por %p40, %p41
    %p43 = scmp.ne.s32.totalorder %s32, %s33
    %p44 = scmp.eq.s32.totalorder %s24, 0
    %p45 = por %p43, %p44
    %p46 = scmp.ne.s32.totalorder %s32, %s33
    %p47 = scmp.eq.s32.totalorder %s25, 1
    %p48 = por %p46, %p47
    %p50 = scmp.ne.s32.totalorder %s33, %s49
    %p51 = scmp.eq.s32.totalorder %s25, 0
    %p52 = por %p50, %p51
    %s54 = sadd.s32 %s53, 1
    %p57 = scmp.eq.s32.totalorder %s19, 1
    %p58 = scmp.ne.s32.totalorder %s53, %s55
    %p59 = scmp.eq.s32.totalorder %s19, 0
    %p60 = por %p58, %p59
    %p61 = scmp.ne.s32.totalorder %s53, %s55
    %p62 = scmp.eq.s32.totalorder %s24, 1
    %p63 = por %p61, %p62
    %p64 = scmp.ne.s32.totalorder %s55, %s56
    %p65 = scmp.eq.s32.totalorder %s24, 0
    %p66 = por %p64, %p65
    %p67 = scmp.ne.s32.totalorder %s55, %s56
    %p68 = scmp.eq.s32.totalorder %s25, 1
    %p69 = por %p67, %p68
    %p71 = scmp.ne.s32.totalorder %s56, %s70
    %p72 = scmp.eq.s32.totalorder %s25, 0
    %p73 = por %p71, %p72
    %s75 = sadd.s32 %s74, 1
    %p78 = scmp.eq.s32.totalorder %s19, 1
    %p79 = scmp.ne.s32.totalorder %s74, %s76
    %p80 = scmp.eq.s32.totalorder %s19, 0
    %p81 = por %p79, %p80
    %p82 = scmp.ne.s32.totalorder %s74, %s76
    %p83 = scmp.eq.s32.totalorder %s24, 1
    %p84 = por %p82, %p83
    %p85 = scmp.ne.s32.totalorder %s76, %s77
    %p86 = scmp.eq.s32.totalorder %s24, 0
    %p87 = por %p85, %p86
    %p88 = scmp.ne.s32.totalorder %s76, %s77
    %p89 = scmp.eq.s32.totalorder %s25, 1
    %p90 = por %p88, %p89
    %p92 = scmp.ne.s32.totalorder %s77, %s91
    %p93 = scmp.eq.s32.totalorder %s25, 0
    %p94 = por %p92, %p93
    %s96 = sadd.s32 %s95, 1
    %p99 = scmp.eq.s32.totalorder %s19, 1
    %p100 = scmp.ne.s32.totalorder %s95, %s97
    %p101 = scmp.eq.s32.totalorder %s19, 0
    %p102 = por %p100, %p101
    %p103 = scmp.ne.s32.totalorder %s95, %s97
    %p104 = scmp.eq.s32.totalorder %s24, 1
    %p105 = por %p103, %p104
    %p106 = scmp.ne.s32.totalorder %s97, %s98
    %p107 = scmp.eq.s32.totalorder %s24, 0
    %p108 = por %p106, %p107
    %p109 = scmp.ne.s32.totalorder %s97, %s98
    %p110 = scmp.eq.s32.totalorder %s25, 1
    %p111 = por %p109, %p110
    %p113 = scmp.ne.s32.totalorder %s98, %s112
    %p114 = scmp.eq.s32.totalorder %s25, 0
    %p115 = por %p113, %p114
    %s117 = sadd.s32 %s116, 1
    %p120 = scmp.eq.s32.totalorder %s19, 1
    %p121 = scmp.ne.s32.totalorder %s116, %s118
    %p122 = scmp.eq.s32.totalorder %s19, 0
    %p123 = por %p121, %p122
    %p124 = scmp.ne.s32.totalorder %s116, %s118
    %p125 = scmp.eq.s32.totalorder %s24, 1
    %p126 = por %p124, %p125
    %p127 = scmp.ne.s32.totalorder %s118, %s119
    %p128 = scmp.eq.s32.totalorder %s24, 0
    %p129 = por %p127, %p128
    %p130 = scmp.ne.s32.totalorder %s118, %s119
    %p131 = scmp.eq.s32.totalorder %s25, 1
    %p132 = por %p130, %p131
    %p134 = scmp.ne.s32.totalorder %s119, %s133
    %p135 = scmp.eq.s32.totalorder %s25, 0
    %p136 = por %p134, %p135
    %s138 = sadd.s32 %s137, 1
    %p141 = scmp.eq.s32.totalorder %s19, 1
    %p142 = scmp.ne.s32.totalorder %s137, %s139
    %p143 = scmp.eq.s32.totalorder %s19, 0
    %p144 = por %p142, %p143
    %p145 = scmp.ne.s32.totalorder %s137, %s139
    %p146 = scmp.eq.s32.totalorder %s24, 1
    %p147 = por %p145, %p146
    %p148 = scmp.ne.s32.totalorder %s139, %s140
    %p149 = scmp.eq.s32.totalorder %s24, 0
    %p150 = por %p148, %p149
    %p151 = scmp.ne.s32.totalorder %s139, %s140
    %p152 = scmp.eq.s32.totalorder %s25, 1
    %p153 = por %p151, %p152
    %p155 = scmp.ne.s32.totalorder %s140, %s154
    %p156 = scmp.eq.s32.totalorder %s25, 0
    %p157 = por %p155, %p156
    %s159 = sadd.s32 %s158, 1
    %p162 = scmp.eq.s32.totalorder %s19, 1
    %p163 = scmp.ne.s32.totalorder %s158, %s160
    %p164 = scmp.eq.s32.totalorder %s19, 0
    %p165 = por %p163, %p164
    %p166 = scmp.ne.s32.totalorder %s158, %s160
    %p167 = scmp.eq.s32.totalorder %s24, 1
    %p168 = por %p166, %p167
    %p169 = scmp.ne.s32.totalorder %s160, %s161
    %p170 = scmp.eq.s32.totalorder %s24, 0
    %p171 = por %p169, %p170
    %p172 = scmp.ne.s32.totalorder %s160, %s161
    %p173 = scmp.eq.s32.totalorder %s25, 1
    %p174 = por %p172, %p173
    %p176 = scmp.ne.s32.totalorder %s161, %s175
    %p177 = scmp.eq.s32.totalorder %s25, 0
    %p178 = por %p176, %p177
    %s180 = sadd.s32 %s179, 1
    %p183 = scmp.eq.s32.totalorder %s19, 1
    %p184 = scmp.ne.s32.totalorder %s179, %s181
    %p185 = scmp.eq.s32.totalorder %s19, 0
    %p186 = por %p184, %p185
    %p187 = scmp.ne.s32.totalorder %s179, %s181
    %p188 = scmp.eq.s32.totalorder %s24, 1
    %p189 = por %p187, %p188
    %p190 = scmp.ne.s32.totalorder %s181, %s182
    %p191 = scmp.eq.s32.totalorder %s24, 0
    %p192 = por %p190, %p191
    %p193 = scmp.ne.s32.totalorder %s181, %s182
    %p194 = scmp.eq.s32.totalorder %s25, 1
    %p195 = por %p193, %p194
    %p197 = scmp.ne.s32.totalorder %s182, %s196
    %p198 = scmp.eq.s32.totalorder %s25, 0
    %p199 = por %p197, %p198
    %s201 = sadd.s32 %s200, 1
    %p204 = scmp.eq.s32.totalorder %s19, 1
    %p205 = scmp.ne.s32.totalorder %s200, %s202
    %p206 = scmp.eq.s32.totalorder %s19, 0
    %p207 = por %p205, %p206
    %p208 = scmp.ne.s32.totalorder %s200, %s202
    %p209 = scmp.eq.s32.totalorder %s24, 1
    %p210 = por %p208, %p209
    %p211 = scmp.ne.s32.totalorder %s202, %s203
    %p212 = scmp.eq.s32.totalorder %s24, 0
    %p213 = por %p211, %p212
    %p214 = scmp.ne.s32.totalorder %s202, %s203
    %p215 = scmp.eq.s32.totalorder %s25, 1
    %p216 = por %p214, %p215
    %p218 = scmp.ne.s32.totalorder %s203, %s217
    %p219 = scmp.eq.s32.totalorder %s25, 0
    %p220 = por %p218, %p219
    %s222 = sadd.s32 %s221, 1
    %p225 = scmp.eq.s32.totalorder %s19, 1
    %p226 = scmp.ne.s32.totalorder %s221, %s223
    %p227 = scmp.eq.s32.totalorder %s19, 0
    %p228 = por %p226, %p227
    %p229 = scmp.ne.s32.totalorder %s221, %s223
    %p230 = scmp.eq.s32.totalorder %s24, 1
    %p231 = por %p229, %p230
    %p232 = scmp.ne.s32.totalorder %s223, %s224
    %p233 = scmp.eq.s32.totalorder %s24, 0
    %p234 = por %p232, %p233
    %p235 = scmp.ne.s32.totalorder %s223, %s224
    %p236 = scmp.eq.s32.totalorder %s25, 1
    %p237 = por %p235, %p236
    %p239 = scmp.ne.s32.totalorder %s224, %s238
    %p240 = scmp.eq.s32.totalorder %s25, 0
    %p241 = por %p239, %p240
    %s243 = sadd.s32 %s242, 1
    %p246 = scmp.eq.s32.totalorder %s19, 1
    %p247 = scmp.ne.s32.totalorder %s242, %s244
    %p248 = scmp.eq.s32.totalorder %s19, 0
    %p249 = por %p247, %p248
    %p250 = scmp.ne.s32.totalorder %s242, %s244
    %p251 = scmp.eq.s32.totalorder %s24, 1
    %p252 = por %p250, %p251
    %p253 = scmp.ne.s32.totalorder %s244, %s245
    %p254 = scmp.eq.s32.totalorder %s24, 0
    %p255 = por %p253, %p254
    %p256 = scmp.ne.s32.totalorder %s244, %s245
    %p257 = scmp.eq.s32.totalorder %s25, 1
    %p258 = por %p256, %p257
    %p260 = scmp.ne.s32.totalorder %s245, %s259
    %p261 = scmp.eq.s32.totalorder %s25, 0
    %p262 = por %p260, %p261
    %s264 = sadd.s32 %s263, 1
    %p267 = scmp.eq.s32.totalorder %s19, 1
    %p268 = scmp.ne.s32.totalorder %s263, %s265
    %p269 = scmp.eq.s32.totalorder %s19, 0
    %p270 = por %p268, %p269
    %p271 = scmp.ne.s32.totalorder %s263, %s265
    %p272 = scmp.eq.s32.totalorder %s24, 1
    %p273 = por %p271, %p272
    %p274 = scmp.ne.s32.totalorder %s265, %s266
    %p275 = scmp.eq.s32.totalorder %s24, 0
    %p276 = por %p274, %p275
    %p277 = scmp.ne.s32.totalorder %s265, %s266
    %p278 = scmp.eq.s32.totalorder %s25, 1
    %p279 = por %p277, %p278
    %p281 = scmp.ne.s32.totalorder %s266, %s280
    %p282 = scmp.eq.s32.totalorder %s25, 0
    %p283 = por %p281, %p282
    %s285 = sadd.s32 %s284, 1
    %p288 = scmp.eq.s32.totalorder %s19, 1
    %p289 = scmp.ne.s32.totalorder %s284, %s286
    %p290 = scmp.eq.s32.totalorder %s19, 0
    %p291 = por %p289, %p290
    %p292 = scmp.ne.s32.totalorder %s284, %s286
    %p293 = scmp.eq.s32.totalorder %s24, 1
    %p294 = por %p292, %p293
    %p295 = scmp.ne.s32.totalorder %s286, %s287
    %p296 = scmp.eq.s32.totalorder %s24, 0
    %p297 = por %p295, %p296
    %p298 = scmp.ne.s32.totalorder %s286, %s287
    %p299 = scmp.eq.s32.totalorder %s25, 1
    %p300 = por %p298, %p299
    %p302 = scmp.ne.s32.totalorder %s287, %s301
    %p303 = scmp.eq.s32.totalorder %s25, 0
    %p304 = por %p302, %p303
    %s305 = ssub.s32 %s19, %s26
    %p306 = scmp.eq.s32.totalorder %s305, 0
    %s308 = sadd.s32 %s307, 1
    %s309 = scalar_select %p306, %s307, %s308
    %p312 = pneg %p306
    %p313 = scmp.eq.s32.totalorder %s19, 1
    %p314 = por %p312, %p313
    %p315 = scmp.ne.s32.totalorder %s307, %s310
    %p316 = scmp.eq.s32.totalorder %s19, 0
    %p317 = por %p315, %p316
    %p318 = scmp.ne.s32.totalorder %s307, %s310
    %p319 = scmp.eq.s32.totalorder %s24, 1
    %p320 = por %p318, %p319
    %p321 = scmp.ne.s32.totalorder %s310, %s311
    %p322 = scmp.eq.s32.totalorder %s24, 0
    %p323 = por %p321, %p322
    %p324 = scmp.ne.s32.totalorder %s310, %s311
    %p325 = scmp.eq.s32.totalorder %s25, 1
    %p326 = por %p324, %p325
    %p328 = scmp.ne.s32.totalorder %s311, %s327
    %p329 = scmp.eq.s32.totalorder %s25, 0
    %p330 = por %p328, %p329
    %p331 = scmp.le.s32.totalorder 1, %s19
    %p332 = scmp.lt.s32.totalorder %s19, 3
    %p333 = pnand %p331, %p332
    %p334 = pneg %p333
    // Predicated region
    $region9: #{lenet5_forward.1} parent=5 // pred_check
      _
    $region10: #{lenet5_forward.1} parent=5 // pred_check_branch
      %336 = sbr.rel (%p333) target = $region12
    $region11: #{lenet5_forward.1} parent=5 // pred_region
      %s337 = ssub.s32 %s19, 1
      // Predicated region
      $region13: #{lenet5_forward.1} parent=11 // pred_check
        %p338 = pneg %p66
      $region14: #{lenet5_forward.1} parent=11 // pred_check_branch
        %340 = sbr.rel (%p338) target = $region16
      $region15: #{lenet5_forward.1} parent=11 // pred_region
        _
      $region16: #{lenet5_forward.1} parent=11 // pred_fallthru
        _
      // Predicated region
      $region17: #{lenet5_forward.1} parent=11 // pred_check
        %p341 = pneg %p87
      $region18: #{lenet5_forward.1} parent=11 // pred_check_branch
        %343 = sbr.rel (%p341) target = $region20
      $region19: #{lenet5_forward.1} parent=11 // pred_region
        _
      $region20: #{lenet5_forward.1} parent=11 // pred_fallthru
        _
      // Predicated region
      $region21: #{lenet5_forward.1} parent=11 // pred_check
        %p344 = pneg %p108
      $region22: #{lenet5_forward.1} parent=11 // pred_check_branch
        %346 = sbr.rel (%p344) target = $region24
      $region23: #{lenet5_forward.1} parent=11 // pred_region
        _
      $region24: #{lenet5_forward.1} parent=11 // pred_fallthru
        _
      // Predicated region
      $region25: #{lenet5_forward.1} parent=11 // pred_check
        %p347 = pneg %p129
      $region26: #{lenet5_forward.1} parent=11 // pred_check_branch
        %349 = sbr.rel (%p347) target = $region28
      $region27: #{lenet5_forward.1} parent=11 // pred_region
        _
      $region28: #{lenet5_forward.1} parent=11 // pred_fallthru
        _
      // Predicated region
      $region29: #{lenet5_forward.1} parent=11 // pred_check
        %p350 = pneg %p150
      $region30: #{lenet5_forward.1} parent=11 // pred_check_branch
        %352 = sbr.rel (%p350) target = $region32
      $region31: #{lenet5_forward.1} parent=11 // pred_region
        _
      $region32: #{lenet5_forward.1} parent=11 // pred_fallthru
        _
      // Predicated region
      $region33: #{lenet5_forward.1} parent=11 // pred_check
        %p353 = pneg %p171
      $region34: #{lenet5_forward.1} parent=11 // pred_check_branch
        %355 = sbr.rel (%p353) target = $region36
      $region35: #{lenet5_forward.1} parent=11 // pred_region
        _
      $region36: #{lenet5_forward.1} parent=11 // pred_fallthru
        _
      // Predicated region
      $region37: #{lenet5_forward.1} parent=11 // pred_check
        %p356 = pneg %p192
      $region38: #{lenet5_forward.1} parent=11 // pred_check_branch
        %358 = sbr.rel (%p356) target = $region40
      $region39: #{lenet5_forward.1} parent=11 // pred_region
        _
      $region40: #{lenet5_forward.1} parent=11 // pred_fallthru
        _
      // Predicated region
      $region41: #{lenet5_forward.1} parent=11 // pred_check
        %p359 = pneg %p213
      $region42: #{lenet5_forward.1} parent=11 // pred_check_branch
        %361 = sbr.rel (%p359) target = $region44
      $region43: #{lenet5_forward.1} parent=11 // pred_region
        _
      $region44: #{lenet5_forward.1} parent=11 // pred_fallthru
        _
      // Predicated region
      $region45: #{lenet5_forward.1} parent=11 // pred_check
        %p362 = pneg %p234
      $region46: #{lenet5_forward.1} parent=11 // pred_check_branch
        %364 = sbr.rel (%p362) target = $region48
      $region47: #{lenet5_forward.1} parent=11 // pred_region
        _
      $region48: #{lenet5_forward.1} parent=11 // pred_fallthru
        _
      // Predicated region
      $region49: #{lenet5_forward.1} parent=11 // pred_check
        %p365 = pneg %p255
      $region50: #{lenet5_forward.1} parent=11 // pred_check_branch
        %367 = sbr.rel (%p365) target = $region52
      $region51: #{lenet5_forward.1} parent=11 // pred_region
        _
      $region52: #{lenet5_forward.1} parent=11 // pred_fallthru
        _
      // Predicated region
      $region53: #{lenet5_forward.1} parent=11 // pred_check
        %p368 = pneg %p276
      $region54: #{lenet5_forward.1} parent=11 // pred_check_branch
        %370 = sbr.rel (%p368) target = $region56
      $region55: #{lenet5_forward.1} parent=11 // pred_region
        _
      $region56: #{lenet5_forward.1} parent=11 // pred_fallthru
        _
      // Predicated region
      $region57: #{lenet5_forward.1} parent=11 // pred_check
        %p371 = pneg %p297
      $region58: #{lenet5_forward.1} parent=11 // pred_check_branch
        %373 = sbr.rel (%p371) target = $region60
      $region59: #{lenet5_forward.1} parent=11 // pred_region
        _
      $region60: #{lenet5_forward.1} parent=11 // pred_fallthru
        _
    $region12: #{lenet5_forward.1} parent=5 // pred_fallthru
      _
    %p374 = scmp.lt.s32.totalorder %s19, 2
    // Predicated region
    $region61: #{lenet5_forward.1} parent=5 // pred_check
      %p375 = pneg %p374
    $region62: #{lenet5_forward.1} parent=5 // pred_check_branch
      %377 = sbr.rel (%p375) target = $region64
    $region63: #{lenet5_forward.1} parent=5 // pred_region
      // Predicated region
      $region65: #{lenet5_forward.1} parent=63 // pred_check
        %p378 = pneg %p39
      $region66: #{lenet5_forward.1} parent=63 // pred_check_branch
        %380 = sbr.rel (%p378) target = $region68
      $region67: #{lenet5_forward.1} parent=63 // pred_region
        %p381 = scmp.lt.s32.totalorder %s19, 1
        %s382 = scalar_select %p381, %s19, 1
        %s383 = smul.addr %s382, 288
        %s384 = smul.addr %s383, 8
        %s385 = scalar_lea.vmem %s0, %s384
      $region68: #{lenet5_forward.1} parent=63 // pred_fallthru
        _
    $region64: #{lenet5_forward.1} parent=5 // pred_fallthru
      _
    %p386 = scmp.le.s32.totalorder 1, %s19
    %p387 = scmp.lt.s32.totalorder %s19, 3
    %p388 = pnand %p386, %p387
    %p389 = pneg %p388
    // Predicated region
    $region69: #{lenet5_forward.1} parent=5 // pred_check
      _
    $region70: #{lenet5_forward.1} parent=5 // pred_check_branch
      %391 = sbr.rel (%p388) target = $region72
    $region71: #{lenet5_forward.1} parent=5 // pred_region
      %s392 = ssub.s32 %s19, 1
      %p393 = scmp.lt.s32.totalorder %s24, 1
      %s394 = scalar_select %p393, %s24, 1
      %s395 = smul.addr %s394, 288
      %s396 = smul.addr %s395, 8
      %s397 = scalar_lea.vmem %s0, %s396
      %p398 = pneg %p45
      %p399 = pneg %p42
      %p400 = pneg %p66
      %p401 = pneg %p63
      %p402 = pneg %p87
      %p403 = pneg %p84
      %p404 = pneg %p108
      %p405 = pneg %p105
      %p406 = pneg %p129
      %p407 = pneg %p126
      %p408 = pneg %p150
      %p409 = pneg %p147
      %p410 = pneg %p171
      %p411 = pneg %p168
      %p412 = pneg %p192
      %p413 = pneg %p189
      %p414 = pneg %p213
      %p415 = pneg %p210
      %p416 = pneg %p234
      %p417 = pneg %p231
      %p418 = pneg %p255
      %p419 = pneg %p252
      %p420 = pneg %p276
      %p421 = pneg %p273
      %p422 = pneg %p297
      %p423 = pneg %p294
      %p424 = pneg %p323
      %p425 = pneg %p320
      %p426 = scmp.lt.s32.totalorder %s24, 1
      %s427 = scalar_select %p426, %s24, 1
      %s428 = smul.addr %s427, 16
      %s429 = smul.addr %s428, 8
      %s430 = scalar_lea.vmem %s13, %s429
      %p431 = scmp.lt.s32.totalorder %s24, 1
      %s432 = scalar_select %p431, %s24, 1
      %s433 = smul.addr %s432, 288
      %s434 = smul.addr %s433, 8
      %s435 = scalar_lea.vmem %s0, %s434
      %p436 = scmp.lt.s32.totalorder %s24, 1
      %s437 = scalar_select %p436, %s24, 1
      %s438 = smul.addr %s437, 16
      %s439 = smul.addr %s438, 8
      %s440 = scalar_lea.vmem %s13, %s439
      %v441 = vld [vmem:[%s435] sm:$0xff]
      %v442 = vld [vmem:[%s435 + $0x8] sm:$0xff]
      %v443 = vld [vmem:[%s435 + $0x10] sm:$0xff]
      %v444 = vld [vmem:[%s435 + $0x18] sm:$0xff]
      %v445 = vld [vmem:[%s435 + $0x20] sm:$0xff]
      %v446 = vld [vmem:[%s435 + $0x28] sm:$0xff]
      %v447 = vld [vmem:[%s435 + $0x30] sm:$0xff]
      %v448 = vld [vmem:[%s435 + $0x38] sm:$0xff]
      %v449 = vld [vmem:[%s435 + $0x40] sm:$0xff]
      %v450 = vld [vmem:[%s435 + $0x48] sm:$0xff]
      %v451 = vld [vmem:[%s435 + $0x50] sm:$0xff]
      %v452 = vld [vmem:[%s435 + $0x58] sm:$0xff]
      %v453 = vld [vmem:[%s435 + $0x60] sm:$0xff]
      %v454 = vld [vmem:[%s435 + $0x68] sm:$0xff]
      %v455 = vld [vmem:[%s435 + $0x70] sm:$0xff]
      %v456 = vld [vmem:[%s435 + $0x78] sm:$0xff]
      %v457 = vld [vmem:[%s435 + $0x80] sm:$0xff]
      %v458 = vld [vmem:[%s435 + $0x88] sm:$0xff]
      %v459 = vld [vmem:[%s435 + $0x90] sm:$0xff]
      %v460 = vld [vmem:[%s435 + $0x98] sm:$0xff]
      %v461 = vld [vmem:[%s435 + $0xa0] sm:$0xff]
      %v462 = vld [vmem:[%s435 + $0xa8] sm:$0xff]
      %v463 = vld [vmem:[%s435 + $0xb0] sm:$0xff]
      %v464 = vld [vmem:[%s435 + $0xb8] sm:$0xff]
      %v465 = vld [vmem:[%s435 + $0xc0] sm:$0xff]
      %v466 = vld [vmem:[%s435 + $0xc8] sm:$0xff]
      %v467 = vld [vmem:[%s435 + $0xd0] sm:$0xff]
      %v468 = vld [vmem:[%s435 + $0xd8] sm:$0xff]
      %v469 = vld [vmem:[%s435 + $0xe0] sm:$0xff]
      %v470 = vld [vmem:[%s435 + $0xe8] sm:$0xff]
      %v471 = vld [vmem:[%s435 + $0xf0] sm:$0xff]
      %v472 = vld [vmem:[%s435 + $0xf8] sm:$0xff]
      %v473 = vld [vmem:[%s435 + $0x100] sm:$0xff]
      %v474 = vld [vmem:[%s435 + $0x108] sm:$0xff]
      %v475 = vld [vmem:[%s435 + $0x110] sm:$0xff]
      %v476 = vld [vmem:[%s435 + $0x118] sm:$0xff]
      %v477 = vld [vmem:[%s435 + $0x120] sm:$0xff]
      %v478 = vld [vmem:[%s435 + $0x128] sm:$0xff]
      %v479 = vld [vmem:[%s435 + $0x130] sm:$0xff]
      %v480 = vld [vmem:[%s435 + $0x138] sm:$0xff]
      %v481 = vld [vmem:[%s435 + $0x140] sm:$0xff]
      %v482 = vld [vmem:[%s435 + $0x148] sm:$0xff]
      %v483 = vld [vmem:[%s435 + $0x150] sm:$0xff]
      %v484 = vld [vmem:[%s435 + $0x158] sm:$0xff]
      %v485 = vld [vmem:[%s435 + $0x160] sm:$0xff]
      %v486 = vld [vmem:[%s435 + $0x168] sm:$0xff]
      %v487 = vld [vmem:[%s435 + $0x170] sm:$0xff]
      %v488 = vld [vmem:[%s435 + $0x178] sm:$0xff]
      %v489 = vld [vmem:[%s435 + $0x180] sm:$0xff]
      %v490 = vld [vmem:[%s435 + $0x188] sm:$0xff]
      %v491 = vld [vmem:[%s435 + $0x190] sm:$0xff]
      %v492 = vld [vmem:[%s435 + $0x198] sm:$0xff]
      %v493 = vld [vmem:[%s435 + $0x1a0] sm:$0xff]
      %v494 = vld [vmem:[%s435 + $0x1a8] sm:$0xff]
      %v495 = vld [vmem:[%s435 + $0x1b0] sm:$0xff]
      %v496 = vld [vmem:[%s435 + $0x1b8] sm:$0xff]
      %v497 = vld [vmem:[%s435 + $0x1c0] sm:$0xff]
      %v498 = vld [vmem:[%s435 + $0x1c8] sm:$0xff]
      %v499 = vld [vmem:[%s435 + $0x1d0] sm:$0xff]
      %v500 = vld [vmem:[%s435 + $0x1d8] sm:$0xff]
      %v501 = vld [vmem:[%s435 + $0x1e0] sm:$0xff]
      %v502 = vld [vmem:[%s435 + $0x1e8] sm:$0xff]
      %v503 = vld [vmem:[%s435 + $0x1f0] sm:$0xff]
      %v504 = vld [vmem:[%s435 + $0x1f8] sm:$0xff]
      %v505 = vld [vmem:[%s435 + $0x200] sm:$0xff]
      %v506 = vld [vmem:[%s435 + $0x208] sm:$0xff]
      %v507 = vld [vmem:[%s435 + $0x210] sm:$0xff]
      %v508 = vld [vmem:[%s435 + $0x218] sm:$0xff]
      %v509 = vld [vmem:[%s435 + $0x220] sm:$0xff]
      %v510 = vld [vmem:[%s435 + $0x228] sm:$0xff]
      %v511 = vld [vmem:[%s435 + $0x230] sm:$0xff]
      %v512 = vld [vmem:[%s435 + $0x238] sm:$0xff]
      %v513 = vld [vmem:[%s435 + $0x240] sm:$0xff]
      %v514 = vld [vmem:[%s435 + $0x248] sm:$0xff]
      %v515 = vld [vmem:[%s435 + $0x250] sm:$0xff]
      %v516 = vld [vmem:[%s435 + $0x258] sm:$0xff]
      %v517 = vld [vmem:[%s435 + $0x260] sm:$0xff]
      %v518 = vld [vmem:[%s435 + $0x268] sm:$0xff]
      %v519 = vld [vmem:[%s435 + $0x270] sm:$0xff]
      %v520 = vld [vmem:[%s435 + $0x278] sm:$0xff]
      %v521 = vld [vmem:[%s435 + $0x280] sm:$0xff]
      %v522 = vld [vmem:[%s435 + $0x288] sm:$0xff]
      %v523 = vld [vmem:[%s435 + $0x290] sm:$0xff]
      %v524 = vld [vmem:[%s435 + $0x298] sm:$0xff]
      %v525 = vld [vmem:[%s435 + $0x2a0] sm:$0xff]
      %v526 = vld [vmem:[%s435 + $0x2a8] sm:$0xff]
      %v527 = vld [vmem:[%s435 + $0x2b0] sm:$0xff]
      %v528 = vld [vmem:[%s435 + $0x2b8] sm:$0xff]
      %v529 = vld [vmem:[%s435 + $0x2c0] sm:$0xff]
      %v530 = vld [vmem:[%s435 + $0x2c8] sm:$0xff]
      %v531 = vld [vmem:[%s435 + $0x2d0] sm:$0xff]
      %v532 = vld [vmem:[%s435 + $0x2d8] sm:$0xff]
      %v533 = vld [vmem:[%s435 + $0x2e0] sm:$0xff]
      %v534 = vld [vmem:[%s435 + $0x2e8] sm:$0xff]
      %v535 = vld [vmem:[%s435 + $0x2f0] sm:$0xff]
      %v536 = vld [vmem:[%s435 + $0x2f8] sm:$0xff]
      %v537 = vld [vmem:[%s435 + $0x300] sm:$0xff]
      %v538 = vld [vmem:[%s435 + $0x308] sm:$0xff]
      %v539 = vld [vmem:[%s435 + $0x310] sm:$0xff]
      %v540 = vld [vmem:[%s435 + $0x318] sm:$0xff]
      %v541 = vld [vmem:[%s435 + $0x320] sm:$0xff]
      %v542 = vld [vmem:[%s435 + $0x328] sm:$0xff]
      %v543 = vld [vmem:[%s435 + $0x330] sm:$0xff]
      %v544 = vld [vmem:[%s435 + $0x338] sm:$0xff]
      %v545 = vld [vmem:[%s435 + $0x340] sm:$0xff]
      %v546 = vld [vmem:[%s435 + $0x348] sm:$0xff]
      %v547 = vld [vmem:[%s435 + $0x350] sm:$0xff]
      %v548 = vld [vmem:[%s435 + $0x358] sm:$0xff]
      %v549 = vld [vmem:[%s435 + $0x360] sm:$0xff]
      %v550 = vld [vmem:[%s435 + $0x368] sm:$0xff]
      %v551 = vld [vmem:[%s435 + $0x370] sm:$0xff]
      %v552 = vld [vmem:[%s435 + $0x378] sm:$0xff]
      %v553 = vld [vmem:[%s435 + $0x380] sm:$0xff]
      %v554 = vld [vmem:[%s435 + $0x388] sm:$0xff]
      %v555 = vld [vmem:[%s435 + $0x390] sm:$0xff]
      %v556 = vld [vmem:[%s435 + $0x398] sm:$0xff]
      %v557 = vld [vmem:[%s435 + $0x3a0] sm:$0xff]
      %v558 = vld [vmem:[%s435 + $0x3a8] sm:$0xff]
      %v559 = vld [vmem:[%s435 + $0x3b0] sm:$0xff]
      %v560 = vld [vmem:[%s435 + $0x3b8] sm:$0xff]
      %v561 = vld [vmem:[%s435 + $0x3c0] sm:$0xff]
      %v562 = vld [vmem:[%s435 + $0x3c8] sm:$0xff]
      %v563 = vld [vmem:[%s435 + $0x3d0] sm:$0xff]
      %v564 = vld [vmem:[%s435 + $0x3d8] sm:$0xff]
      %v565 = vld [vmem:[%s435 + $0x3e0] sm:$0xff]
      %v566 = vld [vmem:[%s435 + $0x3e8] sm:$0xff]
      %v567 = vld [vmem:[%s435 + $0x3f0] sm:$0xff]
      %v568 = vld [vmem:[%s435 + $0x3f8] sm:$0xff]
      %v569 = vld [vmem:[%s435 + $0x400] sm:$0xff]
      %v570 = vld [vmem:[%s435 + $0x408] sm:$0xff]
      %v571 = vld [vmem:[%s435 + $0x410] sm:$0xff]
      %v572 = vld [vmem:[%s435 + $0x418] sm:$0xff]
      %v573 = vld [vmem:[%s435 + $0x420] sm:$0xff]
      %v574 = vld [vmem:[%s435 + $0x428] sm:$0xff]
      %v575 = vld [vmem:[%s435 + $0x430] sm:$0xff]
      %v576 = vld [vmem:[%s435 + $0x438] sm:$0xff]
      %v577 = vld [vmem:[%s435 + $0x440] sm:$0xff]
      %v578 = vld [vmem:[%s435 + $0x448] sm:$0xff]
      %v579 = vld [vmem:[%s435 + $0x450] sm:$0xff]
      %v580 = vld [vmem:[%s435 + $0x458] sm:$0xff]
      %v581 = vld [vmem:[%s435 + $0x460] sm:$0xff]
      %v582 = vld [vmem:[%s435 + $0x468] sm:$0xff]
      %v583 = vld [vmem:[%s435 + $0x470] sm:$0xff]
      %v584 = vld [vmem:[%s435 + $0x478] sm:$0xff]
      %v585 = vld [vmem:[%s435 + $0x480] sm:$0xff]
      %v586 = vld [vmem:[%s435 + $0x488] sm:$0xff]
      %v587 = vld [vmem:[%s435 + $0x490] sm:$0xff]
      %v588 = vld [vmem:[%s435 + $0x498] sm:$0xff]
      %v589 = vld [vmem:[%s435 + $0x4a0] sm:$0xff]
      %v590 = vld [vmem:[%s435 + $0x4a8] sm:$0xff]
      %v591 = vld [vmem:[%s435 + $0x4b0] sm:$0xff]
      %v592 = vld [vmem:[%s435 + $0x4b8] sm:$0xff]
      %v593 = vld [vmem:[%s435 + $0x4c0] sm:$0xff]
      %v594 = vld [vmem:[%s435 + $0x4c8] sm:$0xff]
      %v595 = vld [vmem:[%s435 + $0x4d0] sm:$0xff]
      %v596 = vld [vmem:[%s435 + $0x4d8] sm:$0xff]
      %v597 = vld [vmem:[%s435 + $0x4e0] sm:$0xff]
      %v598 = vld [vmem:[%s435 + $0x4e8] sm:$0xff]
      %v599 = vld [vmem:[%s435 + $0x4f0] sm:$0xff]
      %v600 = vld [vmem:[%s435 + $0x4f8] sm:$0xff]
      %v601 = vld [vmem:[%s435 + $0x500] sm:$0xff]
      %v602 = vld [vmem:[%s435 + $0x508] sm:$0xff]
      %v603 = vld [vmem:[%s435 + $0x510] sm:$0xff]
      %v604 = vld [vmem:[%s435 + $0x518] sm:$0xff]
      %v605 = vld [vmem:[%s435 + $0x520] sm:$0xff]
      %v606 = vld [vmem:[%s435 + $0x528] sm:$0xff]
      %v607 = vld [vmem:[%s435 + $0x530] sm:$0xff]
      %v608 = vld [vmem:[%s435 + $0x538] sm:$0xff]
      %v609 = vld [vmem:[%s435 + $0x540] sm:$0xff]
      %v610 = vld [vmem:[%s435 + $0x548] sm:$0xff]
      %v611 = vld [vmem:[%s435 + $0x550] sm:$0xff]
      %v612 = vld [vmem:[%s435 + $0x558] sm:$0xff]
      %v613 = vld [vmem:[%s435 + $0x560] sm:$0xff]
      %v614 = vld [vmem:[%s435 + $0x568] sm:$0xff]
      %v615 = vld [vmem:[%s435 + $0x570] sm:$0xff]
      %v616 = vld [vmem:[%s435 + $0x578] sm:$0xff]
      %v617 = vld [vmem:[%s435 + $0x580] sm:$0xff]
      %v618 = vld [vmem:[%s435 + $0x588] sm:$0xff]
      %v619 = vld [vmem:[%s435 + $0x590] sm:$0xff]
      %v620 = vld [vmem:[%s435 + $0x598] sm:$0xff]
      %v621 = vld [vmem:[%s435 + $0x5a0] sm:$0xff]
      %v622 = vld [vmem:[%s435 + $0x5a8] sm:$0xff]
      %v623 = vld [vmem:[%s435 + $0x5b0] sm:$0xff]
      %v624 = vld [vmem:[%s435 + $0x5b8] sm:$0xff]
      %v625 = vld [vmem:[%s435 + $0x5c0] sm:$0xff]
      %v626 = vld [vmem:[%s435 + $0x5c8] sm:$0xff]
      %v627 = vld [vmem:[%s435 + $0x5d0] sm:$0xff]
      %v628 = vld [vmem:[%s435 + $0x5d8] sm:$0xff]
      %v629 = vld [vmem:[%s435 + $0x5e0] sm:$0xff]
      %v630 = vld [vmem:[%s435 + $0x5e8] sm:$0xff]
      %v631 = vld [vmem:[%s435 + $0x5f0] sm:$0xff]
      %v632 = vld [vmem:[%s435 + $0x5f8] sm:$0xff]
      %v633 = vld [vmem:[%s435 + $0x600] sm:$0xff]
      %v634 = vld [vmem:[%s435 + $0x608] sm:$0xff]
      %v635 = vld [vmem:[%s435 + $0x610] sm:$0xff]
      %v636 = vld [vmem:[%s435 + $0x618] sm:$0xff]
      %v637 = vld [vmem:[%s435 + $0x620] sm:$0xff]
      %v638 = vld [vmem:[%s435 + $0x628] sm:$0xff]
      %v639 = vld [vmem:[%s435 + $0x630] sm:$0xff]
      %v640 = vld [vmem:[%s435 + $0x638] sm:$0xff]
      %v641 = vld [vmem:[%s435 + $0x640] sm:$0xff]
      %v642 = vld [vmem:[%s435 + $0x648] sm:$0xff]
      %v643 = vld [vmem:[%s435 + $0x650] sm:$0xff]
      %v644 = vld [vmem:[%s435 + $0x658] sm:$0xff]
      %v645 = vld [vmem:[%s435 + $0x660] sm:$0xff]
      %v646 = vld [vmem:[%s435 + $0x668] sm:$0xff]
      %v647 = vld [vmem:[%s435 + $0x670] sm:$0xff]
      %v648 = vld [vmem:[%s435 + $0x678] sm:$0xff]
      %v649 = vld [vmem:[%s435 + $0x680] sm:$0xff]
      %v650 = vld [vmem:[%s435 + $0x688] sm:$0xff]
      %v651 = vld [vmem:[%s435 + $0x690] sm:$0xff]
      %v652 = vld [vmem:[%s435 + $0x698] sm:$0xff]
      %v653 = vld [vmem:[%s435 + $0x6a0] sm:$0xff]
      %v654 = vld [vmem:[%s435 + $0x6a8] sm:$0xff]
      %v655 = vld [vmem:[%s435 + $0x6b0] sm:$0xff]
      %v656 = vld [vmem:[%s435 + $0x6b8] sm:$0xff]
      %v657 = vld [vmem:[%s435 + $0x6c0] sm:$0xff]
      %v658 = vld [vmem:[%s435 + $0x6c8] sm:$0xff]
      %v659 = vld [vmem:[%s435 + $0x6d0] sm:$0xff]
      %v660 = vld [vmem:[%s435 + $0x6d8] sm:$0xff]
      %v661 = vld [vmem:[%s435 + $0x6e0] sm:$0xff]
      %v662 = vld [vmem:[%s435 + $0x6e8] sm:$0xff]
      %v663 = vld [vmem:[%s435 + $0x6f0] sm:$0xff]
      %v664 = vld [vmem:[%s435 + $0x6f8] sm:$0xff]
      %v665 = vld [vmem:[%s435 + $0x700] sm:$0xff]
      %v666 = vld [vmem:[%s435 + $0x708] sm:$0xff]
      %v667 = vld [vmem:[%s435 + $0x710] sm:$0xff]
      %v668 = vld [vmem:[%s435 + $0x718] sm:$0xff]
      %v669 = vld [vmem:[%s435 + $0x720] sm:$0xff]
      %v670 = vld [vmem:[%s435 + $0x728] sm:$0xff]
      %v671 = vld [vmem:[%s435 + $0x730] sm:$0xff]
      %v672 = vld [vmem:[%s435 + $0x738] sm:$0xff]
      %v673 = vld [vmem:[%s435 + $0x740] sm:$0xff]
      %v674 = vld [vmem:[%s435 + $0x748] sm:$0xff]
      %v675 = vld [vmem:[%s435 + $0x750] sm:$0xff]
      %v676 = vld [vmem:[%s435 + $0x758] sm:$0xff]
      %v677 = vld [vmem:[%s435 + $0x760] sm:$0xff]
      %v678 = vld [vmem:[%s435 + $0x768] sm:$0xff]
      %v679 = vld [vmem:[%s435 + $0x770] sm:$0xff]
      %v680 = vld [vmem:[%s435 + $0x778] sm:$0xff]
      %v681 = vld [vmem:[%s435 + $0x780] sm:$0xff]
      %v682 = vld [vmem:[%s435 + $0x788] sm:$0xff]
      %v683 = vld [vmem:[%s435 + $0x790] sm:$0xff]
      %v684 = vld [vmem:[%s435 + $0x798] sm:$0xff]
      %v685 = vld [vmem:[%s435 + $0x7a0] sm:$0xff]
      %v686 = vld [vmem:[%s435 + $0x7a8] sm:$0xff]
      %v687 = vld [vmem:[%s435 + $0x7b0] sm:$0xff]
      %v688 = vld [vmem:[%s435 + $0x7b8] sm:$0xff]
      %v689 = vld [vmem:[%s435 + $0x7c0] sm:$0xff]
      %v690 = vld [vmem:[%s435 + $0x7c8] sm:$0xff]
      %v691 = vld [vmem:[%s435 + $0x7d0] sm:$0xff]
      %v692 = vld [vmem:[%s435 + $0x7d8] sm:$0xff]
      %v693 = vld [vmem:[%s435 + $0x7e0] sm:$0xff]
      %v694 = vld [vmem:[%s435 + $0x7e8] sm:$0xff]
      %v695 = vld [vmem:[%s435 + $0x7f0] sm:$0xff]
      %v696 = vld [vmem:[%s435 + $0x7f8] sm:$0xff]
      %v697 = vld [vmem:[%s435 + $0x800] sm:$0xff]
      %v698 = vld [vmem:[%s435 + $0x808] sm:$0xff]
      %v699 = vld [vmem:[%s435 + $0x810] sm:$0xff]
      %v700 = vld [vmem:[%s435 + $0x818] sm:$0xff]
      %v701 = vld [vmem:[%s435 + $0x820] sm:$0xff]
      %v702 = vld [vmem:[%s435 + $0x828] sm:$0xff]
      %v703 = vld [vmem:[%s435 + $0x830] sm:$0xff]
      %v704 = vld [vmem:[%s435 + $0x838] sm:$0xff]
      %v705 = vld [vmem:[%s435 + $0x840] sm:$0xff]
      %v706 = vld [vmem:[%s435 + $0x848] sm:$0xff]
      %v707 = vld [vmem:[%s435 + $0x850] sm:$0xff]
      %v708 = vld [vmem:[%s435 + $0x858] sm:$0xff]
      %v709 = vld [vmem:[%s435 + $0x860] sm:$0xff]
      %v710 = vld [vmem:[%s435 + $0x868] sm:$0xff]
      %v711 = vld [vmem:[%s435 + $0x870] sm:$0xff]
      %v712 = vld [vmem:[%s435 + $0x878] sm:$0xff]
      %v713 = vld [vmem:[%s435 + $0x880] sm:$0xff]
      %v714 = vld [vmem:[%s435 + $0x888] sm:$0xff]
      %v715 = vld [vmem:[%s435 + $0x890] sm:$0xff]
      %v716 = vld [vmem:[%s435 + $0x898] sm:$0xff]
      %v717 = vld [vmem:[%s435 + $0x8a0] sm:$0xff]
      %v718 = vld [vmem:[%s435 + $0x8a8] sm:$0xff]
      %v719 = vld [vmem:[%s435 + $0x8b0] sm:$0xff]
      %v720 = vld [vmem:[%s435 + $0x8b8] sm:$0xff]
      %v721 = vld [vmem:[%s435 + $0x8c0] sm:$0xff]
      %v722 = vld [vmem:[%s435 + $0x8c8] sm:$0xff]
      %v723 = vld [vmem:[%s435 + $0x8d0] sm:$0xff]
      %v724 = vld [vmem:[%s435 + $0x8d8] sm:$0xff]
      %v725 = vld [vmem:[%s435 + $0x8e0] sm:$0xff]
      %v726 = vld [vmem:[%s435 + $0x8e8] sm:$0xff]
      %v727 = vld [vmem:[%s435 + $0x8f0] sm:$0xff]
      %v728 = vld [vmem:[%s435 + $0x8f8] sm:$0xff]
      %v729 = vld [vmem:[%s1] sm:$0xff]
      %v730 = vld [vmem:[%s1 + $0x8] sm:$0xff]
      %v731 = vld [vmem:[%s1 + $0x10] sm:$0xff]
      %v732 = vld [vmem:[%s1 + $0x18] sm:$0xff]
      %v733 = vld [vmem:[%s1 + $0x20] sm:$0xff]
      %v734 = vld [vmem:[%s1 + $0x28] sm:$0xff]
      %v735 = vld [vmem:[%s1 + $0x30] sm:$0xff]
      %v736 = vld [vmem:[%s1 + $0x38] sm:$0xff]
      %v737 = vld [vmem:[%s1 + $0x40] sm:$0xff]
      %v738 = vld [vmem:[%s1 + $0x48] sm:$0xff]
      %v739 = vld [vmem:[%s1 + $0x50] sm:$0xff]
      %v740 = vld [vmem:[%s1 + $0x58] sm:$0xff]
      %v741 = vld [vmem:[%s1 + $0x60] sm:$0xff]
      %v742 = vld [vmem:[%s1 + $0x68] sm:$0xff]
      %v743 = vld [vmem:[%s1 + $0x70] sm:$0xff]
      %v744 = vld [vmem:[%s1 + $0x78] sm:$0xff]
      %v745 = vld [vmem:[%s1 + $0x80] sm:$0xff]
      %v746 = vld [vmem:[%s1 + $0x88] sm:$0xff]
      %v747 = vld [vmem:[%s1 + $0x90] sm:$0xff]
      %v748 = vld [vmem:[%s1 + $0x98] sm:$0xff]
      %v749 = vld [vmem:[%s1 + $0xa0] sm:$0xff]
      %v750 = vld [vmem:[%s1 + $0xa8] sm:$0xff]
      %v751 = vld [vmem:[%s1 + $0xb0] sm:$0xff]
      %v752 = vld [vmem:[%s1 + $0xb8] sm:$0xff]
      %v753 = vld [vmem:[%s1 + $0xc0] sm:$0xff]
      %v754 = vld [vmem:[%s1 + $0xc8] sm:$0xff]
      %v755 = vld [vmem:[%s1 + $0xd0] sm:$0xff]
      %v756 = vld [vmem:[%s1 + $0xd8] sm:$0xff]
      %v757 = vld [vmem:[%s1 + $0xe0] sm:$0xff]
      %v758 = vld [vmem:[%s1 + $0xe8] sm:$0xff]
      %v759 = vld [vmem:[%s1 + $0xf0] sm:$0xff]
      %v760 = vld [vmem:[%s1 + $0xf8] sm:$0xff]
      %v761 = vld [vmem:[%s1 + $0x100] sm:$0xff]
      %v762 = vld [vmem:[%s1 + $0x108] sm:$0xff]
      %v763 = vld [vmem:[%s1 + $0x110] sm:$0xff]
      %v764 = vld [vmem:[%s1 + $0x118] sm:$0xff]
      %v765 = vld [vmem:[%s1 + $0x120] sm:$0xff]
      %v766 = vld [vmem:[%s1 + $0x128] sm:$0xff]
      %v767 = vld [vmem:[%s1 + $0x130] sm:$0xff]
      %v768 = vld [vmem:[%s1 + $0x138] sm:$0xff]
      %v769 = vld [vmem:[%s1 + $0x140] sm:$0xff]
      %v770 = vld [vmem:[%s1 + $0x148] sm:$0xff]
      %v771 = vld [vmem:[%s1 + $0x150] sm:$0xff]
      %v772 = vld [vmem:[%s1 + $0x158] sm:$0xff]
      %v773 = vld [vmem:[%s1 + $0x160] sm:$0xff]
      %v774 = vld [vmem:[%s1 + $0x168] sm:$0xff]
      %v775 = vld [vmem:[%s1 + $0x170] sm:$0xff]
      %v776 = vld [vmem:[%s1 + $0x178] sm:$0xff]
      %v777 = vld [vmem:[%s1 + $0x180] sm:$0xff]
      %v778 = vld [vmem:[%s1 + $0x188] sm:$0xff]
      %v779 = vld [vmem:[%s2] sm:$0x1]
      %v781 = vlaneseq
      %v782 = vshrl.u32 %v781, 7
      %v783 = vsub.s32 0, %v782
      %v784 = vrot.slane %v779, %v783
      %vm786 = vcmask 130048
      %v788 = vsel %vm786, %v444, 0
      %v791 = vsel %vm786, %v448, 0
      %v794 = vsel %vm786, %v452, 0
      %v797 = vsel %vm786, %v456, 0
      %v800 = vsel %vm786, %v460, 0
      %v803 = vsel %vm786, %v464, 0
      %v806 = vsel %vm786, %v468, 0
      %v809 = vsel %vm786, %v472, 0
      %v812 = vsel %vm786, %v476, 0
      %v815 = vsel %vm786, %v480, 0
      %v818 = vsel %vm786, %v484, 0
      %v821 = vsel %vm786, %v488, 0
      %v824 = vsel %vm786, %v492, 0
      %v827 = vsel %vm786, %v496, 0
      %v830 = vsel %vm786, %v500, 0
      %v833 = vsel %vm786, %v504, 0
      %v836 = vsel %vm786, %v508, 0
      %v839 = vsel %vm786, %v512, 0
      %v842 = vsel %vm786, %v516, 0
      %v845 = vsel %vm786, %v520, 0
      %v848 = vsel %vm786, %v524, 0
      %v851 = vsel %vm786, %v528, 0
      %v854 = vsel %vm786, %v532, 0
      %v857 = vsel %vm786, %v536, 0
      %v860 = vsel %vm786, %v540, 0
      %v863 = vsel %vm786, %v544, 0
      %v866 = vsel %vm786, %v548, 0
      %v869 = vsel %vm786, %v552, 0
      %v872 = vsel %vm786, %v556, 0
      %v875 = vsel %vm786, %v560, 0
      %v878 = vsel %vm786, %v564, 0
      %v881 = vsel %vm786, %v568, 0
      %v884 = vsel %vm786, %v572, 0
      %v887 = vsel %vm786, %v576, 0
      %v890 = vsel %vm786, %v580, 0
      %v893 = vsel %vm786, %v584, 0
      %v896 = vsel %vm786, %v588, 0
      %v899 = vsel %vm786, %v592, 0
      %v902 = vsel %vm786, %v596, 0
      %v905 = vsel %vm786, %v600, 0
      %v908 = vsel %vm786, %v604, 0
      %v911 = vsel %vm786, %v608, 0
      %v914 = vsel %vm786, %v612, 0
      %v917 = vsel %vm786, %v616, 0
      %v920 = vsel %vm786, %v620, 0
      %v923 = vsel %vm786, %v624, 0
      %v926 = vsel %vm786, %v628, 0
      %v929 = vsel %vm786, %v632, 0
      %v932 = vsel %vm786, %v636, 0
      %v935 = vsel %vm786, %v640, 0
      %v938 = vsel %vm786, %v644, 0
      %v941 = vsel %vm786, %v648, 0
      %v944 = vsel %vm786, %v652, 0
      %v947 = vsel %vm786, %v656, 0
      %v950 = vsel %vm786, %v660, 0
      %v953 = vsel %vm786, %v664, 0
      %v956 = vsel %vm786, %v668, 0
      %v959 = vsel %vm786, %v672, 0
      %v962 = vsel %vm786, %v676, 0
      %v965 = vsel %vm786, %v680, 0
      %v968 = vsel %vm786, %v684, 0
      %v971 = vsel %vm786, %v688, 0
      %v974 = vsel %vm786, %v692, 0
      %v977 = vsel %vm786, %v696, 0
      %v980 = vsel %vm786, %v700, 0
      %v983 = vsel %vm786, %v704, 0
      %v986 = vsel %vm786, %v708, 0
      %v989 = vsel %vm786, %v712, 0
      %v992 = vsel %vm786, %v716, 0
      %v995 = vsel %vm786, %v720, 0
      %v998 = vsel %vm786, %v724, 0
      %v1001 = vsel %vm786, %v728, 0
      %1003 = vmatprep.subr.mxu0 0.0
      %1004 = vmatpush1.msra.mxu0 %v729
      %1005 = vmatprep.subr.mxu0 0.0
      %1006 = vmatpush1.msra.mxu0 %v730
      %1007 = vmatprep.subr.mxu0 0.0
      %1008 = vmatpush1.msra.mxu0 %v731
      %1009 = vmatprep.subr.mxu0 0.0
      %1010 = vmatpush1.msra.mxu0 %v732
      %1011 = vmatprep.subr.mxu0 0.0
      %1012 = vmatpush1.msra.mxu0 %v733
      %1013 = vmatprep.subr.mxu0 0.0
      %1014 = vmatpush1.msra.mxu0 %v734
      %1015 = vmatprep.subr.mxu0 0.0
      %1016 = vmatpush1.msra.mxu0 %v735
      %1017 = vmatprep.subr.mxu0 0.0
      %1018 = vmatpush1.msra.mxu0 %v736
      %1019 = vmatprep.subr.mxu0 0.0
      %1020 = vmatpush1.msra.mxu0 %v737
      %1021 = vmatprep.subr.mxu0 0.0
      %1022 = vmatpush1.msra.mxu0 %v738
      %1023 = vmatprep.subr.mxu0 0.0
      %1024 = vmatpush1.msra.mxu0 %v739
      %1025 = vmatprep.subr.mxu0 0.0
      %1026 = vmatpush1.msra.mxu0 %v740
      %1027 = vmatprep.subr.mxu0 0.0
      %1028 = vmatpush1.msra.mxu0 %v741
      %1029 = vmatprep.subr.mxu0 0.0
      %1030 = vmatpush1.msra.mxu0 %v742
      %1031 = vmatprep.subr.mxu0 0.0
      %1032 = vmatpush1.msra.mxu0 %v743
      %1033 = vmatprep.subr.mxu0 0.0
      %1034 = vmatpush1.msra.mxu0 %v744
      %1035 = vmatprep.subr.mxu0 0.0
      %1036 = vmatpush1.msra.mxu0 %v745
      %1037 = vmatprep.subr.mxu0 0.0
      %1038 = vmatpush1.msra.mxu0 %v746
      %1039 = vmatprep.subr.mxu0 0.0
      %1040 = vmatpush1.msra.mxu0 %v747
      %1041 = vmatprep.subr.mxu0 0.0
      %1042 = vmatpush1.msra.mxu0 %v748
      %1043 = vmatprep.subr.mxu0 0.0
      %1044 = vmatpush1.msra.mxu0 %v749
      %1045 = vmatprep.subr.mxu0 0.0
      %1046 = vmatpush1.msra.mxu0 %v750
      %1047 = vmatprep.subr.mxu0 0.0
      %1048 = vmatpush1.msra.mxu0 %v751
      %1049 = vmatprep.subr.mxu0 0.0
      %1050 = vmatpush1.msra.mxu0 %v752
      %1051 = vmatprep.subr.mxu0 0.0
      %1052 = vmatpush1.msra.mxu0 %v753
      %1053 = vmatprep.subr.mxu0 0.0
      %1054 = vmatpush1.msra.mxu0 %v754
      %1055 = vmatprep.subr.mxu0 0.0
      %1056 = vmatpush1.msra.mxu0 %v755
      %1057 = vmatprep.subr.mxu0 0.0
      %1058 = vmatpush1.msra.mxu0 %v756
      %1059 = vmatprep.subr.mxu0 0.0
      %1060 = vmatpush1.msra.mxu0 %v757
      %1061 = vmatprep.subr.mxu0 0.0
      %1062 = vmatpush1.msra.mxu0 %v758
      %1063 = vmatprep.subr.mxu0 0.0
      %1064 = vmatpush1.msra.mxu0 %v759
      %1065 = vmatprep.subr.mxu0 0.0
      %1066 = vmatpush1.msra.mxu0 %v760
      %1067 = vmatprep.mubr.f32.mxu0 %v442
      %1068 = vmatmul.mubr.f32.gmra.mrb[0].mxu0 %v441
      %v1069 = vpop.f32.mrb[0].mxu0
      %v1070 = vadd.f32 %v784, %v1069
      %v1071 = vpop.f32.mrb[0].mxu0
      %1072 = vmatprep.mubr.f32.mxu0 %v446
      %1073 = vmatmul.mubr.f32.gmra.mrb[0].mxu0 %v445
      %v1074 = vpop.f32.mrb[0].mxu0
      %v1075 = vadd.f32 %v784, %v1074
      %v1076 = vpop.f32.mrb[0].mxu0
      %1077 = vmatprep.mubr.f32.mxu0 %v450
      %1078 = vmatmul.mubr.f32.gmra.mrb[0].mxu0 %v449
      %v1079 = vpop.f32.mrb[0].mxu0
      %v1080 = vadd.f32 %v784, %v1079
      %v1081 = vpop.f32.mrb[0].mxu0
      %1082 = vmatprep.mubr.f32.mxu0 %v454
      %1083 = vmatmul.mubr.f32.gmra.mrb[0].mxu0 %v453
      %v1084 = vpop.f32.mrb[0].mxu0
      %v1085 = vadd.f32 %v784, %v1084
      %v1086 = vpop.f32.mrb[0].mxu0
      %1087 = vmatprep.mubr.f32.mxu0 %v458
      %1088 = vmatmul.mubr.f32.gmra.mrb[0].mxu0 %v457
      %v1089 = vpop.f32.mrb[0].mxu0
      %v1090 = vadd.f32 %v784, %v1089
      %v1091 = vpop.f32.mrb[0].mxu0
      %1092 = vmatprep.mubr.f32.mxu0 %v462
      %1093 = vmatmul.mubr.f32.gmra.mrb[0].mxu0 %v461
      %v1094 = vpop.f32.mrb[0].mxu0
      %v1095 = vadd.f32 %v784, %v1094
      %v1096 = vpop.f32.mrb[0].mxu0
      %1097 = vmatprep.mubr.f32.mxu0 %v466
      %1098 = vmatmul.mubr.f32.gmra.mrb[0].mxu0 %v465
      %v1099 = vpop.f32.mrb[0].mxu0
      %v1100 = vadd.f32 %v784, %v1099
      %v1101 = vpop.f32.mrb[0].mxu0
      %1102 = vmatprep.mubr.f32.mxu0 %v470
      %1103 = vmatmul.mubr.f32.gmra.mrb[0].mxu0 %v469
      %v1104 = vpop.f32.mrb[0].mxu0
      %v1105 = vadd.f32 %v784, %v1104
      %v1106 = vpop.f32.mrb[0].mxu0
      %1107 = vmatprep.mubr.f32.mxu0 %v474
      %1108 = vmatmul.mubr.f32.gmra.mrb[0].mxu0 %v473
      %v1109 = vpop.f32.mrb[0].mxu0
      %v1110 = vadd.f32 %v784, %v1109
      %v1111 = vpop.f32.mrb[0].mxu0
      %1112 = vmatprep.mubr.f32.mxu0 %v478
      %1113 = vmatmul.mubr.f32.gmra.mrb[0].mxu0 %v477
      %v1114 = vpop.f32.mrb[0].mxu0
      %v1115 = vadd.f32 %v784, %v1114
      %v1116 = vpop.f32.mrb[0].mxu0
      %1117 = vmatprep.mubr.f32.mxu0 %v482
      %1118 = vmatmul.mubr.f32.gmra.mrb[0].mxu0 %v481
      %v1119 = vpop.f32.mrb[0].mxu0
      %v1120 = vadd.f32 %v784, %v1119
      %v1121 = vpop.f32.mrb[0].mxu0
      %1122 = vmatprep.mubr.f32.mxu0 %v486
      %1123 = vmatmul.mubr.f32.gmra.mrb[0].mxu0 %v485
      %v1124 = vpop.f32.mrb[0].mxu0
      %v1125 = vadd.f32 %v784, %v1124
      %v1126 = vpop.f32.mrb[0].mxu0
      %1127 = vmatprep.mubr.f32.mxu0 %v490
      %1128 = vmatmul.mubr.f32.gmra.mrb[0].mxu0 %v489
      %v1129 = vpop.f32.mrb[0].mxu0
      %v1130 = vadd.f32 %v784, %v1129
      %v1131 = vpop.f32.mrb[0].mxu0
      %1132 = vmatprep.mubr.f32.mxu0 %v494
      %1133 = vmatmul.mubr.f32.gmra.mrb[0].mxu0 %v493
      %v1134 = vpop.f32.mrb[0].mxu0
      %v1135 = vadd.f32 %v784, %v1134
      %v1136 = vpop.f32.mrb[0].mxu0
      %1137 = vmatprep.mubr.f32.mxu0 %v498
      %1138 = vmatmul.mubr.f32.gmra.mrb[0].mxu0 %v497
      %v1139 = vpop.f32.mrb[0].mxu0
      %v1140 = vadd.f32 %v784, %v1139
      %v1141 = vpop.f32.mrb[0].mxu0
      %1142 = vmatprep.mubr.f32.mxu0 %v502
      %1143 = vmatmul.mubr.f32.gmra.mrb[0].mxu0 %v501
      %v1144 = vpop.f32.mrb[0].mxu0
      %v1145 = vadd.f32 %v784, %v1144
      %v1146 = vpop.f32.mrb[0].mxu0
      %1147 = vmatprep.mubr.f32.mxu0 %v506
      %1148 = vmatmul.mubr.f32.gmra.mrb[0].mxu0 %v505
      %v1149 = vpop.f32.mrb[0].mxu0
      %v1150 = vadd.f32 %v784, %v1149
      %v1151 = vpop.f32.mrb[0].mxu0
      %1152 = vmatprep.mubr.f32.mxu0 %v510
      %1153 = vmatmul.mubr.f32.gmra.mrb[0].mxu0 %v509
      %v1154 = vpop.f32.mrb[0].mxu0
      %v1155 = vadd.f32 %v784, %v1154
      %v1156 = vpop.f32.mrb[0].mxu0
      %1157 = vmatprep.mubr.f32.mxu0 %v514
      %1158 = vmatmul.mubr.f32.gmra.mrb[0].mxu0 %v513
      %v1159 = vpop.f32.mrb[0].mxu0
      %v1160 = vadd.f32 %v784, %v1159
      %v1161 = vpop.f32.mrb[0].mxu0
      %1162 = vmatprep.mubr.f32.mxu0 %v518
      %1163 = vmatmul.mubr.f32.gmra.mrb[0].mxu0 %v517
      %v1164 = vpop.f32.mrb[0].mxu0
      %v1165 = vadd.f32 %v784, %v1164
      %v1166 = vpop.f32.mrb[0].mxu0
      %1167 = vmatprep.mubr.f32.mxu0 %v522
      %1168 = vmatmul.mubr.f32.gmra.mrb[0].mxu0 %v521
      %v1169 = vpop.f32.mrb[0].mxu0
      %v1170 = vadd.f32 %v784, %v1169
      %v1171 = vpop.f32.mrb[0].mxu0
      %1172 = vmatprep.mubr.f32.mxu0 %v526
      %1173 = vmatmul.mubr.f32.gmra.mrb[0].mxu0 %v525
      %v1174 = vpop.f32.mrb[0].mxu0
      %v1175 = vadd.f32 %v784, %v1174
      %v1176 = vpop.f32.mrb[0].mxu0
      %1177 = vmatprep.mubr.f32.mxu0 %v530
      %1178 = vmatmul.mubr.f32.gmra.mrb[0].mxu0 %v529
      %v1179 = vpop.f32.mrb[0].mxu0
      %v1180 = vadd.f32 %v784, %v1179
      %v1181 = vpop.f32.mrb[0].mxu0
      %1182 = vmatprep.mubr.f32.mxu0 %v534
      %1183 = vmatmul.mubr.f32.gmra.mrb[0].mxu0 %v533
      %v1184 = vpop.f32.mrb[0].mxu0
      %v1185 = vadd.f32 %v784, %v1184
      %v1186 = vpop.f32.mrb[0].mxu0
      %1187 = vmatprep.mubr.f32.mxu0 %v538
      %1188 = vmatmul.mubr.f32.gmra.mrb[0].mxu0 %v537
      %v1189 = vpop.f32.mrb[0].mxu0
      %v1190 = vadd.f32 %v784, %v1189
      %v1191 = vpop.f32.mrb[0].mxu0
      %1192 = vmatprep.mubr.f32.mxu0 %v542
      %1193 = vmatmul.mubr.f32.gmra.mrb[0].mxu0 %v541
      %v1194 = vpop.f32.mrb[0].mxu0
      %v1195 = vadd.f32 %v784, %v1194
      %v1196 = vpop.f32.mrb[0].mxu0
      %1197 = vmatprep.mubr.f32.mxu0 %v546
      %1198 = vmatmul.mubr.f32.gmra.mrb[0].mxu0 %v545
      %v1199 = vpop.f32.mrb[0].mxu0
      %v1200 = vadd.f32 %v784, %v1199
      %v1201 = vpop.f32.mrb[0].mxu0
      %1202 = vmatprep.mubr.f32.mxu0 %v550
      %1203 = vmatmul.mubr.f32.gmra.mrb[0].mxu0 %v549
      %v1204 = vpop.f32.mrb[0].mxu0
      %v1205 = vadd.f32 %v784, %v1204
      %v1206 = vpop.f32.mrb[0].mxu0
      %1207 = vmatprep.mubr.f32.mxu0 %v554
      %1208 = vmatmul.mubr.f32.gmra.mrb[0].mxu0 %v553
      %v1209 = vpop.f32.mrb[0].mxu0
      %v1210 = vadd.f32 %v784, %v1209
      %v1211 = vpop.f32.mrb[0].mxu0
      %1212 = vmatprep.mubr.f32.mxu0 %v558
      %1213 = vmatmul.mubr.f32.gmra.mrb[0].mxu0 %v557
      %v1214 = vpop.f32.mrb[0].mxu0
      %v1215 = vadd.f32 %v784, %v1214
      %v1216 = vpop.f32.mrb[0].mxu0
      %1217 = vmatprep.mubr.f32.mxu0 %v562
      %1218 = vmatmul.mubr.f32.gmra.mrb[0].mxu0 %v561
      %v1219 = vpop.f32.mrb[0].mxu0
      %v1220 = vadd.f32 %v784, %v1219
      %v1221 = vpop.f32.mrb[0].mxu0
      %1222 = vmatprep.mubr.f32.mxu0 %v566
      %1223 = vmatmul.mubr.f32.gmra.mrb[0].mxu0 %v565
      %v1224 = vpop.f32.mrb[0].mxu0
      %v1225 = vadd.f32 %v784, %v1224
      %v1226 = vpop.f32.mrb[0].mxu0
      %1227 = vmatprep.mubr.f32.mxu0 %v570
      %1228 = vmatmul.mubr.f32.gmra.mrb[0].mxu0 %v569
      %v1229 = vpop.f32.mrb[0].mxu0
      %v1230 = vadd.f32 %v784, %v1229
      %v1231 = vpop.f32.mrb[0].mxu0
      %1232 = vmatprep.mubr.f32.mxu0 %v574
      %1233 = vmatmul.mubr.f32.gmra.mrb[0].mxu0 %v573
      %v1234 = vpop.f32.mrb[0].mxu0
      %v1235 = vadd.f32 %v784, %v1234
      %v1236 = vpop.f32.mrb[0].mxu0
      %1237 = vmatprep.mubr.f32.mxu0 %v578
      %1238 = vmatmul.mubr.f32.gmra.mrb[0].mxu0 %v577
      %v1239 = vpop.f32.mrb[0].mxu0
      %v1240 = vadd.f32 %v784, %v1239
      %v1241 = vpop.f32.mrb[0].mxu0
      %1242 = vmatprep.mubr.f32.mxu0 %v582
      %1243 = vmatmul.mubr.f32.gmra.mrb[0].mxu0 %v581
      %v1244 = vpop.f32.mrb[0].mxu0
      %v1245 = vadd.f32 %v784, %v1244
      %v1246 = vpop.f32.mrb[0].mxu0
      %1247 = vmatprep.mubr.f32.mxu0 %v586
      %1248 = vmatmul.mubr.f32.gmra.mrb[0].mxu0 %v585
      %v1249 = vpop.f32.mrb[0].mxu0
      %v1250 = vadd.f32 %v784, %v1249
      %v1251 = vpop.f32.mrb[0].mxu0
      %1252 = vmatprep.mubr.f32.mxu0 %v590
      %1253 = vmatmul.mubr.f32.gmra.mrb[0].mxu0 %v589
      %v1254 = vpop.f32.mrb[0].mxu0
      %v1255 = vadd.f32 %v784, %v1254
      %v1256 = vpop.f32.mrb[0].mxu0
      %1257 = vmatprep.mubr.f32.mxu0 %v594
      %1258 = vmatmul.mubr.f32.gmra.mrb[0].mxu0 %v593
      %v1259 = vpop.f32.mrb[0].mxu0
      %v1260 = vadd.f32 %v784, %v1259
      %v1261 = vpop.f32.mrb[0].mxu0
      %1262 = vmatprep.mubr.f32.mxu0 %v598
      %1263 = vmatmul.mubr.f32.gmra.mrb[0].mxu0 %v597
      %v1264 = vpop.f32.mrb[0].mxu0
      %v1265 = vadd.f32 %v784, %v1264
      %v1266 = vpop.f32.mrb[0].mxu0
      %1267 = vmatprep.mubr.f32.mxu0 %v602
      %1268 = vmatmul.mubr.f32.gmra.mrb[0].mxu0 %v601
      %v1269 = vpop.f32.mrb[0].mxu0
      %v1270 = vadd.f32 %v784, %v1269
      %v1271 = vpop.f32.mrb[0].mxu0
      %1272 = vmatprep.mubr.f32.mxu0 %v606
      %1273 = vmatmul.mubr.f32.gmra.mrb[0].mxu0 %v605
      %v1274 = vpop.f32.mrb[0].mxu0
      %v1275 = vadd.f32 %v784, %v1274
      %v1276 = vpop.f32.mrb[0].mxu0
      %1277 = vmatprep.mubr.f32.mxu0 %v610
      %1278 = vmatmul.mubr.f32.gmra.mrb[0].mxu0 %v609
      %v1279 = vpop.f32.mrb[0].mxu0
      %v1280 = vadd.f32 %v784, %v1279
      %v1281 = vpop.f32.mrb[0].mxu0
      %1282 = vmatprep.mubr.f32.mxu0 %v614
      %1283 = vmatmul.mubr.f32.gmra.mrb[0].mxu0 %v613
      %v1284 = vpop.f32.mrb[0].mxu0
      %v1285 = vadd.f32 %v784, %v1284
      %v1286 = vpop.f32.mrb[0].mxu0
      %1287 = vmatprep.mubr.f32.mxu0 %v618
      %1288 = vmatmul.mubr.f32.gmra.mrb[0].mxu0 %v617
      %v1289 = vpop.f32.mrb[0].mxu0
      %v1290 = vadd.f32 %v784, %v1289
      %v1291 = vpop.f32.mrb[0].mxu0
      %1292 = vmatprep.mubr.f32.mxu0 %v622
      %1293 = vmatmul.mubr.f32.gmra.mrb[0].mxu0 %v621
      %v1294 = vpop.f32.mrb[0].mxu0
      %v1295 = vadd.f32 %v784, %v1294
      %v1296 = vpop.f32.mrb[0].mxu0
      %1297 = vmatprep.mubr.f32.mxu0 %v626
      %1298 = vmatmul.mubr.f32.gmra.mrb[0].mxu0 %v625
      %v1299 = vpop.f32.mrb[0].mxu0
      %v1300 = vadd.f32 %v784, %v1299
      %v1301 = vpop.f32.mrb[0].mxu0
      %1302 = vmatprep.mubr.f32.mxu0 %v630
      %1303 = vmatmul.mubr.f32.gmra.mrb[0].mxu0 %v629
      %v1304 = vpop.f32.mrb[0].mxu0
      %v1305 = vadd.f32 %v784, %v1304
      %v1306 = vpop.f32.mrb[0].mxu0
      %1307 = vmatprep.mubr.f32.mxu0 %v634
      %1308 = vmatmul.mubr.f32.gmra.mrb[0].mxu0 %v633
      %v1309 = vpop.f32.mrb[0].mxu0
      %v1310 = vadd.f32 %v784, %v1309
      %v1311 = vpop.f32.mrb[0].mxu0
      %1312 = vmatprep.mubr.f32.mxu0 %v638
      %1313 = vmatmul.mubr.f32.gmra.mrb[0].mxu0 %v637
      %v1314 = vpop.f32.mrb[0].mxu0
      %v1315 = vadd.f32 %v784, %v1314
      %v1316 = vpop.f32.mrb[0].mxu0
      %1317 = vmatprep.mubr.f32.mxu0 %v642
      %1318 = vmatmul.mubr.f32.gmra.mrb[0].mxu0 %v641
      %v1319 = vpop.f32.mrb[0].mxu0
      %v1320 = vadd.f32 %v784, %v1319
      %v1321 = vpop.f32.mrb[0].mxu0
      %1322 = vmatprep.mubr.f32.mxu0 %v646
      %1323 = vmatmul.mubr.f32.gmra.mrb[0].mxu0 %v645
      %v1324 = vpop.f32.mrb[0].mxu0
      %v1325 = vadd.f32 %v784, %v1324
      %v1326 = vpop.f32.mrb[0].mxu0
      %1327 = vmatprep.mubr.f32.mxu0 %v650
      %1328 = vmatmul.mubr.f32.gmra.mrb[0].mxu0 %v649
      %v1329 = vpop.f32.mrb[0].mxu0
      %v1330 = vadd.f32 %v784, %v1329
      %v1331 = vpop.f32.mrb[0].mxu0
      %1332 = vmatprep.mubr.f32.mxu0 %v654
      %1333 = vmatmul.mubr.f32.gmra.mrb[0].mxu0 %v653
      %v1334 = vpop.f32.mrb[0].mxu0
      %v1335 = vadd.f32 %v784, %v1334
      %v1336 = vpop.f32.mrb[0].mxu0
      %1337 = vmatprep.mubr.f32.mxu0 %v658
      %1338 = vmatmul.mubr.f32.gmra.mrb[0].mxu0 %v657
      %v1339 = vpop.f32.mrb[0].mxu0
      %v1340 = vadd.f32 %v784, %v1339
      %v1341 = vpop.f32.mrb[0].mxu0
      %1342 = vmatprep.mubr.f32.mxu0 %v662
      %1343 = vmatmul.mubr.f32.gmra.mrb[0].mxu0 %v661
      %v1344 = vpop.f32.mrb[0].mxu0
      %v1345 = vadd.f32 %v784, %v1344
      %v1346 = vpop.f32.mrb[0].mxu0
      %1347 = vmatprep.mubr.f32.mxu0 %v666
      %1348 = vmatmul.mubr.f32.gmra.mrb[0].mxu0 %v665
      %v1349 = vpop.f32.mrb[0].mxu0
      %v1350 = vadd.f32 %v784, %v1349
      %v1351 = vpop.f32.mrb[0].mxu0
      %1352 = vmatprep.mubr.f32.mxu0 %v670
      %1353 = vmatmul.mubr.f32.gmra.mrb[0].mxu0 %v669
      %v1354 = vpop.f32.mrb[0].mxu0
      %v1355 = vadd.f32 %v784, %v1354
      %v1356 = vpop.f32.mrb[0].mxu0
      %1357 = vmatprep.mubr.f32.mxu0 %v674
      %1358 = vmatmul.mubr.f32.gmra.mrb[0].mxu0 %v673
      %v1359 = vpop.f32.mrb[0].mxu0
      %v1360 = vadd.f32 %v784, %v1359
      %v1361 = vpop.f32.mrb[0].mxu0
      %1362 = vmatprep.mubr.f32.mxu0 %v678
      %1363 = vmatmul.mubr.f32.gmra.mrb[0].mxu0 %v677
      %v1364 = vpop.f32.mrb[0].mxu0
      %v1365 = vadd.f32 %v784, %v1364
      %v1366 = vpop.f32.mrb[0].mxu0
      %1367 = vmatprep.mubr.f32.mxu0 %v682
      %1368 = vmatmul.mubr.f32.gmra.mrb[0].mxu0 %v681
      %v1369 = vpop.f32.mrb[0].mxu0
      %v1370 = vadd.f32 %v784, %v1369
      %v1371 = vpop.f32.mrb[0].mxu0
      %1372 = vmatprep.mubr.f32.mxu0 %v686
      %1373 = vmatmul.mubr.f32.gmra.mrb[0].mxu0 %v685
      %v1374 = vpop.f32.mrb[0].mxu0
      %v1375 = vadd.f32 %v784, %v1374
      %v1376 = vpop.f32.mrb[0].mxu0
      %1377 = vmatprep.mubr.f32.mxu0 %v690
      %1378 = vmatmul.mubr.f32.gmra.mrb[0].mxu0 %v689
      %v1379 = vpop.f32.mrb[0].mxu0
      %v1380 = vadd.f32 %v784, %v1379
      %v1381 = vpop.f32.mrb[0].mxu0
      %1382 = vmatprep.mubr.f32.mxu0 %v694
      %1383 = vmatmul.mubr.f32.gmra.mrb[0].mxu0 %v693
      %v1384 = vpop.f32.mrb[0].mxu0
      %v1385 = vadd.f32 %v784, %v1384
      %v1386 = vpop.f32.mrb[0].mxu0
      %1387 = vmatprep.mubr.f32.mxu0 %v698
      %1388 = vmatmul.mubr.f32.gmra.mrb[0].mxu0 %v697
      %v1389 = vpop.f32.mrb[0].mxu0
      %v1390 = vadd.f32 %v784, %v1389
      %v1391 = vpop.f32.mrb[0].mxu0
      %1392 = vmatprep.mubr.f32.mxu0 %v702
      %1393 = vmatmul.mubr.f32.gmra.mrb[0].mxu0 %v701
      %v1394 = vpop.f32.mrb[0].mxu0
      %v1395 = vadd.f32 %v784, %v1394
      %v1396 = vpop.f32.mrb[0].mxu0
      %1397 = vmatprep.mubr.f32.mxu0 %v706
      %1398 = vmatmul.mubr.f32.gmra.mrb[0].mxu0 %v705
      %v1399 = vpop.f32.mrb[0].mxu0
      %v1400 = vadd.f32 %v784, %v1399
      %v1401 = vpop.f32.mrb[0].mxu0
      %1402 = vmatprep.mubr.f32.mxu0 %v710
      %1403 = vmatmul.mubr.f32.gmra.mrb[0].mxu0 %v709
      %v1404 = vpop.f32.mrb[0].mxu0
      %v1405 = vadd.f32 %v784, %v1404
      %v1406 = vpop.f32.mrb[0].mxu0
      %1407 = vmatprep.mubr.f32.mxu0 %v714
      %1408 = vmatmul.mubr.f32.gmra.mrb[0].mxu0 %v713
      %v1409 = vpop.f32.mrb[0].mxu0
      %v1410 = vadd.f32 %v784, %v1409
      %v1411 = vpop.f32.mrb[0].mxu0
      %1412 = vmatprep.mubr.f32.mxu0 %v718
      %1413 = vmatmul.mubr.f32.gmra.mrb[0].mxu0 %v717
      %v1414 = vpop.f32.mrb[0].mxu0
      %v1415 = vadd.f32 %v784, %v1414
      %v1416 = vpop.f32.mrb[0].mxu0
      %1417 = vmatprep.mubr.f32.mxu0 %v722
      %1418 = vmatmul.mubr.f32.gmra.mrb[0].mxu0 %v721
      %v1419 = vpop.f32.mrb[0].mxu0
      %v1420 = vadd.f32 %v784, %v1419
      %v1421 = vpop.f32.mrb[0].mxu0
      %1422 = vmatprep.mubr.f32.mxu0 %v726
      %1423 = vmatmul.mubr.f32.gmra.mrb[0].mxu0 %v725
      %v1424 = vpop.f32.mrb[0].mxu0
      %v1425 = vadd.f32 %v784, %v1424
      %v1426 = vpop.f32.mrb[0].mxu0
      %1427 = vdwg.mxu0
      %1428 = vmatprep.subr.mxu0 0.0
      %1429 = vmatpush1.msra.mxu0 %v761
      %1430 = vmatprep.subr.mxu0 0.0
      %1431 = vmatpush1.msra.mxu0 %v762
      %1432 = vmatprep.subr.mxu0 0.0
      %1433 = vmatpush1.msra.mxu0 %v763
      %1434 = vmatprep.subr.mxu0 0.0
      %1435 = vmatpush1.msra.mxu0 %v764
      %1436 = vmatprep.subr.mxu0 0.0
      %1437 = vmatpush1.msra.mxu0 %v765
      %1438 = vmatprep.subr.mxu0 0.0
      %1439 = vmatpush1.msra.mxu0 %v766
      %1440 = vmatprep.subr.mxu0 0.0
      %1441 = vmatpush1.msra.mxu0 %v767
      %1442 = vmatprep.subr.mxu0 0.0
      %1443 = vmatpush1.msra.mxu0 %v768
      %1444 = vmatprep.subr.mxu0 0.0
      %1445 = vmatpush1.msra.mxu0 %v769
      %1446 = vmatprep.subr.mxu0 0.0
      %1447 = vmatpush1.msra.mxu0 %v770
      %1448 = vmatprep.subr.mxu0 0.0
      %1449 = vmatpush1.msra.mxu0 %v771
      %1450 = vmatprep.subr.mxu0 0.0
      %1451 = vmatpush1.msra.mxu0 %v772
      %1452 = vmatprep.subr.mxu0 0.0
      %1453 = vmatpush1.msra.mxu0 %v773
      %1454 = vmatprep.subr.mxu0 0.0
      %1455 = vmatpush1.msra.mxu0 %v774
      %1456 = vmatprep.subr.mxu0 0.0
      %1457 = vmatpush1.msra.mxu0 %v775
      %1458 = vmatprep.subr.mxu0 0.0
      %1459 = vmatpush1.msra.mxu0 %v776
      %1460 = vmatprep.subr.mxu0 0.0
      %1461 = vmatpush1.msra.mxu0 %v777
      %1462 = vmatprep.subr.mxu0 0.0
      %1463 = vmatpush1.msra.mxu0 %v778
      %1464 = vmatprep.subr.mxu0 0.0
      %1465 = vmatpush1.msra.mxu0 0.0
      %1466 = vmatprep.subr.mxu0 0.0
      %1467 = vmatpush1.msra.mxu0 0.0
      %1468 = vmatprep.subr.mxu0 0.0
      %1469 = vmatpush1.msra.mxu0 0.0
      %1470 = vmatprep.subr.mxu0 0.0
      %1471 = vmatpush1.msra.mxu0 0.0
      %1472 = vmatprep.subr.mxu0 0.0
      %1473 = vmatpush1.msra.mxu0 0.0
      %1474 = vmatprep.subr.mxu0 0.0
      %1475 = vmatpush1.msra.mxu0 0.0
      %1476 = vmatprep.subr.mxu0 0.0
      %1477 = vmatpush1.msra.mxu0 0.0
      %1478 = vmatprep.subr.mxu0 0.0
      %1479 = vmatpush1.msra.mxu0 0.0
      %1480 = vmatprep.subr.mxu0 0.0
      %1481 = vmatpush1.msra.mxu0 0.0
      %1482 = vmatprep.subr.mxu0 0.0
      %1483 = vmatpush1.msra.mxu0 0.0
      %1484 = vmatprep.subr.mxu0 0.0
      %1485 = vmatpush1.msra.mxu0 0.0
      %1486 = vmatprep.subr.mxu0 0.0
      %1487 = vmatpush1.msra.mxu0 0.0
      %1488 = vmatprep.subr.mxu0 0.0
      %1489 = vmatpush1.msra.mxu0 0.0
      %1490 = vmatprep.subr.mxu0 0.0
      %1491 = vmatpush1.msra.mxu0 0.0
      %1492 = vmatprep.mubr.f32.mxu0 %v788
      %1493 = vmatmul.mubr.f32.gmra.mrb[0].mxu0 %v443
      %v1494 = vpop.f32.mrb[0].mxu0
      %v1495 = vadd.f32 %v1070, %v1494
      %v1496 = vpop.f32.mrb[0].mxu0
      %1497 = vmatprep.mubr.f32.mxu0 %v791
      %1498 = vmatmul.mubr.f32.gmra.mrb[0].mxu0 %v447
      %v1499 = vpop.f32.mrb[0].mxu0
      %v1500 = vadd.f32 %v1075, %v1499
      %v1501 = vpop.f32.mrb[0].mxu0
      %1502 = vmatprep.mubr.f32.mxu0 %v794
      %1503 = vmatmul.mubr.f32.gmra.mrb[0].mxu0 %v451
      %v1504 = vpop.f32.mrb[0].mxu0
      %v1505 = vadd.f32 %v1080, %v1504
      %v1506 = vpop.f32.mrb[0].mxu0
      %1507 = vmatprep.mubr.f32.mxu0 %v797
      %1508 = vmatmul.mubr.f32.gmra.mrb[0].mxu0 %v455
      %v1509 = vpop.f32.mrb[0].mxu0
      %v1510 = vadd.f32 %v1085, %v1509
      %v1511 = vpop.f32.mrb[0].mxu0
      %1512 = vmatprep.mubr.f32.mxu0 %v800
      %1513 = vmatmul.mubr.f32.gmra.mrb[0].mxu0 %v459
      %v1514 = vpop.f32.mrb[0].mxu0
      %v1515 = vadd.f32 %v1090, %v1514
      %v1516 = vpop.f32.mrb[0].mxu0
      %1517 = vmatprep.mubr.f32.mxu0 %v803
      %1518 = vmatmul.mubr.f32.gmra.mrb[0].mxu0 %v463
      %v1519 = vpop.f32.mrb[0].mxu0
      %v1520 = vadd.f32 %v1095, %v1519
      %v1521 = vpop.f32.mrb[0].mxu0
      %1522 = vmatprep.mubr.f32.mxu0 %v806
      %1523 = vmatmul.mubr.f32.gmra.mrb[0].mxu0 %v467
      %v1524 = vpop.f32.mrb[0].mxu0
      %v1525 = vadd.f32 %v1100, %v1524
      %v1526 = vpop.f32.mrb[0].mxu0
      %1527 = vmatprep.mubr.f32.mxu0 %v809
      %1528 = vmatmul.mubr.f32.gmra.mrb[0].mxu0 %v471
      %v1529 = vpop.f32.mrb[0].mxu0
      %v1530 = vadd.f32 %v1105, %v1529
      %v1531 = vpop.f32.mrb[0].mxu0
      %1532 = vmatprep.mubr.f32.mxu0 %v812
      %1533 = vmatmul.mubr.f32.gmra.mrb[0].mxu0 %v475
      %v1534 = vpop.f32.mrb[0].mxu0
      %v1535 = vadd.f32 %v1110, %v1534
      %v1536 = vpop.f32.mrb[0].mxu0
      %1537 = vmatprep.mubr.f32.mxu0 %v815
      %1538 = vmatmul.mubr.f32.gmra.mrb[0].mxu0 %v479
      %v1539 = vpop.f32.mrb[0].mxu0
      %v1540 = vadd.f32 %v1115, %v1539
      %v1541 = vpop.f32.mrb[0].mxu0
      %1542 = vmatprep.mubr.f32.mxu0 %v818
      %1543 = vmatmul.mubr.f32.gmra.mrb[0].mxu0 %v483
      %v1544 = vpop.f32.mrb[0].mxu0
      %v1545 = vadd.f32 %v1120, %v1544
      %v1546 = vpop.f32.mrb[0].mxu0
      %1547 = vmatprep.mubr.f32.mxu0 %v821
      %1548 = vmatmul.mubr.f32.gmra.mrb[0].mxu0 %v487
      %v1549 = vpop.f32.mrb[0].mxu0
      %v1550 = vadd.f32 %v1125, %v1549
      %v1551 = vpop.f32.mrb[0].mxu0
      %1552 = vmatprep.mubr.f32.mxu0 %v824
      %1553 = vmatmul.mubr.f32.gmra.mrb[0].mxu0 %v491
      %v1554 = vpop.f32.mrb[0].mxu0
      %v1555 = vadd.f32 %v1130, %v1554
      %v1556 = vpop.f32.mrb[0].mxu0
      %1557 = vmatprep.mubr.f32.mxu0 %v827
      %1558 = vmatmul.mubr.f32.gmra.mrb[0].mxu0 %v495
      %v1559 = vpop.f32.mrb[0].mxu0
      %v1560 = vadd.f32 %v1135, %v1559
      %v1561 = vpop.f32.mrb[0].mxu0
      %1562 = vmatprep.mubr.f32.mxu0 %v830
      %1563 = vmatmul.mubr.f32.gmra.mrb[0].mxu0 %v499
      %v1564 = vpop.f32.mrb[0].mxu0
      %v1565 = vadd.f32 %v1140, %v1564
      %v1566 = vpop.f32.mrb[0].mxu0
      %1567 = vmatprep.mubr.f32.mxu0 %v833
      %1568 = vmatmul.mubr.f32.gmra.mrb[0].mxu0 %v503
      %v1569 = vpop.f32.mrb[0].mxu0
      %v1570 = vadd.f32 %v1145, %v1569
      %v1571 = vpop.f32.mrb[0].mxu0
      %1572 = vmatprep.mubr.f32.mxu0 %v836
      %1573 = vmatmul.mubr.f32.gmra.mrb[0].mxu0 %v507
      %v1574 = vpop.f32.mrb[0].mxu0
      %v1575 = vadd.f32 %v1150, %v1574
      %v1576 = vpop.f32.mrb[0].mxu0
      %1577 = vmatprep.mubr.f32.mxu0 %v839
      %1578 = vmatmul.mubr.f32.gmra.mrb[0].mxu0 %v511
      %v1579 = vpop.f32.mrb[0].mxu0
      %v1580 = vadd.f32 %v1155, %v1579
      %v1581 = vpop.f32.mrb[0].mxu0
      %1582 = vmatprep.mubr.f32.mxu0 %v842
      %1583 = vmatmul.mubr.f32.gmra.mrb[0].mxu0 %v515
      %v1584 = vpop.f32.mrb[0].mxu0
      %v1585 = vadd.f32 %v1160, %v1584
      %v1586 = vpop.f32.mrb[0].mxu0
      %1587 = vmatprep.mubr.f32.mxu0 %v845
      %1588 = vmatmul.mubr.f32.gmra.mrb[0].mxu0 %v519
      %v1589 = vpop.f32.mrb[0].mxu0
      %v1590 = vadd.f32 %v1165, %v1589
      %v1591 = vpop.f32.mrb[0].mxu0
      %1592 = vmatprep.mubr.f32.mxu0 %v848
      %1593 = vmatmul.mubr.f32.gmra.mrb[0].mxu0 %v523
      %v1594 = vpop.f32.mrb[0].mxu0
      %v1595 = vadd.f32 %v1170, %v1594
      %v1596 = vpop.f32.mrb[0].mxu0
      %1597 = vmatprep.mubr.f32.mxu0 %v851
      %1598 = vmatmul.mubr.f32.gmra.mrb[0].mxu0 %v527
      %v1599 = vpop.f32.mrb[0].mxu0
      %v1600 = vadd.f32 %v1175, %v1599
      %v1601 = vpop.f32.mrb[0].mxu0
      %1602 = vmatprep.mubr.f32.mxu0 %v854
      %1603 = vmatmul.mubr.f32.gmra.mrb[0].mxu0 %v531
      %v1604 = vpop.f32.mrb[0].mxu0
      %v1605 = vadd.f32 %v1180, %v1604
      %v1606 = vpop.f32.mrb[0].mxu0
      %1607 = vmatprep.mubr.f32.mxu0 %v857
      %1608 = vmatmul.mubr.f32.gmra.mrb[0].mxu0 %v535
      %v1609 = vpop.f32.mrb[0].mxu0
      %v1610 = vadd.f32 %v1185, %v1609
      %v1611 = vpop.f32.mrb[0].mxu0
      %1612 = vmatprep.mubr.f32.mxu0 %v860
      %1613 = vmatmul.mubr.f32.gmra.mrb[0].mxu0 %v539
      %v1614 = vpop.f32.mrb[0].mxu0
      %v1615 = vadd.f32 %v1190, %v1614
      %v1616 = vpop.f32.mrb[0].mxu0
      %1617 = vmatprep.mubr.f32.mxu0 %v863
      %1618 = vmatmul.mubr.f32.gmra.mrb[0].mxu0 %v543
      %v1619 = vpop.f32.mrb[0].mxu0
      %v1620 = vadd.f32 %v1195, %v1619
      %v1621 = vpop.f32.mrb[0].mxu0
      %1622 = vmatprep.mubr.f32.mxu0 %v866
      %1623 = vmatmul.mubr.f32.gmra.mrb[0].mxu0 %v547
      %v1624 = vpop.f32.mrb[0].mxu0
      %v1625 = vadd.f32 %v1200, %v1624
      %v1626 = vpop.f32.mrb[0].mxu0
      %1627 = vmatprep.mubr.f32.mxu0 %v869
      %1628 = vmatmul.mubr.f32.gmra.mrb[0].mxu0 %v551
      %v1629 = vpop.f32.mrb[0].mxu0
      %v1630 = vadd.f32 %v1205, %v1629
      %v1631 = vpop.f32.mrb[0].mxu0
      %1632 = vmatprep.mubr.f32.mxu0 %v872
      %1633 = vmatmul.mubr.f32.gmra.mrb[0].mxu0 %v555
      %v1634 = vpop.f32.mrb[0].mxu0
      %v1635 = vadd.f32 %v1210, %v1634
      %v1636 = vpop.f32.mrb[0].mxu0
      %1637 = vmatprep.mubr.f32.mxu0 %v875
      %1638 = vmatmul.mubr.f32.gmra.mrb[0].mxu0 %v559
      %v1639 = vpop.f32.mrb[0].mxu0
      %v1640 = vadd.f32 %v1215, %v1639
      %v1641 = vpop.f32.mrb[0].mxu0
      %1642 = vmatprep.mubr.f32.mxu0 %v878
      %1643 = vmatmul.mubr.f32.gmra.mrb[0].mxu0 %v563
      %v1644 = vpop.f32.mrb[0].mxu0
      %v1645 = vadd.f32 %v1220, %v1644
      %v1646 = vpop.f32.mrb[0].mxu0
      %1647 = vmatprep.mubr.f32.mxu0 %v881
      %1648 = vmatmul.mubr.f32.gmra.mrb[0].mxu0 %v567
      %v1649 = vpop.f32.mrb[0].mxu0
      %v1650 = vadd.f32 %v1225, %v1649
      %v1651 = vpop.f32.mrb[0].mxu0
      %1652 = vmatprep.mubr.f32.mxu0 %v884
      %1653 = vmatmul.mubr.f32.gmra.mrb[0].mxu0 %v571
      %v1654 = vpop.f32.mrb[0].mxu0
      %v1655 = vadd.f32 %v1230, %v1654
      %v1656 = vpop.f32.mrb[0].mxu0
      %1657 = vmatprep.mubr.f32.mxu0 %v887
      %1658 = vmatmul.mubr.f32.gmra.mrb[0].mxu0 %v575
      %v1659 = vpop.f32.mrb[0].mxu0
      %v1660 = vadd.f32 %v1235, %v1659
      %v1661 = vpop.f32.mrb[0].mxu0
      %1662 = vmatprep.mubr.f32.mxu0 %v890
      %1663 = vmatmul.mubr.f32.gmra.mrb[0].mxu0 %v579
      %v1664 = vpop.f32.mrb[0].mxu0
      %v1665 = vadd.f32 %v1240, %v1664
      %v1666 = vpop.f32.mrb[0].mxu0
      %1667 = vmatprep.mubr.f32.mxu0 %v893
      %1668 = vmatmul.mubr.f32.gmra.mrb[0].mxu0 %v583
      %v1669 = vpop.f32.mrb[0].mxu0
      %v1670 = vadd.f32 %v1245, %v1669
      %v1671 = vpop.f32.mrb[0].mxu0
      %1672 = vmatprep.mubr.f32.mxu0 %v896
      %1673 = vmatmul.mubr.f32.gmra.mrb[0].mxu0 %v587
      %v1674 = vpop.f32.mrb[0].mxu0
      %v1675 = vadd.f32 %v1250, %v1674
      %v1676 = vpop.f32.mrb[0].mxu0
      %1677 = vmatprep.mubr.f32.mxu0 %v899
      %1678 = vmatmul.mubr.f32.gmra.mrb[0].mxu0 %v591
      %v1679 = vpop.f32.mrb[0].mxu0
      %v1680 = vadd.f32 %v1255, %v1679
      %v1681 = vpop.f32.mrb[0].mxu0
      %1682 = vmatprep.mubr.f32.mxu0 %v902
      %1683 = vmatmul.mubr.f32.gmra.mrb[0].mxu0 %v595
      %v1684 = vpop.f32.mrb[0].mxu0
      %v1685 = vadd.f32 %v1260, %v1684
      %v1686 = vpop.f32.mrb[0].mxu0
      %1687 = vmatprep.mubr.f32.mxu0 %v905
      %1688 = vmatmul.mubr.f32.gmra.mrb[0].mxu0 %v599
      %v1689 = vpop.f32.mrb[0].mxu0
      %v1690 = vadd.f32 %v1265, %v1689
      %v1691 = vpop.f32.mrb[0].mxu0
      %1692 = vmatprep.mubr.f32.mxu0 %v908
      %1693 = vmatmul.mubr.f32.gmra.mrb[0].mxu0 %v603
      %v1694 = vpop.f32.mrb[0].mxu0
      %v1695 = vadd.f32 %v1270, %v1694
      %v1696 = vpop.f32.mrb[0].mxu0
      %1697 = vmatprep.mubr.f32.mxu0 %v911
      %1698 = vmatmul.mubr.f32.gmra.mrb[0].mxu0 %v607
      %v1699 = vpop.f32.mrb[0].mxu0
      %v1700 = vadd.f32 %v1275, %v1699
      %v1701 = vpop.f32.mrb[0].mxu0
      %1702 = vmatprep.mubr.f32.mxu0 %v914
      %1703 = vmatmul.mubr.f32.gmra.mrb[0].mxu0 %v611
      %v1704 = vpop.f32.mrb[0].mxu0
      %v1705 = vadd.f32 %v1280, %v1704
      %v1706 = vpop.f32.mrb[0].mxu0
      %1707 = vmatprep.mubr.f32.mxu0 %v917
      %1708 = vmatmul.mubr.f32.gmra.mrb[0].mxu0 %v615
      %v1709 = vpop.f32.mrb[0].mxu0
      %v1710 = vadd.f32 %v1285, %v1709
      %v1711 = vpop.f32.mrb[0].mxu0
      %1712 = vmatprep.mubr.f32.mxu0 %v920
      %1713 = vmatmul.mubr.f32.gmra.mrb[0].mxu0 %v619
      %v1714 = vpop.f32.mrb[0].mxu0
      %v1715 = vadd.f32 %v1290, %v1714
      %v1716 = vpop.f32.mrb[0].mxu0
      %1717 = vmatprep.mubr.f32.mxu0 %v923
      %1718 = vmatmul.mubr.f32.gmra.mrb[0].mxu0 %v623
      %v1719 = vpop.f32.mrb[0].mxu0
      %v1720 = vadd.f32 %v1295, %v1719
      %v1721 = vpop.f32.mrb[0].mxu0
      %1722 = vmatprep.mubr.f32.mxu0 %v926
      %1723 = vmatmul.mubr.f32.gmra.mrb[0].mxu0 %v627
      %v1724 = vpop.f32.mrb[0].mxu0
      %v1725 = vadd.f32 %v1300, %v1724
      %v1726 = vpop.f32.mrb[0].mxu0
      %1727 = vmatprep.mubr.f32.mxu0 %v929
      %1728 = vmatmul.mubr.f32.gmra.mrb[0].mxu0 %v631
      %v1729 = vpop.f32.mrb[0].mxu0
      %v1730 = vadd.f32 %v1305, %v1729
      %v1731 = vpop.f32.mrb[0].mxu0
      %1732 = vmatprep.mubr.f32.mxu0 %v932
      %1733 = vmatmul.mubr.f32.gmra.mrb[0].mxu0 %v635
      %v1734 = vpop.f32.mrb[0].mxu0
      %v1735 = vadd.f32 %v1310, %v1734
      %v1736 = vpop.f32.mrb[0].mxu0
      %1737 = vmatprep.mubr.f32.mxu0 %v935
      %1738 = vmatmul.mubr.f32.gmra.mrb[0].mxu0 %v639
      %v1739 = vpop.f32.mrb[0].mxu0
      %v1740 = vadd.f32 %v1315, %v1739
      %v1741 = vpop.f32.mrb[0].mxu0
      %1742 = vmatprep.mubr.f32.mxu0 %v938
      %1743 = vmatmul.mubr.f32.gmra.mrb[0].mxu0 %v643
      %v1744 = vpop.f32.mrb[0].mxu0
      %v1745 = vadd.f32 %v1320, %v1744
      %v1746 = vpop.f32.mrb[0].mxu0
      %1747 = vmatprep.mubr.f32.mxu0 %v941
      %1748 = vmatmul.mubr.f32.gmra.mrb[0].mxu0 %v647
      %v1749 = vpop.f32.mrb[0].mxu0
      %v1750 = vadd.f32 %v1325, %v1749
      %v1751 = vpop.f32.mrb[0].mxu0
      %1752 = vmatprep.mubr.f32.mxu0 %v944
      %1753 = vmatmul.mubr.f32.gmra.mrb[0].mxu0 %v651
      %v1754 = vpop.f32.mrb[0].mxu0
      %v1755 = vadd.f32 %v1330, %v1754
      %v1756 = vpop.f32.mrb[0].mxu0
      %1757 = vmatprep.mubr.f32.mxu0 %v947
      %1758 = vmatmul.mubr.f32.gmra.mrb[0].mxu0 %v655
      %v1759 = vpop.f32.mrb[0].mxu0
      %v1760 = vadd.f32 %v1335, %v1759
      %v1761 = vpop.f32.mrb[0].mxu0
      %1762 = vmatprep.mubr.f32.mxu0 %v950
      %1763 = vmatmul.mubr.f32.gmra.mrb[0].mxu0 %v659
      %v1764 = vpop.f32.mrb[0].mxu0
      %v1765 = vadd.f32 %v1340, %v1764
      %v1766 = vpop.f32.mrb[0].mxu0
      %1767 = vmatprep.mubr.f32.mxu0 %v953
      %1768 = vmatmul.mubr.f32.gmra.mrb[0].mxu0 %v663
      %v1769 = vpop.f32.mrb[0].mxu0
      %v1770 = vadd.f32 %v1345, %v1769
      %v1771 = vpop.f32.mrb[0].mxu0
      %1772 = vmatprep.mubr.f32.mxu0 %v956
      %1773 = vmatmul.mubr.f32.gmra.mrb[0].mxu0 %v667
      %v1774 = vpop.f32.mrb[0].mxu0
      %v1775 = vadd.f32 %v1350, %v1774
      %v1776 = vpop.f32.mrb[0].mxu0
      %1777 = vmatprep.mubr.f32.mxu0 %v959
      %1778 = vmatmul.mubr.f32.gmra.mrb[0].mxu0 %v671
      %v1779 = vpop.f32.mrb[0].mxu0
      %v1780 = vadd.f32 %v1355, %v1779
      %v1781 = vpop.f32.mrb[0].mxu0
      %1782 = vmatprep.mubr.f32.mxu0 %v962
      %1783 = vmatmul.mubr.f32.gmra.mrb[0].mxu0 %v675
      %v1784 = vpop.f32.mrb[0].mxu0
      %v1785 = vadd.f32 %v1360, %v1784
      %v1786 = vpop.f32.mrb[0].mxu0
      %1787 = vmatprep.mubr.f32.mxu0 %v965
      %1788 = vmatmul.mubr.f32.gmra.mrb[0].mxu0 %v679
      %v1789 = vpop.f32.mrb[0].mxu0
      %v1790 = vadd.f32 %v1365, %v1789
      %v1791 = vpop.f32.mrb[0].mxu0
      %1792 = vmatprep.mubr.f32.mxu0 %v968
      %1793 = vmatmul.mubr.f32.gmra.mrb[0].mxu0 %v683
      %v1794 = vpop.f32.mrb[0].mxu0
      %v1795 = vadd.f32 %v1370, %v1794
      %v1796 = vpop.f32.mrb[0].mxu0
      %1797 = vmatprep.mubr.f32.mxu0 %v971
      %1798 = vmatmul.mubr.f32.gmra.mrb[0].mxu0 %v687
      %v1799 = vpop.f32.mrb[0].mxu0
      %v1800 = vadd.f32 %v1375, %v1799
      %v1801 = vpop.f32.mrb[0].mxu0
      %1802 = vmatprep.mubr.f32.mxu0 %v974
      %1803 = vmatmul.mubr.f32.gmra.mrb[0].mxu0 %v691
      %v1804 = vpop.f32.mrb[0].mxu0
      %v1805 = vadd.f32 %v1380, %v1804
      %v1806 = vpop.f32.mrb[0].mxu0
      %1807 = vmatprep.mubr.f32.mxu0 %v977
      %1808 = vmatmul.mubr.f32.gmra.mrb[0].mxu0 %v695
      %v1809 = vpop.f32.mrb[0].mxu0
      %v1810 = vadd.f32 %v1385, %v1809
      %v1811 = vpop.f32.mrb[0].mxu0
      %1812 = vmatprep.mubr.f32.mxu0 %v980
      %1813 = vmatmul.mubr.f32.gmra.mrb[0].mxu0 %v699
      %v1814 = vpop.f32.mrb[0].mxu0
      %v1815 = vadd.f32 %v1390, %v1814
      %v1816 = vpop.f32.mrb[0].mxu0
      %1817 = vmatprep.mubr.f32.mxu0 %v983
      %1818 = vmatmul.mubr.f32.gmra.mrb[0].mxu0 %v703
      %v1819 = vpop.f32.mrb[0].mxu0
      %v1820 = vadd.f32 %v1395, %v1819
      %v1821 = vpop.f32.mrb[0].mxu0
      %1822 = vmatprep.mubr.f32.mxu0 %v986
      %1823 = vmatmul.mubr.f32.gmra.mrb[0].mxu0 %v707
      %v1824 = vpop.f32.mrb[0].mxu0
      %v1825 = vadd.f32 %v1400, %v1824
      %v1826 = vpop.f32.mrb[0].mxu0
      %1827 = vmatprep.mubr.f32.mxu0 %v989
      %1828 = vmatmul.mubr.f32.gmra.mrb[0].mxu0 %v711
      %v1829 = vpop.f32.mrb[0].mxu0
      %v1830 = vadd.f32 %v1405, %v1829
      %v1831 = vpop.f32.mrb[0].mxu0
      %1832 = vmatprep.mubr.f32.mxu0 %v992
      %1833 = vmatmul.mubr.f32.gmra.mrb[0].mxu0 %v715
      %v1834 = vpop.f32.mrb[0].mxu0
      %v1835 = vadd.f32 %v1410, %v1834
      %v1836 = vpop.f32.mrb[0].mxu0
      %1837 = vmatprep.mubr.f32.mxu0 %v995
      %1838 = vmatmul.mubr.f32.gmra.mrb[0].mxu0 %v719
      %v1839 = vpop.f32.mrb[0].mxu0
      %v1840 = vadd.f32 %v1415, %v1839
      %v1841 = vpop.f32.mrb[0].mxu0
      %1842 = vmatprep.mubr.f32.mxu0 %v998
      %1843 = vmatmul.mubr.f32.gmra.mrb[0].mxu0 %v723
      %v1844 = vpop.f32.mrb[0].mxu0
      %v1845 = vadd.f32 %v1420, %v1844
      %v1846 = vpop.f32.mrb[0].mxu0
      %1847 = vmatprep.mubr.f32.mxu0 %v1001
      %1848 = vmatmul.mubr.f32.gmra.mrb[0].mxu0 %v727
      %v1849 = vpop.f32.mrb[0].mxu0
      %v1850 = vadd.f32 %v1425, %v1849
      %v1851 = vpop.f32.mrb[0].mxu0
      %1852 = vdwg.mxu0
      %v1853 = vmax.f32 %v1495, 0.0
      %v1854 = vmax.f32 %v1500, 0.0
      %v1855 = vmax.f32 %v1505, 0.0
      %v1856 = vmax.f32 %v1510, 0.0
      %v1857 = vmax.f32 %v1515, 0.0
      %v1858 = vmax.f32 %v1520, 0.0
      %v1859 = vmax.f32 %v1525, 0.0
      %v1860 = vmax.f32 %v1530, 0.0
      %v1861 = vmax.f32 %v1535, 0.0
      %v1862 = vmax.f32 %v1540, 0.0
      %v1863 = vmax.f32 %v1545, 0.0
      %v1864 = vmax.f32 %v1550, 0.0
      %v1865 = vmax.f32 %v1555, 0.0
      %v1866 = vmax.f32 %v1560, 0.0
      %v1867 = vmax.f32 %v1565, 0.0
      %v1868 = vmax.f32 %v1570, 0.0
      %v1869 = vmax.f32 %v1575, 0.0
      %v1870 = vmax.f32 %v1580, 0.0
      %v1871 = vmax.f32 %v1585, 0.0
      %v1872 = vmax.f32 %v1590, 0.0
      %v1873 = vmax.f32 %v1595, 0.0
      %v1874 = vmax.f32 %v1600, 0.0
      %v1875 = vmax.f32 %v1605, 0.0
      %v1876 = vmax.f32 %v1610, 0.0
      %v1877 = vmax.f32 %v1615, 0.0
      %v1878 = vmax.f32 %v1620, 0.0
      %v1879 = vmax.f32 %v1625, 0.0
      %v1880 = vmax.f32 %v1630, 0.0
      %v1881 = vmax.f32 %v1635, 0.0
      %v1882 = vmax.f32 %v1640, 0.0
      %v1883 = vmax.f32 %v1645, 0.0
      %v1884 = vmax.f32 %v1650, 0.0
      %v1885 = vmax.f32 %v1655, 0.0
      %v1886 = vmax.f32 %v1660, 0.0
      %v1887 = vmax.f32 %v1665, 0.0
      %v1888 = vmax.f32 %v1670, 0.0
      %v1889 = vmax.f32 %v1675, 0.0
      %v1890 = vmax.f32 %v1680, 0.0
      %v1891 = vmax.f32 %v1685, 0.0
      %v1892 = vmax.f32 %v1690, 0.0
      %v1893 = vmax.f32 %v1695, 0.0
      %v1894 = vmax.f32 %v1700, 0.0
      %v1895 = vmax.f32 %v1705, 0.0
      %v1896 = vmax.f32 %v1710, 0.0
      %v1897 = vmax.f32 %v1715, 0.0
      %v1898 = vmax.f32 %v1720, 0.0
      %v1899 = vmax.f32 %v1725, 0.0
      %v1900 = vmax.f32 %v1730, 0.0
      %v1901 = vmax.f32 %v1735, 0.0
      %v1902 = vmax.f32 %v1740, 0.0
      %v1903 = vmax.f32 %v1745, 0.0
      %v1904 = vmax.f32 %v1750, 0.0
      %v1905 = vmax.f32 %v1755, 0.0
      %v1906 = vmax.f32 %v1760, 0.0
      %v1907 = vmax.f32 %v1765, 0.0
      %v1908 = vmax.f32 %v1770, 0.0
      %v1909 = vmax.f32 %v1775, 0.0
      %v1910 = vmax.f32 %v1780, 0.0
      %v1911 = vmax.f32 %v1785, 0.0
      %v1912 = vmax.f32 %v1790, 0.0
      %v1913 = vmax.f32 %v1795, 0.0
      %v1914 = vmax.f32 %v1800, 0.0
      %v1915 = vmax.f32 %v1805, 0.0
      %v1916 = vmax.f32 %v1810, 0.0
      %v1917 = vmax.f32 %v1815, 0.0
      %v1918 = vmax.f32 %v1820, 0.0
      %v1919 = vmax.f32 %v1825, 0.0
      %v1920 = vmax.f32 %v1830, 0.0
      %v1921 = vmax.f32 %v1835, 0.0
      %v1922 = vmax.f32 %v1840, 0.0
      %v1923 = vmax.f32 %v1845, 0.0
      %v1924 = vmax.f32 %v1850, 0.0
      %1925 = vst [vmem:[#allocation2] sm:$0xff] %v1853
      %1926 = vst [vmem:[#allocation2 + $0x8] sm:$0xff] %v1854
      %1927 = vst [vmem:[#allocation2 + $0x10] sm:$0xff] %v1855
      %1928 = vst [vmem:[#allocation2 + $0x18] sm:$0xff] %v1856
      %1929 = vst [vmem:[#allocation2 + $0x20] sm:$0xff] %v1857
      %1930 = vst [vmem:[#allocation2 + $0x28] sm:$0xff] %v1858
      %1931 = vst [vmem:[#allocation2 + $0x30] sm:$0xff] %v1859
      %1932 = vst [vmem:[#allocation2 + $0x38] sm:$0xff] %v1860
      %1933 = vst [vmem:[#allocation2 + $0x40] sm:$0xff] %v1861
      %1934 = vst [vmem:[#allocation2 + $0x48] sm:$0xff] %v1862
      %1935 = vst [vmem:[#allocation2 + $0x50] sm:$0xff] %v1863
      %1936 = vst [vmem:[#allocation2 + $0x58] sm:$0xff] %v1864
      %1937 = vst [vmem:[#allocation2 + $0x60] sm:$0xff] %v1865
      %1938 = vst [vmem:[#allocation2 + $0x68] sm:$0xff] %v1866
      %1939 = vst [vmem:[#allocation2 + $0x70] sm:$0xff] %v1867
      %1940 = vst [vmem:[#allocation2 + $0x78] sm:$0xff] %v1868
      %1941 = vst [vmem:[#allocation2 + $0x80] sm:$0xff] %v1869
      %1942 = vst [vmem:[#allocation2 + $0x88] sm:$0xff] %v1870
      %1943 = vst [vmem:[#allocation2 + $0x90] sm:$0xff] %v1871
      %1944 = vst [vmem:[#allocation2 + $0x98] sm:$0xff] %v1872
      %1945 = vst [vmem:[#allocation2 + $0xa0] sm:$0xff] %v1873
      %1946 = vst [vmem:[#allocation2 + $0xa8] sm:$0xff] %v1874
      %1947 = vst [vmem:[#allocation2 + $0xb0] sm:$0xff] %v1875
      %1948 = vst [vmem:[#allocation2 + $0xb8] sm:$0xff] %v1876
      %1949 = vst [vmem:[#allocation2 + $0xc0] sm:$0xff] %v1877
      %1950 = vst [vmem:[#allocation2 + $0xc8] sm:$0xff] %v1878
      %1951 = vst [vmem:[#allocation2 + $0xd0] sm:$0xff] %v1879
      %1952 = vst [vmem:[#allocation2 + $0xd8] sm:$0xff] %v1880
      %1953 = vst [vmem:[#allocation2 + $0xe0] sm:$0xff] %v1881
      %1954 = vst [vmem:[#allocation2 + $0xe8] sm:$0xff] %v1882
      %1955 = vst [vmem:[#allocation2 + $0xf0] sm:$0xff] %v1883
      %1956 = vst [vmem:[#allocation2 + $0xf8] sm:$0xff] %v1884
      %1957 = vst [vmem:[#allocation2 + $0x100] sm:$0xff] %v1885
      %1958 = vst [vmem:[#allocation2 + $0x108] sm:$0xff] %v1886
      %1959 = vst [vmem:[#allocation2 + $0x110] sm:$0xff] %v1887
      %1960 = vst [vmem:[#allocation2 + $0x118] sm:$0xff] %v1888
      %1961 = vst [vmem:[#allocation2 + $0x120] sm:$0xff] %v1889
      %1962 = vst [vmem:[#allocation2 + $0x128] sm:$0xff] %v1890
      %1963 = vst [vmem:[#allocation2 + $0x130] sm:$0xff] %v1891
      %1964 = vst [vmem:[#allocation2 + $0x138] sm:$0xff] %v1892
      %1965 = vst [vmem:[#allocation2 + $0x140] sm:$0xff] %v1893
      %1966 = vst [vmem:[#allocation2 + $0x148] sm:$0xff] %v1894
      %1967 = vst [vmem:[#allocation2 + $0x150] sm:$0xff] %v1895
      %1968 = vst [vmem:[#allocation2 + $0x158] sm:$0xff] %v1896
      %1969 = vst [vmem:[#allocation2 + $0x160] sm:$0xff] %v1897
      %1970 = vst [vmem:[#allocation2 + $0x168] sm:$0xff] %v1898
      %1971 = vst [vmem:[#allocation2 + $0x170] sm:$0xff] %v1899
      %1972 = vst [vmem:[#allocation2 + $0x178] sm:$0xff] %v1900
      %1973 = vst [vmem:[#allocation2 + $0x180] sm:$0xff] %v1901
      %1974 = vst [vmem:[#allocation2 + $0x188] sm:$0xff] %v1902
      %1975 = vst [vmem:[#allocation2 + $0x190] sm:$0xff] %v1903
      %1976 = vst [vmem:[#allocation2 + $0x198] sm:$0xff] %v1904
      %1977 = vst [vmem:[#allocation2 + $0x1a0] sm:$0xff] %v1905
      %1978 = vst [vmem:[#allocation2 + $0x1a8] sm:$0xff] %v1906
      %1979 = vst [vmem:[#allocation2 + $0x1b0] sm:$0xff] %v1907
      %1980 = vst [vmem:[#allocation2 + $0x1b8] sm:$0xff] %v1908
      %1981 = vst [vmem:[#allocation2 + $0x1c0] sm:$0xff] %v1909
      %1982 = vst [vmem:[#allocation2 + $0x1c8] sm:$0xff] %v1910
      %1983 = vst [vmem:[#allocation2 + $0x1d0] sm:$0xff] %v1911
      %1984 = vst [vmem:[#allocation2 + $0x1d8] sm:$0xff] %v1912
      %1985 = vst [vmem:[#allocation2 + $0x1e0] sm:$0xff] %v1913
      %1986 = vst [vmem:[#allocation2 + $0x1e8] sm:$0xff] %v1914
      %1987 = vst [vmem:[#allocation2 + $0x1f0] sm:$0xff] %v1915
      %1988 = vst [vmem:[#allocation2 + $0x1f8] sm:$0xff] %v1916
      %1989 = vst [vmem:[#allocation2 + $0x200] sm:$0xff] %v1917
      %1990 = vst [vmem:[#allocation2 + $0x208] sm:$0xff] %v1918
      %1991 = vst [vmem:[#allocation2 + $0x210] sm:$0xff] %v1919
      %1992 = vst [vmem:[#allocation2 + $0x218] sm:$0xff] %v1920
      %1993 = vst [vmem:[#allocation2 + $0x220] sm:$0xff] %v1921
      %1994 = vst [vmem:[#allocation2 + $0x228] sm:$0xff] %v1922
      %1995 = vst [vmem:[#allocation2 + $0x230] sm:$0xff] %v1923
      %1996 = vst [vmem:[#allocation2 + $0x238] sm:$0xff] %v1924
      %v1997 = vld [vmem:[#allocation2] sm:$0xff]
      %v1998 = vld [vmem:[#allocation2 + $0x8] sm:$0xff]
      %v1999 = vld [vmem:[#allocation2 + $0x10] sm:$0xff]
      %v2000 = vld [vmem:[#allocation2 + $0x18] sm:$0xff]
      %v2001 = vld [vmem:[#allocation2 + $0x20] sm:$0xff]
      %v2002 = vld [vmem:[#allocation2 + $0x28] sm:$0xff]
      %v2003 = vld [vmem:[#allocation2 + $0x30] sm:$0xff]
      %v2004 = vld [vmem:[#allocation2 + $0x38] sm:$0xff]
      %v2005 = vld [vmem:[#allocation2 + $0x40] sm:$0xff]
      %v2006 = vld [vmem:[#allocation2 + $0x48] sm:$0xff]
      %v2007 = vld [vmem:[#allocation2 + $0x50] sm:$0xff]
      %v2008 = vld [vmem:[#allocation2 + $0x58] sm:$0xff]
      %v2009 = vld [vmem:[#allocation2 + $0x60] sm:$0xff]
      %v2010 = vld [vmem:[#allocation2 + $0x68] sm:$0xff]
      %v2011 = vld [vmem:[#allocation2 + $0x70] sm:$0xff]
      %v2012 = vld [vmem:[#allocation2 + $0x78] sm:$0xff]
      %v2013 = vld [vmem:[#allocation2 + $0x80] sm:$0xff]
      %v2014 = vld [vmem:[#allocation2 + $0x88] sm:$0xff]
      %v2015 = vld [vmem:[#allocation2 + $0x90] sm:$0xff]
      %v2016 = vld [vmem:[#allocation2 + $0x98] sm:$0xff]
      %v2017 = vld [vmem:[#allocation2 + $0xa0] sm:$0xff]
      %v2018 = vld [vmem:[#allocation2 + $0xa8] sm:$0xff]
      %v2019 = vld [vmem:[#allocation2 + $0xb0] sm:$0xff]
      %v2020 = vld [vmem:[#allocation2 + $0xb8] sm:$0xff]
      %v2021 = vld [vmem:[#allocation2 + $0xc0] sm:$0xff]
      %v2022 = vld [vmem:[#allocation2 + $0xc8] sm:$0xff]
      %v2023 = vld [vmem:[#allocation2 + $0xd0] sm:$0xff]
      %v2024 = vld [vmem:[#allocation2 + $0xd8] sm:$0xff]
      %v2025 = vld [vmem:[#allocation2 + $0xe0] sm:$0xff]
      %v2026 = vld [vmem:[#allocation2 + $0xe8] sm:$0xff]
      %v2027 = vld [vmem:[#allocation2 + $0xf0] sm:$0xff]
      %v2028 = vld [vmem:[#allocation2 + $0xf8] sm:$0xff]
      %v2029 = vld [vmem:[#allocation2 + $0x100] sm:$0xff]
      %v2030 = vld [vmem:[#allocation2 + $0x108] sm:$0xff]
      %v2031 = vld [vmem:[#allocation2 + $0x110] sm:$0xff]
      %v2032 = vld [vmem:[#allocation2 + $0x118] sm:$0xff]
      %v2033 = vld [vmem:[#allocation2 + $0x120] sm:$0xff]
      %v2034 = vld [vmem:[#allocation2 + $0x128] sm:$0xff]
      %v2035 = vld [vmem:[#allocation2 + $0x130] sm:$0xff]
      %v2036 = vld [vmem:[#allocation2 + $0x138] sm:$0xff]
      %v2037 = vld [vmem:[#allocation2 + $0x140] sm:$0xff]
      %v2038 = vld [vmem:[#allocation2 + $0x148] sm:$0xff]
      %v2039 = vld [vmem:[#allocation2 + $0x150] sm:$0xff]
      %v2040 = vld [vmem:[#allocation2 + $0x158] sm:$0xff]
      %v2041 = vld [vmem:[#allocation2 + $0x160] sm:$0xff]
      %v2042 = vld [vmem:[#allocation2 + $0x168] sm:$0xff]
      %v2043 = vld [vmem:[#allocation2 + $0x170] sm:$0xff]
      %v2044 = vld [vmem:[#allocation2 + $0x178] sm:$0xff]
      %v2045 = vld [vmem:[#allocation2 + $0x180] sm:$0xff]
      %v2046 = vld [vmem:[#allocation2 + $0x188] sm:$0xff]
      %v2047 = vld [vmem:[#allocation2 + $0x190] sm:$0xff]
      %v2048 = vld [vmem:[#allocation2 + $0x198] sm:$0xff]
      %v2049 = vld [vmem:[#allocation2 + $0x1a0] sm:$0xff]
      %v2050 = vld [vmem:[#allocation2 + $0x1a8] sm:$0xff]
      %v2051 = vld [vmem:[#allocation2 + $0x1b0] sm:$0xff]
      %v2052 = vld [vmem:[#allocation2 + $0x1b8] sm:$0xff]
      %v2053 = vld [vmem:[#allocation2 + $0x1c0] sm:$0xff]
      %v2054 = vld [vmem:[#allocation2 + $0x1c8] sm:$0xff]
      %v2055 = vld [vmem:[#allocation2 + $0x1d0] sm:$0xff]
      %v2056 = vld [vmem:[#allocation2 + $0x1d8] sm:$0xff]
      %v2057 = vld [vmem:[#allocation2 + $0x1e0] sm:$0xff]
      %v2058 = vld [vmem:[#allocation2 + $0x1e8] sm:$0xff]
      %v2059 = vld [vmem:[#allocation2 + $0x1f0] sm:$0xff]
      %v2060 = vld [vmem:[#allocation2 + $0x1f8] sm:$0xff]
      %v2061 = vld [vmem:[#allocation2 + $0x200] sm:$0xff]
      %v2062 = vld [vmem:[#allocation2 + $0x208] sm:$0xff]
      %v2063 = vld [vmem:[#allocation2 + $0x210] sm:$0xff]
      %v2064 = vld [vmem:[#allocation2 + $0x218] sm:$0xff]
      %v2065 = vld [vmem:[#allocation2 + $0x220] sm:$0x7f]
      %v2066 = vld [vmem:[#allocation2 + $0x1] sm:$0xff]
      %v2067 = vld [vmem:[#allocation2 + $0x9] sm:$0xff]
      %v2068 = vld [vmem:[#allocation2 + $0x11] sm:$0xff]
      %v2069 = vld [vmem:[#allocation2 + $0x19] sm:$0xff]
      %v2070 = vld [vmem:[#allocation2 + $0x21] sm:$0xff]
      %v2071 = vld [vmem:[#allocation2 + $0x29] sm:$0xff]
      %v2072 = vld [vmem:[#allocation2 + $0x31] sm:$0xff]
      %v2073 = vld [vmem:[#allocation2 + $0x39] sm:$0xff]
      %v2074 = vld [vmem:[#allocation2 + $0x41] sm:$0xff]
      %v2075 = vld [vmem:[#allocation2 + $0x49] sm:$0xff]
      %v2076 = vld [vmem:[#allocation2 + $0x51] sm:$0xff]
      %v2077 = vld [vmem:[#allocation2 + $0x59] sm:$0xff]
      %v2078 = vld [vmem:[#allocation2 + $0x61] sm:$0xff]
      %v2079 = vld [vmem:[#allocation2 + $0x69] sm:$0xff]
      %v2080 = vld [vmem:[#allocation2 + $0x71] sm:$0xff]
      %v2081 = vld [vmem:[#allocation2 + $0x79] sm:$0xff]
      %v2082 = vld [vmem:[#allocation2 + $0x81] sm:$0xff]
      %v2083 = vld [vmem:[#allocation2 + $0x89] sm:$0xff]
      %v2084 = vld [vmem:[#allocation2 + $0x91] sm:$0xff]
      %v2085 = vld [vmem:[#allocation2 + $0x99] sm:$0xff]
      %v2086 = vld [vmem:[#allocation2 + $0xa1] sm:$0xff]
      %v2087 = vld [vmem:[#allocation2 + $0xa9] sm:$0xff]
      %v2088 = vld [vmem:[#allocation2 + $0xb1] sm:$0xff]
      %v2089 = vld [vmem:[#allocation2 + $0xb9] sm:$0xff]
      %v2090 = vld [vmem:[#allocation2 + $0xc1] sm:$0xff]
      %v2091 = vld [vmem:[#allocation2 + $0xc9] sm:$0xff]
      %v2092 = vld [vmem:[#allocation2 + $0xd1] sm:$0xff]
      %v2093 = vld [vmem:[#allocation2 + $0xd9] sm:$0xff]
      %v2094 = vld [vmem:[#allocation2 + $0xe1] sm:$0xff]
      %v2095 = vld [vmem:[#allocation2 + $0xe9] sm:$0xff]
      %v2096 = vld [vmem:[#allocation2 + $0xf1] sm:$0xff]
      %v2097 = vld [vmem:[#allocation2 + $0xf9] sm:$0xff]
      %v2098 = vld [vmem:[#allocation2 + $0x101] sm:$0xff]
      %v2099 = vld [vmem:[#allocation2 + $0x109] sm:$0xff]
      %v2100 = vld [vmem:[#allocation2 + $0x111] sm:$0xff]
      %v2101 = vld [vmem:[#allocation2 + $0x119] sm:$0xff]
      %v2102 = vld [vmem:[#allocation2 + $0x121] sm:$0xff]
      %v2103 = vld [vmem:[#allocation2 + $0x129] sm:$0xff]
      %v2104 = vld [vmem:[#allocation2 + $0x131] sm:$0xff]
      %v2105 = vld [vmem:[#allocation2 + $0x139] sm:$0xff]
      %v2106 = vld [vmem:[#allocation2 + $0x141] sm:$0xff]
      %v2107 = vld [vmem:[#allocation2 + $0x149] sm:$0xff]
      %v2108 = vld [vmem:[#allocation2 + $0x151] sm:$0xff]
      %v2109 = vld [vmem:[#allocation2 + $0x159] sm:$0xff]
      %v2110 = vld [vmem:[#allocation2 + $0x161] sm:$0xff]
      %v2111 = vld [vmem:[#allocation2 + $0x169] sm:$0xff]
      %v2112 = vld [vmem:[#allocation2 + $0x171] sm:$0xff]
      %v2113 = vld [vmem:[#allocation2 + $0x179] sm:$0xff]
      %v2114 = vld [vmem:[#allocation2 + $0x181] sm:$0xff]
      %v2115 = vld [vmem:[#allocation2 + $0x189] sm:$0xff]
      %v2116 = vld [vmem:[#allocation2 + $0x191] sm:$0xff]
      %v2117 = vld [vmem:[#allocation2 + $0x199] sm:$0xff]
      %v2118 = vld [vmem:[#allocation2 + $0x1a1] sm:$0xff]
      %v2119 = vld [vmem:[#allocation2 + $0x1a9] sm:$0xff]
      %v2120 = vld [vmem:[#allocation2 + $0x1b1] sm:$0xff]
      %v2121 = vld [vmem:[#allocation2 + $0x1b9] sm:$0xff]
      %v2122 = vld [vmem:[#allocation2 + $0x1c1] sm:$0xff]
      %v2123 = vld [vmem:[#allocation2 + $0x1c9] sm:$0xff]
      %v2124 = vld [vmem:[#allocation2 + $0x1d1] sm:$0xff]
      %v2125 = vld [vmem:[#allocation2 + $0x1d9] sm:$0xff]
      %v2126 = vld [vmem:[#allocation2 + $0x1e1] sm:$0xff]
      %v2127 = vld [vmem:[#allocation2 + $0x1e9] sm:$0xff]
      %v2128 = vld [vmem:[#allocation2 + $0x1f1] sm:$0xff]
      %v2129 = vld [vmem:[#allocation2 + $0x1f9] sm:$0xff]
      %v2130 = vld [vmem:[#allocation2 + $0x201] sm:$0xff]
      %v2131 = vld [vmem:[#allocation2 + $0x209] sm:$0xff]
      %v2132 = vld [vmem:[#allocation2 + $0x211] sm:$0xff]
      %v2133 = vld [vmem:[#allocation2 + $0x219] sm:$0xff]
      %v2134 = vld [vmem:[#allocation2 + $0x221] sm:$0x7f]
      %v2135 = vmax.f32 %v1997, %v2066
      %v2136 = vmax.f32 %v1998, %v2067
      %v2137 = vmax.f32 %v1999, %v2068
      %v2138 = vmax.f32 %v2000, %v2069
      %v2139 = vmax.f32 %v2001, %v2070
      %v2140 = vmax.f32 %v2002, %v2071
      %v2141 = vmax.f32 %v2003, %v2072
      %v2142 = vmax.f32 %v2004, %v2073
      %v2143 = vmax.f32 %v2005, %v2074
      %v2144 = vmax.f32 %v2006, %v2075
      %v2145 = vmax.f32 %v2007, %v2076
      %v2146 = vmax.f32 %v2008, %v2077
      %v2147 = vmax.f32 %v2009, %v2078
      %v2148 = vmax.f32 %v2010, %v2079
      %v2149 = vmax.f32 %v2011, %v2080
      %v2150 = vmax.f32 %v2012, %v2081
      %v2151 = vmax.f32 %v2013, %v2082
      %v2152 = vmax.f32 %v2014, %v2083
      %v2153 = vmax.f32 %v2015, %v2084
      %v2154 = vmax.f32 %v2016, %v2085
      %v2155 = vmax.f32 %v2017, %v2086
      %v2156 = vmax.f32 %v2018, %v2087
      %v2157 = vmax.f32 %v2019, %v2088
      %v2158 = vmax.f32 %v2020, %v2089
      %v2159 = vmax.f32 %v2021, %v2090
      %v2160 = vmax.f32 %v2022, %v2091
      %v2161 = vmax.f32 %v2023, %v2092
      %v2162 = vmax.f32 %v2024, %v2093
      %v2163 = vmax.f32 %v2025, %v2094
      %v2164 = vmax.f32 %v2026, %v2095
      %v2165 = vmax.f32 %v2027, %v2096
      %v2166 = vmax.f32 %v2028, %v2097
      %v2167 = vmax.f32 %v2029, %v2098
      %v2168 = vmax.f32 %v2030, %v2099
      %v2169 = vmax.f32 %v2031, %v2100
      %v2170 = vmax.f32 %v2032, %v2101
      %v2171 = vmax.f32 %v2033, %v2102
      %v2172 = vmax.f32 %v2034, %v2103
      %v2173 = vmax.f32 %v2035, %v2104
      %v2174 = vmax.f32 %v2036, %v2105
      %v2175 = vmax.f32 %v2037, %v2106
      %v2176 = vmax.f32 %v2038, %v2107
      %v2177 = vmax.f32 %v2039, %v2108
      %v2178 = vmax.f32 %v2040, %v2109
      %v2179 = vmax.f32 %v2041, %v2110
      %v2180 = vmax.f32 %v2042, %v2111
      %v2181 = vmax.f32 %v2043, %v2112
      %v2182 = vmax.f32 %v2044, %v2113
      %v2183 = vmax.f32 %v2045, %v2114
      %v2184 = vmax.f32 %v2046, %v2115
      %v2185 = vmax.f32 %v2047, %v2116
      %v2186 = vmax.f32 %v2048, %v2117
      %v2187 = vmax.f32 %v2049, %v2118
      %v2188 = vmax.f32 %v2050, %v2119
      %v2189 = vmax.f32 %v2051, %v2120
      %v2190 = vmax.f32 %v2052, %v2121
      %v2191 = vmax.f32 %v2053, %v2122
      %v2192 = vmax.f32 %v2054, %v2123
      %v2193 = vmax.f32 %v2055, %v2124
      %v2194 = vmax.f32 %v2056, %v2125
      %v2195 = vmax.f32 %v2057, %v2126
      %v2196 = vmax.f32 %v2058, %v2127
      %v2197 = vmax.f32 %v2059, %v2128
      %v2198 = vmax.f32 %v2060, %v2129
      %v2199 = vmax.f32 %v2061, %v2130
      %v2200 = vmax.f32 %v2062, %v2131
      %v2201 = vmax.f32 %v2063, %v2132
      %v2202 = vmax.f32 %v2064, %v2133
      %v2203 = vmax.f32 %v2065, %v2134
      %v2204 = vld [vmem:[#allocation2 + $0x220] sm:$0xff]
      %v2205 = vld [vmem:[#allocation2 + $0x228] sm:$0xff]
      %v2206 = vld [vmem:[#allocation2 + $0x230] sm:$0xff]
      %v2207 = vld [vmem:[#allocation2 + $0x238] sm:$0x7f]
      %v2208 = vld [vmem:[#allocation2 + $0x19] sm:$0xff]
      %v2209 = vld [vmem:[#allocation2 + $0x21] sm:$0xff]
      %v2210 = vld [vmem:[#allocation2 + $0x29] sm:$0xff]
      %v2211 = vld [vmem:[#allocation2 + $0x31] sm:$0xff]
      %v2212 = vld [vmem:[#allocation2 + $0x39] sm:$0xff]
      %v2213 = vld [vmem:[#allocation2 + $0x41] sm:$0xff]
      %v2214 = vld [vmem:[#allocation2 + $0x49] sm:$0xff]
      %v2215 = vld [vmem:[#allocation2 + $0x51] sm:$0xff]
      %v2216 = vld [vmem:[#allocation2 + $0x59] sm:$0xff]
      %v2217 = vld [vmem:[#allocation2 + $0x61] sm:$0xff]
      %v2218 = vld [vmem:[#allocation2 + $0x69] sm:$0xff]
      %v2219 = vld [vmem:[#allocation2 + $0x71] sm:$0xff]
      %v2220 = vld [vmem:[#allocation2 + $0x79] sm:$0xff]
      %v2221 = vld [vmem:[#allocation2 + $0x81] sm:$0xff]
      %v2222 = vld [vmem:[#allocation2 + $0x89] sm:$0xff]
      %v2223 = vld [vmem:[#allocation2 + $0x91] sm:$0xff]
      %v2224 = vld [vmem:[#allocation2 + $0x99] sm:$0xff]
      %v2225 = vld [vmem:[#allocation2 + $0xa1] sm:$0xff]
      %v2226 = vld [vmem:[#allocation2 + $0xa9] sm:$0xff]
      %v2227 = vld [vmem:[#allocation2 + $0xb1] sm:$0xff]
      %v2228 = vld [vmem:[#allocation2 + $0xb9] sm:$0xff]
      %v2229 = vld [vmem:[#allocation2 + $0xc1] sm:$0xff]
      %v2230 = vld [vmem:[#allocation2 + $0xc9] sm:$0xff]
      %v2231 = vld [vmem:[#allocation2 + $0xd1] sm:$0xff]
      %v2232 = vld [vmem:[#allocation2 + $0xd9] sm:$0xff]
      %v2233 = vld [vmem:[#allocation2 + $0xe1] sm:$0xff]
      %v2234 = vld [vmem:[#allocation2 + $0xe9] sm:$0xff]
      %v2235 = vld [vmem:[#allocation2 + $0xf1] sm:$0xff]
      %v2236 = vld [vmem:[#allocation2 + $0xf9] sm:$0xff]
      %v2237 = vld [vmem:[#allocation2 + $0x101] sm:$0xff]
      %v2238 = vld [vmem:[#allocation2 + $0x109] sm:$0xff]
      %v2239 = vld [vmem:[#allocation2 + $0x111] sm:$0xff]
      %v2240 = vld [vmem:[#allocation2 + $0x119] sm:$0xff]
      %v2241 = vld [vmem:[#allocation2 + $0x121] sm:$0xff]
      %v2242 = vld [vmem:[#allocation2 + $0x129] sm:$0xff]
      %v2243 = vld [vmem:[#allocation2 + $0x131] sm:$0xff]
      %v2244 = vld [vmem:[#allocation2 + $0x139] sm:$0xff]
      %v2245 = vld [vmem:[#allocation2 + $0x141] sm:$0xff]
      %v2246 = vld [vmem:[#allocation2 + $0x149] sm:$0xff]
      %v2247 = vld [vmem:[#allocation2 + $0x151] sm:$0xff]
      %v2248 = vld [vmem:[#allocation2 + $0x159] sm:$0xff]
      %v2249 = vld [vmem:[#allocation2 + $0x161] sm:$0xff]
      %v2250 = vld [vmem:[#allocation2 + $0x169] sm:$0xff]
      %v2251 = vld [vmem:[#allocation2 + $0x171] sm:$0xff]
      %v2252 = vld [vmem:[#allocation2 + $0x179] sm:$0xff]
      %v2253 = vld [vmem:[#allocation2 + $0x181] sm:$0xff]
      %v2254 = vld [vmem:[#allocation2 + $0x189] sm:$0xff]
      %v2255 = vld [vmem:[#allocation2 + $0x191] sm:$0xff]
      %v2256 = vld [vmem:[#allocation2 + $0x199] sm:$0xff]
      %v2257 = vld [vmem:[#allocation2 + $0x1a1] sm:$0xff]
      %v2258 = vld [vmem:[#allocation2 + $0x1a9] sm:$0xff]
      %v2259 = vld [vmem:[#allocation2 + $0x1b1] sm:$0xff]
      %v2260 = vld [vmem:[#allocation2 + $0x1b9] sm:$0xff]
      %v2261 = vld [vmem:[#allocation2 + $0x1c1] sm:$0xff]
      %v2262 = vld [vmem:[#allocation2 + $0x1c9] sm:$0xff]
      %v2263 = vld [vmem:[#allocation2 + $0x1d1] sm:$0xff]
      %v2264 = vld [vmem:[#allocation2 + $0x1d9] sm:$0xff]
      %v2265 = vld [vmem:[#allocation2 + $0x1e1] sm:$0xff]
      %v2266 = vld [vmem:[#allocation2 + $0x1e9] sm:$0xff]
      %v2267 = vld [vmem:[#allocation2 + $0x1f1] sm:$0xff]
      %v2268 = vld [vmem:[#allocation2 + $0x1f9] sm:$0xff]
      %v2269 = vld [vmem:[#allocation2 + $0x201] sm:$0xff]
      %v2270 = vld [vmem:[#allocation2 + $0x209] sm:$0xff]
      %v2271 = vld [vmem:[#allocation2 + $0x211] sm:$0xff]
      %v2272 = vld [vmem:[#allocation2 + $0x219] sm:$0xff]
      %v2273 = vld [vmem:[#allocation2 + $0x221] sm:$0xff]
      %v2274 = vld [vmem:[#allocation2 + $0x229] sm:$0xff]
      %v2275 = vld [vmem:[#allocation2 + $0x231] sm:$0xff]
      %v2276 = vld [vmem:[#allocation2 + $0x239] sm:$0x7f]
      %v2277 = vmax.f32 %v2000, %v2208
      %v2278 = vmax.f32 %v2001, %v2209
      %v2279 = vmax.f32 %v2002, %v2210
      %v2280 = vmax.f32 %v2003, %v2211
      %v2281 = vmax.f32 %v2004, %v2212
      %v2282 = vmax.f32 %v2005, %v2213
      %v2283 = vmax.f32 %v2006, %v2214
      %v2284 = vmax.f32 %v2007, %v2215
      %v2285 = vmax.f32 %v2008, %v2216
      %v2286 = vmax.f32 %v2009, %v2217
      %v2287 = vmax.f32 %v2010, %v2218
      %v2288 = vmax.f32 %v2011, %v2219
      %v2289 = vmax.f32 %v2012, %v2220
      %v2290 = vmax.f32 %v2013, %v2221
      %v2291 = vmax.f32 %v2014, %v2222
      %v2292 = vmax.f32 %v2015, %v2223
      %v2293 = vmax.f32 %v2016, %v2224
      %v2294 = vmax.f32 %v2017, %v2225
      %v2295 = vmax.f32 %v2018, %v2226
      %v2296 = vmax.f32 %v2019, %v2227
      %v2297 = vmax.f32 %v2020, %v2228
      %v2298 = vmax.f32 %v2021, %v2229
      %v2299 = vmax.f32 %v2022, %v2230
      %v2300 = vmax.f32 %v2023, %v2231
      %v2301 = vmax.f32 %v2024, %v2232
      %v2302 = vmax.f32 %v2025, %v2233
      %v2303 = vmax.f32 %v2026, %v2234
      %v2304 = vmax.f32 %v2027, %v2235
      %v2305 = vmax.f32 %v2028, %v2236
      %v2306 = vmax.f32 %v2029, %v2237
      %v2307 = vmax.f32 %v2030, %v2238
      %v2308 = vmax.f32 %v2031, %v2239
      %v2309 = vmax.f32 %v2032, %v2240
      %v2310 = vmax.f32 %v2033, %v2241
      %v2311 = vmax.f32 %v2034, %v2242
      %v2312 = vmax.f32 %v2035, %v2243
      %v2313 = vmax.f32 %v2036, %v2244
      %v2314 = vmax.f32 %v2037, %v2245
      %v2315 = vmax.f32 %v2038, %v2246
      %v2316 = vmax.f32 %v2039, %v2247
      %v2317 = vmax.f32 %v2040, %v2248
      %v2318 = vmax.f32 %v2041, %v2249
      %v2319 = vmax.f32 %v2042, %v2250
      %v2320 = vmax.f32 %v2043, %v2251
      %v2321 = vmax.f32 %v2044, %v2252
      %v2322 = vmax.f32 %v2045, %v2253
      %v2323 = vmax.f32 %v2046, %v2254
      %v2324 = vmax.f32 %v2047, %v2255
      %v2325 = vmax.f32 %v2048, %v2256
      %v2326 = vmax.f32 %v2049, %v2257
      %v2327 = vmax.f32 %v2050, %v2258
      %v2328 = vmax.f32 %v2051, %v2259
      %v2329 = vmax.f32 %v2052, %v2260
      %v2330 = vmax.f32 %v2053, %v2261
      %v2331 = vmax.f32 %v2054, %v2262
      %v2332 = vmax.f32 %v2055, %v2263
      %v2333 = vmax.f32 %v2056, %v2264
      %v2334 = vmax.f32 %v2057, %v2265
      %v2335 = vmax.f32 %v2058, %v2266
      %v2336 = vmax.f32 %v2059, %v2267
      %v2337 = vmax.f32 %v2060, %v2268
      %v2338 = vmax.f32 %v2061, %v2269
      %v2339 = vmax.f32 %v2062, %v2270
      %v2340 = vmax.f32 %v2063, %v2271
      %v2341 = vmax.f32 %v2064, %v2272
      %v2342 = vmax.f32 %v2204, %v2273
      %v2343 = vmax.f32 %v2205, %v2274
      %v2344 = vmax.f32 %v2206, %v2275
      %v2345 = vmax.f32 %v2207, %v2276
      %v2346 = vmax.f32 %v2135, %v2277
      %v2347 = vmax.f32 %v2136, %v2278
      %v2348 = vmax.f32 %v2137, %v2279
      %v2349 = vmax.f32 %v2138, %v2280
      %v2350 = vmax.f32 %v2139, %v2281
      %v2351 = vmax.f32 %v2140, %v2282
      %v2352 = vmax.f32 %v2141, %v2283
      %v2353 = vmax.f32 %v2142, %v2284
      %v2354 = vmax.f32 %v2143, %v2285
      %v2355 = vmax.f32 %v2144, %v2286
      %v2356 = vmax.f32 %v2145, %v2287
      %v2357 = vmax.f32 %v2146, %v2288
      %v2358 = vmax.f32 %v2147, %v2289
      %v2359 = vmax.f32 %v2148, %v2290
      %v2360 = vmax.f32 %v2149, %v2291
      %v2361 = vmax.f32 %v2150, %v2292
      %v2362 = vmax.f32 %v2151, %v2293
      %v2363 = vmax.f32 %v2152, %v2294
      %v2364 = vmax.f32 %v2153, %v2295
      %v2365 = vmax.f32 %v2154, %v2296
      %v2366 = vmax.f32 %v2155, %v2297
      %v2367 = vmax.f32 %v2156, %v2298
      %v2368 = vmax.f32 %v2157, %v2299
      %v2369 = vmax.f32 %v2158, %v2300
      %v2370 = vmax.f32 %v2159, %v2301
      %v2371 = vmax.f32 %v2160, %v2302
      %v2372 = vmax.f32 %v2161, %v2303
      %v2373 = vmax.f32 %v2162, %v2304
      %v2374 = vmax.f32 %v2163, %v2305
      %v2375 = vmax.f32 %v2164, %v2306
      %v2376 = vmax.f32 %v2165, %v2307
      %v2377 = vmax.f32 %v2166, %v2308
      %v2378 = vmax.f32 %v2167, %v2309
      %v2379 = vmax.f32 %v2168, %v2310
      %v2380 = vmax.f32 %v2169, %v2311
      %v2381 = vmax.f32 %v2170, %v2312
      %v2382 = vmax.f32 %v2171, %v2313
      %v2383 = vmax.f32 %v2172, %v2314
      %v2384 = vmax.f32 %v2173, %v2315
      %v2385 = vmax.f32 %v2174, %v2316
      %v2386 = vmax.f32 %v2175, %v2317
      %v2387 = vmax.f32 %v2176, %v2318
      %v2388 = vmax.f32 %v2177, %v2319
      %v2389 = vmax.f32 %v2178, %v2320
      %v2390 = vmax.f32 %v2179, %v2321
      %v2391 = vmax.f32 %v2180, %v2322
      %v2392 = vmax.f32 %v2181, %v2323
      %v2393 = vmax.f32 %v2182, %v2324
      %v2394 = vmax.f32 %v2183, %v2325
      %v2395 = vmax.f32 %v2184, %v2326
      %v2396 = vmax.f32 %v2185, %v2327
      %v2397 = vmax.f32 %v2186, %v2328
      %v2398 = vmax.f32 %v2187, %v2329
      %v2399 = vmax.f32 %v2188, %v2330
      %v2400 = vmax.f32 %v2189, %v2331
      %v2401 = vmax.f32 %v2190, %v2332
      %v2402 = vmax.f32 %v2191, %v2333
      %v2403 = vmax.f32 %v2192, %v2334
      %v2404 = vmax.f32 %v2193, %v2335
      %v2405 = vmax.f32 %v2194, %v2336
      %v2406 = vmax.f32 %v2195, %v2337
      %v2407 = vmax.f32 %v2196, %v2338
      %v2408 = vmax.f32 %v2197, %v2339
      %v2409 = vmax.f32 %v2198, %v2340
      %v2410 = vmax.f32 %v2199, %v2341
      %v2411 = vmax.f32 %v2200, %v2342
      %v2412 = vmax.f32 %v2201, %v2343
      %v2413 = vmax.f32 %v2202, %v2344
      %v2414 = vmax.f32 %v2203, %v2345
      %v2415 = vld [vmem:[%s3] sm:$0xff]
      %v2416 = vld [vmem:[%s3 + $0x8] sm:$0xff]
      %v2417 = vld [vmem:[%s3 + $0x10] sm:$0xff]
      %v2418 = vld [vmem:[%s3 + $0x18] sm:$0xff]
      %v2419 = vld [vmem:[%s3 + $0x20] sm:$0xff]
      %v2420 = vld [vmem:[%s3 + $0x28] sm:$0xff]
      %v2421 = vld [vmem:[%s3 + $0x30] sm:$0xff]
      %v2422 = vld [vmem:[%s3 + $0x38] sm:$0xff]
      %v2423 = vld [vmem:[%s3 + $0x40] sm:$0xff]
      %v2424 = vld [vmem:[%s3 + $0x48] sm:$0xff]
      %v2425 = vld [vmem:[%s3 + $0x50] sm:$0xff]
      %v2426 = vld [vmem:[%s3 + $0x58] sm:$0xff]
      %v2427 = vld [vmem:[%s3 + $0x60] sm:$0xff]
      %v2428 = vld [vmem:[%s3 + $0x68] sm:$0xff]
      %v2429 = vld [vmem:[%s3 + $0x70] sm:$0xff]
      %v2430 = vld [vmem:[%s3 + $0x78] sm:$0xff]
      %v2431 = vld [vmem:[%s3 + $0x80] sm:$0xff]
      %v2432 = vld [vmem:[%s3 + $0x88] sm:$0xff]
      %v2433 = vld [vmem:[%s3 + $0x90] sm:$0xff]
      %v2434 = vld [vmem:[%s3 + $0x98] sm:$0xff]
      %v2435 = vld [vmem:[%s3 + $0xa0] sm:$0xff]
      %v2436 = vld [vmem:[%s3 + $0xa8] sm:$0xff]
      %v2437 = vld [vmem:[%s3 + $0xb0] sm:$0xff]
      %v2438 = vld [vmem:[%s3 + $0xb8] sm:$0xff]
      %v2439 = vld [vmem:[%s3 + $0xc0] sm:$0xff]
      %v2440 = vld [vmem:[%s3 + $0xc8] sm:$0xff]
      %v2441 = vld [vmem:[%s3 + $0xd0] sm:$0xff]
      %v2442 = vld [vmem:[%s3 + $0xd8] sm:$0xff]
      %v2443 = vld [vmem:[%s3 + $0xe0] sm:$0xff]
      %v2444 = vld [vmem:[%s3 + $0xe8] sm:$0xff]
      %v2445 = vld [vmem:[%s3 + $0xf0] sm:$0xff]
      %v2446 = vld [vmem:[%s3 + $0xf8] sm:$0xff]
      %v2447 = vld [vmem:[%s3 + $0x100] sm:$0xff]
      %v2448 = vld [vmem:[%s3 + $0x108] sm:$0xff]
      %v2449 = vld [vmem:[%s3 + $0x110] sm:$0xff]
      %v2450 = vld [vmem:[%s3 + $0x118] sm:$0xff]
      %v2451 = vld [vmem:[%s3 + $0x120] sm:$0xff]
      %v2452 = vld [vmem:[%s3 + $0x128] sm:$0xff]
      %v2453 = vld [vmem:[%s3 + $0x130] sm:$0xff]
      %v2454 = vld [vmem:[%s3 + $0x138] sm:$0xff]
      %v2455 = vld [vmem:[%s3 + $0x140] sm:$0xff]
      %v2456 = vld [vmem:[%s3 + $0x148] sm:$0xff]
      %v2457 = vld [vmem:[%s3 + $0x150] sm:$0xff]
      %v2458 = vld [vmem:[%s3 + $0x158] sm:$0xff]
      %v2459 = vld [vmem:[%s3 + $0x160] sm:$0xff]
      %v2460 = vld [vmem:[%s3 + $0x168] sm:$0xff]
      %v2461 = vld [vmem:[%s3 + $0x170] sm:$0xff]
      %v2462 = vld [vmem:[%s3 + $0x178] sm:$0xff]
      %v2463 = vld [vmem:[%s3 + $0x180] sm:$0xff]
      %v2464 = vld [vmem:[%s3 + $0x188] sm:$0xff]
      %v2465 = vld [vmem:[%s3 + $0x190] sm:$0xff]
      %v2466 = vld [vmem:[%s3 + $0x198] sm:$0xff]
      %v2467 = vld [vmem:[%s3 + $0x1a0] sm:$0xff]
      %v2468 = vld [vmem:[%s3 + $0x1a8] sm:$0xff]
      %v2469 = vld [vmem:[%s3 + $0x1b0] sm:$0xff]
      %v2470 = vld [vmem:[%s3 + $0x1b8] sm:$0xff]
      %v2471 = vld [vmem:[%s3 + $0x1c0] sm:$0xff]
      %v2472 = vld [vmem:[%s3 + $0x1c8] sm:$0xff]
      %v2473 = vld [vmem:[%s3 + $0x1d0] sm:$0xff]
      %v2474 = vld [vmem:[%s3 + $0x1d8] sm:$0xff]
      %v2475 = vld [vmem:[%s3 + $0x1e0] sm:$0xff]
      %v2476 = vld [vmem:[%s3 + $0x1e8] sm:$0xff]
      %v2477 = vld [vmem:[%s3 + $0x1f0] sm:$0xff]
      %v2478 = vld [vmem:[%s3 + $0x1f8] sm:$0xff]
      %v2479 = vld [vmem:[%s3 + $0x200] sm:$0xff]
      %v2480 = vld [vmem:[%s3 + $0x208] sm:$0xff]
      %v2481 = vld [vmem:[%s3 + $0x210] sm:$0xff]
      %v2482 = vld [vmem:[%s3 + $0x218] sm:$0xff]
      %v2483 = vld [vmem:[%s3 + $0x220] sm:$0xff]
      %v2484 = vld [vmem:[%s3 + $0x228] sm:$0xff]
      %v2485 = vld [vmem:[%s3 + $0x230] sm:$0xff]
      %v2486 = vld [vmem:[%s3 + $0x238] sm:$0xff]
      %v2487 = vld [vmem:[%s3 + $0x240] sm:$0xff]
      %v2488 = vld [vmem:[%s3 + $0x248] sm:$0xff]
      %v2489 = vld [vmem:[%s3 + $0x250] sm:$0xff]
      %v2490 = vld [vmem:[%s3 + $0x258] sm:$0xff]
      %v2491 = vld [vmem:[%s3 + $0x260] sm:$0xff]
      %v2492 = vld [vmem:[%s3 + $0x268] sm:$0xff]
      %v2493 = vld [vmem:[%s3 + $0x270] sm:$0xff]
      %v2494 = vld [vmem:[%s3 + $0x278] sm:$0xff]
      %v2495 = vld [vmem:[%s3 + $0x280] sm:$0xff]
      %v2496 = vld [vmem:[%s3 + $0x288] sm:$0xff]
      %v2497 = vld [vmem:[%s3 + $0x290] sm:$0xff]
      %v2498 = vld [vmem:[%s3 + $0x298] sm:$0xff]
      %v2499 = vld [vmem:[%s3 + $0x2a0] sm:$0xff]
      %v2500 = vld [vmem:[%s3 + $0x2a8] sm:$0xff]
      %v2501 = vld [vmem:[%s3 + $0x2b0] sm:$0xff]
      %v2502 = vld [vmem:[%s3 + $0x2b8] sm:$0xff]
      %v2503 = vld [vmem:[%s3 + $0x2c0] sm:$0xff]
      %v2504 = vld [vmem:[%s3 + $0x2c8] sm:$0xff]
      %vm2505 = vcmask 318464
      %v2507 = vsel %vm2505, %v2419, 0
      %v2510 = vsel %vm2505, %v2424, 0
      %v2513 = vsel %vm2505, %v2429, 0
      %v2516 = vsel %vm2505, %v2434, 0
      %v2519 = vsel %vm2505, %v2439, 0
      %v2522 = vsel %vm2505, %v2444, 0
      %v2525 = vsel %vm2505, %v2449, 0
      %v2528 = vsel %vm2505, %v2454, 0
      %v2531 = vsel %vm2505, %v2459, 0
      %v2534 = vsel %vm2505, %v2464, 0
      %v2537 = vsel %vm2505, %v2469, 0
      %v2540 = vsel %vm2505, %v2474, 0
      %v2543 = vsel %vm2505, %v2479, 0
      %v2546 = vsel %vm2505, %v2484, 0
      %v2549 = vsel %vm2505, %v2489, 0
      %v2552 = vsel %vm2505, %v2494, 0
      %v2555 = vsel %vm2505, %v2499, 0
      %v2558 = vsel %vm2505, %v2504, 0
      %vm2560 = vcmask 1046528
      %v2562 = vsel %vm2560, %v2414, 0
      %2564 = vmatprep.subr.mxu0 0.0
      %2565 = vmatpush1.msra.mxu0 %v2346
      %2566 = vmatprep.subr.mxu0 0.0
      %2567 = vmatpush1.msra.mxu0 %v2347
      %2568 = vmatprep.subr.mxu0 0.0
      %2569 = vmatpush1.msra.mxu0 %v2348
      %2570 = vmatprep.subr.mxu0 0.0
      %2571 = vmatpush1.msra.mxu0 %v2349
      %2572 = vmatprep.subr.mxu0 0.0
      %2573 = vmatpush1.msra.mxu0 %v2350
      %2574 = vmatprep.subr.mxu0 0.0
      %2575 = vmatpush1.msra.mxu0 %v2351
      %2576 = vmatprep.subr.mxu0 0.0
      %2577 = vmatpush1.msra.mxu0 %v2352
      %2578 = vmatprep.subr.mxu0 0.0
      %2579 = vmatpush1.msra.mxu0 %v2353
      %2580 = vmatprep.subr.mxu0 0.0
      %2581 = vmatpush1.msra.mxu0 %v2354
      %2582 = vmatprep.subr.mxu0 0.0
      %2583 = vmatpush1.msra.mxu0 %v2355
      %2584 = vmatprep.subr.mxu0 0.0
      %2585 = vmatpush1.msra.mxu0 %v2356
      %2586 = vmatprep.subr.mxu0 0.0
      %2587 = vmatpush1.msra.mxu0 %v2357
      %2588 = vmatprep.subr.mxu0 0.0
      %2589 = vmatpush1.msra.mxu0 %v2358
      %2590 = vmatprep.subr.mxu0 0.0
      %2591 = vmatpush1.msra.mxu0 %v2359
      %2592 = vmatprep.subr.mxu0 0.0
      %2593 = vmatpush1.msra.mxu0 %v2360
      %2594 = vmatprep.subr.mxu0 0.0
      %2595 = vmatpush1.msra.mxu0 %v2361
      %2596 = vmatprep.subr.mxu0 0.0
      %2597 = vmatpush1.msra.mxu0 %v2362
      %2598 = vmatprep.subr.mxu0 0.0
      %2599 = vmatpush1.msra.mxu0 %v2363
      %2600 = vmatprep.subr.mxu0 0.0
      %2601 = vmatpush1.msra.mxu0 %v2364
      %2602 = vmatprep.subr.mxu0 0.0
      %2603 = vmatpush1.msra.mxu0 %v2365
      %2604 = vmatprep.subr.mxu0 0.0
      %2605 = vmatpush1.msra.mxu0 %v2366
      %2606 = vmatprep.subr.mxu0 0.0
      %2607 = vmatpush1.msra.mxu0 %v2367
      %2608 = vmatprep.subr.mxu0 0.0
      %2609 = vmatpush1.msra.mxu0 %v2368
      %2610 = vmatprep.subr.mxu0 0.0
      %2611 = vmatpush1.msra.mxu0 %v2369
      %2612 = vmatprep.subr.mxu0 0.0
      %2613 = vmatpush1.msra.mxu0 %v2370
      %2614 = vmatprep.subr.mxu0 0.0
      %2615 = vmatpush1.msra.mxu0 %v2371
      %2616 = vmatprep.subr.mxu0 0.0
      %2617 = vmatpush1.msra.mxu0 %v2372
      %2618 = vmatprep.subr.mxu0 0.0
      %2619 = vmatpush1.msra.mxu0 %v2373
      %2620 = vmatprep.subr.mxu0 0.0
      %2621 = vmatpush1.msra.mxu0 %v2374
      %2622 = vmatprep.subr.mxu0 0.0
      %2623 = vmatpush1.msra.mxu0 %v2375
      %2624 = vmatprep.subr.mxu0 0.0
      %2625 = vmatpush1.msra.mxu0 %v2376
      %2626 = vmatprep.subr.mxu0 0.0
      %2627 = vmatpush1.msra.mxu0 %v2377
      %2628 = vmatprep.mubr.f32.mxu0 %v2416
      %2629 = vmatmul.mubr.f32.gmra.mrb[0].mxu0 %v2415
      %v2630 = vpop.f32.mrb[0].mxu0
      %v2631 = vadd.f32 0.0, %v2630
      %v2632 = vpop.f32.mrb[0].mxu0
      %2633 = vmatprep.mubr.f32.mxu0 %v2421
      %2634 = vmatmul.mubr.f32.gmra.mrb[0].mxu0 %v2420
      %v2635 = vpop.f32.mrb[0].mxu0
      %v2636 = vadd.f32 0.0, %v2635
      %v2637 = vpop.f32.mrb[0].mxu0
      %2638 = vmatprep.mubr.f32.mxu0 %v2426
      %2639 = vmatmul.mubr.f32.gmra.mrb[0].mxu0 %v2425
      %v2640 = vpop.f32.mrb[0].mxu0
      %v2641 = vadd.f32 0.0, %v2640
      %v2642 = vpop.f32.mrb[0].mxu0
      %2643 = vmatprep.mubr.f32.mxu0 %v2431
      %2644 = vmatmul.mubr.f32.gmra.mrb[0].mxu0 %v2430
      %v2645 = vpop.f32.mrb[0].mxu0
      %v2646 = vadd.f32 0.0, %v2645
      %v2647 = vpop.f32.mrb[0].mxu0
      %2648 = vmatprep.mubr.f32.mxu0 %v2436
      %2649 = vmatmul.mubr.f32.gmra.mrb[0].mxu0 %v2435
      %v2650 = vpop.f32.mrb[0].mxu0
      %v2651 = vadd.f32 0.0, %v2650
      %v2652 = vpop.f32.mrb[0].mxu0
      %2653 = vmatprep.mubr.f32.mxu0 %v2441
      %2654 = vmatmul.mubr.f32.gmra.mrb[0].mxu0 %v2440
      %v2655 = vpop.f32.mrb[0].mxu0
      %v2656 = vadd.f32 0.0, %v2655
      %v2657 = vpop.f32.mrb[0].mxu0
      %2658 = vmatprep.mubr.f32.mxu0 %v2446
      %2659 = vmatmul.mubr.f32.gmra.mrb[0].mxu0 %v2445
      %v2660 = vpop.f32.mrb[0].mxu0
      %v2661 = vadd.f32 0.0, %v2660
      %v2662 = vpop.f32.mrb[0].mxu0
      %2663 = vmatprep.mubr.f32.mxu0 %v2451
      %2664 = vmatmul.mubr.f32.gmra.mrb[0].mxu0 %v2450
      %v2665 = vpop.f32.mrb[0].mxu0
      %v2666 = vadd.f32 0.0, %v2665
      %v2667 = vpop.f32.mrb[0].mxu0
      %2668 = vmatprep.mubr.f32.mxu0 %v2456
      %2669 = vmatmul.mubr.f32.gmra.mrb[0].mxu0 %v2455
      %v2670 = vpop.f32.mrb[0].mxu0
      %v2671 = vadd.f32 0.0, %v2670
      %v2672 = vpop.f32.mrb[0].mxu0
      %2673 = vmatprep.mubr.f32.mxu0 %v2461
      %2674 = vmatmul.mubr.f32.gmra.mrb[0].mxu0 %v2460
      %v2675 = vpop.f32.mrb[0].mxu0
      %v2676 = vadd.f32 0.0, %v2675
      %v2677 = vpop.f32.mrb[0].mxu0
      %2678 = vmatprep.mubr.f32.mxu0 %v2466
      %2679 = vmatmul.mubr.f32.gmra.mrb[0].mxu0 %v2465
      %v2680 = vpop.f32.mrb[0].mxu0
      %v2681 = vadd.f32 0.0, %v2680
      %v2682 = vpop.f32.mrb[0].mxu0
      %2683 = vmatprep.mubr.f32.mxu0 %v2471
      %2684 = vmatmul.mubr.f32.gmra.mrb[0].mxu0 %v2470
      %v2685 = vpop.f32.mrb[0].mxu0
      %v2686 = vadd.f32 0.0, %v2685
      %v2687 = vpop.f32.mrb[0].mxu0
      %2688 = vmatprep.mubr.f32.mxu0 %v2476
      %2689 = vmatmul.mubr.f32.gmra.mrb[0].mxu0 %v2475
      %v2690 = vpop.f32.mrb[0].mxu0
      %v2691 = vadd.f32 0.0, %v2690
      %v2692 = vpop.f32.mrb[0].mxu0
      %2693 = vmatprep.mubr.f32.mxu0 %v2481
      %2694 = vmatmul.mubr.f32.gmra.mrb[0].mxu0 %v2480
      %v2695 = vpop.f32.mrb[0].mxu0
      %v2696 = vadd.f32 0.0, %v2695
      %v2697 = vpop.f32.mrb[0].mxu0
      %2698 = vmatprep.mubr.f32.mxu0 %v2486
      %2699 = vmatmul.mubr.f32.gmra.mrb[0].mxu0 %v2485
      %v2700 = vpop.f32.mrb[0].mxu0
      %v2701 = vadd.f32 0.0, %v2700
      %v2702 = vpop.f32.mrb[0].mxu0
      %2703 = vmatprep.mubr.f32.mxu0 %v2491
      %2704 = vmatmul.mubr.f32.gmra.mrb[0].mxu0 %v2490
      %v2705 = vpop.f32.mrb[0].mxu0
      %v2706 = vadd.f32 0.0, %v2705
      %v2707 = vpop.f32.mrb[0].mxu0
      %2708 = vmatprep.mubr.f32.mxu0 %v2496
      %2709 = vmatmul.mubr.f32.gmra.mrb[0].mxu0 %v2495
      %v2710 = vpop.f32.mrb[0].mxu0
      %v2711 = vadd.f32 0.0, %v2710
      %v2712 = vpop.f32.mrb[0].mxu0
      %2713 = vmatprep.mubr.f32.mxu0 %v2501
      %2714 = vmatmul.mubr.f32.gmra.mrb[0].mxu0 %v2500
      %v2715 = vpop.f32.mrb[0].mxu0
      %v2716 = vadd.f32 0.0, %v2715
      %v2717 = vpop.f32.mrb[0].mxu0
      %2718 = vdwg.mxu0
      %2719 = vmatprep.subr.mxu0 0.0
      %2720 = vmatpush1.msra.mxu0 %v2378
      %2721 = vmatprep.subr.mxu0 0.0
      %2722 = vmatpush1.msra.mxu0 %v2379
      %2723 = vmatprep.subr.mxu0 0.0
      %2724 = vmatpush1.msra.mxu0 %v2380
      %2725 = vmatprep.subr.mxu0 0.0
      %2726 = vmatpush1.msra.mxu0 %v2381
      %2727 = vmatprep.subr.mxu0 0.0
      %2728 = vmatpush1.msra.mxu0 %v2382
      %2729 = vmatprep.subr.mxu0 0.0
      %2730 = vmatpush1.msra.mxu0 %v2383
      %2731 = vmatprep.subr.mxu0 0.0
      %2732 = vmatpush1.msra.mxu0 %v2384
      %2733 = vmatprep.subr.mxu0 0.0
      %2734 = vmatpush1.msra.mxu0 %v2385
      %2735 = vmatprep.subr.mxu0 0.0
      %2736 = vmatpush1.msra.mxu0 %v2386
      %2737 = vmatprep.subr.mxu0 0.0
      %2738 = vmatpush1.msra.mxu0 %v2387
      %2739 = vmatprep.subr.mxu0 0.0
      %2740 = vmatpush1.msra.mxu0 %v2388
      %2741 = vmatprep.subr.mxu0 0.0
      %2742 = vmatpush1.msra.mxu0 %v2389
      %2743 = vmatprep.subr.mxu0 0.0
      %2744 = vmatpush1.msra.mxu0 %v2390
      %2745 = vmatprep.subr.mxu0 0.0
      %2746 = vmatpush1.msra.mxu0 %v2391
      %2747 = vmatprep.subr.mxu0 0.0
      %2748 = vmatpush1.msra.mxu0 %v2392
      %2749 = vmatprep.subr.mxu0 0.0
      %2750 = vmatpush1.msra.mxu0 %v2393
      %2751 = vmatprep.subr.mxu0 0.0
      %2752 = vmatpush1.msra.mxu0 %v2394
      %2753 = vmatprep.subr.mxu0 0.0
      %2754 = vmatpush1.msra.mxu0 %v2395
      %2755 = vmatprep.subr.mxu0 0.0
      %2756 = vmatpush1.msra.mxu0 %v2396
      %2757 = vmatprep.subr.mxu0 0.0
      %2758 = vmatpush1.msra.mxu0 %v2397
      %2759 = vmatprep.subr.mxu0 0.0
      %2760 = vmatpush1.msra.mxu0 %v2398
      %2761 = vmatprep.subr.mxu0 0.0
      %2762 = vmatpush1.msra.mxu0 %v2399
      %2763 = vmatprep.subr.mxu0 0.0
      %2764 = vmatpush1.msra.mxu0 %v2400
      %2765 = vmatprep.subr.mxu0 0.0
      %2766 = vmatpush1.msra.mxu0 %v2401
      %2767 = vmatprep.subr.mxu0 0.0
      %2768 = vmatpush1.msra.mxu0 %v2402
      %2769 = vmatprep.subr.mxu0 0.0
      %2770 = vmatpush1.msra.mxu0 %v2403
      %2771 = vmatprep.subr.mxu0 0.0
      %2772 = vmatpush1.msra.mxu0 %v2404
      %2773 = vmatprep.subr.mxu0 0.0
      %2774 = vmatpush1.msra.mxu0 %v2405
      %2775 = vmatprep.subr.mxu0 0.0
      %2776 = vmatpush1.msra.mxu0 %v2406
      %2777 = vmatprep.subr.mxu0 0.0
      %2778 = vmatpush1.msra.mxu0 %v2407
      %2779 = vmatprep.subr.mxu0 0.0
      %2780 = vmatpush1.msra.mxu0 %v2408
      %2781 = vmatprep.subr.mxu0 0.0
      %2782 = vmatpush1.msra.mxu0 %v2409
      %2783 = vmatprep.mubr.f32.mxu0 %v2418
      %2784 = vmatmul.mubr.f32.gmra.mrb[0].mxu0 %v2417
      %v2785 = vpop.f32.mrb[0].mxu0
      %v2786 = vadd.f32 %v2631, %v2785
      %v2787 = vpop.f32.mrb[0].mxu0
      %2788 = vmatprep.mubr.f32.mxu0 %v2423
      %2789 = vmatmul.mubr.f32.gmra.mrb[0].mxu0 %v2422
      %v2790 = vpop.f32.mrb[0].mxu0
      %v2791 = vadd.f32 %v2636, %v2790
      %v2792 = vpop.f32.mrb[0].mxu0
      %2793 = vmatprep.mubr.f32.mxu0 %v2428
      %2794 = vmatmul.mubr.f32.gmra.mrb[0].mxu0 %v2427
      %v2795 = vpop.f32.mrb[0].mxu0
      %v2796 = vadd.f32 %v2641, %v2795
      %v2797 = vpop.f32.mrb[0].mxu0
      %2798 = vmatprep.mubr.f32.mxu0 %v2433
      %2799 = vmatmul.mubr.f32.gmra.mrb[0].mxu0 %v2432
      %v2800 = vpop.f32.mrb[0].mxu0
      %v2801 = vadd.f32 %v2646, %v2800
      %v2802 = vpop.f32.mrb[0].mxu0
      %2803 = vmatprep.mubr.f32.mxu0 %v2438
      %2804 = vmatmul.mubr.f32.gmra.mrb[0].mxu0 %v2437
      %v2805 = vpop.f32.mrb[0].mxu0
      %v2806 = vadd.f32 %v2651, %v2805
      %v2807 = vpop.f32.mrb[0].mxu0
      %2808 = vmatprep.mubr.f32.mxu0 %v2443
      %2809 = vmatmul.mubr.f32.gmra.mrb[0].mxu0 %v2442
      %v2810 = vpop.f32.mrb[0].mxu0
      %v2811 = vadd.f32 %v2656, %v2810
      %v2812 = vpop.f32.mrb[0].mxu0
      %2813 = vmatprep.mubr.f32.mxu0 %v2448
      %2814 = vmatmul.mubr.f32.gmra.mrb[0].mxu0 %v2447
      %v2815 = vpop.f32.mrb[0].mxu0
      %v2816 = vadd.f32 %v2661, %v2815
      %v2817 = vpop.f32.mrb[0].mxu0
      %2818 = vmatprep.mubr.f32.mxu0 %v2453
      %2819 = vmatmul.mubr.f32.gmra.mrb[0].mxu0 %v2452
      %v2820 = vpop.f32.mrb[0].mxu0
      %v2821 = vadd.f32 %v2666, %v2820
      %v2822 = vpop.f32.mrb[0].mxu0
      %2823 = vmatprep.mubr.f32.mxu0 %v2458
      %2824 = vmatmul.mubr.f32.gmra.mrb[0].mxu0 %v2457
      %v2825 = vpop.f32.mrb[0].mxu0
      %v2826 = vadd.f32 %v2671, %v2825
      %v2827 = vpop.f32.mrb[0].mxu0
      %2828 = vmatprep.mubr.f32.mxu0 %v2463
      %2829 = vmatmul.mubr.f32.gmra.mrb[0].mxu0 %v2462
      %v2830 = vpop.f32.mrb[0].mxu0
      %v2831 = vadd.f32 %v2676, %v2830
      %v2832 = vpop.f32.mrb[0].mxu0
      %2833 = vmatprep.mubr.f32.mxu0 %v2468
      %2834 = vmatmul.mubr.f32.gmra.mrb[0].mxu0 %v2467
      %v2835 = vpop.f32.mrb[0].mxu0
      %v2836 = vadd.f32 %v2681, %v2835
      %v2837 = vpop.f32.mrb[0].mxu0
      %2838 = vmatprep.mubr.f32.mxu0 %v2473
      %2839 = vmatmul.mubr.f32.gmra.mrb[0].mxu0 %v2472
      %v2840 = vpop.f32.mrb[0].mxu0
      %v2841 = vadd.f32 %v2686, %v2840
      %v2842 = vpop.f32.mrb[0].mxu0
      %2843 = vmatprep.mubr.f32.mxu0 %v2478
      %2844 = vmatmul.mubr.f32.gmra.mrb[0].mxu0 %v2477
      %v2845 = vpop.f32.mrb[0].mxu0
      %v2846 = vadd.f32 %v2691, %v2845
      %v2847 = vpop.f32.mrb[0].mxu0
      %2848 = vmatprep.mubr.f32.mxu0 %v2483
      %2849 = vmatmul.mubr.f32.gmra.mrb[0].mxu0 %v2482
      %v2850 = vpop.f32.mrb[0].mxu0
      %v2851 = vadd.f32 %v2696, %v2850
      %v2852 = vpop.f32.mrb[0].mxu0
      %2853 = vmatprep.mubr.f32.mxu0 %v2488
      %2854 = vmatmul.mubr.f32.gmra.mrb[0].mxu0 %v2487
      %v2855 = vpop.f32.mrb[0].mxu0
      %v2856 = vadd.f32 %v2701, %v2855
      %v2857 = vpop.f32.mrb[0].mxu0
      %2858 = vmatprep.mubr.f32.mxu0 %v2493
      %2859 = vmatmul.mubr.f32.gmra.mrb[0].mxu0 %v2492
      %v2860 = vpop.f32.mrb[0].mxu0
      %v2861 = vadd.f32 %v2706, %v2860
      %v2862 = vpop.f32.mrb[0].mxu0
      %2863 = vmatprep.mubr.f32.mxu0 %v2498
      %2864 = vmatmul.mubr.f32.gmra.mrb[0].mxu0 %v2497
      %v2865 = vpop.f32.mrb[0].mxu0
      %v2866 = vadd.f32 %v2711, %v2865
      %v2867 = vpop.f32.mrb[0].mxu0
      %2868 = vmatprep.mubr.f32.mxu0 %v2503
      %2869 = vmatmul.mubr.f32.gmra.mrb[0].mxu0 %v2502
      %v2870 = vpop.f32.mrb[0].mxu0
      %v2871 = vadd.f32 %v2716, %v2870
      %v2872 = vpop.f32.mrb[0].mxu0
      %2873 = vdwg.mxu0
      %2874 = vmatprep.subr.mxu0 0.0
      %2875 = vmatpush1.msra.mxu0 %v2410
      %2876 = vmatprep.subr.mxu0 0.0
      %2877 = vmatpush1.msra.mxu0 %v2411
      %2878 = vmatprep.subr.mxu0 0.0
      %2879 = vmatpush1.msra.mxu0 %v2412
      %2880 = vmatprep.subr.mxu0 0.0
      %2881 = vmatpush1.msra.mxu0 %v2413
      %2882 = vmatprep.subr.mxu0 0.0
      %2883 = vmatpush1.msra.mxu0 %v2562
      %2884 = vmatprep.subr.mxu0 0.0
      %2885 = vmatpush1.msra.mxu0 0.0
      %2886 = vmatprep.subr.mxu0 0.0
      %2887 = vmatpush1.msra.mxu0 0.0
      %2888 = vmatprep.subr.mxu0 0.0
      %2889 = vmatpush1.msra.mxu0 0.0
      %2890 = vmatprep.subr.mxu0 0.0
      %2891 = vmatpush1.msra.mxu0 0.0
      %2892 = vmatprep.subr.mxu0 0.0
      %2893 = vmatpush1.msra.mxu0 0.0
      %2894 = vmatprep.subr.mxu0 0.0
      %2895 = vmatpush1.msra.mxu0 0.0
      %2896 = vmatprep.subr.mxu0 0.0
      %2897 = vmatpush1.msra.mxu0 0.0
      %2898 = vmatprep.subr.mxu0 0.0
      %2899 = vmatpush1.msra.mxu0 0.0
      %2900 = vmatprep.subr.mxu0 0.0
      %2901 = vmatpush1.msra.mxu0 0.0
      %2902 = vmatprep.subr.mxu0 0.0
      %2903 = vmatpush1.msra.mxu0 0.0
      %2904 = vmatprep.subr.mxu0 0.0
      %2905 = vmatpush1.msra.mxu0 0.0
      %2906 = vmatprep.subr.mxu0 0.0
      %2907 = vmatpush1.msra.mxu0 0.0
      %2908 = vmatprep.subr.mxu0 0.0
      %2909 = vmatpush1.msra.mxu0 0.0
      %2910 = vmatprep.subr.mxu0 0.0
      %2911 = vmatpush1.msra.mxu0 0.0
      %2912 = vmatprep.subr.mxu0 0.0
      %2913 = vmatpush1.msra.mxu0 0.0
      %2914 = vmatprep.subr.mxu0 0.0
      %2915 = vmatpush1.msra.mxu0 0.0
      %2916 = vmatprep.subr.mxu0 0.0
      %2917 = vmatpush1.msra.mxu0 0.0
      %2918 = vmatprep.subr.mxu0 0.0
      %2919 = vmatpush1.msra.mxu0 0.0
      %2920 = vmatprep.subr.mxu0 0.0
      %2921 = vmatpush1.msra.mxu0 0.0
      %2922 = vmatprep.subr.mxu0 0.0
      %2923 = vmatpush1.msra.mxu0 0.0
      %2924 = vmatprep.subr.mxu0 0.0
      %2925 = vmatpush1.msra.mxu0 0.0
      %2926 = vmatprep.subr.mxu0 0.0
      %2927 = vmatpush1.msra.mxu0 0.0
      %2928 = vmatprep.subr.mxu0 0.0
      %2929 = vmatpush1.msra.mxu0 0.0
      %2930 = vmatprep.subr.mxu0 0.0
      %2931 = vmatpush1.msra.mxu0 0.0
      %2932 = vmatprep.subr.mxu0 0.0
      %2933 = vmatpush1.msra.mxu0 0.0
      %2934 = vmatprep.subr.mxu0 0.0
      %2935 = vmatpush1.msra.mxu0 0.0
      %2936 = vmatprep.subr.mxu0 0.0
      %2937 = vmatpush1.msra.mxu0 0.0
      %2938 = vmatprep.mubr.f32.mxu0 0.0
      %2939 = vmatmul.mubr.f32.gmra.mrb[0].mxu0 %v2507
      %v2940 = vpop.f32.mrb[0].mxu0
      %v2941 = vadd.f32 %v2786, %v2940
      %v2942 = vpop.f32.mrb[0].mxu0
      %2943 = vmatprep.mubr.f32.mxu0 0.0
      %2944 = vmatmul.mubr.f32.gmra.mrb[0].mxu0 %v2510
      %v2945 = vpop.f32.mrb[0].mxu0
      %v2946 = vadd.f32 %v2791, %v2945
      %v2947 = vpop.f32.mrb[0].mxu0
      %2948 = vmatprep.mubr.f32.mxu0 0.0
      %2949 = vmatmul.mubr.f32.gmra.mrb[0].mxu0 %v2513
      %v2950 = vpop.f32.mrb[0].mxu0
      %v2951 = vadd.f32 %v2796, %v2950
      %v2952 = vpop.f32.mrb[0].mxu0
      %2953 = vmatprep.mubr.f32.mxu0 0.0
      %2954 = vmatmul.mubr.f32.gmra.mrb[0].mxu0 %v2516
      %v2955 = vpop.f32.mrb[0].mxu0
      %v2956 = vadd.f32 %v2801, %v2955
      %v2957 = vpop.f32.mrb[0].mxu0
      %2958 = vmatprep.mubr.f32.mxu0 0.0
      %2959 = vmatmul.mubr.f32.gmra.mrb[0].mxu0 %v2519
      %v2960 = vpop.f32.mrb[0].mxu0
      %v2961 = vadd.f32 %v2806, %v2960
      %v2962 = vpop.f32.mrb[0].mxu0
      %2963 = vmatprep.mubr.f32.mxu0 0.0
      %2964 = vmatmul.mubr.f32.gmra.mrb[0].mxu0 %v2522
      %v2965 = vpop.f32.mrb[0].mxu0
      %v2966 = vadd.f32 %v2811, %v2965
      %v2967 = vpop.f32.mrb[0].mxu0
      %2968 = vmatprep.mubr.f32.mxu0 0.0
      %2969 = vmatmul.mubr.f32.gmra.mrb[0].mxu0 %v2525
      %v2970 = vpop.f32.mrb[0].mxu0
      %v2971 = vadd.f32 %v2816, %v2970
      %v2972 = vpop.f32.mrb[0].mxu0
      %2973 = vmatprep.mubr.f32.mxu0 0.0
      %2974 = vmatmul.mubr.f32.gmra.mrb[0].mxu0 %v2528
      %v2975 = vpop.f32.mrb[0].mxu0
      %v2976 = vadd.f32 %v2821, %v2975
      %v2977 = vpop.f32.mrb[0].mxu0
      %2978 = vmatprep.mubr.f32.mxu0 0.0
      %2979 = vmatmul.mubr.f32.gmra.mrb[0].mxu0 %v2531
      %v2980 = vpop.f32.mrb[0].mxu0
      %v2981 = vadd.f32 %v2826, %v2980
      %v2982 = vpop.f32.mrb[0].mxu0
      %2983 = vmatprep.mubr.f32.mxu0 0.0
      %2984 = vmatmul.mubr.f32.gmra.mrb[0].mxu0 %v2534
      %v2985 = vpop.f32.mrb[0].mxu0
      %v2986 = vadd.f32 %v2831, %v2985
      %v2987 = vpop.f32.mrb[0].mxu0
      %2988 = vmatprep.mubr.f32.mxu0 0.0
      %2989 = vmatmul.mubr.f32.gmra.mrb[0].mxu0 %v2537
      %v2990 = vpop.f32.mrb[0].mxu0
      %v2991 = vadd.f32 %v2836, %v2990
      %v2992 = vpop.f32.mrb[0].mxu0
      %2993 = vmatprep.mubr.f32.mxu0 0.0
      %2994 = vmatmul.mubr.f32.gmra.mrb[0].mxu0 %v2540
      %v2995 = vpop.f32.mrb[0].mxu0
      %v2996 = vadd.f32 %v2841, %v2995
      %v2997 = vpop.f32.mrb[0].mxu0
      %2998 = vmatprep.mubr.f32.mxu0 0.0
      %2999 = vmatmul.mubr.f32.gmra.mrb[0].mxu0 %v2543
      %v3000 = vpop.f32.mrb[0].mxu0
      %v3001 = vadd.f32 %v2846, %v3000
      %v3002 = vpop.f32.mrb[0].mxu0
      %3003 = vmatprep.mubr.f32.mxu0 0.0
      %3004 = vmatmul.mubr.f32.gmra.mrb[0].mxu0 %v2546
      %v3005 = vpop.f32.mrb[0].mxu0
      %v3006 = vadd.f32 %v2851, %v3005
      %v3007 = vpop.f32.mrb[0].mxu0
      %3008 = vmatprep.mubr.f32.mxu0 0.0
      %3009 = vmatmul.mubr.f32.gmra.mrb[0].mxu0 %v2549
      %v3010 = vpop.f32.mrb[0].mxu0
      %v3011 = vadd.f32 %v2856, %v3010
      %v3012 = vpop.f32.mrb[0].mxu0
      %3013 = vmatprep.mubr.f32.mxu0 0.0
      %3014 = vmatmul.mubr.f32.gmra.mrb[0].mxu0 %v2552
      %v3015 = vpop.f32.mrb[0].mxu0
      %v3016 = vadd.f32 %v2861, %v3015
      %v3017 = vpop.f32.mrb[0].mxu0
      %3018 = vmatprep.mubr.f32.mxu0 0.0
      %3019 = vmatmul.mubr.f32.gmra.mrb[0].mxu0 %v2555
      %v3020 = vpop.f32.mrb[0].mxu0
      %v3021 = vadd.f32 %v2866, %v3020
      %v3022 = vpop.f32.mrb[0].mxu0
      %3023 = vmatprep.mubr.f32.mxu0 0.0
      %3024 = vmatmul.mubr.f32.gmra.mrb[0].mxu0 %v2558
      %v3025 = vpop.f32.mrb[0].mxu0
      %v3026 = vadd.f32 %v2871, %v3025
      %v3027 = vpop.f32.mrb[0].mxu0
      %3028 = vdwg.mxu0
      %3029 = vst [vmem:[#allocation3] sm:$0xff] %v2941
      %3030 = vst [vmem:[#allocation3 + $0x8] sm:$0xff] %v2946
      %3031 = vst [vmem:[#allocation3 + $0x10] sm:$0xff] %v2951
      %3032 = vst [vmem:[#allocation3 + $0x18] sm:$0xff] %v2956
      %3033 = vst [vmem:[#allocation3 + $0x20] sm:$0xff] %v2961
      %3034 = vst [vmem:[#allocation3 + $0x28] sm:$0xff] %v2966
      %3035 = vst [vmem:[#allocation3 + $0x30] sm:$0xff] %v2971
      %3036 = vst [vmem:[#allocation3 + $0x38] sm:$0xff] %v2976
      %3037 = vst [vmem:[#allocation3 + $0x40] sm:$0xff] %v2981
      %3038 = vst [vmem:[#allocation3 + $0x48] sm:$0xff] %v2986
      %3039 = vst [vmem:[#allocation3 + $0x50] sm:$0xff] %v2991
      %3040 = vst [vmem:[#allocation3 + $0x58] sm:$0xff] %v2996
      %3041 = vst [vmem:[#allocation3 + $0x60] sm:$0xff] %v3001
      %3042 = vst [vmem:[#allocation3 + $0x68] sm:$0xff] %v3006
      %3043 = vst [vmem:[#allocation3 + $0x70] sm:$0xff] %v3011
      %3044 = vst [vmem:[#allocation3 + $0x78] sm:$0xff] %v3016
      %3045 = vst [vmem:[#allocation3 + $0x80] sm:$0xff] %v3021
      %3046 = vst [vmem:[#allocation3 + $0x88] sm:$0xff] %v3026
      %v3047 = vld [vmem:[#allocation3] sm:$0xff]
      %v3048 = vld [vmem:[#allocation3 + $0x8] sm:$0xff]
      %v3049 = vld [vmem:[#allocation3 + $0x10] sm:$0xff]
      %v3050 = vld [vmem:[#allocation3 + $0x18] sm:$0xff]
      %v3051 = vld [vmem:[#allocation3 + $0x20] sm:$0xff]
      %v3052 = vld [vmem:[#allocation3 + $0x28] sm:$0xff]
      %v3053 = vld [vmem:[#allocation3 + $0x30] sm:$0xff]
      %v3054 = vld [vmem:[#allocation3 + $0x38] sm:$0xff]
      %v3055 = vld [vmem:[#allocation3 + $0x40] sm:$0xff]
      %v3056 = vld [vmem:[#allocation3 + $0x48] sm:$0xff]
      %v3057 = vld [vmem:[#allocation3 + $0x50] sm:$0xff]
      %v3058 = vld [vmem:[#allocation3 + $0x58] sm:$0xf]
      %3059 = vst [vmem:[#allocation4] sm:$0xff] %v3047
      %3060 = vst [vmem:[#allocation4 + $0xc8] sm:$0xff] %v3048
      %3061 = vst [vmem:[#allocation4 + $0x190] sm:$0xff] %v3049
      %3062 = vst [vmem:[#allocation4 + $0x258] sm:$0xff] %v3050
      %3063 = vst [vmem:[#allocation4 + $0x320] sm:$0xff] %v3051
      %3064 = vst [vmem:[#allocation4 + $0x3e8] sm:$0xff] %v3052
      %3065 = vst [vmem:[#allocation4 + $0x4b0] sm:$0xff] %v3053
      %3066 = vst [vmem:[#allocation4 + $0x578] sm:$0xff] %v3054
      %3067 = vst [vmem:[#allocation4 + $0x640] sm:$0xff] %v3055
      %3068 = vst [vmem:[#allocation4 + $0x708] sm:$0xff] %v3056
      %3069 = vst [vmem:[#allocation4 + $0x7d0] sm:$0xff] %v3057
      %3070 = vst [vmem:[#allocation4 + $0x898] sm:$0xf] %v3058
      %v3071 = vld [vmem:[#allocation3 + $0x1] sm:$0xff]
      %v3072 = vld [vmem:[#allocation3 + $0x9] sm:$0xff]
      %v3073 = vld [vmem:[#allocation3 + $0x11] sm:$0xff]
      %v3074 = vld [vmem:[#allocation3 + $0x19] sm:$0xff]
      %v3075 = vld [vmem:[#allocation3 + $0x21] sm:$0xff]
      %v3076 = vld [vmem:[#allocation3 + $0x29] sm:$0xff]
      %v3077 = vld [vmem:[#allocation3 + $0x31] sm:$0xff]
      %v3078 = vld [vmem:[#allocation3 + $0x39] sm:$0xff]
      %v3079 = vld [vmem:[#allocation3 + $0x41] sm:$0xff]
      %v3080 = vld [vmem:[#allocation3 + $0x49] sm:$0xff]
      %v3081 = vld [vmem:[#allocation3 + $0x51] sm:$0xff]
      %v3082 = vld [vmem:[#allocation3 + $0x59] sm:$0xf]
      %3083 = vst [vmem:[#allocation4 + $0x8] sm:$0xff] %v3071
      %3084 = vst [vmem:[#allocation4 + $0xd0] sm:$0xff] %v3072
      %3085 = vst [vmem:[#allocation4 + $0x198] sm:$0xff] %v3073
      %3086 = vst [vmem:[#allocation4 + $0x260] sm:$0xff] %v3074
      %3087 = vst [vmem:[#allocation4 + $0x328] sm:$0xff] %v3075
      %3088 = vst [vmem:[#allocation4 + $0x3f0] sm:$0xff] %v3076
      %3089 = vst [vmem:[#allocation4 + $0x4b8] sm:$0xff] %v3077
      %3090 = vst [vmem:[#allocation4 + $0x580] sm:$0xff] %v3078
      %3091 = vst [vmem:[#allocation4 + $0x648] sm:$0xff] %v3079
      %3092 = vst [vmem:[#allocation4 + $0x710] sm:$0xff] %v3080
      %3093 = vst [vmem:[#allocation4 + $0x7d8] sm:$0xff] %v3081
      %3094 = vst [vmem:[#allocation4 + $0x8a0] sm:$0xf] %v3082
      %v3095 = vld [vmem:[#allocation3 + $0x2] sm:$0xff]
      %v3096 = vld [vmem:[#allocation3 + $0xa] sm:$0xff]
      %v3097 = vld [vmem:[#allocation3 + $0x12] sm:$0xff]
      %v3098 = vld [vmem:[#allocation3 + $0x1a] sm:$0xff]
      %v3099 = vld [vmem:[#allocation3 + $0x22] sm:$0xff]
      %v3100 = vld [vmem:[#allocation3 + $0x2a] sm:$0xff]
      %v3101 = vld [vmem:[#allocation3 + $0x32] sm:$0xff]
      %v3102 = vld [vmem:[#allocation3 + $0x3a] sm:$0xff]
      %v3103 = vld [vmem:[#allocation3 + $0x42] sm:$0xff]
      %v3104 = vld [vmem:[#allocation3 + $0x4a] sm:$0xff]
      %v3105 = vld [vmem:[#allocation3 + $0x52] sm:$0xff]
      %v3106 = vld [vmem:[#allocation3 + $0x5a] sm:$0xf]
      %3107 = vst [vmem:[#allocation4 + $0x10] sm:$0xff] %v3095
      %3108 = vst [vmem:[#allocation4 + $0xd8] sm:$0xff] %v3096
      %3109 = vst [vmem:[#allocation4 + $0x1a0] sm:$0xff] %v3097
      %3110 = vst [vmem:[#allocation4 + $0x268] sm:$0xff] %v3098
      %3111 = vst [vmem:[#allocation4 + $0x330] sm:$0xff] %v3099
      %3112 = vst [vmem:[#allocation4 + $0x3f8] sm:$0xff] %v3100
      %3113 = vst [vmem:[#allocation4 + $0x4c0] sm:$0xff] %v3101
      %3114 = vst [vmem:[#allocation4 + $0x588] sm:$0xff] %v3102
      %3115 = vst [vmem:[#allocation4 + $0x650] sm:$0xff] %v3103
      %3116 = vst [vmem:[#allocation4 + $0x718] sm:$0xff] %v3104
      %3117 = vst [vmem:[#allocation4 + $0x7e0] sm:$0xff] %v3105
      %3118 = vst [vmem:[#allocation4 + $0x8a8] sm:$0xf] %v3106
      %v3119 = vld [vmem:[#allocation3 + $0x3] sm:$0xff]
      %v3120 = vld [vmem:[#allocation3 + $0xb] sm:$0xff]
      %v3121 = vld [vmem:[#allocation3 + $0x13] sm:$0xff]
      %v3122 = vld [vmem:[#allocation3 + $0x1b] sm:$0xff]
      %v3123 = vld [vmem:[#allocation3 + $0x23] sm:$0xff]
      %v3124 = vld [vmem:[#allocation3 + $0x2b] sm:$0xff]
      %v3125 = vld [vmem:[#allocation3 + $0x33] sm:$0xff]
      %v3126 = vld [vmem:[#allocation3 + $0x3b] sm:$0xff]
      %v3127 = vld [vmem:[#allocation3 + $0x43] sm:$0xff]
      %v3128 = vld [vmem:[#allocation3 + $0x4b] sm:$0xff]
      %v3129 = vld [vmem:[#allocation3 + $0x53] sm:$0xff]
      %v3130 = vld [vmem:[#allocation3 + $0x5b] sm:$0xf]
      %3131 = vst [vmem:[#allocation4 + $0x18] sm:$0xff] %v3119
      %3132 = vst [vmem:[#allocation4 + $0xe0] sm:$0xff] %v3120
      %3133 = vst [vmem:[#allocation4 + $0x1a8] sm:$0xff] %v3121
      %3134 = vst [vmem:[#allocation4 + $0x270] sm:$0xff] %v3122
      %3135 = vst [vmem:[#allocation4 + $0x338] sm:$0xff] %v3123
      %3136 = vst [vmem:[#allocation4 + $0x400] sm:$0xff] %v3124
      %3137 = vst [vmem:[#allocation4 + $0x4c8] sm:$0xff] %v3125
      %3138 = vst [vmem:[#allocation4 + $0x590] sm:$0xff] %v3126
      %3139 = vst [vmem:[#allocation4 + $0x658] sm:$0xff] %v3127
      %3140 = vst [vmem:[#allocation4 + $0x720] sm:$0xff] %v3128
      %3141 = vst [vmem:[#allocation4 + $0x7e8] sm:$0xff] %v3129
      %3142 = vst [vmem:[#allocation4 + $0x8b0] sm:$0xf] %v3130
      %v3143 = vld [vmem:[#allocation3 + $0x4] sm:$0xff]
      %v3144 = vld [vmem:[#allocation3 + $0xc] sm:$0xff]
      %v3145 = vld [vmem:[#allocation3 + $0x14] sm:$0xff]
      %v3146 = vld [vmem:[#allocation3 + $0x1c] sm:$0xff]
      %v3147 = vld [vmem:[#allocation3 + $0x24] sm:$0xff]
      %v3148 = vld [vmem:[#allocation3 + $0x2c] sm:$0xff]
      %v3149 = vld [vmem:[#allocation3 + $0x34] sm:$0xff]
      %v3150 = vld [vmem:[#allocation3 + $0x3c] sm:$0xff]
      %v3151 = vld [vmem:[#allocation3 + $0x44] sm:$0xff]
      %v3152 = vld [vmem:[#allocation3 + $0x4c] sm:$0xff]
      %v3153 = vld [vmem:[#allocation3 + $0x54] sm:$0xff]
      %v3154 = vld [vmem:[#allocation3 + $0x5c] sm:$0xf]
      %3155 = vst [vmem:[#allocation4 + $0x20] sm:$0xff] %v3143
      %3156 = vst [vmem:[#allocation4 + $0xe8] sm:$0xff] %v3144
      %3157 = vst [vmem:[#allocation4 + $0x1b0] sm:$0xff] %v3145
      %3158 = vst [vmem:[#allocation4 + $0x278] sm:$0xff] %v3146
      %3159 = vst [vmem:[#allocation4 + $0x340] sm:$0xff] %v3147
      %3160 = vst [vmem:[#allocation4 + $0x408] sm:$0xff] %v3148
      %3161 = vst [vmem:[#allocation4 + $0x4d0] sm:$0xff] %v3149
      %3162 = vst [vmem:[#allocation4 + $0x598] sm:$0xff] %v3150
      %3163 = vst [vmem:[#allocation4 + $0x660] sm:$0xff] %v3151
      %3164 = vst [vmem:[#allocation4 + $0x728] sm:$0xff] %v3152
      %3165 = vst [vmem:[#allocation4 + $0x7f0] sm:$0xff] %v3153
      %3166 = vst [vmem:[#allocation4 + $0x8b8] sm:$0xf] %v3154
      %v3167 = vld [vmem:[#allocation3 + $0xc] sm:$0xff]
      %v3168 = vld [vmem:[#allocation3 + $0x14] sm:$0xff]
      %v3169 = vld [vmem:[#allocation3 + $0x1c] sm:$0xff]
      %v3170 = vld [vmem:[#allocation3 + $0x24] sm:$0xff]
      %v3171 = vld [vmem:[#allocation3 + $0x2c] sm:$0xff]
      %v3172 = vld [vmem:[#allocation3 + $0x34] sm:$0xff]
      %v3173 = vld [vmem:[#allocation3 + $0x3c] sm:$0xff]
      %v3174 = vld [vmem:[#allocation3 + $0x44] sm:$0xff]
      %v3175 = vld [vmem:[#allocation3 + $0x4c] sm:$0xff]
      %v3176 = vld [vmem:[#allocation3 + $0x54] sm:$0xff]
      %v3177 = vld [vmem:[#allocation3 + $0x5c] sm:$0xff]
      %v3178 = vld [vmem:[#allocation3 + $0x64] sm:$0xf]
      %3179 = vst [vmem:[#allocation4 + $0x28] sm:$0xff] %v3167
      %3180 = vst [vmem:[#allocation4 + $0xf0] sm:$0xff] %v3168
      %3181 = vst [vmem:[#allocation4 + $0x1b8] sm:$0xff] %v3169
      %3182 = vst [vmem:[#allocation4 + $0x280] sm:$0xff] %v3170
      %3183 = vst [vmem:[#allocation4 + $0x348] sm:$0xff] %v3171
      %3184 = vst [vmem:[#allocation4 + $0x410] sm:$0xff] %v3172
      %3185 = vst [vmem:[#allocation4 + $0x4d8] sm:$0xff] %v3173
      %3186 = vst [vmem:[#allocation4 + $0x5a0] sm:$0xff] %v3174
      %3187 = vst [vmem:[#allocation4 + $0x668] sm:$0xff] %v3175
      %3188 = vst [vmem:[#allocation4 + $0x730] sm:$0xff] %v3176
      %3189 = vst [vmem:[#allocation4 + $0x7f8] sm:$0xff] %v3177
      %3190 = vst [vmem:[#allocation4 + $0x8c0] sm:$0xf] %v3178
      %v3191 = vld [vmem:[#allocation3 + $0xd] sm:$0xff]
      %v3192 = vld [vmem:[#allocation3 + $0x15] sm:$0xff]
      %v3193 = vld [vmem:[#allocation3 + $0x1d] sm:$0xff]
      %v3194 = vld [vmem:[#allocation3 + $0x25] sm:$0xff]
      %v3195 = vld [vmem:[#allocation3 + $0x2d] sm:$0xff]
      %v3196 = vld [vmem:[#allocation3 + $0x35] sm:$0xff]
      %v3197 = vld [vmem:[#allocation3 + $0x3d] sm:$0xff]
      %v3198 = vld [vmem:[#allocation3 + $0x45] sm:$0xff]
      %v3199 = vld [vmem:[#allocation3 + $0x4d] sm:$0xff]
      %v3200 = vld [vmem:[#allocation3 + $0x55] sm:$0xff]
      %v3201 = vld [vmem:[#allocation3 + $0x5d] sm:$0xff]
      %v3202 = vld [vmem:[#allocation3 + $0x65] sm:$0xf]
      %3203 = vst [vmem:[#allocation4 + $0x30] sm:$0xff] %v3191
      %3204 = vst [vmem:[#allocation4 + $0xf8] sm:$0xff] %v3192
      %3205 = vst [vmem:[#allocation4 + $0x1c0] sm:$0xff] %v3193
      %3206 = vst [vmem:[#allocation4 + $0x288] sm:$0xff] %v3194
      %3207 = vst [vmem:[#allocation4 + $0x350] sm:$0xff] %v3195
      %3208 = vst [vmem:[#allocation4 + $0x418] sm:$0xff] %v3196
      %3209 = vst [vmem:[#allocation4 + $0x4e0] sm:$0xff] %v3197
      %3210 = vst [vmem:[#allocation4 + $0x5a8] sm:$0xff] %v3198
      %3211 = vst [vmem:[#allocation4 + $0x670] sm:$0xff] %v3199
      %3212 = vst [vmem:[#allocation4 + $0x738] sm:$0xff] %v3200
      %3213 = vst [vmem:[#allocation4 + $0x800] sm:$0xff] %v3201
      %3214 = vst [vmem:[#allocation4 + $0x8c8] sm:$0xf] %v3202
      %v3215 = vld [vmem:[#allocation3 + $0xe] sm:$0xff]
      %v3216 = vld [vmem:[#allocation3 + $0x16] sm:$0xff]
      %v3217 = vld [vmem:[#allocation3 + $0x1e] sm:$0xff]
      %v3218 = vld [vmem:[#allocation3 + $0x26] sm:$0xff]
      %v3219 = vld [vmem:[#allocation3 + $0x2e] sm:$0xff]
      %v3220 = vld [vmem:[#allocation3 + $0x36] sm:$0xff]
      %v3221 = vld [vmem:[#allocation3 + $0x3e] sm:$0xff]
      %v3222 = vld [vmem:[#allocation3 + $0x46] sm:$0xff]
      %v3223 = vld [vmem:[#allocation3 + $0x4e] sm:$0xff]
      %v3224 = vld [vmem:[#allocation3 + $0x56] sm:$0xff]
      %v3225 = vld [vmem:[#allocation3 + $0x5e] sm:$0xff]
      %v3226 = vld [vmem:[#allocation3 + $0x66] sm:$0xf]
      %3227 = vst [vmem:[#allocation4 + $0x38] sm:$0xff] %v3215
      %3228 = vst [vmem:[#allocation4 + $0x100] sm:$0xff] %v3216
      %3229 = vst [vmem:[#allocation4 + $0x1c8] sm:$0xff] %v3217
      %3230 = vst [vmem:[#allocation4 + $0x290] sm:$0xff] %v3218
      %3231 = vst [vmem:[#allocation4 + $0x358] sm:$0xff] %v3219
      %3232 = vst [vmem:[#allocation4 + $0x420] sm:$0xff] %v3220
      %3233 = vst [vmem:[#allocation4 + $0x4e8] sm:$0xff] %v3221
      %3234 = vst [vmem:[#allocation4 + $0x5b0] sm:$0xff] %v3222
      %3235 = vst [vmem:[#allocation4 + $0x678] sm:$0xff] %v3223
      %3236 = vst [vmem:[#allocation4 + $0x740] sm:$0xff] %v3224
      %3237 = vst [vmem:[#allocation4 + $0x808] sm:$0xff] %v3225
      %3238 = vst [vmem:[#allocation4 + $0x8d0] sm:$0xf] %v3226
      %v3239 = vld [vmem:[#allocation3 + $0xf] sm:$0xff]
      %v3240 = vld [vmem:[#allocation3 + $0x17] sm:$0xff]
      %v3241 = vld [vmem:[#allocation3 + $0x1f] sm:$0xff]
      %v3242 = vld [vmem:[#allocation3 + $0x27] sm:$0xff]
      %v3243 = vld [vmem:[#allocation3 + $0x2f] sm:$0xff]
      %v3244 = vld [vmem:[#allocation3 + $0x37] sm:$0xff]
      %v3245 = vld [vmem:[#allocation3 + $0x3f] sm:$0xff]
      %v3246 = vld [vmem:[#allocation3 + $0x47] sm:$0xff]
      %v3247 = vld [vmem:[#allocation3 + $0x4f] sm:$0xff]
      %v3248 = vld [vmem:[#allocation3 + $0x57] sm:$0xff]
      %v3249 = vld [vmem:[#allocation3 + $0x5f] sm:$0xff]
      %v3250 = vld [vmem:[#allocation3 + $0x67] sm:$0xf]
      %3251 = vst [vmem:[#allocation4 + $0x40] sm:$0xff] %v3239
      %3252 = vst [vmem:[#allocation4 + $0x108] sm:$0xff] %v3240
      %3253 = vst [vmem:[#allocation4 + $0x1d0] sm:$0xff] %v3241
      %3254 = vst [vmem:[#allocation4 + $0x298] sm:$0xff] %v3242
      %3255 = vst [vmem:[#allocation4 + $0x360] sm:$0xff] %v3243
      %3256 = vst [vmem:[#allocation4 + $0x428] sm:$0xff] %v3244
      %3257 = vst [vmem:[#allocation4 + $0x4f0] sm:$0xff] %v3245
      %3258 = vst [vmem:[#allocation4 + $0x5b8] sm:$0xff] %v3246
      %3259 = vst [vmem:[#allocation4 + $0x680] sm:$0xff] %v3247
      %3260 = vst [vmem:[#allocation4 + $0x748] sm:$0xff] %v3248
      %3261 = vst [vmem:[#allocation4 + $0x810] sm:$0xff] %v3249
      %3262 = vst [vmem:[#allocation4 + $0x8d8] sm:$0xf] %v3250
      %v3263 = vld [vmem:[#allocation3 + $0x10] sm:$0xff]
      %v3264 = vld [vmem:[#allocation3 + $0x18] sm:$0xff]
      %v3265 = vld [vmem:[#allocation3 + $0x20] sm:$0xff]
      %v3266 = vld [vmem:[#allocation3 + $0x28] sm:$0xff]
      %v3267 = vld [vmem:[#allocation3 + $0x30] sm:$0xff]
      %v3268 = vld [vmem:[#allocation3 + $0x38] sm:$0xff]
      %v3269 = vld [vmem:[#allocation3 + $0x40] sm:$0xff]
      %v3270 = vld [vmem:[#allocation3 + $0x48] sm:$0xff]
      %v3271 = vld [vmem:[#allocation3 + $0x50] sm:$0xff]
      %v3272 = vld [vmem:[#allocation3 + $0x58] sm:$0xff]
      %v3273 = vld [vmem:[#allocation3 + $0x60] sm:$0xff]
      %v3274 = vld [vmem:[#allocation3 + $0x68] sm:$0xf]
      %3275 = vst [vmem:[#allocation4 + $0x48] sm:$0xff] %v3263
      %3276 = vst [vmem:[#allocation4 + $0x110] sm:$0xff] %v3264
      %3277 = vst [vmem:[#allocation4 + $0x1d8] sm:$0xff] %v3265
      %3278 = vst [vmem:[#allocation4 + $0x2a0] sm:$0xff] %v3266
      %3279 = vst [vmem:[#allocation4 + $0x368] sm:$0xff] %v3267
      %3280 = vst [vmem:[#allocation4 + $0x430] sm:$0xff] %v3268
      %3281 = vst [vmem:[#allocation4 + $0x4f8] sm:$0xff] %v3269
      %3282 = vst [vmem:[#allocation4 + $0x5c0] sm:$0xff] %v3270
      %3283 = vst [vmem:[#allocation4 + $0x688] sm:$0xff] %v3271
      %3284 = vst [vmem:[#allocation4 + $0x750] sm:$0xff] %v3272
      %3285 = vst [vmem:[#allocation4 + $0x818] sm:$0xff] %v3273
      %3286 = vst [vmem:[#allocation4 + $0x8e0] sm:$0xf] %v3274
      %v3287 = vld [vmem:[#allocation3 + $0x18] sm:$0xff]
      %v3288 = vld [vmem:[#allocation3 + $0x20] sm:$0xff]
      %v3289 = vld [vmem:[#allocation3 + $0x28] sm:$0xff]
      %v3290 = vld [vmem:[#allocation3 + $0x30] sm:$0xff]
      %v3291 = vld [vmem:[#allocation3 + $0x38] sm:$0xff]
      %v3292 = vld [vmem:[#allocation3 + $0x40] sm:$0xff]
      %v3293 = vld [vmem:[#allocation3 + $0x48] sm:$0xff]
      %v3294 = vld [vmem:[#allocation3 + $0x50] sm:$0xff]
      %v3295 = vld [vmem:[#allocation3 + $0x58] sm:$0xff]
      %v3296 = vld [vmem:[#allocation3 + $0x60] sm:$0xff]
      %v3297 = vld [vmem:[#allocation3 + $0x68] sm:$0xff]
      %v3298 = vld [vmem:[#allocation3 + $0x70] sm:$0xf]
      %3299 = vst [vmem:[#allocation4 + $0x50] sm:$0xff] %v3287
      %3300 = vst [vmem:[#allocation4 + $0x118] sm:$0xff] %v3288
      %3301 = vst [vmem:[#allocation4 + $0x1e0] sm:$0xff] %v3289
      %3302 = vst [vmem:[#allocation4 + $0x2a8] sm:$0xff] %v3290
      %3303 = vst [vmem:[#allocation4 + $0x370] sm:$0xff] %v3291
      %3304 = vst [vmem:[#allocation4 + $0x438] sm:$0xff] %v3292
      %3305 = vst [vmem:[#allocation4 + $0x500] sm:$0xff] %v3293
      %3306 = vst [vmem:[#allocation4 + $0x5c8] sm:$0xff] %v3294
      %3307 = vst [vmem:[#allocation4 + $0x690] sm:$0xff] %v3295
      %3308 = vst [vmem:[#allocation4 + $0x758] sm:$0xff] %v3296
      %3309 = vst [vmem:[#allocation4 + $0x820] sm:$0xff] %v3297
      %3310 = vst [vmem:[#allocation4 + $0x8e8] sm:$0xf] %v3298
      %v3311 = vld [vmem:[#allocation3 + $0x19] sm:$0xff]
      %v3312 = vld [vmem:[#allocation3 + $0x21] sm:$0xff]
      %v3313 = vld [vmem:[#allocation3 + $0x29] sm:$0xff]
      %v3314 = vld [vmem:[#allocation3 + $0x31] sm:$0xff]
      %v3315 = vld [vmem:[#allocation3 + $0x39] sm:$0xff]
      %v3316 = vld [vmem:[#allocation3 + $0x41] sm:$0xff]
      %v3317 = vld [vmem:[#allocation3 + $0x49] sm:$0xff]
      %v3318 = vld [vmem:[#allocation3 + $0x51] sm:$0xff]
      %v3319 = vld [vmem:[#allocation3 + $0x59] sm:$0xff]
      %v3320 = vld [vmem:[#allocation3 + $0x61] sm:$0xff]
      %v3321 = vld [vmem:[#allocation3 + $0x69] sm:$0xff]
      %v3322 = vld [vmem:[#allocation3 + $0x71] sm:$0xf]
      %3323 = vst [vmem:[#allocation4 + $0x58] sm:$0xff] %v3311
      %3324 = vst [vmem:[#allocation4 + $0x120] sm:$0xff] %v3312
      %3325 = vst [vmem:[#allocation4 + $0x1e8] sm:$0xff] %v3313
      %3326 = vst [vmem:[#allocation4 + $0x2b0] sm:$0xff] %v3314
      %3327 = vst [vmem:[#allocation4 + $0x378] sm:$0xff] %v3315
      %3328 = vst [vmem:[#allocation4 + $0x440] sm:$0xff] %v3316
      %3329 = vst [vmem:[#allocation4 + $0x508] sm:$0xff] %v3317
      %3330 = vst [vmem:[#allocation4 + $0x5d0] sm:$0xff] %v3318
      %3331 = vst [vmem:[#allocation4 + $0x698] sm:$0xff] %v3319
      %3332 = vst [vmem:[#allocation4 + $0x760] sm:$0xff] %v3320
      %3333 = vst [vmem:[#allocation4 + $0x828] sm:$0xff] %v3321
      %3334 = vst [vmem:[#allocation4 + $0x8f0] sm:$0xf] %v3322
      %v3335 = vld [vmem:[#allocation3 + $0x1a] sm:$0xff]
      %v3336 = vld [vmem:[#allocation3 + $0x22] sm:$0xff]
      %v3337 = vld [vmem:[#allocation3 + $0x2a] sm:$0xff]
      %v3338 = vld [vmem:[#allocation3 + $0x32] sm:$0xff]
      %v3339 = vld [vmem:[#allocation3 + $0x3a] sm:$0xff]
      %v3340 = vld [vmem:[#allocation3 + $0x42] sm:$0xff]
      %v3341 = vld [vmem:[#allocation3 + $0x4a] sm:$0xff]
      %v3342 = vld [vmem:[#allocation3 + $0x52] sm:$0xff]
      %v3343 = vld [vmem:[#allocation3 + $0x5a] sm:$0xff]
      %v3344 = vld [vmem:[#allocation3 + $0x62] sm:$0xff]
      %v3345 = vld [vmem:[#allocation3 + $0x6a] sm:$0xff]
      %v3346 = vld [vmem:[#allocation3 + $0x72] sm:$0xf]
      %3347 = vst [vmem:[#allocation4 + $0x60] sm:$0xff] %v3335
      %3348 = vst [vmem:[#allocation4 + $0x128] sm:$0xff] %v3336
      %3349 = vst [vmem:[#allocation4 + $0x1f0] sm:$0xff] %v3337
      %3350 = vst [vmem:[#allocation4 + $0x2b8] sm:$0xff] %v3338
      %3351 = vst [vmem:[#allocation4 + $0x380] sm:$0xff] %v3339
      %3352 = vst [vmem:[#allocation4 + $0x448] sm:$0xff] %v3340
      %3353 = vst [vmem:[#allocation4 + $0x510] sm:$0xff] %v3341
      %3354 = vst [vmem:[#allocation4 + $0x5d8] sm:$0xff] %v3342
      %3355 = vst [vmem:[#allocation4 + $0x6a0] sm:$0xff] %v3343
      %3356 = vst [vmem:[#allocation4 + $0x768] sm:$0xff] %v3344
      %3357 = vst [vmem:[#allocation4 + $0x830] sm:$0xff] %v3345
      %3358 = vst [vmem:[#allocation4 + $0x8f8] sm:$0xf] %v3346
      %v3359 = vld [vmem:[#allocation3 + $0x1b] sm:$0xff]
      %v3360 = vld [vmem:[#allocation3 + $0x23] sm:$0xff]
      %v3361 = vld [vmem:[#allocation3 + $0x2b] sm:$0xff]
      %v3362 = vld [vmem:[#allocation3 + $0x33] sm:$0xff]
      %v3363 = vld [vmem:[#allocation3 + $0x3b] sm:$0xff]
      %v3364 = vld [vmem:[#allocation3 + $0x43] sm:$0xff]
      %v3365 = vld [vmem:[#allocation3 + $0x4b] sm:$0xff]
      %v3366 = vld [vmem:[#allocation3 + $0x53] sm:$0xff]
      %v3367 = vld [vmem:[#allocation3 + $0x5b] sm:$0xff]
      %v3368 = vld [vmem:[#allocation3 + $0x63] sm:$0xff]
      %v3369 = vld [vmem:[#allocation3 + $0x6b] sm:$0xff]
      %v3370 = vld [vmem:[#allocation3 + $0x73] sm:$0xf]
      %3371 = vst [vmem:[#allocation4 + $0x68] sm:$0xff] %v3359
      %3372 = vst [vmem:[#allocation4 + $0x130] sm:$0xff] %v3360
      %3373 = vst [vmem:[#allocation4 + $0x1f8] sm:$0xff] %v3361
      %3374 = vst [vmem:[#allocation4 + $0x2c0] sm:$0xff] %v3362
      %3375 = vst [vmem:[#allocation4 + $0x388] sm:$0xff] %v3363
      %3376 = vst [vmem:[#allocation4 + $0x450] sm:$0xff] %v3364
      %3377 = vst [vmem:[#allocation4 + $0x518] sm:$0xff] %v3365
      %3378 = vst [vmem:[#allocation4 + $0x5e0] sm:$0xff] %v3366
      %3379 = vst [vmem:[#allocation4 + $0x6a8] sm:$0xff] %v3367
      %3380 = vst [vmem:[#allocation4 + $0x770] sm:$0xff] %v3368
      %3381 = vst [vmem:[#allocation4 + $0x838] sm:$0xff] %v3369
      %3382 = vst [vmem:[#allocation4 + $0x900] sm:$0xf] %v3370
      %v3383 = vld [vmem:[#allocation3 + $0x1c] sm:$0xff]
      %v3384 = vld [vmem:[#allocation3 + $0x24] sm:$0xff]
      %v3385 = vld [vmem:[#allocation3 + $0x2c] sm:$0xff]
      %v3386 = vld [vmem:[#allocation3 + $0x34] sm:$0xff]
      %v3387 = vld [vmem:[#allocation3 + $0x3c] sm:$0xff]
      %v3388 = vld [vmem:[#allocation3 + $0x44] sm:$0xff]
      %v3389 = vld [vmem:[#allocation3 + $0x4c] sm:$0xff]
      %v3390 = vld [vmem:[#allocation3 + $0x54] sm:$0xff]
      %v3391 = vld [vmem:[#allocation3 + $0x5c] sm:$0xff]
      %v3392 = vld [vmem:[#allocation3 + $0x64] sm:$0xff]
      %v3393 = vld [vmem:[#allocation3 + $0x6c] sm:$0xff]
      %v3394 = vld [vmem:[#allocation3 + $0x74] sm:$0xf]
      %3395 = vst [vmem:[#allocation4 + $0x70] sm:$0xff] %v3383
      %3396 = vst [vmem:[#allocation4 + $0x138] sm:$0xff] %v3384
      %3397 = vst [vmem:[#allocation4 + $0x200] sm:$0xff] %v3385
      %3398 = vst [vmem:[#allocation4 + $0x2c8] sm:$0xff] %v3386
      %3399 = vst [vmem:[#allocation4 + $0x390] sm:$0xff] %v3387
      %3400 = vst [vmem:[#allocation4 + $0x458] sm:$0xff] %v3388
      %3401 = vst [vmem:[#allocation4 + $0x520] sm:$0xff] %v3389
      %3402 = vst [vmem:[#allocation4 + $0x5e8] sm:$0xff] %v3390
      %3403 = vst [vmem:[#allocation4 + $0x6b0] sm:$0xff] %v3391
      %3404 = vst [vmem:[#allocation4 + $0x778] sm:$0xff] %v3392
      %3405 = vst [vmem:[#allocation4 + $0x840] sm:$0xff] %v3393
      %3406 = vst [vmem:[#allocation4 + $0x908] sm:$0xf] %v3394
      %v3407 = vld [vmem:[#allocation3 + $0x24] sm:$0xff]
      %v3408 = vld [vmem:[#allocation3 + $0x2c] sm:$0xff]
      %v3409 = vld [vmem:[#allocation3 + $0x34] sm:$0xff]
      %v3410 = vld [vmem:[#allocation3 + $0x3c] sm:$0xff]
      %v3411 = vld [vmem:[#allocation3 + $0x44] sm:$0xff]
      %v3412 = vld [vmem:[#allocation3 + $0x4c] sm:$0xff]
      %v3413 = vld [vmem:[#allocation3 + $0x54] sm:$0xff]
      %v3414 = vld [vmem:[#allocation3 + $0x5c] sm:$0xff]
      %v3415 = vld [vmem:[#allocation3 + $0x64] sm:$0xff]
      %v3416 = vld [vmem:[#allocation3 + $0x6c] sm:$0xff]
      %v3417 = vld [vmem:[#allocation3 + $0x74] sm:$0xff]
      %v3418 = vld [vmem:[#allocation3 + $0x7c] sm:$0xf]
      %3419 = vst [vmem:[#allocation4 + $0x78] sm:$0xff] %v3407
      %3420 = vst [vmem:[#allocation4 + $0x140] sm:$0xff] %v3408
      %3421 = vst [vmem:[#allocation4 + $0x208] sm:$0xff] %v3409
      %3422 = vst [vmem:[#allocation4 + $0x2d0] sm:$0xff] %v3410
      %3423 = vst [vmem:[#allocation4 + $0x398] sm:$0xff] %v3411
      %3424 = vst [vmem:[#allocation4 + $0x460] sm:$0xff] %v3412
      %3425 = vst [vmem:[#allocation4 + $0x528] sm:$0xff] %v3413
      %3426 = vst [vmem:[#allocation4 + $0x5f0] sm:$0xff] %v3414
      %3427 = vst [vmem:[#allocation4 + $0x6b8] sm:$0xff] %v3415
      %3428 = vst [vmem:[#allocation4 + $0x780] sm:$0xff] %v3416
      %3429 = vst [vmem:[#allocation4 + $0x848] sm:$0xff] %v3417
      %3430 = vst [vmem:[#allocation4 + $0x910] sm:$0xf] %v3418
      %v3431 = vld [vmem:[#allocation3 + $0x25] sm:$0xff]
      %v3432 = vld [vmem:[#allocation3 + $0x2d] sm:$0xff]
      %v3433 = vld [vmem:[#allocation3 + $0x35] sm:$0xff]
      %v3434 = vld [vmem:[#allocation3 + $0x3d] sm:$0xff]
      %v3435 = vld [vmem:[#allocation3 + $0x45] sm:$0xff]
      %v3436 = vld [vmem:[#allocation3 + $0x4d] sm:$0xff]
      %v3437 = vld [vmem:[#allocation3 + $0x55] sm:$0xff]
      %v3438 = vld [vmem:[#allocation3 + $0x5d] sm:$0xff]
      %v3439 = vld [vmem:[#allocation3 + $0x65] sm:$0xff]
      %v3440 = vld [vmem:[#allocation3 + $0x6d] sm:$0xff]
      %v3441 = vld [vmem:[#allocation3 + $0x75] sm:$0xff]
      %v3442 = vld [vmem:[#allocation3 + $0x7d] sm:$0xf]
      %3443 = vst [vmem:[#allocation4 + $0x80] sm:$0xff] %v3431
      %3444 = vst [vmem:[#allocation4 + $0x148] sm:$0xff] %v3432
      %3445 = vst [vmem:[#allocation4 + $0x210] sm:$0xff] %v3433
      %3446 = vst [vmem:[#allocation4 + $0x2d8] sm:$0xff] %v3434
      %3447 = vst [vmem:[#allocation4 + $0x3a0] sm:$0xff] %v3435
      %3448 = vst [vmem:[#allocation4 + $0x468] sm:$0xff] %v3436
      %3449 = vst [vmem:[#allocation4 + $0x530] sm:$0xff] %v3437
      %3450 = vst [vmem:[#allocation4 + $0x5f8] sm:$0xff] %v3438
      %3451 = vst [vmem:[#allocation4 + $0x6c0] sm:$0xff] %v3439
      %3452 = vst [vmem:[#allocation4 + $0x788] sm:$0xff] %v3440
      %3453 = vst [vmem:[#allocation4 + $0x850] sm:$0xff] %v3441
      %3454 = vst [vmem:[#allocation4 + $0x918] sm:$0xf] %v3442
      %v3455 = vld [vmem:[#allocation3 + $0x26] sm:$0xff]
      %v3456 = vld [vmem:[#allocation3 + $0x2e] sm:$0xff]
      %v3457 = vld [vmem:[#allocation3 + $0x36] sm:$0xff]
      %v3458 = vld [vmem:[#allocation3 + $0x3e] sm:$0xff]
      %v3459 = vld [vmem:[#allocation3 + $0x46] sm:$0xff]
      %v3460 = vld [vmem:[#allocation3 + $0x4e] sm:$0xff]
      %v3461 = vld [vmem:[#allocation3 + $0x56] sm:$0xff]
      %v3462 = vld [vmem:[#allocation3 + $0x5e] sm:$0xff]
      %v3463 = vld [vmem:[#allocation3 + $0x66] sm:$0xff]
      %v3464 = vld [vmem:[#allocation3 + $0x6e] sm:$0xff]
      %v3465 = vld [vmem:[#allocation3 + $0x76] sm:$0xff]
      %v3466 = vld [vmem:[#allocation3 + $0x7e] sm:$0xf]
      %3467 = vst [vmem:[#allocation4 + $0x88] sm:$0xff] %v3455
      %3468 = vst [vmem:[#allocation4 + $0x150] sm:$0xff] %v3456
      %3469 = vst [vmem:[#allocation4 + $0x218] sm:$0xff] %v3457
      %3470 = vst [vmem:[#allocation4 + $0x2e0] sm:$0xff] %v3458
      %3471 = vst [vmem:[#allocation4 + $0x3a8] sm:$0xff] %v3459
      %3472 = vst [vmem:[#allocation4 + $0x470] sm:$0xff] %v3460
      %3473 = vst [vmem:[#allocation4 + $0x538] sm:$0xff] %v3461
      %3474 = vst [vmem:[#allocation4 + $0x600] sm:$0xff] %v3462
      %3475 = vst [vmem:[#allocation4 + $0x6c8] sm:$0xff] %v3463
      %3476 = vst [vmem:[#allocation4 + $0x790] sm:$0xff] %v3464
      %3477 = vst [vmem:[#allocation4 + $0x858] sm:$0xff] %v3465
      %3478 = vst [vmem:[#allocation4 + $0x920] sm:$0xf] %v3466
      %v3479 = vld [vmem:[#allocation3 + $0x27] sm:$0xff]
      %v3480 = vld [vmem:[#allocation3 + $0x2f] sm:$0xff]
      %v3481 = vld [vmem:[#allocation3 + $0x37] sm:$0xff]
      %v3482 = vld [vmem:[#allocation3 + $0x3f] sm:$0xff]
      %v3483 = vld [vmem:[#allocation3 + $0x47] sm:$0xff]
      %v3484 = vld [vmem:[#allocation3 + $0x4f] sm:$0xff]
      %v3485 = vld [vmem:[#allocation3 + $0x57] sm:$0xff]
      %v3486 = vld [vmem:[#allocation3 + $0x5f] sm:$0xff]
      %v3487 = vld [vmem:[#allocation3 + $0x67] sm:$0xff]
      %v3488 = vld [vmem:[#allocation3 + $0x6f] sm:$0xff]
      %v3489 = vld [vmem:[#allocation3 + $0x77] sm:$0xff]
      %v3490 = vld [vmem:[#allocation3 + $0x7f] sm:$0xf]
      %3491 = vst [vmem:[#allocation4 + $0x90] sm:$0xff] %v3479
      %3492 = vst [vmem:[#allocation4 + $0x158] sm:$0xff] %v3480
      %3493 = vst [vmem:[#allocation4 + $0x220] sm:$0xff] %v3481
      %3494 = vst [vmem:[#allocation4 + $0x2e8] sm:$0xff] %v3482
      %3495 = vst [vmem:[#allocation4 + $0x3b0] sm:$0xff] %v3483
      %3496 = vst [vmem:[#allocation4 + $0x478] sm:$0xff] %v3484
      %3497 = vst [vmem:[#allocation4 + $0x540] sm:$0xff] %v3485
      %3498 = vst [vmem:[#allocation4 + $0x608] sm:$0xff] %v3486
      %3499 = vst [vmem:[#allocation4 + $0x6d0] sm:$0xff] %v3487
      %3500 = vst [vmem:[#allocation4 + $0x798] sm:$0xff] %v3488
      %3501 = vst [vmem:[#allocation4 + $0x860] sm:$0xff] %v3489
      %3502 = vst [vmem:[#allocation4 + $0x928] sm:$0xf] %v3490
      %v3503 = vld [vmem:[#allocation3 + $0x28] sm:$0xff]
      %v3504 = vld [vmem:[#allocation3 + $0x30] sm:$0xff]
      %v3505 = vld [vmem:[#allocation3 + $0x38] sm:$0xff]
      %v3506 = vld [vmem:[#allocation3 + $0x40] sm:$0xff]
      %v3507 = vld [vmem:[#allocation3 + $0x48] sm:$0xff]
      %v3508 = vld [vmem:[#allocation3 + $0x50] sm:$0xff]
      %v3509 = vld [vmem:[#allocation3 + $0x58] sm:$0xff]
      %v3510 = vld [vmem:[#allocation3 + $0x60] sm:$0xff]
      %v3511 = vld [vmem:[#allocation3 + $0x68] sm:$0xff]
      %v3512 = vld [vmem:[#allocation3 + $0x70] sm:$0xff]
      %v3513 = vld [vmem:[#allocation3 + $0x78] sm:$0xff]
      %v3514 = vld [vmem:[#allocation3 + $0x80] sm:$0xf]
      %3515 = vst [vmem:[#allocation4 + $0x98] sm:$0xff] %v3503
      %3516 = vst [vmem:[#allocation4 + $0x160] sm:$0xff] %v3504
      %3517 = vst [vmem:[#allocation4 + $0x228] sm:$0xff] %v3505
      %3518 = vst [vmem:[#allocation4 + $0x2f0] sm:$0xff] %v3506
      %3519 = vst [vmem:[#allocation4 + $0x3b8] sm:$0xff] %v3507
      %3520 = vst [vmem:[#allocation4 + $0x480] sm:$0xff] %v3508
      %3521 = vst [vmem:[#allocation4 + $0x548] sm:$0xff] %v3509
      %3522 = vst [vmem:[#allocation4 + $0x610] sm:$0xff] %v3510
      %3523 = vst [vmem:[#allocation4 + $0x6d8] sm:$0xff] %v3511
      %3524 = vst [vmem:[#allocation4 + $0x7a0] sm:$0xff] %v3512
      %3525 = vst [vmem:[#allocation4 + $0x868] sm:$0xff] %v3513
      %3526 = vst [vmem:[#allocation4 + $0x930] sm:$0xf] %v3514
      %v3527 = vld [vmem:[#allocation3 + $0x30] sm:$0xff]
      %v3528 = vld [vmem:[#allocation3 + $0x38] sm:$0xff]
      %v3529 = vld [vmem:[#allocation3 + $0x40] sm:$0xff]
      %v3530 = vld [vmem:[#allocation3 + $0x48] sm:$0xff]
      %v3531 = vld [vmem:[#allocation3 + $0x50] sm:$0xff]
      %v3532 = vld [vmem:[#allocation3 + $0x58] sm:$0xff]
      %v3533 = vld [vmem:[#allocation3 + $0x60] sm:$0xff]
      %v3534 = vld [vmem:[#allocation3 + $0x68] sm:$0xff]
      %v3535 = vld [vmem:[#allocation3 + $0x70] sm:$0xff]
      %v3536 = vld [vmem:[#allocation3 + $0x78] sm:$0xff]
      %v3537 = vld [vmem:[#allocation3 + $0x80] sm:$0xff]
      %v3538 = vld [vmem:[#allocation3 + $0x88] sm:$0xf]
      %3539 = vst [vmem:[#allocation4 + $0xa0] sm:$0xff] %v3527
      %3540 = vst [vmem:[#allocation4 + $0x168] sm:$0xff] %v3528
      %3541 = vst [vmem:[#allocation4 + $0x230] sm:$0xff] %v3529
      %3542 = vst [vmem:[#allocation4 + $0x2f8] sm:$0xff] %v3530
      %3543 = vst [vmem:[#allocation4 + $0x3c0] sm:$0xff] %v3531
      %3544 = vst [vmem:[#allocation4 + $0x488] sm:$0xff] %v3532
      %3545 = vst [vmem:[#allocation4 + $0x550] sm:$0xff] %v3533
      %3546 = vst [vmem:[#allocation4 + $0x618] sm:$0xff] %v3534
      %3547 = vst [vmem:[#allocation4 + $0x6e0] sm:$0xff] %v3535
      %3548 = vst [vmem:[#allocation4 + $0x7a8] sm:$0xff] %v3536
      %3549 = vst [vmem:[#allocation4 + $0x870] sm:$0xff] %v3537
      %3550 = vst [vmem:[#allocation4 + $0x938] sm:$0xf] %v3538
      %v3551 = vld [vmem:[#allocation3 + $0x31] sm:$0xff]
      %v3552 = vld [vmem:[#allocation3 + $0x39] sm:$0xff]
      %v3553 = vld [vmem:[#allocation3 + $0x41] sm:$0xff]
      %v3554 = vld [vmem:[#allocation3 + $0x49] sm:$0xff]
      %v3555 = vld [vmem:[#allocation3 + $0x51] sm:$0xff]
      %v3556 = vld [vmem:[#allocation3 + $0x59] sm:$0xff]
      %v3557 = vld [vmem:[#allocation3 + $0x61] sm:$0xff]
      %v3558 = vld [vmem:[#allocation3 + $0x69] sm:$0xff]
      %v3559 = vld [vmem:[#allocation3 + $0x71] sm:$0xff]
      %v3560 = vld [vmem:[#allocation3 + $0x79] sm:$0xff]
      %v3561 = vld [vmem:[#allocation3 + $0x81] sm:$0xff]
      %v3562 = vld [vmem:[#allocation3 + $0x89] sm:$0xf]
      %3563 = vst [vmem:[#allocation4 + $0xa8] sm:$0xff] %v3551
      %3564 = vst [vmem:[#allocation4 + $0x170] sm:$0xff] %v3552
      %3565 = vst [vmem:[#allocation4 + $0x238] sm:$0xff] %v3553
      %3566 = vst [vmem:[#allocation4 + $0x300] sm:$0xff] %v3554
      %3567 = vst [vmem:[#allocation4 + $0x3c8] sm:$0xff] %v3555
      %3568 = vst [vmem:[#allocation4 + $0x490] sm:$0xff] %v3556
      %3569 = vst [vmem:[#allocation4 + $0x558] sm:$0xff] %v3557
      %3570 = vst [vmem:[#allocation4 + $0x620] sm:$0xff] %v3558
      %3571 = vst [vmem:[#allocation4 + $0x6e8] sm:$0xff] %v3559
      %3572 = vst [vmem:[#allocation4 + $0x7b0] sm:$0xff] %v3560
      %3573 = vst [vmem:[#allocation4 + $0x878] sm:$0xff] %v3561
      %3574 = vst [vmem:[#allocation4 + $0x940] sm:$0xf] %v3562
      %v3575 = vld [vmem:[#allocation3 + $0x32] sm:$0xff]
      %v3576 = vld [vmem:[#allocation3 + $0x3a] sm:$0xff]
      %v3577 = vld [vmem:[#allocation3 + $0x42] sm:$0xff]
      %v3578 = vld [vmem:[#allocation3 + $0x4a] sm:$0xff]
      %v3579 = vld [vmem:[#allocation3 + $0x52] sm:$0xff]
      %v3580 = vld [vmem:[#allocation3 + $0x5a] sm:$0xff]
      %v3581 = vld [vmem:[#allocation3 + $0x62] sm:$0xff]
      %v3582 = vld [vmem:[#allocation3 + $0x6a] sm:$0xff]
      %v3583 = vld [vmem:[#allocation3 + $0x72] sm:$0xff]
      %v3584 = vld [vmem:[#allocation3 + $0x7a] sm:$0xff]
      %v3585 = vld [vmem:[#allocation3 + $0x82] sm:$0xff]
      %v3586 = vld [vmem:[#allocation3 + $0x8a] sm:$0xf]
      %3587 = vst [vmem:[#allocation4 + $0xb0] sm:$0xff] %v3575
      %3588 = vst [vmem:[#allocation4 + $0x178] sm:$0xff] %v3576
      %3589 = vst [vmem:[#allocation4 + $0x240] sm:$0xff] %v3577
      %3590 = vst [vmem:[#allocation4 + $0x308] sm:$0xff] %v3578
      %3591 = vst [vmem:[#allocation4 + $0x3d0] sm:$0xff] %v3579
      %3592 = vst [vmem:[#allocation4 + $0x498] sm:$0xff] %v3580
      %3593 = vst [vmem:[#allocation4 + $0x560] sm:$0xff] %v3581
      %3594 = vst [vmem:[#allocation4 + $0x628] sm:$0xff] %v3582
      %3595 = vst [vmem:[#allocation4 + $0x6f0] sm:$0xff] %v3583
      %3596 = vst [vmem:[#allocation4 + $0x7b8] sm:$0xff] %v3584
      %3597 = vst [vmem:[#allocation4 + $0x880] sm:$0xff] %v3585
      %3598 = vst [vmem:[#allocation4 + $0x948] sm:$0xf] %v3586
      %v3599 = vld [vmem:[#allocation3 + $0x33] sm:$0xff]
      %v3600 = vld [vmem:[#allocation3 + $0x3b] sm:$0xff]
      %v3601 = vld [vmem:[#allocation3 + $0x43] sm:$0xff]
      %v3602 = vld [vmem:[#allocation3 + $0x4b] sm:$0xff]
      %v3603 = vld [vmem:[#allocation3 + $0x53] sm:$0xff]
      %v3604 = vld [vmem:[#allocation3 + $0x5b] sm:$0xff]
      %v3605 = vld [vmem:[#allocation3 + $0x63] sm:$0xff]
      %v3606 = vld [vmem:[#allocation3 + $0x6b] sm:$0xff]
      %v3607 = vld [vmem:[#allocation3 + $0x73] sm:$0xff]
      %v3608 = vld [vmem:[#allocation3 + $0x7b] sm:$0xff]
      %v3609 = vld [vmem:[#allocation3 + $0x83] sm:$0xff]
      %v3610 = vld [vmem:[#allocation3 + $0x8b] sm:$0xf]
      %3611 = vst [vmem:[#allocation4 + $0xb8] sm:$0xff] %v3599
      %3612 = vst [vmem:[#allocation4 + $0x180] sm:$0xff] %v3600
      %3613 = vst [vmem:[#allocation4 + $0x248] sm:$0xff] %v3601
      %3614 = vst [vmem:[#allocation4 + $0x310] sm:$0xff] %v3602
      %3615 = vst [vmem:[#allocation4 + $0x3d8] sm:$0xff] %v3603
      %3616 = vst [vmem:[#allocation4 + $0x4a0] sm:$0xff] %v3604
      %3617 = vst [vmem:[#allocation4 + $0x568] sm:$0xff] %v3605
      %3618 = vst [vmem:[#allocation4 + $0x630] sm:$0xff] %v3606
      %3619 = vst [vmem:[#allocation4 + $0x6f8] sm:$0xff] %v3607
      %3620 = vst [vmem:[#allocation4 + $0x7c0] sm:$0xff] %v3608
      %3621 = vst [vmem:[#allocation4 + $0x888] sm:$0xff] %v3609
      %3622 = vst [vmem:[#allocation4 + $0x950] sm:$0xf] %v3610
      %v3623 = vld [vmem:[#allocation3 + $0x34] sm:$0xff]
      %v3624 = vld [vmem:[#allocation3 + $0x3c] sm:$0xff]
      %v3625 = vld [vmem:[#allocation3 + $0x44] sm:$0xff]
      %v3626 = vld [vmem:[#allocation3 + $0x4c] sm:$0xff]
      %v3627 = vld [vmem:[#allocation3 + $0x54] sm:$0xff]
      %v3628 = vld [vmem:[#allocation3 + $0x5c] sm:$0xff]
      %v3629 = vld [vmem:[#allocation3 + $0x64] sm:$0xff]
      %v3630 = vld [vmem:[#allocation3 + $0x6c] sm:$0xff]
      %v3631 = vld [vmem:[#allocation3 + $0x74] sm:$0xff]
      %v3632 = vld [vmem:[#allocation3 + $0x7c] sm:$0xff]
      %v3633 = vld [vmem:[#allocation3 + $0x84] sm:$0xff]
      %v3634 = vld [vmem:[#allocation3 + $0x8c] sm:$0xf]
      %3635 = vst [vmem:[#allocation4 + $0xc0] sm:$0xff] %v3623
      %3636 = vst [vmem:[#allocation4 + $0x188] sm:$0xff] %v3624
      %3637 = vst [vmem:[#allocation4 + $0x250] sm:$0xff] %v3625
      %3638 = vst [vmem:[#allocation4 + $0x318] sm:$0xff] %v3626
      %3639 = vst [vmem:[#allocation4 + $0x3e0] sm:$0xff] %v3627
      %3640 = vst [vmem:[#allocation4 + $0x4a8] sm:$0xff] %v3628
      %3641 = vst [vmem:[#allocation4 + $0x570] sm:$0xff] %v3629
      %3642 = vst [vmem:[#allocation4 + $0x638] sm:$0xff] %v3630
      %3643 = vst [vmem:[#allocation4 + $0x700] sm:$0xff] %v3631
      %3644 = vst [vmem:[#allocation4 + $0x7c8] sm:$0xff] %v3632
      %3645 = vst [vmem:[#allocation4 + $0x890] sm:$0xff] %v3633
      %3646 = vst [vmem:[#allocation4 + $0x958] sm:$0xf] %v3634
      %v3647 = vld [vmem:[#allocation4] sm:$0xff]
      %v3648 = vld [vmem:[#allocation4 + $0x8] sm:$0xff]
      %v3649 = vld [vmem:[#allocation4 + $0x10] sm:$0xff]
      %v3650 = vld [vmem:[#allocation4 + $0x18] sm:$0xff]
      %v3651 = vld [vmem:[#allocation4 + $0x20] sm:$0xff]
      %v3652 = vld [vmem:[#allocation4 + $0x28] sm:$0xff]
      %v3653 = vld [vmem:[#allocation4 + $0x30] sm:$0xff]
      %v3654 = vld [vmem:[#allocation4 + $0x38] sm:$0xff]
      %v3655 = vld [vmem:[#allocation4 + $0x40] sm:$0xff]
      %v3656 = vld [vmem:[#allocation4 + $0x48] sm:$0xff]
      %v3657 = vld [vmem:[#allocation4 + $0x50] sm:$0xff]
      %v3658 = vld [vmem:[#allocation4 + $0x58] sm:$0xff]
      %v3659 = vld [vmem:[#allocation4 + $0x60] sm:$0xff]
      %v3660 = vld [vmem:[#allocation4 + $0x68] sm:$0xff]
      %v3661 = vld [vmem:[#allocation4 + $0x70] sm:$0xff]
      %v3662 = vld [vmem:[#allocation4 + $0x78] sm:$0xff]
      %v3663 = vld [vmem:[#allocation4 + $0x80] sm:$0xff]
      %v3664 = vld [vmem:[#allocation4 + $0x88] sm:$0xff]
      %v3665 = vld [vmem:[#allocation4 + $0x90] sm:$0xff]
      %v3666 = vld [vmem:[#allocation4 + $0x98] sm:$0xff]
      %v3667 = vld [vmem:[#allocation4 + $0xa0] sm:$0xff]
      %v3668 = vld [vmem:[#allocation4 + $0xa8] sm:$0xff]
      %v3669 = vld [vmem:[#allocation4 + $0xb0] sm:$0xff]
      %v3670 = vld [vmem:[#allocation4 + $0xb8] sm:$0xff]
      %v3671 = vld [vmem:[#allocation4 + $0xc0] sm:$0xff]
      %v3672 = vld [vmem:[#allocation4 + $0xc8] sm:$0xff]
      %v3673 = vld [vmem:[#allocation4 + $0xd0] sm:$0xff]
      %v3674 = vld [vmem:[#allocation4 + $0xd8] sm:$0xff]
      %v3675 = vld [vmem:[#allocation4 + $0xe0] sm:$0xff]
      %v3676 = vld [vmem:[#allocation4 + $0xe8] sm:$0xff]
      %v3677 = vld [vmem:[#allocation4 + $0xf0] sm:$0xff]
      %v3678 = vld [vmem:[#allocation4 + $0xf8] sm:$0xff]
      %v3679 = vld [vmem:[#allocation4 + $0x100] sm:$0xff]
      %v3680 = vld [vmem:[#allocation4 + $0x108] sm:$0xff]
      %v3681 = vld [vmem:[#allocation4 + $0x110] sm:$0xff]
      %v3682 = vld [vmem:[#allocation4 + $0x118] sm:$0xff]
      %v3683 = vld [vmem:[#allocation4 + $0x120] sm:$0xff]
      %v3684 = vld [vmem:[#allocation4 + $0x128] sm:$0xff]
      %v3685 = vld [vmem:[#allocation4 + $0x130] sm:$0xff]
      %v3686 = vld [vmem:[#allocation4 + $0x138] sm:$0xff]
      %v3687 = vld [vmem:[#allocation4 + $0x140] sm:$0xff]
      %v3688 = vld [vmem:[#allocation4 + $0x148] sm:$0xff]
      %v3689 = vld [vmem:[#allocation4 + $0x150] sm:$0xff]
      %v3690 = vld [vmem:[#allocation4 + $0x158] sm:$0xff]
      %v3691 = vld [vmem:[#allocation4 + $0x160] sm:$0xff]
      %v3692 = vld [vmem:[#allocation4 + $0x168] sm:$0xff]
      %v3693 = vld [vmem:[#allocation4 + $0x170] sm:$0xff]
      %v3694 = vld [vmem:[#allocation4 + $0x178] sm:$0xff]
      %v3695 = vld [vmem:[#allocation4 + $0x180] sm:$0xff]
      %v3696 = vld [vmem:[#allocation4 + $0x188] sm:$0xff]
      %v3697 = vld [vmem:[#allocation4 + $0x190] sm:$0xff]
      %v3698 = vld [vmem:[#allocation4 + $0x198] sm:$0xff]
      %v3699 = vld [vmem:[#allocation4 + $0x1a0] sm:$0xff]
      %v3700 = vld [vmem:[#allocation4 + $0x1a8] sm:$0xff]
      %v3701 = vld [vmem:[#allocation4 + $0x1b0] sm:$0xff]
      %v3702 = vld [vmem:[#allocation4 + $0x1b8] sm:$0xff]
      %v3703 = vld [vmem:[#allocation4 + $0x1c0] sm:$0xff]
      %v3704 = vld [vmem:[#allocation4 + $0x1c8] sm:$0xff]
      %v3705 = vld [vmem:[#allocation4 + $0x1d0] sm:$0xff]
      %v3706 = vld [vmem:[#allocation4 + $0x1d8] sm:$0xff]
      %v3707 = vld [vmem:[#allocation4 + $0x1e0] sm:$0xff]
      %v3708 = vld [vmem:[#allocation4 + $0x1e8] sm:$0xff]
      %v3709 = vld [vmem:[#allocation4 + $0x1f0] sm:$0xff]
      %v3710 = vld [vmem:[#allocation4 + $0x1f8] sm:$0xff]
      %v3711 = vld [vmem:[#allocation4 + $0x200] sm:$0xff]
      %v3712 = vld [vmem:[#allocation4 + $0x208] sm:$0xff]
      %v3713 = vld [vmem:[#allocation4 + $0x210] sm:$0xff]
      %v3714 = vld [vmem:[#allocation4 + $0x218] sm:$0xff]
      %v3715 = vld [vmem:[#allocation4 + $0x220] sm:$0xff]
      %v3716 = vld [vmem:[#allocation4 + $0x228] sm:$0xff]
      %v3717 = vld [vmem:[#allocation4 + $0x230] sm:$0xff]
      %v3718 = vld [vmem:[#allocation4 + $0x238] sm:$0xff]
      %v3719 = vld [vmem:[#allocation4 + $0x240] sm:$0xff]
      %v3720 = vld [vmem:[#allocation4 + $0x248] sm:$0xff]
      %v3721 = vld [vmem:[#allocation4 + $0x250] sm:$0xff]
      %v3722 = vld [vmem:[#allocation4 + $0x258] sm:$0xff]
      %v3723 = vld [vmem:[#allocation4 + $0x260] sm:$0xff]
      %v3724 = vld [vmem:[#allocation4 + $0x268] sm:$0xff]
      %v3725 = vld [vmem:[#allocation4 + $0x270] sm:$0xff]
      %v3726 = vld [vmem:[#allocation4 + $0x278] sm:$0xff]
      %v3727 = vld [vmem:[#allocation4 + $0x280] sm:$0xff]
      %v3728 = vld [vmem:[#allocation4 + $0x288] sm:$0xff]
      %v3729 = vld [vmem:[#allocation4 + $0x290] sm:$0xff]
      %v3730 = vld [vmem:[#allocation4 + $0x298] sm:$0xff]
      %v3731 = vld [vmem:[#allocation4 + $0x2a0] sm:$0xff]
      %v3732 = vld [vmem:[#allocation4 + $0x2a8] sm:$0xff]
      %v3733 = vld [vmem:[#allocation4 + $0x2b0] sm:$0xff]
      %v3734 = vld [vmem:[#allocation4 + $0x2b8] sm:$0xff]
      %v3735 = vld [vmem:[#allocation4 + $0x2c0] sm:$0xff]
      %v3736 = vld [vmem:[#allocation4 + $0x2c8] sm:$0xff]
      %v3737 = vld [vmem:[#allocation4 + $0x2d0] sm:$0xff]
      %v3738 = vld [vmem:[#allocation4 + $0x2d8] sm:$0xff]
      %v3739 = vld [vmem:[#allocation4 + $0x2e0] sm:$0xff]
      %v3740 = vld [vmem:[#allocation4 + $0x2e8] sm:$0xff]
      %v3741 = vld [vmem:[#allocation4 + $0x2f0] sm:$0xff]
      %v3742 = vld [vmem:[#allocation4 + $0x2f8] sm:$0xff]
      %v3743 = vld [vmem:[#allocation4 + $0x300] sm:$0xff]
      %v3744 = vld [vmem:[#allocation4 + $0x308] sm:$0xff]
      %v3745 = vld [vmem:[#allocation4 + $0x310] sm:$0xff]
      %v3746 = vld [vmem:[#allocation4 + $0x318] sm:$0xff]
      %v3747 = vld [vmem:[#allocation4 + $0x320] sm:$0xff]
      %v3748 = vld [vmem:[#allocation4 + $0x328] sm:$0xff]
      %v3749 = vld [vmem:[#allocation4 + $0x330] sm:$0xff]
      %v3750 = vld [vmem:[#allocation4 + $0x338] sm:$0xff]
      %v3751 = vld [vmem:[#allocation4 + $0x340] sm:$0xff]
      %v3752 = vld [vmem:[#allocation4 + $0x348] sm:$0xff]
      %v3753 = vld [vmem:[#allocation4 + $0x350] sm:$0xff]
      %v3754 = vld [vmem:[#allocation4 + $0x358] sm:$0xff]
      %v3755 = vld [vmem:[#allocation4 + $0x360] sm:$0xff]
      %v3756 = vld [vmem:[#allocation4 + $0x368] sm:$0xff]
      %v3757 = vld [vmem:[#allocation4 + $0x370] sm:$0xff]
      %v3758 = vld [vmem:[#allocation4 + $0x378] sm:$0xff]
      %v3759 = vld [vmem:[#allocation4 + $0x380] sm:$0xff]
      %v3760 = vld [vmem:[#allocation4 + $0x388] sm:$0xff]
      %v3761 = vld [vmem:[#allocation4 + $0x390] sm:$0xff]
      %v3762 = vld [vmem:[#allocation4 + $0x398] sm:$0xff]
      %v3763 = vld [vmem:[#allocation4 + $0x3a0] sm:$0xff]
      %v3764 = vld [vmem:[#allocation4 + $0x3a8] sm:$0xff]
      %v3765 = vld [vmem:[#allocation4 + $0x3b0] sm:$0xff]
      %v3766 = vld [vmem:[#allocation4 + $0x3b8] sm:$0xff]
      %v3767 = vld [vmem:[#allocation4 + $0x3c0] sm:$0xff]
      %v3768 = vld [vmem:[#allocation4 + $0x3c8] sm:$0xff]
      %v3769 = vld [vmem:[#allocation4 + $0x3d0] sm:$0xff]
      %v3770 = vld [vmem:[#allocation4 + $0x3d8] sm:$0xff]
      %v3771 = vld [vmem:[#allocation4 + $0x3e0] sm:$0xff]
      %v3772 = vld [vmem:[#allocation4 + $0x3e8] sm:$0xff]
      %v3773 = vld [vmem:[#allocation4 + $0x3f0] sm:$0xff]
      %v3774 = vld [vmem:[#allocation4 + $0x3f8] sm:$0xff]
      %v3775 = vld [vmem:[#allocation4 + $0x400] sm:$0xff]
      %v3776 = vld [vmem:[#allocation4 + $0x408] sm:$0xff]
      %v3777 = vld [vmem:[#allocation4 + $0x410] sm:$0xff]
      %v3778 = vld [vmem:[#allocation4 + $0x418] sm:$0xff]
      %v3779 = vld [vmem:[#allocation4 + $0x420] sm:$0xff]
      %v3780 = vld [vmem:[#allocation4 + $0x428] sm:$0xff]
      %v3781 = vld [vmem:[#allocation4 + $0x430] sm:$0xff]
      %v3782 = vld [vmem:[#allocation4 + $0x438] sm:$0xff]
      %v3783 = vld [vmem:[#allocation4 + $0x440] sm:$0xff]
      %v3784 = vld [vmem:[#allocation4 + $0x448] sm:$0xff]
      %v3785 = vld [vmem:[#allocation4 + $0x450] sm:$0xff]
      %v3786 = vld [vmem:[#allocation4 + $0x458] sm:$0xff]
      %v3787 = vld [vmem:[#allocation4 + $0x460] sm:$0xff]
      %v3788 = vld [vmem:[#allocation4 + $0x468] sm:$0xff]
      %v3789 = vld [vmem:[#allocation4 + $0x470] sm:$0xff]
      %v3790 = vld [vmem:[#allocation4 + $0x478] sm:$0xff]
      %v3791 = vld [vmem:[#allocation4 + $0x480] sm:$0xff]
      %v3792 = vld [vmem:[#allocation4 + $0x488] sm:$0xff]
      %v3793 = vld [vmem:[#allocation4 + $0x490] sm:$0xff]
      %v3794 = vld [vmem:[#allocation4 + $0x498] sm:$0xff]
      %v3795 = vld [vmem:[#allocation4 + $0x4a0] sm:$0xff]
      %v3796 = vld [vmem:[#allocation4 + $0x4a8] sm:$0xff]
      %v3797 = vld [vmem:[#allocation4 + $0x4b0] sm:$0xff]
      %v3798 = vld [vmem:[#allocation4 + $0x4b8] sm:$0xff]
      %v3799 = vld [vmem:[#allocation4 + $0x4c0] sm:$0xff]
      %v3800 = vld [vmem:[#allocation4 + $0x4c8] sm:$0xff]
      %v3801 = vld [vmem:[#allocation4 + $0x4d0] sm:$0xff]
      %v3802 = vld [vmem:[#allocation4 + $0x4d8] sm:$0xff]
      %v3803 = vld [vmem:[#allocation4 + $0x4e0] sm:$0xff]
      %v3804 = vld [vmem:[#allocation4 + $0x4e8] sm:$0xff]
      %v3805 = vld [vmem:[#allocation4 + $0x4f0] sm:$0xff]
      %v3806 = vld [vmem:[#allocation4 + $0x4f8] sm:$0xff]
      %v3807 = vld [vmem:[#allocation4 + $0x500] sm:$0xff]
      %v3808 = vld [vmem:[#allocation4 + $0x508] sm:$0xff]
      %v3809 = vld [vmem:[#allocation4 + $0x510] sm:$0xff]
      %v3810 = vld [vmem:[#allocation4 + $0x518] sm:$0xff]
      %v3811 = vld [vmem:[#allocation4 + $0x520] sm:$0xff]
      %v3812 = vld [vmem:[#allocation4 + $0x528] sm:$0xff]
      %v3813 = vld [vmem:[#allocation4 + $0x530] sm:$0xff]
      %v3814 = vld [vmem:[#allocation4 + $0x538] sm:$0xff]
      %v3815 = vld [vmem:[#allocation4 + $0x540] sm:$0xff]
      %v3816 = vld [vmem:[#allocation4 + $0x548] sm:$0xff]
      %v3817 = vld [vmem:[#allocation4 + $0x550] sm:$0xff]
      %v3818 = vld [vmem:[#allocation4 + $0x558] sm:$0xff]
      %v3819 = vld [vmem:[#allocation4 + $0x560] sm:$0xff]
      %v3820 = vld [vmem:[#allocation4 + $0x568] sm:$0xff]
      %v3821 = vld [vmem:[#allocation4 + $0x570] sm:$0xff]
      %v3822 = vld [vmem:[#allocation4 + $0x578] sm:$0xff]
      %v3823 = vld [vmem:[#allocation4 + $0x580] sm:$0xff]
      %v3824 = vld [vmem:[#allocation4 + $0x588] sm:$0xff]
      %v3825 = vld [vmem:[#allocation4 + $0x590] sm:$0xff]
      %v3826 = vld [vmem:[#allocation4 + $0x598] sm:$0xff]
      %v3827 = vld [vmem:[#allocation4 + $0x5a0] sm:$0xff]
      %v3828 = vld [vmem:[#allocation4 + $0x5a8] sm:$0xff]
      %v3829 = vld [vmem:[#allocation4 + $0x5b0] sm:$0xff]
      %v3830 = vld [vmem:[#allocation4 + $0x5b8] sm:$0xff]
      %v3831 = vld [vmem:[#allocation4 + $0x5c0] sm:$0xff]
      %v3832 = vld [vmem:[#allocation4 + $0x5c8] sm:$0xff]
      %v3833 = vld [vmem:[#allocation4 + $0x5d0] sm:$0xff]
      %v3834 = vld [vmem:[#allocation4 + $0x5d8] sm:$0xff]
      %v3835 = vld [vmem:[#allocation4 + $0x5e0] sm:$0xff]
      %v3836 = vld [vmem:[#allocation4 + $0x5e8] sm:$0xff]
      %v3837 = vld [vmem:[#allocation4 + $0x5f0] sm:$0xff]
      %v3838 = vld [vmem:[#allocation4 + $0x5f8] sm:$0xff]
      %v3839 = vld [vmem:[#allocation4 + $0x600] sm:$0xff]
      %v3840 = vld [vmem:[#allocation4 + $0x608] sm:$0xff]
      %v3841 = vld [vmem:[#allocation4 + $0x610] sm:$0xff]
      %v3842 = vld [vmem:[#allocation4 + $0x618] sm:$0xff]
      %v3843 = vld [vmem:[#allocation4 + $0x620] sm:$0xff]
      %v3844 = vld [vmem:[#allocation4 + $0x628] sm:$0xff]
      %v3845 = vld [vmem:[#allocation4 + $0x630] sm:$0xff]
      %v3846 = vld [vmem:[#allocation4 + $0x638] sm:$0xff]
      %v3847 = vld [vmem:[#allocation4 + $0x640] sm:$0xff]
      %v3848 = vld [vmem:[#allocation4 + $0x648] sm:$0xff]
      %v3849 = vld [vmem:[#allocation4 + $0x650] sm:$0xff]
      %v3850 = vld [vmem:[#allocation4 + $0x658] sm:$0xff]
      %v3851 = vld [vmem:[#allocation4 + $0x660] sm:$0xff]
      %v3852 = vld [vmem:[#allocation4 + $0x668] sm:$0xff]
      %v3853 = vld [vmem:[#allocation4 + $0x670] sm:$0xff]
      %v3854 = vld [vmem:[#allocation4 + $0x678] sm:$0xff]
      %v3855 = vld [vmem:[#allocation4 + $0x680] sm:$0xff]
      %v3856 = vld [vmem:[#allocation4 + $0x688] sm:$0xff]
      %v3857 = vld [vmem:[#allocation4 + $0x690] sm:$0xff]
      %v3858 = vld [vmem:[#allocation4 + $0x698] sm:$0xff]
      %v3859 = vld [vmem:[#allocation4 + $0x6a0] sm:$0xff]
      %v3860 = vld [vmem:[#allocation4 + $0x6a8] sm:$0xff]
      %v3861 = vld [vmem:[#allocation4 + $0x6b0] sm:$0xff]
      %v3862 = vld [vmem:[#allocation4 + $0x6b8] sm:$0xff]
      %v3863 = vld [vmem:[#allocation4 + $0x6c0] sm:$0xff]
      %v3864 = vld [vmem:[#allocation4 + $0x6c8] sm:$0xff]
      %v3865 = vld [vmem:[#allocation4 + $0x6d0] sm:$0xff]
      %v3866 = vld [vmem:[#allocation4 + $0x6d8] sm:$0xff]
      %v3867 = vld [vmem:[#allocation4 + $0x6e0] sm:$0xff]
      %v3868 = vld [vmem:[#allocation4 + $0x6e8] sm:$0xff]
      %v3869 = vld [vmem:[#allocation4 + $0x6f0] sm:$0xff]
      %v3870 = vld [vmem:[#allocation4 + $0x6f8] sm:$0xff]
      %v3871 = vld [vmem:[#allocation4 + $0x700] sm:$0xff]
      %v3872 = vld [vmem:[#allocation4 + $0x708] sm:$0xff]
      %v3873 = vld [vmem:[#allocation4 + $0x710] sm:$0xff]
      %v3874 = vld [vmem:[#allocation4 + $0x718] sm:$0xff]
      %v3875 = vld [vmem:[#allocation4 + $0x720] sm:$0xff]
      %v3876 = vld [vmem:[#allocation4 + $0x728] sm:$0xff]
      %v3877 = vld [vmem:[#allocation4 + $0x730] sm:$0xff]
      %v3878 = vld [vmem:[#allocation4 + $0x738] sm:$0xff]
      %v3879 = vld [vmem:[#allocation4 + $0x740] sm:$0xff]
      %v3880 = vld [vmem:[#allocation4 + $0x748] sm:$0xff]
      %v3881 = vld [vmem:[#allocation4 + $0x750] sm:$0xff]
      %v3882 = vld [vmem:[#allocation4 + $0x758] sm:$0xff]
      %v3883 = vld [vmem:[#allocation4 + $0x760] sm:$0xff]
      %v3884 = vld [vmem:[#allocation4 + $0x768] sm:$0xff]
      %v3885 = vld [vmem:[#allocation4 + $0x770] sm:$0xff]
      %v3886 = vld [vmem:[#allocation4 + $0x778] sm:$0xff]
      %v3887 = vld [vmem:[#allocation4 + $0x780] sm:$0xff]
      %v3888 = vld [vmem:[#allocation4 + $0x788] sm:$0xff]
      %v3889 = vld [vmem:[#allocation4 + $0x790] sm:$0xff]
      %v3890 = vld [vmem:[#allocation4 + $0x798] sm:$0xff]
      %v3891 = vld [vmem:[#allocation4 + $0x7a0] sm:$0xff]
      %v3892 = vld [vmem:[#allocation4 + $0x7a8] sm:$0xff]
      %v3893 = vld [vmem:[#allocation4 + $0x7b0] sm:$0xff]
      %v3894 = vld [vmem:[#allocation4 + $0x7b8] sm:$0xff]
      %v3895 = vld [vmem:[#allocation4 + $0x7c0] sm:$0xff]
      %v3896 = vld [vmem:[#allocation4 + $0x7c8] sm:$0xff]
      %v3897 = vld [vmem:[#allocation4 + $0x7d0] sm:$0xff]
      %v3898 = vld [vmem:[#allocation4 + $0x7d8] sm:$0xff]
      %v3899 = vld [vmem:[#allocation4 + $0x7e0] sm:$0xff]
      %v3900 = vld [vmem:[#allocation4 + $0x7e8] sm:$0xff]
      %v3901 = vld [vmem:[#allocation4 + $0x7f0] sm:$0xff]
      %v3902 = vld [vmem:[#allocation4 + $0x7f8] sm:$0xff]
      %v3903 = vld [vmem:[#allocation4 + $0x800] sm:$0xff]
      %v3904 = vld [vmem:[#allocation4 + $0x808] sm:$0xff]
      %v3905 = vld [vmem:[#allocation4 + $0x810] sm:$0xff]
      %v3906 = vld [vmem:[#allocation4 + $0x818] sm:$0xff]
      %v3907 = vld [vmem:[#allocation4 + $0x820] sm:$0xff]
      %v3908 = vld [vmem:[#allocation4 + $0x828] sm:$0xff]
      %v3909 = vld [vmem:[#allocation4 + $0x830] sm:$0xff]
      %v3910 = vld [vmem:[#allocation4 + $0x838] sm:$0xff]
      %v3911 = vld [vmem:[#allocation4 + $0x840] sm:$0xff]
      %v3912 = vld [vmem:[#allocation4 + $0x848] sm:$0xff]
      %v3913 = vld [vmem:[#allocation4 + $0x850] sm:$0xff]
      %v3914 = vld [vmem:[#allocation4 + $0x858] sm:$0xff]
      %v3915 = vld [vmem:[#allocation4 + $0x860] sm:$0xff]
      %v3916 = vld [vmem:[#allocation4 + $0x868] sm:$0xff]
      %v3917 = vld [vmem:[#allocation4 + $0x870] sm:$0xff]
      %v3918 = vld [vmem:[#allocation4 + $0x878] sm:$0xff]
      %v3919 = vld [vmem:[#allocation4 + $0x880] sm:$0xff]
      %v3920 = vld [vmem:[#allocation4 + $0x888] sm:$0xff]
      %v3921 = vld [vmem:[#allocation4 + $0x890] sm:$0xff]
      %v3922 = vld [vmem:[#allocation4 + $0x898] sm:$0xf]
      %v3923 = vld [vmem:[#allocation4 + $0x8a0] sm:$0xf]
      %v3924 = vld [vmem:[#allocation4 + $0x8a8] sm:$0xf]
      %v3925 = vld [vmem:[#allocation4 + $0x8b0] sm:$0xf]
      %v3926 = vld [vmem:[#allocation4 + $0x8b8] sm:$0xf]
      %v3927 = vld [vmem:[#allocation4 + $0x8c0] sm:$0xf]
      %v3928 = vld [vmem:[#allocation4 + $0x8c8] sm:$0xf]
      %v3929 = vld [vmem:[#allocation4 + $0x8d0] sm:$0xf]
      %v3930 = vld [vmem:[#allocation4 + $0x8d8] sm:$0xf]
      %v3931 = vld [vmem:[#allocation4 + $0x8e0] sm:$0xf]
      %v3932 = vld [vmem:[#allocation4 + $0x8e8] sm:$0xf]
      %v3933 = vld [vmem:[#allocation4 + $0x8f0] sm:$0xf]
      %v3934 = vld [vmem:[#allocation4 + $0x8f8] sm:$0xf]
      %v3935 = vld [vmem:[#allocation4 + $0x900] sm:$0xf]
      %v3936 = vld [vmem:[#allocation4 + $0x908] sm:$0xf]
      %v3937 = vld [vmem:[#allocation4 + $0x910] sm:$0xf]
      %v3938 = vld [vmem:[#allocation4 + $0x918] sm:$0xf]
      %v3939 = vld [vmem:[#allocation4 + $0x920] sm:$0xf]
      %v3940 = vld [vmem:[#allocation4 + $0x928] sm:$0xf]
      %v3941 = vld [vmem:[#allocation4 + $0x930] sm:$0xf]
      %v3942 = vld [vmem:[#allocation4 + $0x938] sm:$0xf]
      %v3943 = vld [vmem:[#allocation4 + $0x940] sm:$0xf]
      %v3944 = vld [vmem:[#allocation4 + $0x948] sm:$0xf]
      %v3945 = vld [vmem:[#allocation4 + $0x950] sm:$0xf]
      %v3946 = vld [vmem:[#allocation4 + $0x958] sm:$0xf]
      %v3947 = vld [vmem:[%s4] sm:$0xff]
      %v3948 = vld [vmem:[%s4 + $0x8] sm:$0xff]
      %v3949 = vld [vmem:[%s4 + $0x10] sm:$0xff]
      %v3950 = vld [vmem:[%s4 + $0x18] sm:$0xff]
      %v3951 = vld [vmem:[%s4 + $0x20] sm:$0xff]
      %v3952 = vld [vmem:[%s4 + $0x28] sm:$0xff]
      %v3953 = vld [vmem:[%s4 + $0x30] sm:$0xff]
      %v3954 = vld [vmem:[%s4 + $0x38] sm:$0xff]
      %v3955 = vld [vmem:[%s4 + $0x40] sm:$0xff]
      %v3956 = vld [vmem:[%s4 + $0x48] sm:$0xff]
      %v3957 = vld [vmem:[%s4 + $0x50] sm:$0xff]
      %v3958 = vld [vmem:[%s4 + $0x58] sm:$0xff]
      %v3959 = vld [vmem:[%s4 + $0x60] sm:$0xff]
      %v3960 = vld [vmem:[%s4 + $0x68] sm:$0xff]
      %v3961 = vld [vmem:[%s4 + $0x70] sm:$0xff]
      %v3962 = vld [vmem:[%s4 + $0x78] sm:$0xff]
      %v3963 = vld [vmem:[%s4 + $0x80] sm:$0xff]
      %v3964 = vld [vmem:[%s4 + $0x88] sm:$0xff]
      %v3965 = vld [vmem:[%s4 + $0x90] sm:$0xff]
      %v3966 = vld [vmem:[%s4 + $0x98] sm:$0xff]
      %v3967 = vld [vmem:[%s4 + $0xa0] sm:$0xff]
      %v3968 = vld [vmem:[%s4 + $0xa8] sm:$0xff]
      %v3969 = vld [vmem:[%s4 + $0xb0] sm:$0xff]
      %v3970 = vld [vmem:[%s4 + $0xb8] sm:$0xff]
      %v3971 = vld [vmem:[%s4 + $0xc0] sm:$0xff]
      %v3972 = vld [vmem:[%s4 + $0xc8] sm:$0xff]
      %v3973 = vld [vmem:[%s4 + $0xd0] sm:$0xff]
      %v3974 = vld [vmem:[%s4 + $0xd8] sm:$0xff]
      %v3975 = vld [vmem:[%s4 + $0xe0] sm:$0xff]
      %v3976 = vld [vmem:[%s4 + $0xe8] sm:$0xff]
      %v3977 = vld [vmem:[%s4 + $0xf0] sm:$0xff]
      %v3978 = vld [vmem:[%s4 + $0xf8] sm:$0xff]
      %v3979 = vld [vmem:[%s4 + $0x100] sm:$0xff]
      %v3980 = vld [vmem:[%s4 + $0x108] sm:$0xff]
      %v3981 = vld [vmem:[%s4 + $0x110] sm:$0xff]
      %v3982 = vld [vmem:[%s4 + $0x118] sm:$0xff]
      %v3983 = vld [vmem:[%s4 + $0x120] sm:$0xff]
      %v3984 = vld [vmem:[%s4 + $0x128] sm:$0xff]
      %v3985 = vld [vmem:[%s4 + $0x130] sm:$0xff]
      %v3986 = vld [vmem:[%s4 + $0x138] sm:$0xff]
      %v3987 = vld [vmem:[%s4 + $0x140] sm:$0xff]
      %v3988 = vld [vmem:[%s4 + $0x148] sm:$0xff]
      %v3989 = vld [vmem:[%s4 + $0x150] sm:$0xff]
      %v3990 = vld [vmem:[%s4 + $0x158] sm:$0xff]
      %v3991 = vld [vmem:[%s4 + $0x160] sm:$0xff]
      %v3992 = vld [vmem:[%s4 + $0x168] sm:$0xff]
      %v3993 = vld [vmem:[%s4 + $0x170] sm:$0xff]
      %v3994 = vld [vmem:[%s4 + $0x178] sm:$0xff]
      %v3995 = vld [vmem:[%s4 + $0x180] sm:$0xff]
      %v3996 = vld [vmem:[%s4 + $0x188] sm:$0xff]
      %v3997 = vld [vmem:[%s4 + $0x190] sm:$0xff]
      %v3998 = vld [vmem:[%s4 + $0x198] sm:$0xff]
      %v3999 = vld [vmem:[%s4 + $0x1a0] sm:$0xff]
      %v4000 = vld [vmem:[%s4 + $0x1a8] sm:$0xff]
      %v4001 = vld [vmem:[%s4 + $0x1b0] sm:$0xff]
      %v4002 = vld [vmem:[%s4 + $0x1b8] sm:$0xff]
      %v4003 = vld [vmem:[%s4 + $0x1c0] sm:$0xff]
      %v4004 = vld [vmem:[%s4 + $0x1c8] sm:$0xff]
      %v4005 = vld [vmem:[%s4 + $0x1d0] sm:$0xff]
      %v4006 = vld [vmem:[%s4 + $0x1d8] sm:$0xff]
      %v4007 = vld [vmem:[%s4 + $0x1e0] sm:$0xff]
      %v4008 = vld [vmem:[%s4 + $0x1e8] sm:$0xff]
      %v4009 = vld [vmem:[%s4 + $0x1f0] sm:$0xff]
      %v4010 = vld [vmem:[%s4 + $0x1f8] sm:$0xff]
      %v4011 = vld [vmem:[%s4 + $0x200] sm:$0xff]
      %v4012 = vld [vmem:[%s4 + $0x208] sm:$0xff]
      %v4013 = vld [vmem:[%s4 + $0x210] sm:$0xff]
      %v4014 = vld [vmem:[%s4 + $0x218] sm:$0xff]
      %v4015 = vld [vmem:[%s4 + $0x220] sm:$0xff]
      %v4016 = vld [vmem:[%s4 + $0x228] sm:$0xff]
      %v4017 = vld [vmem:[%s4 + $0x230] sm:$0xff]
      %v4018 = vld [vmem:[%s4 + $0x238] sm:$0xff]
      %v4019 = vld [vmem:[%s4 + $0x240] sm:$0xff]
      %v4020 = vld [vmem:[%s4 + $0x248] sm:$0xff]
      %v4021 = vld [vmem:[%s4 + $0x250] sm:$0xff]
      %v4022 = vld [vmem:[%s4 + $0x258] sm:$0xff]
      %v4023 = vld [vmem:[%s4 + $0x260] sm:$0xff]
      %v4024 = vld [vmem:[%s4 + $0x268] sm:$0xff]
      %v4025 = vld [vmem:[%s4 + $0x270] sm:$0xff]
      %v4026 = vld [vmem:[%s4 + $0x278] sm:$0xff]
      %v4027 = vld [vmem:[%s4 + $0x280] sm:$0xff]
      %v4028 = vld [vmem:[%s4 + $0x288] sm:$0xff]
      %v4029 = vld [vmem:[%s4 + $0x290] sm:$0xff]
      %v4030 = vld [vmem:[%s4 + $0x298] sm:$0xff]
      %v4031 = vld [vmem:[%s4 + $0x2a0] sm:$0xff]
      %v4032 = vld [vmem:[%s4 + $0x2a8] sm:$0xff]
      %v4033 = vld [vmem:[%s4 + $0x2b0] sm:$0xff]
      %v4034 = vld [vmem:[%s4 + $0x2b8] sm:$0xff]
      %v4035 = vld [vmem:[%s4 + $0x2c0] sm:$0xff]
      %v4036 = vld [vmem:[%s4 + $0x2c8] sm:$0xff]
      %v4037 = vld [vmem:[%s4 + $0x2d0] sm:$0xff]
      %v4038 = vld [vmem:[%s4 + $0x2d8] sm:$0xff]
      %v4039 = vld [vmem:[%s4 + $0x2e0] sm:$0xff]
      %v4040 = vld [vmem:[%s4 + $0x2e8] sm:$0xff]
      %v4041 = vld [vmem:[%s4 + $0x2f0] sm:$0xff]
      %v4042 = vld [vmem:[%s4 + $0x2f8] sm:$0xff]
      %v4043 = vld [vmem:[%s4 + $0x300] sm:$0xff]
      %v4044 = vld [vmem:[%s4 + $0x308] sm:$0xff]
      %v4045 = vld [vmem:[%s4 + $0x310] sm:$0xff]
      %v4046 = vld [vmem:[%s4 + $0x318] sm:$0xff]
      %v4047 = vld [vmem:[%s4 + $0x320] sm:$0xff]
      %v4048 = vld [vmem:[%s4 + $0x328] sm:$0xff]
      %v4049 = vld [vmem:[%s4 + $0x330] sm:$0xff]
      %v4050 = vld [vmem:[%s4 + $0x338] sm:$0xff]
      %v4051 = vld [vmem:[%s4 + $0x340] sm:$0xff]
      %v4052 = vld [vmem:[%s4 + $0x348] sm:$0xff]
      %v4053 = vld [vmem:[%s4 + $0x350] sm:$0xff]
      %v4054 = vld [vmem:[%s4 + $0x358] sm:$0xff]
      %v4055 = vld [vmem:[%s4 + $0x360] sm:$0xff]
      %v4056 = vld [vmem:[%s4 + $0x368] sm:$0xff]
      %v4057 = vld [vmem:[%s4 + $0x370] sm:$0xff]
      %v4058 = vld [vmem:[%s4 + $0x378] sm:$0xff]
      %v4059 = vld [vmem:[%s4 + $0x380] sm:$0xff]
      %v4060 = vld [vmem:[%s4 + $0x388] sm:$0xff]
      %v4061 = vld [vmem:[%s4 + $0x390] sm:$0xff]
      %v4062 = vld [vmem:[%s4 + $0x398] sm:$0xff]
      %v4063 = vld [vmem:[%s4 + $0x3a0] sm:$0xff]
      %v4064 = vld [vmem:[%s4 + $0x3a8] sm:$0xff]
      %v4065 = vld [vmem:[%s4 + $0x3b0] sm:$0xff]
      %v4066 = vld [vmem:[%s4 + $0x3b8] sm:$0xff]
      %v4067 = vld [vmem:[%s4 + $0x3c0] sm:$0xff]
      %v4068 = vld [vmem:[%s4 + $0x3c8] sm:$0xff]
      %v4069 = vld [vmem:[%s4 + $0x3d0] sm:$0xff]
      %v4070 = vld [vmem:[%s4 + $0x3d8] sm:$0xff]
      %v4071 = vld [vmem:[%s4 + $0x3e0] sm:$0xff]
      %v4072 = vld [vmem:[%s4 + $0x3e8] sm:$0xff]
      %v4073 = vld [vmem:[%s4 + $0x3f0] sm:$0xff]
      %v4074 = vld [vmem:[%s4 + $0x3f8] sm:$0xff]
      %v4075 = vld [vmem:[%s4 + $0x400] sm:$0xff]
      %v4076 = vld [vmem:[%s4 + $0x408] sm:$0xff]
      %v4077 = vld [vmem:[%s4 + $0x410] sm:$0xff]
      %v4078 = vld [vmem:[%s4 + $0x418] sm:$0xff]
      %v4079 = vld [vmem:[%s4 + $0x420] sm:$0xff]
      %v4080 = vld [vmem:[%s4 + $0x428] sm:$0xff]
      %v4081 = vld [vmem:[%s4 + $0x430] sm:$0xff]
      %v4082 = vld [vmem:[%s4 + $0x438] sm:$0xff]
      %v4083 = vld [vmem:[%s4 + $0x440] sm:$0xff]
      %v4084 = vld [vmem:[%s4 + $0x448] sm:$0xff]
      %v4085 = vld [vmem:[%s4 + $0x450] sm:$0xff]
      %v4086 = vld [vmem:[%s4 + $0x458] sm:$0xff]
      %v4087 = vld [vmem:[%s4 + $0x460] sm:$0xff]
      %v4088 = vld [vmem:[%s4 + $0x468] sm:$0xff]
      %v4089 = vld [vmem:[%s4 + $0x470] sm:$0xff]
      %v4090 = vld [vmem:[%s4 + $0x478] sm:$0xff]
      %v4091 = vld [vmem:[%s4 + $0x480] sm:$0xff]
      %v4092 = vld [vmem:[%s4 + $0x488] sm:$0xff]
      %v4093 = vld [vmem:[%s4 + $0x490] sm:$0xff]
      %v4094 = vld [vmem:[%s4 + $0x498] sm:$0xff]
      %v4095 = vld [vmem:[%s4 + $0x4a0] sm:$0xff]
      %v4096 = vld [vmem:[%s4 + $0x4a8] sm:$0xff]
      %v4097 = vld [vmem:[%s4 + $0x4b0] sm:$0xff]
      %v4098 = vld [vmem:[%s4 + $0x4b8] sm:$0xff]
      %v4099 = vld [vmem:[%s4 + $0x4c0] sm:$0xff]
      %v4100 = vld [vmem:[%s4 + $0x4c8] sm:$0xff]
      %v4101 = vld [vmem:[%s4 + $0x4d0] sm:$0xff]
      %v4102 = vld [vmem:[%s4 + $0x4d8] sm:$0xff]
      %v4103 = vld [vmem:[%s4 + $0x4e0] sm:$0xff]
      %v4104 = vld [vmem:[%s4 + $0x4e8] sm:$0xff]
      %v4105 = vld [vmem:[%s4 + $0x4f0] sm:$0xff]
      %v4106 = vld [vmem:[%s4 + $0x4f8] sm:$0xff]
      %v4107 = vld [vmem:[%s4 + $0x500] sm:$0xff]
      %v4108 = vld [vmem:[%s4 + $0x508] sm:$0xff]
      %v4109 = vld [vmem:[%s4 + $0x510] sm:$0xff]
      %v4110 = vld [vmem:[%s4 + $0x518] sm:$0xff]
      %v4111 = vld [vmem:[%s4 + $0x520] sm:$0xff]
      %v4112 = vld [vmem:[%s4 + $0x528] sm:$0xff]
      %v4113 = vld [vmem:[%s4 + $0x530] sm:$0xff]
      %v4114 = vld [vmem:[%s4 + $0x538] sm:$0xff]
      %v4115 = vld [vmem:[%s4 + $0x540] sm:$0xff]
      %v4116 = vld [vmem:[%s4 + $0x548] sm:$0xff]
      %v4117 = vld [vmem:[%s4 + $0x550] sm:$0xff]
      %v4118 = vld [vmem:[%s4 + $0x558] sm:$0xff]
      %v4119 = vld [vmem:[%s4 + $0x560] sm:$0xff]
      %v4120 = vld [vmem:[%s4 + $0x568] sm:$0xff]
      %v4121 = vld [vmem:[%s4 + $0x570] sm:$0xff]
      %v4122 = vld [vmem:[%s4 + $0x578] sm:$0xff]
      %v4123 = vld [vmem:[%s4 + $0x580] sm:$0xff]
      %v4124 = vld [vmem:[%s4 + $0x588] sm:$0xff]
      %v4125 = vld [vmem:[%s4 + $0x590] sm:$0xff]
      %v4126 = vld [vmem:[%s4 + $0x598] sm:$0xff]
      %v4127 = vld [vmem:[%s4 + $0x5a0] sm:$0xff]
      %v4128 = vld [vmem:[%s4 + $0x5a8] sm:$0xff]
      %v4129 = vld [vmem:[%s4 + $0x5b0] sm:$0xff]
      %v4130 = vld [vmem:[%s4 + $0x5b8] sm:$0xff]
      %v4131 = vld [vmem:[%s4 + $0x5c0] sm:$0xff]
      %v4132 = vld [vmem:[%s4 + $0x5c8] sm:$0xff]
      %v4133 = vld [vmem:[%s4 + $0x5d0] sm:$0xff]
      %v4134 = vld [vmem:[%s4 + $0x5d8] sm:$0xff]
      %v4135 = vld [vmem:[%s4 + $0x5e0] sm:$0xff]
      %v4136 = vld [vmem:[%s4 + $0x5e8] sm:$0xff]
      %v4137 = vld [vmem:[%s4 + $0x5f0] sm:$0xff]
      %v4138 = vld [vmem:[%s4 + $0x5f8] sm:$0xff]
      %v4139 = vld [vmem:[%s4 + $0x600] sm:$0xff]
      %v4140 = vld [vmem:[%s4 + $0x608] sm:$0xff]
      %v4141 = vld [vmem:[%s4 + $0x610] sm:$0xff]
      %v4142 = vld [vmem:[%s4 + $0x618] sm:$0xff]
      %v4143 = vld [vmem:[%s4 + $0x620] sm:$0xff]
      %v4144 = vld [vmem:[%s4 + $0x628] sm:$0xff]
      %v4145 = vld [vmem:[%s4 + $0x630] sm:$0xff]
      %v4146 = vld [vmem:[%s4 + $0x638] sm:$0xff]
      %v4147 = vld [vmem:[%s4 + $0x640] sm:$0xff]
      %v4148 = vld [vmem:[%s4 + $0x648] sm:$0xff]
      %v4149 = vld [vmem:[%s4 + $0x650] sm:$0xff]
      %v4150 = vld [vmem:[%s4 + $0x658] sm:$0xff]
      %v4151 = vld [vmem:[%s4 + $0x660] sm:$0xff]
      %v4152 = vld [vmem:[%s4 + $0x668] sm:$0xff]
      %v4153 = vld [vmem:[%s4 + $0x670] sm:$0xff]
      %v4154 = vld [vmem:[%s4 + $0x678] sm:$0xff]
      %v4155 = vld [vmem:[%s4 + $0x680] sm:$0xff]
      %v4156 = vld [vmem:[%s4 + $0x688] sm:$0xff]
      %v4157 = vld [vmem:[%s4 + $0x690] sm:$0xff]
      %v4158 = vld [vmem:[%s4 + $0x698] sm:$0xff]
      %v4159 = vld [vmem:[%s4 + $0x6a0] sm:$0xff]
      %v4160 = vld [vmem:[%s4 + $0x6a8] sm:$0xff]
      %v4161 = vld [vmem:[%s4 + $0x6b0] sm:$0xff]
      %v4162 = vld [vmem:[%s4 + $0x6b8] sm:$0xff]
      %v4163 = vld [vmem:[%s4 + $0x6c0] sm:$0xff]
      %v4164 = vld [vmem:[%s4 + $0x6c8] sm:$0xff]
      %v4165 = vld [vmem:[%s4 + $0x6d0] sm:$0xff]
      %v4166 = vld [vmem:[%s4 + $0x6d8] sm:$0xff]
      %v4167 = vld [vmem:[%s4 + $0x6e0] sm:$0xff]
      %v4168 = vld [vmem:[%s4 + $0x6e8] sm:$0xff]
      %v4169 = vld [vmem:[%s4 + $0x6f0] sm:$0xff]
      %v4170 = vld [vmem:[%s4 + $0x6f8] sm:$0xff]
      %v4171 = vld [vmem:[%s4 + $0x700] sm:$0xff]
      %v4172 = vld [vmem:[%s4 + $0x708] sm:$0xff]
      %v4173 = vld [vmem:[%s4 + $0x710] sm:$0xff]
      %v4174 = vld [vmem:[%s4 + $0x718] sm:$0xff]
      %v4175 = vld [vmem:[%s4 + $0x720] sm:$0xff]
      %v4176 = vld [vmem:[%s4 + $0x728] sm:$0xff]
      %v4177 = vld [vmem:[%s4 + $0x730] sm:$0xff]
      %v4178 = vld [vmem:[%s4 + $0x738] sm:$0xff]
      %v4179 = vld [vmem:[%s4 + $0x740] sm:$0xff]
      %v4180 = vld [vmem:[%s4 + $0x748] sm:$0xff]
      %v4181 = vld [vmem:[%s4 + $0x750] sm:$0xff]
      %v4182 = vld [vmem:[%s4 + $0x758] sm:$0xff]
      %v4183 = vld [vmem:[%s4 + $0x760] sm:$0xff]
      %v4184 = vld [vmem:[%s4 + $0x768] sm:$0xff]
      %v4185 = vld [vmem:[%s4 + $0x770] sm:$0xff]
      %v4186 = vld [vmem:[%s4 + $0x778] sm:$0xff]
      %v4187 = vld [vmem:[%s4 + $0x780] sm:$0xff]
      %v4188 = vld [vmem:[%s4 + $0x788] sm:$0xff]
      %v4189 = vld [vmem:[%s4 + $0x790] sm:$0xff]
      %v4190 = vld [vmem:[%s4 + $0x798] sm:$0xff]
      %v4191 = vld [vmem:[%s4 + $0x7a0] sm:$0xff]
      %v4192 = vld [vmem:[%s4 + $0x7a8] sm:$0xff]
      %v4193 = vld [vmem:[%s4 + $0x7b0] sm:$0xff]
      %v4194 = vld [vmem:[%s4 + $0x7b8] sm:$0xff]
      %v4195 = vld [vmem:[%s4 + $0x7c0] sm:$0xff]
      %v4196 = vld [vmem:[%s4 + $0x7c8] sm:$0xff]
      %v4197 = vld [vmem:[%s4 + $0x7d0] sm:$0xff]
      %v4198 = vld [vmem:[%s4 + $0x7d8] sm:$0xff]
      %v4199 = vld [vmem:[%s4 + $0x7e0] sm:$0xff]
      %v4200 = vld [vmem:[%s4 + $0x7e8] sm:$0xff]
      %v4201 = vld [vmem:[%s4 + $0x7f0] sm:$0xff]
      %v4202 = vld [vmem:[%s4 + $0x7f8] sm:$0xff]
      %v4203 = vld [vmem:[%s4 + $0x800] sm:$0xff]
      %v4204 = vld [vmem:[%s4 + $0x808] sm:$0xff]
      %v4205 = vld [vmem:[%s4 + $0x810] sm:$0xff]
      %v4206 = vld [vmem:[%s4 + $0x818] sm:$0xff]
      %v4207 = vld [vmem:[%s4 + $0x820] sm:$0xff]
      %v4208 = vld [vmem:[%s4 + $0x828] sm:$0xff]
      %v4209 = vld [vmem:[%s4 + $0x830] sm:$0xff]
      %v4210 = vld [vmem:[%s4 + $0x838] sm:$0xff]
      %v4211 = vld [vmem:[%s4 + $0x840] sm:$0xff]
      %v4212 = vld [vmem:[%s4 + $0x848] sm:$0xff]
      %v4213 = vld [vmem:[%s4 + $0x850] sm:$0xff]
      %v4214 = vld [vmem:[%s4 + $0x858] sm:$0xff]
      %v4215 = vld [vmem:[%s4 + $0x860] sm:$0xff]
      %v4216 = vld [vmem:[%s4 + $0x868] sm:$0xff]
      %v4217 = vld [vmem:[%s4 + $0x870] sm:$0xff]
      %v4218 = vld [vmem:[%s4 + $0x878] sm:$0xff]
      %v4219 = vld [vmem:[%s4 + $0x880] sm:$0xff]
      %v4220 = vld [vmem:[%s4 + $0x888] sm:$0xff]
      %v4221 = vld [vmem:[%s4 + $0x890] sm:$0xff]
      %v4222 = vld [vmem:[%s4 + $0x898] sm:$0xff]
      %v4223 = vld [vmem:[%s4 + $0x8a0] sm:$0xff]
      %v4224 = vld [vmem:[%s4 + $0x8a8] sm:$0xff]
      %v4225 = vld [vmem:[%s4 + $0x8b0] sm:$0xff]
      %v4226 = vld [vmem:[%s4 + $0x8b8] sm:$0xff]
      %v4227 = vld [vmem:[%s4 + $0x8c0] sm:$0xff]
      %v4228 = vld [vmem:[%s4 + $0x8c8] sm:$0xff]
      %v4229 = vld [vmem:[%s4 + $0x8d0] sm:$0xff]
      %v4230 = vld [vmem:[%s4 + $0x8d8] sm:$0xff]
      %v4231 = vld [vmem:[%s4 + $0x8e0] sm:$0xff]
      %v4232 = vld [vmem:[%s4 + $0x8e8] sm:$0xff]
      %v4233 = vld [vmem:[%s4 + $0x8f0] sm:$0xff]
      %v4234 = vld [vmem:[%s4 + $0x8f8] sm:$0xff]
      %v4235 = vld [vmem:[%s4 + $0x900] sm:$0xff]
      %v4236 = vld [vmem:[%s4 + $0x908] sm:$0xff]
      %v4237 = vld [vmem:[%s4 + $0x910] sm:$0xff]
      %v4238 = vld [vmem:[%s4 + $0x918] sm:$0xff]
      %v4239 = vld [vmem:[%s4 + $0x920] sm:$0xff]
      %v4240 = vld [vmem:[%s4 + $0x928] sm:$0xff]
      %v4241 = vld [vmem:[%s4 + $0x930] sm:$0xff]
      %v4242 = vld [vmem:[%s4 + $0x938] sm:$0xff]
      %v4243 = vld [vmem:[%s4 + $0x940] sm:$0xff]
      %v4244 = vld [vmem:[%s4 + $0x948] sm:$0xff]
      %v4245 = vld [vmem:[%s4 + $0x950] sm:$0xff]
      %v4246 = vld [vmem:[%s4 + $0x958] sm:$0xff]
      %v4247 = vld [vmem:[%s4 + $0x960] sm:$0xff]
      %v4248 = vld [vmem:[%s4 + $0x968] sm:$0xff]
      %v4249 = vld [vmem:[%s4 + $0x970] sm:$0xff]
      %v4250 = vld [vmem:[%s4 + $0x978] sm:$0xff]
      %v4251 = vld [vmem:[%s4 + $0x980] sm:$0xff]
      %v4252 = vld [vmem:[%s4 + $0x988] sm:$0xff]
      %v4253 = vld [vmem:[%s4 + $0x990] sm:$0xff]
      %v4254 = vld [vmem:[%s4 + $0x998] sm:$0xff]
      %v4255 = vld [vmem:[%s4 + $0x9a0] sm:$0xff]
      %v4256 = vld [vmem:[%s4 + $0x9a8] sm:$0xff]
      %v4257 = vld [vmem:[%s4 + $0x9b0] sm:$0xff]
      %v4258 = vld [vmem:[%s4 + $0x9b8] sm:$0xff]
      %v4259 = vld [vmem:[%s4 + $0x9c0] sm:$0xff]
      %v4260 = vld [vmem:[%s4 + $0x9c8] sm:$0xff]
      %v4261 = vld [vmem:[%s4 + $0x9d0] sm:$0xff]
      %v4262 = vld [vmem:[%s4 + $0x9d8] sm:$0xff]
      %v4263 = vld [vmem:[%s4 + $0x9e0] sm:$0xff]
      %v4264 = vld [vmem:[%s4 + $0x9e8] sm:$0xff]
      %v4265 = vld [vmem:[%s4 + $0x9f0] sm:$0xff]
      %v4266 = vld [vmem:[%s4 + $0x9f8] sm:$0xff]
      %v4267 = vld [vmem:[%s4 + $0xa00] sm:$0xff]
      %v4268 = vld [vmem:[%s4 + $0xa08] sm:$0xff]
      %v4269 = vld [vmem:[%s4 + $0xa10] sm:$0xff]
      %v4270 = vld [vmem:[%s4 + $0xa18] sm:$0xff]
      %v4271 = vld [vmem:[%s4 + $0xa20] sm:$0xff]
      %v4272 = vld [vmem:[%s4 + $0xa28] sm:$0xff]
      %v4273 = vld [vmem:[%s4 + $0xa30] sm:$0xff]
      %v4274 = vld [vmem:[%s4 + $0xa38] sm:$0xff]
      %v4275 = vld [vmem:[%s4 + $0xa40] sm:$0xff]
      %v4276 = vld [vmem:[%s4 + $0xa48] sm:$0xff]
      %v4277 = vld [vmem:[%s4 + $0xa50] sm:$0xff]
      %v4278 = vld [vmem:[%s4 + $0xa58] sm:$0xff]
      %v4279 = vld [vmem:[%s4 + $0xa60] sm:$0xff]
      %v4280 = vld [vmem:[%s4 + $0xa68] sm:$0xff]
      %v4281 = vld [vmem:[%s4 + $0xa70] sm:$0xff]
      %v4282 = vld [vmem:[%s4 + $0xa78] sm:$0xff]
      %v4283 = vld [vmem:[%s4 + $0xa80] sm:$0xff]
      %v4284 = vld [vmem:[%s4 + $0xa88] sm:$0xff]
      %v4285 = vld [vmem:[%s4 + $0xa90] sm:$0xff]
      %v4286 = vld [vmem:[%s4 + $0xa98] sm:$0xff]
      %v4287 = vld [vmem:[%s4 + $0xaa0] sm:$0xff]
      %v4288 = vld [vmem:[%s4 + $0xaa8] sm:$0xff]
      %v4289 = vld [vmem:[%s4 + $0xab0] sm:$0xff]
      %v4290 = vld [vmem:[%s4 + $0xab8] sm:$0xff]
      %v4291 = vld [vmem:[%s4 + $0xac0] sm:$0xff]
      %v4292 = vld [vmem:[%s4 + $0xac8] sm:$0xff]
      %v4293 = vld [vmem:[%s4 + $0xad0] sm:$0xff]
      %v4294 = vld [vmem:[%s4 + $0xad8] sm:$0xff]
      %v4295 = vld [vmem:[%s4 + $0xae0] sm:$0xff]
      %v4296 = vld [vmem:[%s4 + $0xae8] sm:$0xff]
      %v4297 = vld [vmem:[%s4 + $0xaf0] sm:$0xff]
      %v4298 = vld [vmem:[%s4 + $0xaf8] sm:$0xff]
      %v4299 = vld [vmem:[%s4 + $0xb00] sm:$0xff]
      %v4300 = vld [vmem:[%s4 + $0xb08] sm:$0xff]
      %v4301 = vld [vmem:[%s4 + $0xb10] sm:$0xff]
      %v4302 = vld [vmem:[%s4 + $0xb18] sm:$0xff]
      %v4303 = vld [vmem:[%s4 + $0xb20] sm:$0xff]
      %v4304 = vld [vmem:[%s4 + $0xb28] sm:$0xff]
      %v4305 = vld [vmem:[%s4 + $0xb30] sm:$0xff]
      %v4306 = vld [vmem:[%s4 + $0xb38] sm:$0xff]
      %v4307 = vld [vmem:[%s4 + $0xb40] sm:$0xff]
      %v4308 = vld [vmem:[%s4 + $0xb48] sm:$0xff]
      %v4309 = vld [vmem:[%s4 + $0xb50] sm:$0xff]
      %v4310 = vld [vmem:[%s4 + $0xb58] sm:$0xff]
      %v4311 = vld [vmem:[%s4 + $0xb60] sm:$0xff]
      %v4312 = vld [vmem:[%s4 + $0xb68] sm:$0xff]
      %v4313 = vld [vmem:[%s4 + $0xb70] sm:$0xff]
      %v4314 = vld [vmem:[%s4 + $0xb78] sm:$0xff]
      %v4315 = vld [vmem:[%s4 + $0xb80] sm:$0xff]
      %v4316 = vld [vmem:[%s4 + $0xb88] sm:$0xff]
      %v4317 = vld [vmem:[%s4 + $0xb90] sm:$0xff]
      %v4318 = vld [vmem:[%s4 + $0xb98] sm:$0xff]
      %v4319 = vld [vmem:[%s4 + $0xba0] sm:$0xff]
      %v4320 = vld [vmem:[%s4 + $0xba8] sm:$0xff]
      %v4321 = vld [vmem:[%s4 + $0xbb0] sm:$0xff]
      %v4322 = vld [vmem:[%s4 + $0xbb8] sm:$0xff]
      %v4323 = vld [vmem:[%s4 + $0xbc0] sm:$0xff]
      %v4324 = vld [vmem:[%s4 + $0xbc8] sm:$0xff]
      %v4325 = vld [vmem:[%s4 + $0xbd0] sm:$0xff]
      %v4326 = vld [vmem:[%s4 + $0xbd8] sm:$0xff]
      %v4327 = vld [vmem:[%s4 + $0xbe0] sm:$0xff]
      %v4328 = vld [vmem:[%s4 + $0xbe8] sm:$0xff]
      %v4329 = vld [vmem:[%s4 + $0xbf0] sm:$0xff]
      %v4330 = vld [vmem:[%s4 + $0xbf8] sm:$0xff]
      %v4331 = vld [vmem:[%s4 + $0xc00] sm:$0xff]
      %v4332 = vld [vmem:[%s4 + $0xc08] sm:$0xff]
      %v4333 = vld [vmem:[%s4 + $0xc10] sm:$0xff]
      %v4334 = vld [vmem:[%s4 + $0xc18] sm:$0xff]
      %v4335 = vld [vmem:[%s4 + $0xc20] sm:$0xff]
      %v4336 = vld [vmem:[%s4 + $0xc28] sm:$0xff]
      %v4337 = vld [vmem:[%s4 + $0xc30] sm:$0xff]
      %v4338 = vld [vmem:[%s4 + $0xc38] sm:$0xff]
      %v4339 = vld [vmem:[%s4 + $0xc40] sm:$0xff]
      %v4340 = vld [vmem:[%s4 + $0xc48] sm:$0xff]
      %v4341 = vld [vmem:[%s4 + $0xc50] sm:$0xff]
      %v4342 = vld [vmem:[%s4 + $0xc58] sm:$0xff]
      %v4343 = vld [vmem:[%s4 + $0xc60] sm:$0xff]
      %v4344 = vld [vmem:[%s4 + $0xc68] sm:$0xff]
      %v4345 = vld [vmem:[%s4 + $0xc70] sm:$0xff]
      %v4346 = vld [vmem:[%s4 + $0xc78] sm:$0xff]
      %v4347 = vld [vmem:[%s4 + $0xc80] sm:$0xff]
      %v4348 = vld [vmem:[%s4 + $0xc88] sm:$0xff]
      %v4349 = vld [vmem:[%s4 + $0xc90] sm:$0xff]
      %v4350 = vld [vmem:[%s4 + $0xc98] sm:$0xff]
      %v4351 = vld [vmem:[%s4 + $0xca0] sm:$0xff]
      %v4352 = vld [vmem:[%s4 + $0xca8] sm:$0xff]
      %v4353 = vld [vmem:[%s4 + $0xcb0] sm:$0xff]
      %v4354 = vld [vmem:[%s4 + $0xcb8] sm:$0xff]
      %v4355 = vld [vmem:[%s4 + $0xcc0] sm:$0xff]
      %v4356 = vld [vmem:[%s4 + $0xcc8] sm:$0xff]
      %v4357 = vld [vmem:[%s4 + $0xcd0] sm:$0xff]
      %v4358 = vld [vmem:[%s4 + $0xcd8] sm:$0xff]
      %v4359 = vld [vmem:[%s4 + $0xce0] sm:$0xff]
      %v4360 = vld [vmem:[%s4 + $0xce8] sm:$0xff]
      %v4361 = vld [vmem:[%s4 + $0xcf0] sm:$0xff]
      %v4362 = vld [vmem:[%s4 + $0xcf8] sm:$0xff]
      %v4363 = vld [vmem:[%s4 + $0xd00] sm:$0xff]
      %v4364 = vld [vmem:[%s4 + $0xd08] sm:$0xff]
      %v4365 = vld [vmem:[%s4 + $0xd10] sm:$0xff]
      %v4366 = vld [vmem:[%s4 + $0xd18] sm:$0xff]
      %v4367 = vld [vmem:[%s4 + $0xd20] sm:$0xff]
      %v4368 = vld [vmem:[%s4 + $0xd28] sm:$0xff]
      %v4369 = vld [vmem:[%s4 + $0xd30] sm:$0xff]
      %v4370 = vld [vmem:[%s4 + $0xd38] sm:$0xff]
      %v4371 = vld [vmem:[%s4 + $0xd40] sm:$0xff]
      %v4372 = vld [vmem:[%s4 + $0xd48] sm:$0xff]
      %v4373 = vld [vmem:[%s4 + $0xd50] sm:$0xff]
      %v4374 = vld [vmem:[%s4 + $0xd58] sm:$0xff]
      %v4375 = vld [vmem:[%s4 + $0xd60] sm:$0xff]
      %v4376 = vld [vmem:[%s4 + $0xd68] sm:$0xff]
      %v4377 = vld [vmem:[%s4 + $0xd70] sm:$0xff]
      %v4378 = vld [vmem:[%s4 + $0xd78] sm:$0xff]
      %v4379 = vld [vmem:[%s4 + $0xd80] sm:$0xff]
      %v4380 = vld [vmem:[%s4 + $0xd88] sm:$0xff]
      %v4381 = vld [vmem:[%s4 + $0xd90] sm:$0xff]
      %v4382 = vld [vmem:[%s4 + $0xd98] sm:$0xff]
      %v4383 = vld [vmem:[%s4 + $0xda0] sm:$0xff]
      %v4384 = vld [vmem:[%s4 + $0xda8] sm:$0xff]
      %v4385 = vld [vmem:[%s4 + $0xdb0] sm:$0xff]
      %v4386 = vld [vmem:[%s4 + $0xdb8] sm:$0xff]
      %v4387 = vld [vmem:[%s4 + $0xdc0] sm:$0xff]
      %v4388 = vld [vmem:[%s4 + $0xdc8] sm:$0xff]
      %v4389 = vld [vmem:[%s4 + $0xdd0] sm:$0xff]
      %v4390 = vld [vmem:[%s4 + $0xdd8] sm:$0xff]
      %v4391 = vld [vmem:[%s4 + $0xde0] sm:$0xff]
      %v4392 = vld [vmem:[%s4 + $0xde8] sm:$0xff]
      %v4393 = vld [vmem:[%s4 + $0xdf0] sm:$0xff]
      %v4394 = vld [vmem:[%s4 + $0xdf8] sm:$0xff]
      %v4395 = vld [vmem:[%s4 + $0xe00] sm:$0xff]
      %v4396 = vld [vmem:[%s4 + $0xe08] sm:$0xff]
      %v4397 = vld [vmem:[%s4 + $0xe10] sm:$0xff]
      %v4398 = vld [vmem:[%s4 + $0xe18] sm:$0xff]
      %v4399 = vld [vmem:[%s4 + $0xe20] sm:$0xff]
      %v4400 = vld [vmem:[%s4 + $0xe28] sm:$0xff]
      %v4401 = vld [vmem:[%s4 + $0xe30] sm:$0xff]
      %v4402 = vld [vmem:[%s4 + $0xe38] sm:$0xff]
      %v4403 = vld [vmem:[%s4 + $0xe40] sm:$0xff]
      %v4404 = vld [vmem:[%s4 + $0xe48] sm:$0xff]
      %v4405 = vld [vmem:[%s4 + $0xe50] sm:$0xff]
      %v4406 = vld [vmem:[%s4 + $0xe58] sm:$0xff]
      %v4407 = vld [vmem:[%s4 + $0xe60] sm:$0xff]
      %v4408 = vld [vmem:[%s4 + $0xe68] sm:$0xff]
      %v4409 = vld [vmem:[%s4 + $0xe70] sm:$0xff]
      %v4410 = vld [vmem:[%s4 + $0xe78] sm:$0xff]
      %v4411 = vld [vmem:[%s4 + $0xe80] sm:$0xff]
      %v4412 = vld [vmem:[%s4 + $0xe88] sm:$0xff]
      %v4413 = vld [vmem:[%s4 + $0xe90] sm:$0xff]
      %v4414 = vld [vmem:[%s4 + $0xe98] sm:$0xff]
      %v4415 = vld [vmem:[%s4 + $0xea0] sm:$0xff]
      %v4416 = vld [vmem:[%s4 + $0xea8] sm:$0xff]
      %v4417 = vld [vmem:[%s4 + $0xeb0] sm:$0xff]
      %v4418 = vld [vmem:[%s4 + $0xeb8] sm:$0xff]
      %v4419 = vld [vmem:[%s4 + $0xec0] sm:$0xff]
      %v4420 = vld [vmem:[%s4 + $0xec8] sm:$0xff]
      %v4421 = vld [vmem:[%s4 + $0xed0] sm:$0xff]
      %v4422 = vld [vmem:[%s4 + $0xed8] sm:$0xff]
      %v4423 = vld [vmem:[%s4 + $0xee0] sm:$0xff]
      %v4424 = vld [vmem:[%s4 + $0xee8] sm:$0xff]
      %v4425 = vld [vmem:[%s4 + $0xef0] sm:$0xff]
      %v4426 = vld [vmem:[%s4 + $0xef8] sm:$0xff]
      %v4427 = vld [vmem:[%s4 + $0xf00] sm:$0xff]
      %v4428 = vld [vmem:[%s4 + $0xf08] sm:$0xff]
      %v4429 = vld [vmem:[%s4 + $0xf10] sm:$0xff]
      %v4430 = vld [vmem:[%s4 + $0xf18] sm:$0xff]
      %v4431 = vld [vmem:[%s4 + $0xf20] sm:$0xff]
      %v4432 = vld [vmem:[%s4 + $0xf28] sm:$0xff]
      %v4433 = vld [vmem:[%s4 + $0xf30] sm:$0xff]
      %v4434 = vld [vmem:[%s4 + $0xf38] sm:$0xff]
      %v4435 = vld [vmem:[%s4 + $0xf40] sm:$0xff]
      %v4436 = vld [vmem:[%s4 + $0xf48] sm:$0xff]
      %v4437 = vld [vmem:[%s4 + $0xf50] sm:$0xff]
      %v4438 = vld [vmem:[%s4 + $0xf58] sm:$0xff]
      %v4439 = vld [vmem:[%s4 + $0xf60] sm:$0xff]
      %v4440 = vld [vmem:[%s4 + $0xf68] sm:$0xff]
      %v4441 = vld [vmem:[%s4 + $0xf70] sm:$0xff]
      %v4442 = vld [vmem:[%s4 + $0xf78] sm:$0xff]
      %v4443 = vld [vmem:[%s4 + $0xf80] sm:$0xff]
      %v4444 = vld [vmem:[%s4 + $0xf88] sm:$0xff]
      %v4445 = vld [vmem:[%s4 + $0xf90] sm:$0xff]
      %v4446 = vld [vmem:[%s4 + $0xf98] sm:$0xff]
      %v4447 = vld [vmem:[%s4 + $0xfa0] sm:$0xff]
      %v4448 = vld [vmem:[%s4 + $0xfa8] sm:$0xff]
      %v4449 = vld [vmem:[%s4 + $0xfb0] sm:$0xff]
      %v4450 = vld [vmem:[%s4 + $0xfb8] sm:$0xff]
      %v4451 = vld [vmem:[%s4 + $0xfc0] sm:$0xff]
      %v4452 = vld [vmem:[%s4 + $0xfc8] sm:$0xff]
      %v4453 = vld [vmem:[%s4 + $0xfd0] sm:$0xff]
      %v4454 = vld [vmem:[%s4 + $0xfd8] sm:$0xff]
      %v4455 = vld [vmem:[%s4 + $0xfe0] sm:$0xff]
      %v4456 = vld [vmem:[%s4 + $0xfe8] sm:$0xff]
      %v4457 = vld [vmem:[%s4 + $0xff0] sm:$0xff]
      %v4458 = vld [vmem:[%s4 + $0xff8] sm:$0xff]
      %v4459 = vld [vmem:[%s4 + $0x1000] sm:$0xff]
      %v4460 = vld [vmem:[%s4 + $0x1008] sm:$0xff]
      %v4461 = vld [vmem:[%s4 + $0x1010] sm:$0xff]
      %v4462 = vld [vmem:[%s4 + $0x1018] sm:$0xff]
      %v4463 = vld [vmem:[%s4 + $0x1020] sm:$0xff]
      %v4464 = vld [vmem:[%s4 + $0x1028] sm:$0xff]
      %v4465 = vld [vmem:[%s4 + $0x1030] sm:$0xff]
      %v4466 = vld [vmem:[%s4 + $0x1038] sm:$0xff]
      %v4467 = vld [vmem:[%s4 + $0x1040] sm:$0xff]
      %v4468 = vld [vmem:[%s4 + $0x1048] sm:$0xff]
      %v4469 = vld [vmem:[%s4 + $0x1050] sm:$0xff]
      %v4470 = vld [vmem:[%s4 + $0x1058] sm:$0xff]
      %v4471 = vld [vmem:[%s4 + $0x1060] sm:$0xff]
      %v4472 = vld [vmem:[%s4 + $0x1068] sm:$0xff]
      %v4473 = vld [vmem:[%s4 + $0x1070] sm:$0xff]
      %v4474 = vld [vmem:[%s4 + $0x1078] sm:$0xff]
      %v4475 = vld [vmem:[%s4 + $0x1080] sm:$0xff]
      %v4476 = vld [vmem:[%s4 + $0x1088] sm:$0xff]
      %v4477 = vld [vmem:[%s4 + $0x1090] sm:$0xff]
      %v4478 = vld [vmem:[%s4 + $0x1098] sm:$0xff]
      %v4479 = vld [vmem:[%s4 + $0x10a0] sm:$0xff]
      %v4480 = vld [vmem:[%s4 + $0x10a8] sm:$0xff]
      %v4481 = vld [vmem:[%s4 + $0x10b0] sm:$0xff]
      %v4482 = vld [vmem:[%s4 + $0x10b8] sm:$0xff]
      %v4483 = vld [vmem:[%s4 + $0x10c0] sm:$0xff]
      %v4484 = vld [vmem:[%s4 + $0x10c8] sm:$0xff]
      %v4485 = vld [vmem:[%s4 + $0x10d0] sm:$0xff]
      %v4486 = vld [vmem:[%s4 + $0x10d8] sm:$0xff]
      %v4487 = vld [vmem:[%s4 + $0x10e0] sm:$0xff]
      %v4488 = vld [vmem:[%s4 + $0x10e8] sm:$0xff]
      %v4489 = vld [vmem:[%s4 + $0x10f0] sm:$0xff]
      %v4490 = vld [vmem:[%s4 + $0x10f8] sm:$0xff]
      %v4491 = vld [vmem:[%s4 + $0x1100] sm:$0xff]
      %v4492 = vld [vmem:[%s4 + $0x1108] sm:$0xff]
      %v4493 = vld [vmem:[%s4 + $0x1110] sm:$0xff]
      %v4494 = vld [vmem:[%s4 + $0x1118] sm:$0xff]
      %v4495 = vld [vmem:[%s4 + $0x1120] sm:$0xff]
      %v4496 = vld [vmem:[%s4 + $0x1128] sm:$0xff]
      %v4497 = vld [vmem:[%s4 + $0x1130] sm:$0xff]
      %v4498 = vld [vmem:[%s4 + $0x1138] sm:$0xff]
      %v4499 = vld [vmem:[%s4 + $0x1140] sm:$0xff]
      %v4500 = vld [vmem:[%s4 + $0x1148] sm:$0xff]
      %v4501 = vld [vmem:[%s4 + $0x1150] sm:$0xff]
      %v4502 = vld [vmem:[%s4 + $0x1158] sm:$0xff]
      %v4503 = vld [vmem:[%s4 + $0x1160] sm:$0xff]
      %v4504 = vld [vmem:[%s4 + $0x1168] sm:$0xff]
      %v4505 = vld [vmem:[%s4 + $0x1170] sm:$0xff]
      %v4506 = vld [vmem:[%s4 + $0x1178] sm:$0xff]
      %v4507 = vld [vmem:[%s4 + $0x1180] sm:$0xff]
      %v4508 = vld [vmem:[%s4 + $0x1188] sm:$0xff]
      %v4509 = vld [vmem:[%s4 + $0x1190] sm:$0xff]
      %v4510 = vld [vmem:[%s4 + $0x1198] sm:$0xff]
      %v4511 = vld [vmem:[%s4 + $0x11a0] sm:$0xff]
      %v4512 = vld [vmem:[%s4 + $0x11a8] sm:$0xff]
      %v4513 = vld [vmem:[%s4 + $0x11b0] sm:$0xff]
      %v4514 = vld [vmem:[%s4 + $0x11b8] sm:$0xff]
      %v4515 = vld [vmem:[%s4 + $0x11c0] sm:$0xff]
      %v4516 = vld [vmem:[%s4 + $0x11c8] sm:$0xff]
      %v4517 = vld [vmem:[%s4 + $0x11d0] sm:$0xff]
      %v4518 = vld [vmem:[%s4 + $0x11d8] sm:$0xff]
      %v4519 = vld [vmem:[%s4 + $0x11e0] sm:$0xff]
      %v4520 = vld [vmem:[%s4 + $0x11e8] sm:$0xff]
      %v4521 = vld [vmem:[%s4 + $0x11f0] sm:$0xff]
      %v4522 = vld [vmem:[%s4 + $0x11f8] sm:$0xff]
      %v4523 = vld [vmem:[%s4 + $0x1200] sm:$0xff]
      %v4524 = vld [vmem:[%s4 + $0x1208] sm:$0xff]
      %v4525 = vld [vmem:[%s4 + $0x1210] sm:$0xff]
      %v4526 = vld [vmem:[%s4 + $0x1218] sm:$0xff]
      %v4527 = vld [vmem:[%s4 + $0x1220] sm:$0xff]
      %v4528 = vld [vmem:[%s4 + $0x1228] sm:$0xff]
      %v4529 = vld [vmem:[%s4 + $0x1230] sm:$0xff]
      %v4530 = vld [vmem:[%s4 + $0x1238] sm:$0xff]
      %v4531 = vld [vmem:[%s4 + $0x1240] sm:$0xff]
      %v4532 = vld [vmem:[%s4 + $0x1248] sm:$0xff]
      %v4533 = vld [vmem:[%s4 + $0x1250] sm:$0xff]
      %v4534 = vld [vmem:[%s4 + $0x1258] sm:$0xff]
      %v4535 = vld [vmem:[%s4 + $0x1260] sm:$0xff]
      %v4536 = vld [vmem:[%s4 + $0x1268] sm:$0xff]
      %v4537 = vld [vmem:[%s4 + $0x1270] sm:$0xff]
      %v4538 = vld [vmem:[%s4 + $0x1278] sm:$0xff]
      %v4539 = vld [vmem:[%s4 + $0x1280] sm:$0xff]
      %v4540 = vld [vmem:[%s4 + $0x1288] sm:$0xff]
      %v4541 = vld [vmem:[%s4 + $0x1290] sm:$0xff]
      %v4542 = vld [vmem:[%s4 + $0x1298] sm:$0xff]
      %v4543 = vld [vmem:[%s4 + $0x12a0] sm:$0xff]
      %v4544 = vld [vmem:[%s4 + $0x12a8] sm:$0xff]
      %v4545 = vld [vmem:[%s4 + $0x12b0] sm:$0xff]
      %v4546 = vld [vmem:[%s4 + $0x12b8] sm:$0xff]
      %v4547 = vld [vmem:[%s4 + $0x12c0] sm:$0xff]
      %v4548 = vld [vmem:[%s4 + $0x12c8] sm:$0xff]
      %v4549 = vld [vmem:[%s4 + $0x12d0] sm:$0xff]
      %v4550 = vld [vmem:[%s4 + $0x12d8] sm:$0xff]
      %v4551 = vld [vmem:[%s4 + $0x12e0] sm:$0xff]
      %v4552 = vld [vmem:[%s4 + $0x12e8] sm:$0xff]
      %v4553 = vld [vmem:[%s4 + $0x12f0] sm:$0xff]
      %v4554 = vld [vmem:[%s4 + $0x12f8] sm:$0xff]
      %v4555 = vld [vmem:[%s4 + $0x1300] sm:$0xff]
      %v4556 = vld [vmem:[%s4 + $0x1308] sm:$0xff]
      %v4557 = vld [vmem:[%s4 + $0x1310] sm:$0xff]
      %v4558 = vld [vmem:[%s4 + $0x1318] sm:$0xff]
      %v4559 = vld [vmem:[%s4 + $0x1320] sm:$0xff]
      %v4560 = vld [vmem:[%s4 + $0x1328] sm:$0xff]
      %v4561 = vld [vmem:[%s4 + $0x1330] sm:$0xff]
      %v4562 = vld [vmem:[%s4 + $0x1338] sm:$0xff]
      %v4563 = vld [vmem:[%s4 + $0x1340] sm:$0xff]
      %v4564 = vld [vmem:[%s4 + $0x1348] sm:$0xff]
      %v4565 = vld [vmem:[%s4 + $0x1350] sm:$0xff]
      %v4566 = vld [vmem:[%s4 + $0x1358] sm:$0xff]
      %v4567 = vld [vmem:[%s4 + $0x1360] sm:$0xff]
      %v4568 = vld [vmem:[%s4 + $0x1368] sm:$0xff]
      %v4569 = vld [vmem:[%s4 + $0x1370] sm:$0xff]
      %v4570 = vld [vmem:[%s4 + $0x1378] sm:$0xff]
      %v4571 = vld [vmem:[%s4 + $0x1380] sm:$0xff]
      %v4572 = vld [vmem:[%s4 + $0x1388] sm:$0xff]
      %v4573 = vld [vmem:[%s4 + $0x1390] sm:$0xff]
      %v4574 = vld [vmem:[%s4 + $0x1398] sm:$0xff]
      %v4575 = vld [vmem:[%s4 + $0x13a0] sm:$0xff]
      %v4576 = vld [vmem:[%s4 + $0x13a8] sm:$0xff]
      %v4577 = vld [vmem:[%s4 + $0x13b0] sm:$0xff]
      %v4578 = vld [vmem:[%s4 + $0x13b8] sm:$0xff]
      %v4579 = vld [vmem:[%s4 + $0x13c0] sm:$0xff]
      %v4580 = vld [vmem:[%s4 + $0x13c8] sm:$0xff]
      %v4581 = vld [vmem:[%s4 + $0x13d0] sm:$0xff]
      %v4582 = vld [vmem:[%s4 + $0x13d8] sm:$0xff]
      %v4583 = vld [vmem:[%s4 + $0x13e0] sm:$0xff]
      %v4584 = vld [vmem:[%s4 + $0x13e8] sm:$0xff]
      %v4585 = vld [vmem:[%s4 + $0x13f0] sm:$0xff]
      %v4586 = vld [vmem:[%s4 + $0x13f8] sm:$0xff]
      %v4587 = vld [vmem:[%s4 + $0x1400] sm:$0xff]
      %v4588 = vld [vmem:[%s4 + $0x1408] sm:$0xff]
      %v4589 = vld [vmem:[%s4 + $0x1410] sm:$0xff]
      %v4590 = vld [vmem:[%s4 + $0x1418] sm:$0xff]
      %v4591 = vld [vmem:[%s4 + $0x1420] sm:$0xff]
      %v4592 = vld [vmem:[%s4 + $0x1428] sm:$0xff]
      %v4593 = vld [vmem:[%s4 + $0x1430] sm:$0xff]
      %v4594 = vld [vmem:[%s4 + $0x1438] sm:$0xff]
      %v4595 = vld [vmem:[%s4 + $0x1440] sm:$0xff]
      %v4596 = vld [vmem:[%s4 + $0x1448] sm:$0xff]
      %v4597 = vld [vmem:[%s4 + $0x1450] sm:$0xff]
      %v4598 = vld [vmem:[%s4 + $0x1458] sm:$0xff]
      %v4599 = vld [vmem:[%s4 + $0x1460] sm:$0xff]
      %v4600 = vld [vmem:[%s4 + $0x1468] sm:$0xff]
      %v4601 = vld [vmem:[%s4 + $0x1470] sm:$0xff]
      %v4602 = vld [vmem:[%s4 + $0x1478] sm:$0xff]
      %v4603 = vld [vmem:[%s4 + $0x1480] sm:$0xff]
      %v4604 = vld [vmem:[%s4 + $0x1488] sm:$0xff]
      %v4605 = vld [vmem:[%s4 + $0x1490] sm:$0xff]
      %v4606 = vld [vmem:[%s4 + $0x1498] sm:$0xff]
      %v4607 = vld [vmem:[%s4 + $0x14a0] sm:$0xff]
      %v4608 = vld [vmem:[%s4 + $0x14a8] sm:$0xff]
      %v4609 = vld [vmem:[%s4 + $0x14b0] sm:$0xff]
      %v4610 = vld [vmem:[%s4 + $0x14b8] sm:$0xff]
      %v4611 = vld [vmem:[%s4 + $0x14c0] sm:$0xff]
      %v4612 = vld [vmem:[%s4 + $0x14c8] sm:$0xff]
      %v4613 = vld [vmem:[%s4 + $0x14d0] sm:$0xff]
      %v4614 = vld [vmem:[%s4 + $0x14d8] sm:$0xff]
      %v4615 = vld [vmem:[%s4 + $0x14e0] sm:$0xff]
      %v4616 = vld [vmem:[%s4 + $0x14e8] sm:$0xff]
      %v4617 = vld [vmem:[%s4 + $0x14f0] sm:$0xff]
      %v4618 = vld [vmem:[%s4 + $0x14f8] sm:$0xff]
      %v4619 = vld [vmem:[%s4 + $0x1500] sm:$0xff]
      %v4620 = vld [vmem:[%s4 + $0x1508] sm:$0xff]
      %v4621 = vld [vmem:[%s4 + $0x1510] sm:$0xff]
      %v4622 = vld [vmem:[%s4 + $0x1518] sm:$0xff]
      %v4623 = vld [vmem:[%s4 + $0x1520] sm:$0xff]
      %v4624 = vld [vmem:[%s4 + $0x1528] sm:$0xff]
      %v4625 = vld [vmem:[%s4 + $0x1530] sm:$0xff]
      %v4626 = vld [vmem:[%s4 + $0x1538] sm:$0xff]
      %v4627 = vld [vmem:[%s4 + $0x1540] sm:$0xff]
      %v4628 = vld [vmem:[%s4 + $0x1548] sm:$0xff]
      %v4629 = vld [vmem:[%s4 + $0x1550] sm:$0xff]
      %v4630 = vld [vmem:[%s4 + $0x1558] sm:$0xff]
      %v4631 = vld [vmem:[%s4 + $0x1560] sm:$0xff]
      %v4632 = vld [vmem:[%s4 + $0x1568] sm:$0xff]
      %v4633 = vld [vmem:[%s4 + $0x1570] sm:$0xff]
      %v4634 = vld [vmem:[%s4 + $0x1578] sm:$0xff]
      %v4635 = vld [vmem:[%s4 + $0x1580] sm:$0xff]
      %v4636 = vld [vmem:[%s4 + $0x1588] sm:$0xff]
      %v4637 = vld [vmem:[%s4 + $0x1590] sm:$0xff]
      %v4638 = vld [vmem:[%s4 + $0x1598] sm:$0xff]
      %v4639 = vld [vmem:[%s4 + $0x15a0] sm:$0xff]
      %v4640 = vld [vmem:[%s4 + $0x15a8] sm:$0xff]
      %v4641 = vld [vmem:[%s4 + $0x15b0] sm:$0xff]
      %v4642 = vld [vmem:[%s4 + $0x15b8] sm:$0xff]
      %v4643 = vld [vmem:[%s4 + $0x15c0] sm:$0xff]
      %v4644 = vld [vmem:[%s4 + $0x15c8] sm:$0xff]
      %v4645 = vld [vmem:[%s4 + $0x15d0] sm:$0xff]
      %v4646 = vld [vmem:[%s4 + $0x15d8] sm:$0xff]
      %v4647 = vld [vmem:[%s4 + $0x15e0] sm:$0xff]
      %v4648 = vld [vmem:[%s4 + $0x15e8] sm:$0xff]
      %v4649 = vld [vmem:[%s4 + $0x15f0] sm:$0xff]
      %v4650 = vld [vmem:[%s4 + $0x15f8] sm:$0xff]
      %v4651 = vld [vmem:[%s4 + $0x1600] sm:$0xff]
      %v4652 = vld [vmem:[%s4 + $0x1608] sm:$0xff]
      %v4653 = vld [vmem:[%s4 + $0x1610] sm:$0xff]
      %v4654 = vld [vmem:[%s4 + $0x1618] sm:$0xff]
      %v4655 = vld [vmem:[%s4 + $0x1620] sm:$0xff]
      %v4656 = vld [vmem:[%s4 + $0x1628] sm:$0xff]
      %v4657 = vld [vmem:[%s4 + $0x1630] sm:$0xff]
      %v4658 = vld [vmem:[%s4 + $0x1638] sm:$0xff]
      %v4659 = vld [vmem:[%s4 + $0x1640] sm:$0xff]
      %v4660 = vld [vmem:[%s4 + $0x1648] sm:$0xff]
      %v4661 = vld [vmem:[%s4 + $0x1650] sm:$0xff]
      %v4662 = vld [vmem:[%s4 + $0x1658] sm:$0xff]
      %v4663 = vld [vmem:[%s4 + $0x1660] sm:$0xff]
      %v4664 = vld [vmem:[%s4 + $0x1668] sm:$0xff]
      %v4665 = vld [vmem:[%s4 + $0x1670] sm:$0xff]
      %v4666 = vld [vmem:[%s4 + $0x1678] sm:$0xff]
      %v4667 = vld [vmem:[%s4 + $0x1680] sm:$0xff]
      %v4668 = vld [vmem:[%s4 + $0x1688] sm:$0xff]
      %v4669 = vld [vmem:[%s4 + $0x1690] sm:$0xff]
      %v4670 = vld [vmem:[%s4 + $0x1698] sm:$0xff]
      %v4671 = vld [vmem:[%s4 + $0x16a0] sm:$0xff]
      %v4672 = vld [vmem:[%s4 + $0x16a8] sm:$0xff]
      %v4673 = vld [vmem:[%s4 + $0x16b0] sm:$0xff]
      %v4674 = vld [vmem:[%s4 + $0x16b8] sm:$0xff]
      %v4675 = vld [vmem:[%s4 + $0x16c0] sm:$0xff]
      %v4676 = vld [vmem:[%s4 + $0x16c8] sm:$0xff]
      %v4677 = vld [vmem:[%s4 + $0x16d0] sm:$0xff]
      %v4678 = vld [vmem:[%s4 + $0x16d8] sm:$0xff]
      %v4679 = vld [vmem:[%s4 + $0x16e0] sm:$0xff]
      %v4680 = vld [vmem:[%s4 + $0x16e8] sm:$0xff]
      %v4681 = vld [vmem:[%s4 + $0x16f0] sm:$0xff]
      %v4682 = vld [vmem:[%s4 + $0x16f8] sm:$0xff]
      %v4683 = vld [vmem:[%s4 + $0x1700] sm:$0xff]
      %v4684 = vld [vmem:[%s4 + $0x1708] sm:$0xff]
      %v4685 = vld [vmem:[%s4 + $0x1710] sm:$0xff]
      %v4686 = vld [vmem:[%s4 + $0x1718] sm:$0xff]
      %v4687 = vld [vmem:[%s4 + $0x1720] sm:$0xff]
      %v4688 = vld [vmem:[%s4 + $0x1728] sm:$0xff]
      %v4689 = vld [vmem:[%s4 + $0x1730] sm:$0xff]
      %v4690 = vld [vmem:[%s4 + $0x1738] sm:$0xff]
      %v4691 = vld [vmem:[%s4 + $0x1740] sm:$0xff]
      %v4692 = vld [vmem:[%s4 + $0x1748] sm:$0xff]
      %v4693 = vld [vmem:[%s4 + $0x1750] sm:$0xff]
      %v4694 = vld [vmem:[%s4 + $0x1758] sm:$0xff]
      %v4695 = vld [vmem:[%s4 + $0x1760] sm:$0xff]
      %v4696 = vld [vmem:[%s4 + $0x1768] sm:$0xff]
      %v4697 = vld [vmem:[%s4 + $0x1770] sm:$0xff]
      %v4698 = vld [vmem:[%s4 + $0x1778] sm:$0xff]
      %v4699 = vld [vmem:[%s4 + $0x1780] sm:$0xff]
      %v4700 = vld [vmem:[%s4 + $0x1788] sm:$0xff]
      %v4701 = vld [vmem:[%s4 + $0x1790] sm:$0xff]
      %v4702 = vld [vmem:[%s4 + $0x1798] sm:$0xff]
      %v4703 = vld [vmem:[%s4 + $0x17a0] sm:$0xff]
      %v4704 = vld [vmem:[%s4 + $0x17a8] sm:$0xff]
      %v4705 = vld [vmem:[%s4 + $0x17b0] sm:$0xff]
      %v4706 = vld [vmem:[%s4 + $0x17b8] sm:$0xff]
      %v4707 = vld [vmem:[%s4 + $0x17c0] sm:$0xff]
      %v4708 = vld [vmem:[%s4 + $0x17c8] sm:$0xff]
      %v4709 = vld [vmem:[%s4 + $0x17d0] sm:$0xff]
      %v4710 = vld [vmem:[%s4 + $0x17d8] sm:$0xff]
      %v4711 = vld [vmem:[%s4 + $0x17e0] sm:$0xff]
      %v4712 = vld [vmem:[%s4 + $0x17e8] sm:$0xff]
      %v4713 = vld [vmem:[%s4 + $0x17f0] sm:$0xff]
      %v4714 = vld [vmem:[%s4 + $0x17f8] sm:$0xff]
      %v4715 = vld [vmem:[%s4 + $0x1800] sm:$0xff]
      %v4716 = vld [vmem:[%s4 + $0x1808] sm:$0xff]
      %v4717 = vld [vmem:[%s4 + $0x1810] sm:$0xff]
      %v4718 = vld [vmem:[%s4 + $0x1818] sm:$0xff]
      %v4719 = vld [vmem:[%s4 + $0x1820] sm:$0xff]
      %v4720 = vld [vmem:[%s4 + $0x1828] sm:$0xff]
      %v4721 = vld [vmem:[%s4 + $0x1830] sm:$0xff]
      %v4722 = vld [vmem:[%s4 + $0x1838] sm:$0xff]
      %v4723 = vld [vmem:[%s4 + $0x1840] sm:$0xff]
      %v4724 = vld [vmem:[%s4 + $0x1848] sm:$0xff]
      %v4725 = vld [vmem:[%s4 + $0x1850] sm:$0xff]
      %v4726 = vld [vmem:[%s4 + $0x1858] sm:$0xff]
      %v4727 = vld [vmem:[%s4 + $0x1860] sm:$0xff]
      %v4728 = vld [vmem:[%s4 + $0x1868] sm:$0xff]
      %v4729 = vld [vmem:[%s4 + $0x1870] sm:$0xff]
      %v4730 = vld [vmem:[%s4 + $0x1878] sm:$0xff]
      %v4731 = vld [vmem:[%s4 + $0x1880] sm:$0xff]
      %v4732 = vld [vmem:[%s4 + $0x1888] sm:$0xff]
      %v4733 = vld [vmem:[%s4 + $0x1890] sm:$0xff]
      %v4734 = vld [vmem:[%s4 + $0x1898] sm:$0xff]
      %v4735 = vld [vmem:[%s4 + $0x18a0] sm:$0xff]
      %v4736 = vld [vmem:[%s4 + $0x18a8] sm:$0xff]
      %v4737 = vld [vmem:[%s4 + $0x18b0] sm:$0xff]
      %v4738 = vld [vmem:[%s4 + $0x18b8] sm:$0xff]
      %v4739 = vld [vmem:[%s4 + $0x18c0] sm:$0xff]
      %v4740 = vld [vmem:[%s4 + $0x18c8] sm:$0xff]
      %v4741 = vld [vmem:[%s4 + $0x18d0] sm:$0xff]
      %v4742 = vld [vmem:[%s4 + $0x18d8] sm:$0xff]
      %v4743 = vld [vmem:[%s4 + $0x18e0] sm:$0xff]
      %v4744 = vld [vmem:[%s4 + $0x18e8] sm:$0xff]
      %v4745 = vld [vmem:[%s4 + $0x18f0] sm:$0xff]
      %v4746 = vld [vmem:[%s4 + $0x18f8] sm:$0xff]
      %v4747 = vld [vmem:[%s5] sm:$0x3]
      %v4749 = vlaneseq
      %v4750 = vshrl.u32 %v4749, 7
      %v4751 = vsub.s32 0, %v4750
      %v4752 = vrot.slane %v4747, %v4751
      %v4753 = vlaneseq
      %v4754 = vshrl.u32 %v4753, 7
      %v4755 = vsub.s32 1, %v4754
      %v4756 = vrot.slane %v4747, %v4755
      %4759 = vmatprep.subr.mxu0 %v3948
      %4760 = vmatpush1.msra.mxu0 %v3947
      %4761 = vmatprep.subr.mxu0 %v3950
      %4762 = vmatpush1.msra.mxu0 %v3949
      %4763 = vmatprep.subr.mxu0 %v3952
      %4764 = vmatpush1.msra.mxu0 %v3951
      %4765 = vmatprep.subr.mxu0 %v3954
      %4766 = vmatpush1.msra.mxu0 %v3953
      %4767 = vmatprep.subr.mxu0 %v3956
      %4768 = vmatpush1.msra.mxu0 %v3955
      %4769 = vmatprep.subr.mxu0 %v3958
      %4770 = vmatpush1.msra.mxu0 %v3957
      %4771 = vmatprep.subr.mxu0 %v3960
      %4772 = vmatpush1.msra.mxu0 %v3959
      %4773 = vmatprep.subr.mxu0 %v3962
      %4774 = vmatpush1.msra.mxu0 %v3961
      %4775 = vmatprep.subr.mxu0 %v3964
      %4776 = vmatpush1.msra.mxu0 %v3963
      %4777 = vmatprep.subr.mxu0 %v3966
      %4778 = vmatpush1.msra.mxu0 %v3965
      %4779 = vmatprep.subr.mxu0 %v3968
      %4780 = vmatpush1.msra.mxu0 %v3967
      %4781 = vmatprep.subr.mxu0 %v3970
      %4782 = vmatpush1.msra.mxu0 %v3969
      %4783 = vmatprep.subr.mxu0 %v3972
      %4784 = vmatpush1.msra.mxu0 %v3971
      %4785 = vmatprep.subr.mxu0 %v3974
      %4786 = vmatpush1.msra.mxu0 %v3973
      %4787 = vmatprep.subr.mxu0 %v3976
      %4788 = vmatpush1.msra.mxu0 %v3975
      %4789 = vmatprep.subr.mxu0 %v3978
      %4790 = vmatpush1.msra.mxu0 %v3977
      %4791 = vmatprep.subr.mxu0 %v3980
      %4792 = vmatpush1.msra.mxu0 %v3979
      %4793 = vmatprep.subr.mxu0 %v3982
      %4794 = vmatpush1.msra.mxu0 %v3981
      %4795 = vmatprep.subr.mxu0 %v3984
      %4796 = vmatpush1.msra.mxu0 %v3983
      %4797 = vmatprep.subr.mxu0 %v3986
      %4798 = vmatpush1.msra.mxu0 %v3985
      %4799 = vmatprep.subr.mxu0 %v3988
      %4800 = vmatpush1.msra.mxu0 %v3987
      %4801 = vmatprep.subr.mxu0 %v3990
      %4802 = vmatpush1.msra.mxu0 %v3989
      %4803 = vmatprep.subr.mxu0 %v3992
      %4804 = vmatpush1.msra.mxu0 %v3991
      %4805 = vmatprep.subr.mxu0 %v3994
      %4806 = vmatpush1.msra.mxu0 %v3993
      %4807 = vmatprep.subr.mxu0 %v3996
      %4808 = vmatpush1.msra.mxu0 %v3995
      %4809 = vmatprep.subr.mxu0 %v3998
      %4810 = vmatpush1.msra.mxu0 %v3997
      %4811 = vmatprep.subr.mxu0 %v4000
      %4812 = vmatpush1.msra.mxu0 %v3999
      %4813 = vmatprep.subr.mxu0 %v4002
      %4814 = vmatpush1.msra.mxu0 %v4001
      %4815 = vmatprep.subr.mxu0 %v4004
      %4816 = vmatpush1.msra.mxu0 %v4003
      %4817 = vmatprep.subr.mxu0 %v4006
      %4818 = vmatpush1.msra.mxu0 %v4005
      %4819 = vmatprep.subr.mxu0 %v4008
      %4820 = vmatpush1.msra.mxu0 %v4007
      %4821 = vmatprep.subr.mxu0 %v4010
      %4822 = vmatpush1.msra.mxu0 %v4009
      %4823 = vmatprep.mubr.f32.mxu0 %v3648
      %4824 = vmatmul.mubr.f32.gmra.mrb[0].mxu0 %v3647
      %v4825 = vpop.f32.mrb[0].mxu0
      %v4826 = vadd.f32 %v4752, %v4825
      %v4827 = vpop.f32.mrb[0].mxu0
      %v4828 = vadd.f32 %v4756, %v4827
      %4829 = vmatprep.mubr.f32.mxu0 %v3673
      %4830 = vmatmul.mubr.f32.gmra.mrb[0].mxu0 %v3672
      %v4831 = vpop.f32.mrb[0].mxu0
      %v4832 = vadd.f32 %v4752, %v4831
      %v4833 = vpop.f32.mrb[0].mxu0
      %v4834 = vadd.f32 %v4756, %v4833
      %4835 = vmatprep.mubr.f32.mxu0 %v3698
      %4836 = vmatmul.mubr.f32.gmra.mrb[0].mxu0 %v3697
      %v4837 = vpop.f32.mrb[0].mxu0
      %v4838 = vadd.f32 %v4752, %v4837
      %v4839 = vpop.f32.mrb[0].mxu0
      %v4840 = vadd.f32 %v4756, %v4839
      %4841 = vmatprep.mubr.f32.mxu0 %v3723
      %4842 = vmatmul.mubr.f32.gmra.mrb[0].mxu0 %v3722
      %v4843 = vpop.f32.mrb[0].mxu0
      %v4844 = vadd.f32 %v4752, %v4843
      %v4845 = vpop.f32.mrb[0].mxu0
      %v4846 = vadd.f32 %v4756, %v4845
      %4847 = vmatprep.mubr.f32.mxu0 %v3748
      %4848 = vmatmul.mubr.f32.gmra.mrb[0].mxu0 %v3747
      %v4849 = vpop.f32.mrb[0].mxu0
      %v4850 = vadd.f32 %v4752, %v4849
      %v4851 = vpop.f32.mrb[0].mxu0
      %v4852 = vadd.f32 %v4756, %v4851
      %4853 = vmatprep.mubr.f32.mxu0 %v3773
      %4854 = vmatmul.mubr.f32.gmra.mrb[0].mxu0 %v3772
      %v4855 = vpop.f32.mrb[0].mxu0
      %v4856 = vadd.f32 %v4752, %v4855
      %v4857 = vpop.f32.mrb[0].mxu0
      %v4858 = vadd.f32 %v4756, %v4857
      %4859 = vmatprep.mubr.f32.mxu0 %v3798
      %4860 = vmatmul.mubr.f32.gmra.mrb[0].mxu0 %v3797
      %v4861 = vpop.f32.mrb[0].mxu0
      %v4862 = vadd.f32 %v4752, %v4861
      %v4863 = vpop.f32.mrb[0].mxu0
      %v4864 = vadd.f32 %v4756, %v4863
      %4865 = vmatprep.mubr.f32.mxu0 %v3823
      %4866 = vmatmul.mubr.f32.gmra.mrb[0].mxu0 %v3822
      %v4867 = vpop.f32.mrb[0].mxu0
      %v4868 = vadd.f32 %v4752, %v4867
      %v4869 = vpop.f32.mrb[0].mxu0
      %v4870 = vadd.f32 %v4756, %v4869
      %4871 = vmatprep.mubr.f32.mxu0 %v3848
      %4872 = vmatmul.mubr.f32.gmra.mrb[0].mxu0 %v3847
      %v4873 = vpop.f32.mrb[0].mxu0
      %v4874 = vadd.f32 %v4752, %v4873
      %v4875 = vpop.f32.mrb[0].mxu0
      %v4876 = vadd.f32 %v4756, %v4875
      %4877 = vmatprep.mubr.f32.mxu0 %v3873
      %4878 = vmatmul.mubr.f32.gmra.mrb[0].mxu0 %v3872
      %v4879 = vpop.f32.mrb[0].mxu0
      %v4880 = vadd.f32 %v4752, %v4879
      %v4881 = vpop.f32.mrb[0].mxu0
      %v4882 = vadd.f32 %v4756, %v4881
      %4883 = vmatprep.mubr.f32.mxu0 %v3898
      %4884 = vmatmul.mubr.f32.gmra.mrb[0].mxu0 %v3897
      %v4885 = vpop.f32.mrb[0].mxu0
      %v4886 = vadd.f32 %v4752, %v4885
      %v4887 = vpop.f32.mrb[0].mxu0
      %v4888 = vadd.f32 %v4756, %v4887
      %4889 = vmatprep.mubr.f32.mxu0 %v3923
      %4890 = vmatmul.mubr.f32.gmra.mrb[0].mxu0 %v3922
      %v4891 = vpop.f32.mrb[0].mxu0
      %v4892 = vadd.f32 %v4752, %v4891
      %v4893 = vpop.f32.mrb[0].mxu0
      %v4894 = vadd.f32 %v4756, %v4893
      %4895 = vdwg.mxu0
      %4896 = vmatprep.subr.mxu0 %v4012
      %4897 = vmatpush1.msra.mxu0 %v4011
      %4898 = vmatprep.subr.mxu0 %v4014
      %4899 = vmatpush1.msra.mxu0 %v4013
      %4900 = vmatprep.subr.mxu0 %v4016
      %4901 = vmatpush1.msra.mxu0 %v4015
      %4902 = vmatprep.subr.mxu0 %v4018
      %4903 = vmatpush1.msra.mxu0 %v4017
      %4904 = vmatprep.subr.mxu0 %v4020
      %4905 = vmatpush1.msra.mxu0 %v4019
      %4906 = vmatprep.subr.mxu0 %v4022
      %4907 = vmatpush1.msra.mxu0 %v4021
      %4908 = vmatprep.subr.mxu0 %v4024
      %4909 = vmatpush1.msra.mxu0 %v4023
      %4910 = vmatprep.subr.mxu0 %v4026
      %4911 = vmatpush1.msra.mxu0 %v4025
      %4912 = vmatprep.subr.mxu0 %v4028
      %4913 = vmatpush1.msra.mxu0 %v4027
      %4914 = vmatprep.subr.mxu0 %v4030
      %4915 = vmatpush1.msra.mxu0 %v4029
      %4916 = vmatprep.subr.mxu0 %v4032
      %4917 = vmatpush1.msra.mxu0 %v4031
      %4918 = vmatprep.subr.mxu0 %v4034
      %4919 = vmatpush1.msra.mxu0 %v4033
      %4920 = vmatprep.subr.mxu0 %v4036
      %4921 = vmatpush1.msra.mxu0 %v4035
      %4922 = vmatprep.subr.mxu0 %v4038
      %4923 = vmatpush1.msra.mxu0 %v4037
      %4924 = vmatprep.subr.mxu0 %v4040
      %4925 = vmatpush1.msra.mxu0 %v4039
      %4926 = vmatprep.subr.mxu0 %v4042
      %4927 = vmatpush1.msra.mxu0 %v4041
      %4928 = vmatprep.subr.mxu0 %v4044
      %4929 = vmatpush1.msra.mxu0 %v4043
      %4930 = vmatprep.subr.mxu0 %v4046
      %4931 = vmatpush1.msra.mxu0 %v4045
      %4932 = vmatprep.subr.mxu0 %v4048
      %4933 = vmatpush1.msra.mxu0 %v4047
      %4934 = vmatprep.subr.mxu0 %v4050
      %4935 = vmatpush1.msra.mxu0 %v4049
      %4936 = vmatprep.subr.mxu0 %v4052
      %4937 = vmatpush1.msra.mxu0 %v4051
      %4938 = vmatprep.subr.mxu0 %v4054
      %4939 = vmatpush1.msra.mxu0 %v4053
      %4940 = vmatprep.subr.mxu0 %v4056
      %4941 = vmatpush1.msra.mxu0 %v4055
      %4942 = vmatprep.subr.mxu0 %v4058
      %4943 = vmatpush1.msra.mxu0 %v4057
      %4944 = vmatprep.subr.mxu0 %v4060
      %4945 = vmatpush1.msra.mxu0 %v4059
      %4946 = vmatprep.subr.mxu0 %v4062
      %4947 = vmatpush1.msra.mxu0 %v4061
      %4948 = vmatprep.subr.mxu0 %v4064
      %4949 = vmatpush1.msra.mxu0 %v4063
      %4950 = vmatprep.subr.mxu0 %v4066
      %4951 = vmatpush1.msra.mxu0 %v4065
      %4952 = vmatprep.subr.mxu0 %v4068
      %4953 = vmatpush1.msra.mxu0 %v4067
      %4954 = vmatprep.subr.mxu0 %v4070
      %4955 = vmatpush1.msra.mxu0 %v4069
      %4956 = vmatprep.subr.mxu0 %v4072
      %4957 = vmatpush1.msra.mxu0 %v4071
      %4958 = vmatprep.subr.mxu0 %v4074
      %4959 = vmatpush1.msra.mxu0 %v4073
      %4960 = vmatprep.mubr.f32.mxu0 %v3650
      %4961 = vmatmul.mubr.f32.gmra.mrb[0].mxu0 %v3649
      %v4962 = vpop.f32.mrb[0].mxu0
      %v4963 = vadd.f32 %v4826, %v4962
      %v4964 = vpop.f32.mrb[0].mxu0
      %v4965 = vadd.f32 %v4828, %v4964
      %4966 = vmatprep.mubr.f32.mxu0 %v3675
      %4967 = vmatmul.mubr.f32.gmra.mrb[0].mxu0 %v3674
      %v4968 = vpop.f32.mrb[0].mxu0
      %v4969 = vadd.f32 %v4832, %v4968
      %v4970 = vpop.f32.mrb[0].mxu0
      %v4971 = vadd.f32 %v4834, %v4970
      %4972 = vmatprep.mubr.f32.mxu0 %v3700
      %4973 = vmatmul.mubr.f32.gmra.mrb[0].mxu0 %v3699
      %v4974 = vpop.f32.mrb[0].mxu0
      %v4975 = vadd.f32 %v4838, %v4974
      %v4976 = vpop.f32.mrb[0].mxu0
      %v4977 = vadd.f32 %v4840, %v4976
      %4978 = vmatprep.mubr.f32.mxu0 %v3725
      %4979 = vmatmul.mubr.f32.gmra.mrb[0].mxu0 %v3724
      %v4980 = vpop.f32.mrb[0].mxu0
      %v4981 = vadd.f32 %v4844, %v4980
      %v4982 = vpop.f32.mrb[0].mxu0
      %v4983 = vadd.f32 %v4846, %v4982
      %4984 = vmatprep.mubr.f32.mxu0 %v3750
      %4985 = vmatmul.mubr.f32.gmra.mrb[0].mxu0 %v3749
      %v4986 = vpop.f32.mrb[0].mxu0
      %v4987 = vadd.f32 %v4850, %v4986
      %v4988 = vpop.f32.mrb[0].mxu0
      %v4989 = vadd.f32 %v4852, %v4988
      %4990 = vmatprep.mubr.f32.mxu0 %v3775
      %4991 = vmatmul.mubr.f32.gmra.mrb[0].mxu0 %v3774
      %v4992 = vpop.f32.mrb[0].mxu0
      %v4993 = vadd.f32 %v4856, %v4992
      %v4994 = vpop.f32.mrb[0].mxu0
      %v4995 = vadd.f32 %v4858, %v4994
      %4996 = vmatprep.mubr.f32.mxu0 %v3800
      %4997 = vmatmul.mubr.f32.gmra.mrb[0].mxu0 %v3799
      %v4998 = vpop.f32.mrb[0].mxu0
      %v4999 = vadd.f32 %v4862, %v4998
      %v5000 = vpop.f32.mrb[0].mxu0
      %v5001 = vadd.f32 %v4864, %v5000
      %5002 = vmatprep.mubr.f32.mxu0 %v3825
      %5003 = vmatmul.mubr.f32.gmra.mrb[0].mxu0 %v3824
      %v5004 = vpop.f32.mrb[0].mxu0
      %v5005 = vadd.f32 %v4868, %v5004
      %v5006 = vpop.f32.mrb[0].mxu0
      %v5007 = vadd.f32 %v4870, %v5006
      %5008 = vmatprep.mubr.f32.mxu0 %v3850
      %5009 = vmatmul.mubr.f32.gmra.mrb[0].mxu0 %v3849
      %v5010 = vpop.f32.mrb[0].mxu0
      %v5011 = vadd.f32 %v4874, %v5010
      %v5012 = vpop.f32.mrb[0].mxu0
      %v5013 = vadd.f32 %v4876, %v5012
      %5014 = vmatprep.mubr.f32.mxu0 %v3875
      %5015 = vmatmul.mubr.f32.gmra.mrb[0].mxu0 %v3874
      %v5016 = vpop.f32.mrb[0].mxu0
      %v5017 = vadd.f32 %v4880, %v5016
      %v5018 = vpop.f32.mrb[0].mxu0
      %v5019 = vadd.f32 %v4882, %v5018
      %5020 = vmatprep.mubr.f32.mxu0 %v3900
      %5021 = vmatmul.mubr.f32.gmra.mrb[0].mxu0 %v3899
      %v5022 = vpop.f32.mrb[0].mxu0
      %v5023 = vadd.f32 %v4886, %v5022
      %v5024 = vpop.f32.mrb[0].mxu0
      %v5025 = vadd.f32 %v4888, %v5024
      %5026 = vmatprep.mubr.f32.mxu0 %v3925
      %5027 = vmatmul.mubr.f32.gmra.mrb[0].mxu0 %v3924
      %v5028 = vpop.f32.mrb[0].mxu0
      %v5029 = vadd.f32 %v4892, %v5028
      %v5030 = vpop.f32.mrb[0].mxu0
      %v5031 = vadd.f32 %v4894, %v5030
      %5032 = vdwg.mxu0
      %5033 = vmatprep.subr.mxu0 %v4076
      %5034 = vmatpush1.msra.mxu0 %v4075
      %5035 = vmatprep.subr.mxu0 %v4078
      %5036 = vmatpush1.msra.mxu0 %v4077
      %5037 = vmatprep.subr.mxu0 %v4080
      %5038 = vmatpush1.msra.mxu0 %v4079
      %5039 = vmatprep.subr.mxu0 %v4082
      %5040 = vmatpush1.msra.mxu0 %v4081
      %5041 = vmatprep.subr.mxu0 %v4084
      %5042 = vmatpush1.msra.mxu0 %v4083
      %5043 = vmatprep.subr.mxu0 %v4086
      %5044 = vmatpush1.msra.mxu0 %v4085
      %5045 = vmatprep.subr.mxu0 %v4088
      %5046 = vmatpush1.msra.mxu0 %v4087
      %5047 = vmatprep.subr.mxu0 %v4090
      %5048 = vmatpush1.msra.mxu0 %v4089
      %5049 = vmatprep.subr.mxu0 %v4092
      %5050 = vmatpush1.msra.mxu0 %v4091
      %5051 = vmatprep.subr.mxu0 %v4094
      %5052 = vmatpush1.msra.mxu0 %v4093
      %5053 = vmatprep.subr.mxu0 %v4096
      %5054 = vmatpush1.msra.mxu0 %v4095
      %5055 = vmatprep.subr.mxu0 %v4098
      %5056 = vmatpush1.msra.mxu0 %v4097
      %5057 = vmatprep.subr.mxu0 %v4100
      %5058 = vmatpush1.msra.mxu0 %v4099
      %5059 = vmatprep.subr.mxu0 %v4102
      %5060 = vmatpush1.msra.mxu0 %v4101
      %5061 = vmatprep.subr.mxu0 %v4104
      %5062 = vmatpush1.msra.mxu0 %v4103
      %5063 = vmatprep.subr.mxu0 %v4106
      %5064 = vmatpush1.msra.mxu0 %v4105
      %5065 = vmatprep.subr.mxu0 %v4108
      %5066 = vmatpush1.msra.mxu0 %v4107
      %5067 = vmatprep.subr.mxu0 %v4110
      %5068 = vmatpush1.msra.mxu0 %v4109
      %5069 = vmatprep.subr.mxu0 %v4112
      %5070 = vmatpush1.msra.mxu0 %v4111
      %5071 = vmatprep.subr.mxu0 %v4114
      %5072 = vmatpush1.msra.mxu0 %v4113
      %5073 = vmatprep.subr.mxu0 %v4116
      %5074 = vmatpush1.msra.mxu0 %v4115
      %5075 = vmatprep.subr.mxu0 %v4118
      %5076 = vmatpush1.msra.mxu0 %v4117
      %5077 = vmatprep.subr.mxu0 %v4120
      %5078 = vmatpush1.msra.mxu0 %v4119
      %5079 = vmatprep.subr.mxu0 %v4122
      %5080 = vmatpush1.msra.mxu0 %v4121
      %5081 = vmatprep.subr.mxu0 %v4124
      %5082 = vmatpush1.msra.mxu0 %v4123
      %5083 = vmatprep.subr.mxu0 %v4126
      %5084 = vmatpush1.msra.mxu0 %v4125
      %5085 = vmatprep.subr.mxu0 %v4128
      %5086 = vmatpush1.msra.mxu0 %v4127
      %5087 = vmatprep.subr.mxu0 %v4130
      %5088 = vmatpush1.msra.mxu0 %v4129
      %5089 = vmatprep.subr.mxu0 %v4132
      %5090 = vmatpush1.msra.mxu0 %v4131
      %5091 = vmatprep.subr.mxu0 %v4134
      %5092 = vmatpush1.msra.mxu0 %v4133
      %5093 = vmatprep.subr.mxu0 %v4136
      %5094 = vmatpush1.msra.mxu0 %v4135
      %5095 = vmatprep.subr.mxu0 %v4138
      %5096 = vmatpush1.msra.mxu0 %v4137
      %5097 = vmatprep.mubr.f32.mxu0 %v3652
      %5098 = vmatmul.mubr.f32.gmra.mrb[0].mxu0 %v3651
      %v5099 = vpop.f32.mrb[0].mxu0
      %v5100 = vadd.f32 %v4963, %v5099
      %v5101 = vpop.f32.mrb[0].mxu0
      %v5102 = vadd.f32 %v4965, %v5101
      %5103 = vmatprep.mubr.f32.mxu0 %v3677
      %5104 = vmatmul.mubr.f32.gmra.mrb[0].mxu0 %v3676
      %v5105 = vpop.f32.mrb[0].mxu0
      %v5106 = vadd.f32 %v4969, %v5105
      %v5107 = vpop.f32.mrb[0].mxu0
      %v5108 = vadd.f32 %v4971, %v5107
      %5109 = vmatprep.mubr.f32.mxu0 %v3702
      %5110 = vmatmul.mubr.f32.gmra.mrb[0].mxu0 %v3701
      %v5111 = vpop.f32.mrb[0].mxu0
      %v5112 = vadd.f32 %v4975, %v5111
      %v5113 = vpop.f32.mrb[0].mxu0
      %v5114 = vadd.f32 %v4977, %v5113
      %5115 = vmatprep.mubr.f32.mxu0 %v3727
      %5116 = vmatmul.mubr.f32.gmra.mrb[0].mxu0 %v3726
      %v5117 = vpop.f32.mrb[0].mxu0
      %v5118 = vadd.f32 %v4981, %v5117
      %v5119 = vpop.f32.mrb[0].mxu0
      %v5120 = vadd.f32 %v4983, %v5119
      %5121 = vmatprep.mubr.f32.mxu0 %v3752
      %5122 = vmatmul.mubr.f32.gmra.mrb[0].mxu0 %v3751
      %v5123 = vpop.f32.mrb[0].mxu0
      %v5124 = vadd.f32 %v4987, %v5123
      %v5125 = vpop.f32.mrb[0].mxu0
      %v5126 = vadd.f32 %v4989, %v5125
      %5127 = vmatprep.mubr.f32.mxu0 %v3777
      %5128 = vmatmul.mubr.f32.gmra.mrb[0].mxu0 %v3776
      %v5129 = vpop.f32.mrb[0].mxu0
      %v5130 = vadd.f32 %v4993, %v5129
      %v5131 = vpop.f32.mrb[0].mxu0
      %v5132 = vadd.f32 %v4995, %v5131
      %5133 = vmatprep.mubr.f32.mxu0 %v3802
      %5134 = vmatmul.mubr.f32.gmra.mrb[0].mxu0 %v3801
      %v5135 = vpop.f32.mrb[0].mxu0
      %v5136 = vadd.f32 %v4999, %v5135
      %v5137 = vpop.f32.mrb[0].mxu0
      %v5138 = vadd.f32 %v5001, %v5137
      %5139 = vmatprep.mubr.f32.mxu0 %v3827
      %5140 = vmatmul.mubr.f32.gmra.mrb[0].mxu0 %v3826
      %v5141 = vpop.f32.mrb[0].mxu0
      %v5142 = vadd.f32 %v5005, %v5141
      %v5143 = vpop.f32.mrb[0].mxu0
      %v5144 = vadd.f32 %v5007, %v5143
      %5145 = vmatprep.mubr.f32.mxu0 %v3852
      %5146 = vmatmul.mubr.f32.gmra.mrb[0].mxu0 %v3851
      %v5147 = vpop.f32.mrb[0].mxu0
      %v5148 = vadd.f32 %v5011, %v5147
      %v5149 = vpop.f32.mrb[0].mxu0
      %v5150 = vadd.f32 %v5013, %v5149
      %5151 = vmatprep.mubr.f32.mxu0 %v3877
      %5152 = vmatmul.mubr.f32.gmra.mrb[0].mxu0 %v3876
      %v5153 = vpop.f32.mrb[0].mxu0
      %v5154 = vadd.f32 %v5017, %v5153
      %v5155 = vpop.f32.mrb[0].mxu0
      %v5156 = vadd.f32 %v5019, %v5155
      %5157 = vmatprep.mubr.f32.mxu0 %v3902
      %5158 = vmatmul.mubr.f32.gmra.mrb[0].mxu0 %v3901
      %v5159 = vpop.f32.mrb[0].mxu0
      %v5160 = vadd.f32 %v5023, %v5159
      %v5161 = vpop.f32.mrb[0].mxu0
      %v5162 = vadd.f32 %v5025, %v5161
      %5163 = vmatprep.mubr.f32.mxu0 %v3927
      %5164 = vmatmul.mubr.f32.gmra.mrb[0].mxu0 %v3926
      %v5165 = vpop.f32.mrb[0].mxu0
      %v5166 = vadd.f32 %v5029, %v5165
      %v5167 = vpop.f32.mrb[0].mxu0
      %v5168 = vadd.f32 %v5031, %v5167
      %5169 = vdwg.mxu0
      %5170 = vmatprep.subr.mxu0 %v4140
      %5171 = vmatpush1.msra.mxu0 %v4139
      %5172 = vmatprep.subr.mxu0 %v4142
      %5173 = vmatpush1.msra.mxu0 %v4141
      %5174 = vmatprep.subr.mxu0 %v4144
      %5175 = vmatpush1.msra.mxu0 %v4143
      %5176 = vmatprep.subr.mxu0 %v4146
      %5177 = vmatpush1.msra.mxu0 %v4145
      %5178 = vmatprep.subr.mxu0 %v4148
      %5179 = vmatpush1.msra.mxu0 %v4147
      %5180 = vmatprep.subr.mxu0 %v4150
      %5181 = vmatpush1.msra.mxu0 %v4149
      %5182 = vmatprep.subr.mxu0 %v4152
      %5183 = vmatpush1.msra.mxu0 %v4151
      %5184 = vmatprep.subr.mxu0 %v4154
      %5185 = vmatpush1.msra.mxu0 %v4153
      %5186 = vmatprep.subr.mxu0 %v4156
      %5187 = vmatpush1.msra.mxu0 %v4155
      %5188 = vmatprep.subr.mxu0 %v4158
      %5189 = vmatpush1.msra.mxu0 %v4157
      %5190 = vmatprep.subr.mxu0 %v4160
      %5191 = vmatpush1.msra.mxu0 %v4159
      %5192 = vmatprep.subr.mxu0 %v4162
      %5193 = vmatpush1.msra.mxu0 %v4161
      %5194 = vmatprep.subr.mxu0 %v4164
      %5195 = vmatpush1.msra.mxu0 %v4163
      %5196 = vmatprep.subr.mxu0 %v4166
      %5197 = vmatpush1.msra.mxu0 %v4165
      %5198 = vmatprep.subr.mxu0 %v4168
      %5199 = vmatpush1.msra.mxu0 %v4167
      %5200 = vmatprep.subr.mxu0 %v4170
      %5201 = vmatpush1.msra.mxu0 %v4169
      %5202 = vmatprep.subr.mxu0 %v4172
      %5203 = vmatpush1.msra.mxu0 %v4171
      %5204 = vmatprep.subr.mxu0 %v4174
      %5205 = vmatpush1.msra.mxu0 %v4173
      %5206 = vmatprep.subr.mxu0 %v4176
      %5207 = vmatpush1.msra.mxu0 %v4175
      %5208 = vmatprep.subr.mxu0 %v4178
      %5209 = vmatpush1.msra.mxu0 %v4177
      %5210 = vmatprep.subr.mxu0 %v4180
      %5211 = vmatpush1.msra.mxu0 %v4179
      %5212 = vmatprep.subr.mxu0 %v4182
      %5213 = vmatpush1.msra.mxu0 %v4181
      %5214 = vmatprep.subr.mxu0 %v4184
      %5215 = vmatpush1.msra.mxu0 %v4183
      %5216 = vmatprep.subr.mxu0 %v4186
      %5217 = vmatpush1.msra.mxu0 %v4185
      %5218 = vmatprep.subr.mxu0 %v4188
      %5219 = vmatpush1.msra.mxu0 %v4187
      %5220 = vmatprep.subr.mxu0 %v4190
      %5221 = vmatpush1.msra.mxu0 %v4189
      %5222 = vmatprep.subr.mxu0 %v4192
      %5223 = vmatpush1.msra.mxu0 %v4191
      %5224 = vmatprep.subr.mxu0 %v4194
      %5225 = vmatpush1.msra.mxu0 %v4193
      %5226 = vmatprep.subr.mxu0 %v4196
      %5227 = vmatpush1.msra.mxu0 %v4195
      %5228 = vmatprep.subr.mxu0 %v4198
      %5229 = vmatpush1.msra.mxu0 %v4197
      %5230 = vmatprep.subr.mxu0 %v4200
      %5231 = vmatpush1.msra.mxu0 %v4199
      %5232 = vmatprep.subr.mxu0 %v4202
      %5233 = vmatpush1.msra.mxu0 %v4201
      %5234 = vmatprep.mubr.f32.mxu0 %v3654
      %5235 = vmatmul.mubr.f32.gmra.mrb[0].mxu0 %v3653
      %v5236 = vpop.f32.mrb[0].mxu0
      %v5237 = vadd.f32 %v5100, %v5236
      %v5238 = vpop.f32.mrb[0].mxu0
      %v5239 = vadd.f32 %v5102, %v5238
      %5240 = vmatprep.mubr.f32.mxu0 %v3679
      %5241 = vmatmul.mubr.f32.gmra.mrb[0].mxu0 %v3678
      %v5242 = vpop.f32.mrb[0].mxu0
      %v5243 = vadd.f32 %v5106, %v5242
      %v5244 = vpop.f32.mrb[0].mxu0
      %v5245 = vadd.f32 %v5108, %v5244
      %5246 = vmatprep.mubr.f32.mxu0 %v3704
      %5247 = vmatmul.mubr.f32.gmra.mrb[0].mxu0 %v3703
      %v5248 = vpop.f32.mrb[0].mxu0
      %v5249 = vadd.f32 %v5112, %v5248
      %v5250 = vpop.f32.mrb[0].mxu0
      %v5251 = vadd.f32 %v5114, %v5250
      %5252 = vmatprep.mubr.f32.mxu0 %v3729
      %5253 = vmatmul.mubr.f32.gmra.mrb[0].mxu0 %v3728
      %v5254 = vpop.f32.mrb[0].mxu0
      %v5255 = vadd.f32 %v5118, %v5254
      %v5256 = vpop.f32.mrb[0].mxu0
      %v5257 = vadd.f32 %v5120, %v5256
      %5258 = vmatprep.mubr.f32.mxu0 %v3754
      %5259 = vmatmul.mubr.f32.gmra.mrb[0].mxu0 %v3753
      %v5260 = vpop.f32.mrb[0].mxu0
      %v5261 = vadd.f32 %v5124, %v5260
      %v5262 = vpop.f32.mrb[0].mxu0
      %v5263 = vadd.f32 %v5126, %v5262
      %5264 = vmatprep.mubr.f32.mxu0 %v3779
      %5265 = vmatmul.mubr.f32.gmra.mrb[0].mxu0 %v3778
      %v5266 = vpop.f32.mrb[0].mxu0
      %v5267 = vadd.f32 %v5130, %v5266
      %v5268 = vpop.f32.mrb[0].mxu0
      %v5269 = vadd.f32 %v5132, %v5268
      %5270 = vmatprep.mubr.f32.mxu0 %v3804
      %5271 = vmatmul.mubr.f32.gmra.mrb[0].mxu0 %v3803
      %v5272 = vpop.f32.mrb[0].mxu0
      %v5273 = vadd.f32 %v5136, %v5272
      %v5274 = vpop.f32.mrb[0].mxu0
      %v5275 = vadd.f32 %v5138, %v5274
      %5276 = vmatprep.mubr.f32.mxu0 %v3829
      %5277 = vmatmul.mubr.f32.gmra.mrb[0].mxu0 %v3828
      %v5278 = vpop.f32.mrb[0].mxu0
      %v5279 = vadd.f32 %v5142, %v5278
      %v5280 = vpop.f32.mrb[0].mxu0
      %v5281 = vadd.f32 %v5144, %v5280
      %5282 = vmatprep.mubr.f32.mxu0 %v3854
      %5283 = vmatmul.mubr.f32.gmra.mrb[0].mxu0 %v3853
      %v5284 = vpop.f32.mrb[0].mxu0
      %v5285 = vadd.f32 %v5148, %v5284
      %v5286 = vpop.f32.mrb[0].mxu0
      %v5287 = vadd.f32 %v5150, %v5286
      %5288 = vmatprep.mubr.f32.mxu0 %v3879
      %5289 = vmatmul.mubr.f32.gmra.mrb[0].mxu0 %v3878
      %v5290 = vpop.f32.mrb[0].mxu0
      %v5291 = vadd.f32 %v5154, %v5290
      %v5292 = vpop.f32.mrb[0].mxu0
      %v5293 = vadd.f32 %v5156, %v5292
      %5294 = vmatprep.mubr.f32.mxu0 %v3904
      %5295 = vmatmul.mubr.f32.gmra.mrb[0].mxu0 %v3903
      %v5296 = vpop.f32.mrb[0].mxu0
      %v5297 = vadd.f32 %v5160, %v5296
      %v5298 = vpop.f32.mrb[0].mxu0
      %v5299 = vadd.f32 %v5162, %v5298
      %5300 = vmatprep.mubr.f32.mxu0 %v3929
      %5301 = vmatmul.mubr.f32.gmra.mrb[0].mxu0 %v3928
      %v5302 = vpop.f32.mrb[0].mxu0
      %v5303 = vadd.f32 %v5166, %v5302
      %v5304 = vpop.f32.mrb[0].mxu0
      %v5305 = vadd.f32 %v5168, %v5304
      %5306 = vdwg.mxu0
      %5307 = vmatprep.subr.mxu0 %v4204
      %5308 = vmatpush1.msra.mxu0 %v4203
      %5309 = vmatprep.subr.mxu0 %v4206
      %5310 = vmatpush1.msra.mxu0 %v4205
      %5311 = vmatprep.subr.mxu0 %v4208
      %5312 = vmatpush1.msra.mxu0 %v4207
      %5313 = vmatprep.subr.mxu0 %v4210
      %5314 = vmatpush1.msra.mxu0 %v4209
      %5315 = vmatprep.subr.mxu0 %v4212
      %5316 = vmatpush1.msra.mxu0 %v4211
      %5317 = vmatprep.subr.mxu0 %v4214
      %5318 = vmatpush1.msra.mxu0 %v4213
      %5319 = vmatprep.subr.mxu0 %v4216
      %5320 = vmatpush1.msra.mxu0 %v4215
      %5321 = vmatprep.subr.mxu0 %v4218
      %5322 = vmatpush1.msra.mxu0 %v4217
      %5323 = vmatprep.subr.mxu0 %v4220
      %5324 = vmatpush1.msra.mxu0 %v4219
      %5325 = vmatprep.subr.mxu0 %v4222
      %5326 = vmatpush1.msra.mxu0 %v4221
      %5327 = vmatprep.subr.mxu0 %v4224
      %5328 = vmatpush1.msra.mxu0 %v4223
      %5329 = vmatprep.subr.mxu0 %v4226
      %5330 = vmatpush1.msra.mxu0 %v4225
      %5331 = vmatprep.subr.mxu0 %v4228
      %5332 = vmatpush1.msra.mxu0 %v4227
      %5333 = vmatprep.subr.mxu0 %v4230
      %5334 = vmatpush1.msra.mxu0 %v4229
      %5335 = vmatprep.subr.mxu0 %v4232
      %5336 = vmatpush1.msra.mxu0 %v4231
      %5337 = vmatprep.subr.mxu0 %v4234
      %5338 = vmatpush1.msra.mxu0 %v4233
      %5339 = vmatprep.subr.mxu0 %v4236
      %5340 = vmatpush1.msra.mxu0 %v4235
      %5341 = vmatprep.subr.mxu0 %v4238
      %5342 = vmatpush1.msra.mxu0 %v4237
      %5343 = vmatprep.subr.mxu0 %v4240
      %5344 = vmatpush1.msra.mxu0 %v4239
      %5345 = vmatprep.subr.mxu0 %v4242
      %5346 = vmatpush1.msra.mxu0 %v4241
      %5347 = vmatprep.subr.mxu0 %v4244
      %5348 = vmatpush1.msra.mxu0 %v4243
      %5349 = vmatprep.subr.mxu0 %v4246
      %5350 = vmatpush1.msra.mxu0 %v4245
      %5351 = vmatprep.subr.mxu0 %v4248
      %5352 = vmatpush1.msra.mxu0 %v4247
      %5353 = vmatprep.subr.mxu0 %v4250
      %5354 = vmatpush1.msra.mxu0 %v4249
      %5355 = vmatprep.subr.mxu0 %v4252
      %5356 = vmatpush1.msra.mxu0 %v4251
      %5357 = vmatprep.subr.mxu0 %v4254
      %5358 = vmatpush1.msra.mxu0 %v4253
      %5359 = vmatprep.subr.mxu0 %v4256
      %5360 = vmatpush1.msra.mxu0 %v4255
      %5361 = vmatprep.subr.mxu0 %v4258
      %5362 = vmatpush1.msra.mxu0 %v4257
      %5363 = vmatprep.subr.mxu0 %v4260
      %5364 = vmatpush1.msra.mxu0 %v4259
      %5365 = vmatprep.subr.mxu0 %v4262
      %5366 = vmatpush1.msra.mxu0 %v4261
      %5367 = vmatprep.subr.mxu0 %v4264
      %5368 = vmatpush1.msra.mxu0 %v4263
      %5369 = vmatprep.subr.mxu0 %v4266
      %5370 = vmatpush1.msra.mxu0 %v4265
      %5371 = vmatprep.mubr.f32.mxu0 %v3656
      %5372 = vmatmul.mubr.f32.gmra.mrb[0].mxu0 %v3655
      %v5373 = vpop.f32.mrb[0].mxu0
      %v5374 = vadd.f32 %v5237, %v5373
      %v5375 = vpop.f32.mrb[0].mxu0
      %v5376 = vadd.f32 %v5239, %v5375
      %5377 = vmatprep.mubr.f32.mxu0 %v3681
      %5378 = vmatmul.mubr.f32.gmra.mrb[0].mxu0 %v3680
      %v5379 = vpop.f32.mrb[0].mxu0
      %v5380 = vadd.f32 %v5243, %v5379
      %v5381 = vpop.f32.mrb[0].mxu0
      %v5382 = vadd.f32 %v5245, %v5381
      %5383 = vmatprep.mubr.f32.mxu0 %v3706
      %5384 = vmatmul.mubr.f32.gmra.mrb[0].mxu0 %v3705
      %v5385 = vpop.f32.mrb[0].mxu0
      %v5386 = vadd.f32 %v5249, %v5385
      %v5387 = vpop.f32.mrb[0].mxu0
      %v5388 = vadd.f32 %v5251, %v5387
      %5389 = vmatprep.mubr.f32.mxu0 %v3731
      %5390 = vmatmul.mubr.f32.gmra.mrb[0].mxu0 %v3730
      %v5391 = vpop.f32.mrb[0].mxu0
      %v5392 = vadd.f32 %v5255, %v5391
      %v5393 = vpop.f32.mrb[0].mxu0
      %v5394 = vadd.f32 %v5257, %v5393
      %5395 = vmatprep.mubr.f32.mxu0 %v3756
      %5396 = vmatmul.mubr.f32.gmra.mrb[0].mxu0 %v3755
      %v5397 = vpop.f32.mrb[0].mxu0
      %v5398 = vadd.f32 %v5261, %v5397
      %v5399 = vpop.f32.mrb[0].mxu0
      %v5400 = vadd.f32 %v5263, %v5399
      %5401 = vmatprep.mubr.f32.mxu0 %v3781
      %5402 = vmatmul.mubr.f32.gmra.mrb[0].mxu0 %v3780
      %v5403 = vpop.f32.mrb[0].mxu0
      %v5404 = vadd.f32 %v5267, %v5403
      %v5405 = vpop.f32.mrb[0].mxu0
      %v5406 = vadd.f32 %v5269, %v5405
      %5407 = vmatprep.mubr.f32.mxu0 %v3806
      %5408 = vmatmul.mubr.f32.gmra.mrb[0].mxu0 %v3805
      %v5409 = vpop.f32.mrb[0].mxu0
      %v5410 = vadd.f32 %v5273, %v5409
      %v5411 = vpop.f32.mrb[0].mxu0
      %v5412 = vadd.f32 %v5275, %v5411
      %5413 = vmatprep.mubr.f32.mxu0 %v3831
      %5414 = vmatmul.mubr.f32.gmra.mrb[0].mxu0 %v3830
      %v5415 = vpop.f32.mrb[0].mxu0
      %v5416 = vadd.f32 %v5279, %v5415
      %v5417 = vpop.f32.mrb[0].mxu0
      %v5418 = vadd.f32 %v5281, %v5417
      %5419 = vmatprep.mubr.f32.mxu0 %v3856
      %5420 = vmatmul.mubr.f32.gmra.mrb[0].mxu0 %v3855
      %v5421 = vpop.f32.mrb[0].mxu0
      %v5422 = vadd.f32 %v5285, %v5421
      %v5423 = vpop.f32.mrb[0].mxu0
      %v5424 = vadd.f32 %v5287, %v5423
      %5425 = vmatprep.mubr.f32.mxu0 %v3881
      %5426 = vmatmul.mubr.f32.gmra.mrb[0].mxu0 %v3880
      %v5427 = vpop.f32.mrb[0].mxu0
      %v5428 = vadd.f32 %v5291, %v5427
      %v5429 = vpop.f32.mrb[0].mxu0
      %v5430 = vadd.f32 %v5293, %v5429
      %5431 = vmatprep.mubr.f32.mxu0 %v3906
      %5432 = vmatmul.mubr.f32.gmra.mrb[0].mxu0 %v3905
      %v5433 = vpop.f32.mrb[0].mxu0
      %v5434 = vadd.f32 %v5297, %v5433
      %v5435 = vpop.f32.mrb[0].mxu0
      %v5436 = vadd.f32 %v5299, %v5435
      %5437 = vmatprep.mubr.f32.mxu0 %v3931
      %5438 = vmatmul.mubr.f32.gmra.mrb[0].mxu0 %v3930
      %v5439 = vpop.f32.mrb[0].mxu0
      %v5440 = vadd.f32 %v5303, %v5439
      %v5441 = vpop.f32.mrb[0].mxu0
      %v5442 = vadd.f32 %v5305, %v5441
      %5443 = vdwg.mxu0
      %5444 = vmatprep.subr.mxu0 %v4268
      %5445 = vmatpush1.msra.mxu0 %v4267
      %5446 = vmatprep.subr.mxu0 %v4270
      %5447 = vmatpush1.msra.mxu0 %v4269
      %5448 = vmatprep.subr.mxu0 %v4272
      %5449 = vmatpush1.msra.mxu0 %v4271
      %5450 = vmatprep.subr.mxu0 %v4274
      %5451 = vmatpush1.msra.mxu0 %v4273
      %5452 = vmatprep.subr.mxu0 %v4276
      %5453 = vmatpush1.msra.mxu0 %v4275
      %5454 = vmatprep.subr.mxu0 %v4278
      %5455 = vmatpush1.msra.mxu0 %v4277
      %5456 = vmatprep.subr.mxu0 %v4280
      %5457 = vmatpush1.msra.mxu0 %v4279
      %5458 = vmatprep.subr.mxu0 %v4282
      %5459 = vmatpush1.msra.mxu0 %v4281
      %5460 = vmatprep.subr.mxu0 %v4284
      %5461 = vmatpush1.msra.mxu0 %v4283
      %5462 = vmatprep.subr.mxu0 %v4286
      %5463 = vmatpush1.msra.mxu0 %v4285
      %5464 = vmatprep.subr.mxu0 %v4288
      %5465 = vmatpush1.msra.mxu0 %v4287
      %5466 = vmatprep.subr.mxu0 %v4290
      %5467 = vmatpush1.msra.mxu0 %v4289
      %5468 = vmatprep.subr.mxu0 %v4292
      %5469 = vmatpush1.msra.mxu0 %v4291
      %5470 = vmatprep.subr.mxu0 %v4294
      %5471 = vmatpush1.msra.mxu0 %v4293
      %5472 = vmatprep.subr.mxu0 %v4296
      %5473 = vmatpush1.msra.mxu0 %v4295
      %5474 = vmatprep.subr.mxu0 %v4298
      %5475 = vmatpush1.msra.mxu0 %v4297
      %5476 = vmatprep.subr.mxu0 %v4300
      %5477 = vmatpush1.msra.mxu0 %v4299
      %5478 = vmatprep.subr.mxu0 %v4302
      %5479 = vmatpush1.msra.mxu0 %v4301
      %5480 = vmatprep.subr.mxu0 %v4304
      %5481 = vmatpush1.msra.mxu0 %v4303
      %5482 = vmatprep.subr.mxu0 %v4306
      %5483 = vmatpush1.msra.mxu0 %v4305
      %5484 = vmatprep.subr.mxu0 %v4308
      %5485 = vmatpush1.msra.mxu0 %v4307
      %5486 = vmatprep.subr.mxu0 %v4310
      %5487 = vmatpush1.msra.mxu0 %v4309
      %5488 = vmatprep.subr.mxu0 %v4312
      %5489 = vmatpush1.msra.mxu0 %v4311
      %5490 = vmatprep.subr.mxu0 %v4314
      %5491 = vmatpush1.msra.mxu0 %v4313
      %5492 = vmatprep.subr.mxu0 %v4316
      %5493 = vmatpush1.msra.mxu0 %v4315
      %5494 = vmatprep.subr.mxu0 %v4318
      %5495 = vmatpush1.msra.mxu0 %v4317
      %5496 = vmatprep.subr.mxu0 %v4320
      %5497 = vmatpush1.msra.mxu0 %v4319
      %5498 = vmatprep.subr.mxu0 %v4322
      %5499 = vmatpush1.msra.mxu0 %v4321
      %5500 = vmatprep.subr.mxu0 %v4324
      %5501 = vmatpush1.msra.mxu0 %v4323
      %5502 = vmatprep.subr.mxu0 %v4326
      %5503 = vmatpush1.msra.mxu0 %v4325
      %5504 = vmatprep.subr.mxu0 %v4328
      %5505 = vmatpush1.msra.mxu0 %v4327
      %5506 = vmatprep.subr.mxu0 %v4330
      %5507 = vmatpush1.msra.mxu0 %v4329
      %5508 = vmatprep.mubr.f32.mxu0 %v3658
      %5509 = vmatmul.mubr.f32.gmra.mrb[0].mxu0 %v3657
      %v5510 = vpop.f32.mrb[0].mxu0
      %v5511 = vadd.f32 %v5374, %v5510
      %v5512 = vpop.f32.mrb[0].mxu0
      %v5513 = vadd.f32 %v5376, %v5512
      %5514 = vmatprep.mubr.f32.mxu0 %v3683
      %5515 = vmatmul.mubr.f32.gmra.mrb[0].mxu0 %v3682
      %v5516 = vpop.f32.mrb[0].mxu0
      %v5517 = vadd.f32 %v5380, %v5516
      %v5518 = vpop.f32.mrb[0].mxu0
      %v5519 = vadd.f32 %v5382, %v5518
      %5520 = vmatprep.mubr.f32.mxu0 %v3708
      %5521 = vmatmul.mubr.f32.gmra.mrb[0].mxu0 %v3707
      %v5522 = vpop.f32.mrb[0].mxu0
      %v5523 = vadd.f32 %v5386, %v5522
      %v5524 = vpop.f32.mrb[0].mxu0
      %v5525 = vadd.f32 %v5388, %v5524
      %5526 = vmatprep.mubr.f32.mxu0 %v3733
      %5527 = vmatmul.mubr.f32.gmra.mrb[0].mxu0 %v3732
      %v5528 = vpop.f32.mrb[0].mxu0
      %v5529 = vadd.f32 %v5392, %v5528
      %v5530 = vpop.f32.mrb[0].mxu0
      %v5531 = vadd.f32 %v5394, %v5530
      %5532 = vmatprep.mubr.f32.mxu0 %v3758
      %5533 = vmatmul.mubr.f32.gmra.mrb[0].mxu0 %v3757
      %v5534 = vpop.f32.mrb[0].mxu0
      %v5535 = vadd.f32 %v5398, %v5534
      %v5536 = vpop.f32.mrb[0].mxu0
      %v5537 = vadd.f32 %v5400, %v5536
      %5538 = vmatprep.mubr.f32.mxu0 %v3783
      %5539 = vmatmul.mubr.f32.gmra.mrb[0].mxu0 %v3782
      %v5540 = vpop.f32.mrb[0].mxu0
      %v5541 = vadd.f32 %v5404, %v5540
      %v5542 = vpop.f32.mrb[0].mxu0
      %v5543 = vadd.f32 %v5406, %v5542
      %5544 = vmatprep.mubr.f32.mxu0 %v3808
      %5545 = vmatmul.mubr.f32.gmra.mrb[0].mxu0 %v3807
      %v5546 = vpop.f32.mrb[0].mxu0
      %v5547 = vadd.f32 %v5410, %v5546
      %v5548 = vpop.f32.mrb[0].mxu0
      %v5549 = vadd.f32 %v5412, %v5548
      %5550 = vmatprep.mubr.f32.mxu0 %v3833
      %5551 = vmatmul.mubr.f32.gmra.mrb[0].mxu0 %v3832
      %v5552 = vpop.f32.mrb[0].mxu0
      %v5553 = vadd.f32 %v5416, %v5552
      %v5554 = vpop.f32.mrb[0].mxu0
      %v5555 = vadd.f32 %v5418, %v5554
      %5556 = vmatprep.mubr.f32.mxu0 %v3858
      %5557 = vmatmul.mubr.f32.gmra.mrb[0].mxu0 %v3857
      %v5558 = vpop.f32.mrb[0].mxu0
      %v5559 = vadd.f32 %v5422, %v5558
      %v5560 = vpop.f32.mrb[0].mxu0
      %v5561 = vadd.f32 %v5424, %v5560
      %5562 = vmatprep.mubr.f32.mxu0 %v3883
      %5563 = vmatmul.mubr.f32.gmra.mrb[0].mxu0 %v3882
      %v5564 = vpop.f32.mrb[0].mxu0
      %v5565 = vadd.f32 %v5428, %v5564
      %v5566 = vpop.f32.mrb[0].mxu0
      %v5567 = vadd.f32 %v5430, %v5566
      %5568 = vmatprep.mubr.f32.mxu0 %v3908
      %5569 = vmatmul.mubr.f32.gmra.mrb[0].mxu0 %v3907
      %v5570 = vpop.f32.mrb[0].mxu0
      %v5571 = vadd.f32 %v5434, %v5570
      %v5572 = vpop.f32.mrb[0].mxu0
      %v5573 = vadd.f32 %v5436, %v5572
      %5574 = vmatprep.mubr.f32.mxu0 %v3933
      %5575 = vmatmul.mubr.f32.gmra.mrb[0].mxu0 %v3932
      %v5576 = vpop.f32.mrb[0].mxu0
      %v5577 = vadd.f32 %v5440, %v5576
      %v5578 = vpop.f32.mrb[0].mxu0
      %v5579 = vadd.f32 %v5442, %v5578
      %5580 = vdwg.mxu0
      %5581 = vmatprep.subr.mxu0 %v4332
      %5582 = vmatpush1.msra.mxu0 %v4331
      %5583 = vmatprep.subr.mxu0 %v4334
      %5584 = vmatpush1.msra.mxu0 %v4333
      %5585 = vmatprep.subr.mxu0 %v4336
      %5586 = vmatpush1.msra.mxu0 %v4335
      %5587 = vmatprep.subr.mxu0 %v4338
      %5588 = vmatpush1.msra.mxu0 %v4337
      %5589 = vmatprep.subr.mxu0 %v4340
      %5590 = vmatpush1.msra.mxu0 %v4339
      %5591 = vmatprep.subr.mxu0 %v4342
      %5592 = vmatpush1.msra.mxu0 %v4341
      %5593 = vmatprep.subr.mxu0 %v4344
      %5594 = vmatpush1.msra.mxu0 %v4343
      %5595 = vmatprep.subr.mxu0 %v4346
      %5596 = vmatpush1.msra.mxu0 %v4345
      %5597 = vmatprep.subr.mxu0 %v4348
      %5598 = vmatpush1.msra.mxu0 %v4347
      %5599 = vmatprep.subr.mxu0 %v4350
      %5600 = vmatpush1.msra.mxu0 %v4349
      %5601 = vmatprep.subr.mxu0 %v4352
      %5602 = vmatpush1.msra.mxu0 %v4351
      %5603 = vmatprep.subr.mxu0 %v4354
      %5604 = vmatpush1.msra.mxu0 %v4353
      %5605 = vmatprep.subr.mxu0 %v4356
      %5606 = vmatpush1.msra.mxu0 %v4355
      %5607 = vmatprep.subr.mxu0 %v4358
      %5608 = vmatpush1.msra.mxu0 %v4357
      %5609 = vmatprep.subr.mxu0 %v4360
      %5610 = vmatpush1.msra.mxu0 %v4359
      %5611 = vmatprep.subr.mxu0 %v4362
      %5612 = vmatpush1.msra.mxu0 %v4361
      %5613 = vmatprep.subr.mxu0 %v4364
      %5614 = vmatpush1.msra.mxu0 %v4363
      %5615 = vmatprep.subr.mxu0 %v4366
      %5616 = vmatpush1.msra.mxu0 %v4365
      %5617 = vmatprep.subr.mxu0 %v4368
      %5618 = vmatpush1.msra.mxu0 %v4367
      %5619 = vmatprep.subr.mxu0 %v4370
      %5620 = vmatpush1.msra.mxu0 %v4369
      %5621 = vmatprep.subr.mxu0 %v4372
      %5622 = vmatpush1.msra.mxu0 %v4371
      %5623 = vmatprep.subr.mxu0 %v4374
      %5624 = vmatpush1.msra.mxu0 %v4373
      %5625 = vmatprep.subr.mxu0 %v4376
      %5626 = vmatpush1.msra.mxu0 %v4375
      %5627 = vmatprep.subr.mxu0 %v4378
      %5628 = vmatpush1.msra.mxu0 %v4377
      %5629 = vmatprep.subr.mxu0 %v4380
      %5630 = vmatpush1.msra.mxu0 %v4379
      %5631 = vmatprep.subr.mxu0 %v4382
      %5632 = vmatpush1.msra.mxu0 %v4381
      %5633 = vmatprep.subr.mxu0 %v4384
      %5634 = vmatpush1.msra.mxu0 %v4383
      %5635 = vmatprep.subr.mxu0 %v4386
      %5636 = vmatpush1.msra.mxu0 %v4385
      %5637 = vmatprep.subr.mxu0 %v4388
      %5638 = vmatpush1.msra.mxu0 %v4387
      %5639 = vmatprep.subr.mxu0 %v4390
      %5640 = vmatpush1.msra.mxu0 %v4389
      %5641 = vmatprep.subr.mxu0 %v4392
      %5642 = vmatpush1.msra.mxu0 %v4391
      %5643 = vmatprep.subr.mxu0 %v4394
      %5644 = vmatpush1.msra.mxu0 %v4393
      %5645 = vmatprep.mubr.f32.mxu0 %v3660
      %5646 = vmatmul.mubr.f32.gmra.mrb[0].mxu0 %v3659
      %v5647 = vpop.f32.mrb[0].mxu0
      %v5648 = vadd.f32 %v5511, %v5647
      %v5649 = vpop.f32.mrb[0].mxu0
      %v5650 = vadd.f32 %v5513, %v5649
      %5651 = vmatprep.mubr.f32.mxu0 %v3685
      %5652 = vmatmul.mubr.f32.gmra.mrb[0].mxu0 %v3684
      %v5653 = vpop.f32.mrb[0].mxu0
      %v5654 = vadd.f32 %v5517, %v5653
      %v5655 = vpop.f32.mrb[0].mxu0
      %v5656 = vadd.f32 %v5519, %v5655
      %5657 = vmatprep.mubr.f32.mxu0 %v3710
      %5658 = vmatmul.mubr.f32.gmra.mrb[0].mxu0 %v3709
      %v5659 = vpop.f32.mrb[0].mxu0
      %v5660 = vadd.f32 %v5523, %v5659
      %v5661 = vpop.f32.mrb[0].mxu0
      %v5662 = vadd.f32 %v5525, %v5661
      %5663 = vmatprep.mubr.f32.mxu0 %v3735
      %5664 = vmatmul.mubr.f32.gmra.mrb[0].mxu0 %v3734
      %v5665 = vpop.f32.mrb[0].mxu0
      %v5666 = vadd.f32 %v5529, %v5665
      %v5667 = vpop.f32.mrb[0].mxu0
      %v5668 = vadd.f32 %v5531, %v5667
      %5669 = vmatprep.mubr.f32.mxu0 %v3760
      %5670 = vmatmul.mubr.f32.gmra.mrb[0].mxu0 %v3759
      %v5671 = vpop.f32.mrb[0].mxu0
      %v5672 = vadd.f32 %v5535, %v5671
      %v5673 = vpop.f32.mrb[0].mxu0
      %v5674 = vadd.f32 %v5537, %v5673
      %5675 = vmatprep.mubr.f32.mxu0 %v3785
      %5676 = vmatmul.mubr.f32.gmra.mrb[0].mxu0 %v3784
      %v5677 = vpop.f32.mrb[0].mxu0
      %v5678 = vadd.f32 %v5541, %v5677
      %v5679 = vpop.f32.mrb[0].mxu0
      %v5680 = vadd.f32 %v5543, %v5679
      %5681 = vmatprep.mubr.f32.mxu0 %v3810
      %5682 = vmatmul.mubr.f32.gmra.mrb[0].mxu0 %v3809
      %v5683 = vpop.f32.mrb[0].mxu0
      %v5684 = vadd.f32 %v5547, %v5683
      %v5685 = vpop.f32.mrb[0].mxu0
      %v5686 = vadd.f32 %v5549, %v5685
      %5687 = vmatprep.mubr.f32.mxu0 %v3835
      %5688 = vmatmul.mubr.f32.gmra.mrb[0].mxu0 %v3834
      %v5689 = vpop.f32.mrb[0].mxu0
      %v5690 = vadd.f32 %v5553, %v5689
      %v5691 = vpop.f32.mrb[0].mxu0
      %v5692 = vadd.f32 %v5555, %v5691
      %5693 = vmatprep.mubr.f32.mxu0 %v3860
      %5694 = vmatmul.mubr.f32.gmra.mrb[0].mxu0 %v3859
      %v5695 = vpop.f32.mrb[0].mxu0
      %v5696 = vadd.f32 %v5559, %v5695
      %v5697 = vpop.f32.mrb[0].mxu0
      %v5698 = vadd.f32 %v5561, %v5697
      %5699 = vmatprep.mubr.f32.mxu0 %v3885
      %5700 = vmatmul.mubr.f32.gmra.mrb[0].mxu0 %v3884
      %v5701 = vpop.f32.mrb[0].mxu0
      %v5702 = vadd.f32 %v5565, %v5701
      %v5703 = vpop.f32.mrb[0].mxu0
      %v5704 = vadd.f32 %v5567, %v5703
      %5705 = vmatprep.mubr.f32.mxu0 %v3910
      %5706 = vmatmul.mubr.f32.gmra.mrb[0].mxu0 %v3909
      %v5707 = vpop.f32.mrb[0].mxu0
      %v5708 = vadd.f32 %v5571, %v5707
      %v5709 = vpop.f32.mrb[0].mxu0
      %v5710 = vadd.f32 %v5573, %v5709
      %5711 = vmatprep.mubr.f32.mxu0 %v3935
      %5712 = vmatmul.mubr.f32.gmra.mrb[0].mxu0 %v3934
      %v5713 = vpop.f32.mrb[0].mxu0
      %v5714 = vadd.f32 %v5577, %v5713
      %v5715 = vpop.f32.mrb[0].mxu0
      %v5716 = vadd.f32 %v5579, %v5715
      %5717 = vdwg.mxu0
      %5718 = vmatprep.subr.mxu0 %v4396
      %5719 = vmatpush1.msra.mxu0 %v4395
      %5720 = vmatprep.subr.mxu0 %v4398
      %5721 = vmatpush1.msra.mxu0 %v4397
      %5722 = vmatprep.subr.mxu0 %v4400
      %5723 = vmatpush1.msra.mxu0 %v4399
      %5724 = vmatprep.subr.mxu0 %v4402
      %5725 = vmatpush1.msra.mxu0 %v4401
      %5726 = vmatprep.subr.mxu0 %v4404
      %5727 = vmatpush1.msra.mxu0 %v4403
      %5728 = vmatprep.subr.mxu0 %v4406
      %5729 = vmatpush1.msra.mxu0 %v4405
      %5730 = vmatprep.subr.mxu0 %v4408
      %5731 = vmatpush1.msra.mxu0 %v4407
      %5732 = vmatprep.subr.mxu0 %v4410
      %5733 = vmatpush1.msra.mxu0 %v4409
      %5734 = vmatprep.subr.mxu0 %v4412
      %5735 = vmatpush1.msra.mxu0 %v4411
      %5736 = vmatprep.subr.mxu0 %v4414
      %5737 = vmatpush1.msra.mxu0 %v4413
      %5738 = vmatprep.subr.mxu0 %v4416
      %5739 = vmatpush1.msra.mxu0 %v4415
      %5740 = vmatprep.subr.mxu0 %v4418
      %5741 = vmatpush1.msra.mxu0 %v4417
      %5742 = vmatprep.subr.mxu0 %v4420
      %5743 = vmatpush1.msra.mxu0 %v4419
      %5744 = vmatprep.subr.mxu0 %v4422
      %5745 = vmatpush1.msra.mxu0 %v4421
      %5746 = vmatprep.subr.mxu0 %v4424
      %5747 = vmatpush1.msra.mxu0 %v4423
      %5748 = vmatprep.subr.mxu0 %v4426
      %5749 = vmatpush1.msra.mxu0 %v4425
      %5750 = vmatprep.subr.mxu0 %v4428
      %5751 = vmatpush1.msra.mxu0 %v4427
      %5752 = vmatprep.subr.mxu0 %v4430
      %5753 = vmatpush1.msra.mxu0 %v4429
      %5754 = vmatprep.subr.mxu0 %v4432
      %5755 = vmatpush1.msra.mxu0 %v4431
      %5756 = vmatprep.subr.mxu0 %v4434
      %5757 = vmatpush1.msra.mxu0 %v4433
      %5758 = vmatprep.subr.mxu0 %v4436
      %5759 = vmatpush1.msra.mxu0 %v4435
      %5760 = vmatprep.subr.mxu0 %v4438
      %5761 = vmatpush1.msra.mxu0 %v4437
      %5762 = vmatprep.subr.mxu0 %v4440
      %5763 = vmatpush1.msra.mxu0 %v4439
      %5764 = vmatprep.subr.mxu0 %v4442
      %5765 = vmatpush1.msra.mxu0 %v4441
      %5766 = vmatprep.subr.mxu0 %v4444
      %5767 = vmatpush1.msra.mxu0 %v4443
      %5768 = vmatprep.subr.mxu0 %v4446
      %5769 = vmatpush1.msra.mxu0 %v4445
      %5770 = vmatprep.subr.mxu0 %v4448
      %5771 = vmatpush1.msra.mxu0 %v4447
      %5772 = vmatprep.subr.mxu0 %v4450
      %5773 = vmatpush1.msra.mxu0 %v4449
      %5774 = vmatprep.subr.mxu0 %v4452
      %5775 = vmatpush1.msra.mxu0 %v4451
      %5776 = vmatprep.subr.mxu0 %v4454
      %5777 = vmatpush1.msra.mxu0 %v4453
      %5778 = vmatprep.subr.mxu0 %v4456
      %5779 = vmatpush1.msra.mxu0 %v4455
      %5780 = vmatprep.subr.mxu0 %v4458
      %5781 = vmatpush1.msra.mxu0 %v4457
      %5782 = vmatprep.mubr.f32.mxu0 %v3662
      %5783 = vmatmul.mubr.f32.gmra.mrb[0].mxu0 %v3661
      %v5784 = vpop.f32.mrb[0].mxu0
      %v5785 = vadd.f32 %v5648, %v5784
      %v5786 = vpop.f32.mrb[0].mxu0
      %v5787 = vadd.f32 %v5650, %v5786
      %5788 = vmatprep.mubr.f32.mxu0 %v3687
      %5789 = vmatmul.mubr.f32.gmra.mrb[0].mxu0 %v3686
      %v5790 = vpop.f32.mrb[0].mxu0
      %v5791 = vadd.f32 %v5654, %v5790
      %v5792 = vpop.f32.mrb[0].mxu0
      %v5793 = vadd.f32 %v5656, %v5792
      %5794 = vmatprep.mubr.f32.mxu0 %v3712
      %5795 = vmatmul.mubr.f32.gmra.mrb[0].mxu0 %v3711
      %v5796 = vpop.f32.mrb[0].mxu0
      %v5797 = vadd.f32 %v5660, %v5796
      %v5798 = vpop.f32.mrb[0].mxu0
      %v5799 = vadd.f32 %v5662, %v5798
      %5800 = vmatprep.mubr.f32.mxu0 %v3737
      %5801 = vmatmul.mubr.f32.gmra.mrb[0].mxu0 %v3736
      %v5802 = vpop.f32.mrb[0].mxu0
      %v5803 = vadd.f32 %v5666, %v5802
      %v5804 = vpop.f32.mrb[0].mxu0
      %v5805 = vadd.f32 %v5668, %v5804
      %5806 = vmatprep.mubr.f32.mxu0 %v3762
      %5807 = vmatmul.mubr.f32.gmra.mrb[0].mxu0 %v3761
      %v5808 = vpop.f32.mrb[0].mxu0
      %v5809 = vadd.f32 %v5672, %v5808
      %v5810 = vpop.f32.mrb[0].mxu0
      %v5811 = vadd.f32 %v5674, %v5810
      %5812 = vmatprep.mubr.f32.mxu0 %v3787
      %5813 = vmatmul.mubr.f32.gmra.mrb[0].mxu0 %v3786
      %v5814 = vpop.f32.mrb[0].mxu0
      %v5815 = vadd.f32 %v5678, %v5814
      %v5816 = vpop.f32.mrb[0].mxu0
      %v5817 = vadd.f32 %v5680, %v5816
      %5818 = vmatprep.mubr.f32.mxu0 %v3812
      %5819 = vmatmul.mubr.f32.gmra.mrb[0].mxu0 %v3811
      %v5820 = vpop.f32.mrb[0].mxu0
      %v5821 = vadd.f32 %v5684, %v5820
      %v5822 = vpop.f32.mrb[0].mxu0
      %v5823 = vadd.f32 %v5686, %v5822
      %5824 = vmatprep.mubr.f32.mxu0 %v3837
      %5825 = vmatmul.mubr.f32.gmra.mrb[0].mxu0 %v3836
      %v5826 = vpop.f32.mrb[0].mxu0
      %v5827 = vadd.f32 %v5690, %v5826
      %v5828 = vpop.f32.mrb[0].mxu0
      %v5829 = vadd.f32 %v5692, %v5828
      %5830 = vmatprep.mubr.f32.mxu0 %v3862
      %5831 = vmatmul.mubr.f32.gmra.mrb[0].mxu0 %v3861
      %v5832 = vpop.f32.mrb[0].mxu0
      %v5833 = vadd.f32 %v5696, %v5832
      %v5834 = vpop.f32.mrb[0].mxu0
      %v5835 = vadd.f32 %v5698, %v5834
      %5836 = vmatprep.mubr.f32.mxu0 %v3887
      %5837 = vmatmul.mubr.f32.gmra.mrb[0].mxu0 %v3886
      %v5838 = vpop.f32.mrb[0].mxu0
      %v5839 = vadd.f32 %v5702, %v5838
      %v5840 = vpop.f32.mrb[0].mxu0
      %v5841 = vadd.f32 %v5704, %v5840
      %5842 = vmatprep.mubr.f32.mxu0 %v3912
      %5843 = vmatmul.mubr.f32.gmra.mrb[0].mxu0 %v3911
      %v5844 = vpop.f32.mrb[0].mxu0
      %v5845 = vadd.f32 %v5708, %v5844
      %v5846 = vpop.f32.mrb[0].mxu0
      %v5847 = vadd.f32 %v5710, %v5846
      %5848 = vmatprep.mubr.f32.mxu0 %v3937
      %5849 = vmatmul.mubr.f32.gmra.mrb[0].mxu0 %v3936
      %v5850 = vpop.f32.mrb[0].mxu0
      %v5851 = vadd.f32 %v5714, %v5850
      %v5852 = vpop.f32.mrb[0].mxu0
      %v5853 = vadd.f32 %v5716, %v5852
      %5854 = vdwg.mxu0
      %5855 = vmatprep.subr.mxu0 %v4460
      %5856 = vmatpush1.msra.mxu0 %v4459
      %5857 = vmatprep.subr.mxu0 %v4462
      %5858 = vmatpush1.msra.mxu0 %v4461
      %5859 = vmatprep.subr.mxu0 %v4464
      %5860 = vmatpush1.msra.mxu0 %v4463
      %5861 = vmatprep.subr.mxu0 %v4466
      %5862 = vmatpush1.msra.mxu0 %v4465
      %5863 = vmatprep.subr.mxu0 %v4468
      %5864 = vmatpush1.msra.mxu0 %v4467
      %5865 = vmatprep.subr.mxu0 %v4470
      %5866 = vmatpush1.msra.mxu0 %v4469
      %5867 = vmatprep.subr.mxu0 %v4472
      %5868 = vmatpush1.msra.mxu0 %v4471
      %5869 = vmatprep.subr.mxu0 %v4474
      %5870 = vmatpush1.msra.mxu0 %v4473
      %5871 = vmatprep.subr.mxu0 %v4476
      %5872 = vmatpush1.msra.mxu0 %v4475
      %5873 = vmatprep.subr.mxu0 %v4478
      %5874 = vmatpush1.msra.mxu0 %v4477
      %5875 = vmatprep.subr.mxu0 %v4480
      %5876 = vmatpush1.msra.mxu0 %v4479
      %5877 = vmatprep.subr.mxu0 %v4482
      %5878 = vmatpush1.msra.mxu0 %v4481
      %5879 = vmatprep.subr.mxu0 %v4484
      %5880 = vmatpush1.msra.mxu0 %v4483
      %5881 = vmatprep.subr.mxu0 %v4486
      %5882 = vmatpush1.msra.mxu0 %v4485
      %5883 = vmatprep.subr.mxu0 %v4488
      %5884 = vmatpush1.msra.mxu0 %v4487
      %5885 = vmatprep.subr.mxu0 %v4490
      %5886 = vmatpush1.msra.mxu0 %v4489
      %5887 = vmatprep.subr.mxu0 %v4492
      %5888 = vmatpush1.msra.mxu0 %v4491
      %5889 = vmatprep.subr.mxu0 %v4494
      %5890 = vmatpush1.msra.mxu0 %v4493
      %5891 = vmatprep.subr.mxu0 %v4496
      %5892 = vmatpush1.msra.mxu0 %v4495
      %5893 = vmatprep.subr.mxu0 %v4498
      %5894 = vmatpush1.msra.mxu0 %v4497
      %5895 = vmatprep.subr.mxu0 %v4500
      %5896 = vmatpush1.msra.mxu0 %v4499
      %5897 = vmatprep.subr.mxu0 %v4502
      %5898 = vmatpush1.msra.mxu0 %v4501
      %5899 = vmatprep.subr.mxu0 %v4504
      %5900 = vmatpush1.msra.mxu0 %v4503
      %5901 = vmatprep.subr.mxu0 %v4506
      %5902 = vmatpush1.msra.mxu0 %v4505
      %5903 = vmatprep.subr.mxu0 %v4508
      %5904 = vmatpush1.msra.mxu0 %v4507
      %5905 = vmatprep.subr.mxu0 %v4510
      %5906 = vmatpush1.msra.mxu0 %v4509
      %5907 = vmatprep.subr.mxu0 %v4512
      %5908 = vmatpush1.msra.mxu0 %v4511
      %5909 = vmatprep.subr.mxu0 %v4514
      %5910 = vmatpush1.msra.mxu0 %v4513
      %5911 = vmatprep.subr.mxu0 %v4516
      %5912 = vmatpush1.msra.mxu0 %v4515
      %5913 = vmatprep.subr.mxu0 %v4518
      %5914 = vmatpush1.msra.mxu0 %v4517
      %5915 = vmatprep.subr.mxu0 %v4520
      %5916 = vmatpush1.msra.mxu0 %v4519
      %5917 = vmatprep.subr.mxu0 %v4522
      %5918 = vmatpush1.msra.mxu0 %v4521
      %5919 = vmatprep.mubr.f32.mxu0 %v3664
      %5920 = vmatmul.mubr.f32.gmra.mrb[0].mxu0 %v3663
      %v5921 = vpop.f32.mrb[0].mxu0
      %v5922 = vadd.f32 %v5785, %v5921
      %v5923 = vpop.f32.mrb[0].mxu0
      %v5924 = vadd.f32 %v5787, %v5923
      %5925 = vmatprep.mubr.f32.mxu0 %v3689
      %5926 = vmatmul.mubr.f32.gmra.mrb[0].mxu0 %v3688
      %v5927 = vpop.f32.mrb[0].mxu0
      %v5928 = vadd.f32 %v5791, %v5927
      %v5929 = vpop.f32.mrb[0].mxu0
      %v5930 = vadd.f32 %v5793, %v5929
      %5931 = vmatprep.mubr.f32.mxu0 %v3714
      %5932 = vmatmul.mubr.f32.gmra.mrb[0].mxu0 %v3713
      %v5933 = vpop.f32.mrb[0].mxu0
      %v5934 = vadd.f32 %v5797, %v5933
      %v5935 = vpop.f32.mrb[0].mxu0
      %v5936 = vadd.f32 %v5799, %v5935
      %5937 = vmatprep.mubr.f32.mxu0 %v3739
      %5938 = vmatmul.mubr.f32.gmra.mrb[0].mxu0 %v3738
      %v5939 = vpop.f32.mrb[0].mxu0
      %v5940 = vadd.f32 %v5803, %v5939
      %v5941 = vpop.f32.mrb[0].mxu0
      %v5942 = vadd.f32 %v5805, %v5941
      %5943 = vmatprep.mubr.f32.mxu0 %v3764
      %5944 = vmatmul.mubr.f32.gmra.mrb[0].mxu0 %v3763
      %v5945 = vpop.f32.mrb[0].mxu0
      %v5946 = vadd.f32 %v5809, %v5945
      %v5947 = vpop.f32.mrb[0].mxu0
      %v5948 = vadd.f32 %v5811, %v5947
      %5949 = vmatprep.mubr.f32.mxu0 %v3789
      %5950 = vmatmul.mubr.f32.gmra.mrb[0].mxu0 %v3788
      %v5951 = vpop.f32.mrb[0].mxu0
      %v5952 = vadd.f32 %v5815, %v5951
      %v5953 = vpop.f32.mrb[0].mxu0
      %v5954 = vadd.f32 %v5817, %v5953
      %5955 = vmatprep.mubr.f32.mxu0 %v3814
      %5956 = vmatmul.mubr.f32.gmra.mrb[0].mxu0 %v3813
      %v5957 = vpop.f32.mrb[0].mxu0
      %v5958 = vadd.f32 %v5821, %v5957
      %v5959 = vpop.f32.mrb[0].mxu0
      %v5960 = vadd.f32 %v5823, %v5959
      %5961 = vmatprep.mubr.f32.mxu0 %v3839
      %5962 = vmatmul.mubr.f32.gmra.mrb[0].mxu0 %v3838
      %v5963 = vpop.f32.mrb[0].mxu0
      %v5964 = vadd.f32 %v5827, %v5963
      %v5965 = vpop.f32.mrb[0].mxu0
      %v5966 = vadd.f32 %v5829, %v5965
      %5967 = vmatprep.mubr.f32.mxu0 %v3864
      %5968 = vmatmul.mubr.f32.gmra.mrb[0].mxu0 %v3863
      %v5969 = vpop.f32.mrb[0].mxu0
      %v5970 = vadd.f32 %v5833, %v5969
      %v5971 = vpop.f32.mrb[0].mxu0
      %v5972 = vadd.f32 %v5835, %v5971
      %5973 = vmatprep.mubr.f32.mxu0 %v3889
      %5974 = vmatmul.mubr.f32.gmra.mrb[0].mxu0 %v3888
      %v5975 = vpop.f32.mrb[0].mxu0
      %v5976 = vadd.f32 %v5839, %v5975
      %v5977 = vpop.f32.mrb[0].mxu0
      %v5978 = vadd.f32 %v5841, %v5977
      %5979 = vmatprep.mubr.f32.mxu0 %v3914
      %5980 = vmatmul.mubr.f32.gmra.mrb[0].mxu0 %v3913
      %v5981 = vpop.f32.mrb[0].mxu0
      %v5982 = vadd.f32 %v5845, %v5981
      %v5983 = vpop.f32.mrb[0].mxu0
      %v5984 = vadd.f32 %v5847, %v5983
      %5985 = vmatprep.mubr.f32.mxu0 %v3939
      %5986 = vmatmul.mubr.f32.gmra.mrb[0].mxu0 %v3938
      %v5987 = vpop.f32.mrb[0].mxu0
      %v5988 = vadd.f32 %v5851, %v5987
      %v5989 = vpop.f32.mrb[0].mxu0
      %v5990 = vadd.f32 %v5853, %v5989
      %5991 = vdwg.mxu0
      %5992 = vmatprep.subr.mxu0 %v4524
      %5993 = vmatpush1.msra.mxu0 %v4523
      %5994 = vmatprep.subr.mxu0 %v4526
      %5995 = vmatpush1.msra.mxu0 %v4525
      %5996 = vmatprep.subr.mxu0 %v4528
      %5997 = vmatpush1.msra.mxu0 %v4527
      %5998 = vmatprep.subr.mxu0 %v4530
      %5999 = vmatpush1.msra.mxu0 %v4529
      %6000 = vmatprep.subr.mxu0 %v4532
      %6001 = vmatpush1.msra.mxu0 %v4531
      %6002 = vmatprep.subr.mxu0 %v4534
      %6003 = vmatpush1.msra.mxu0 %v4533
      %6004 = vmatprep.subr.mxu0 %v4536
      %6005 = vmatpush1.msra.mxu0 %v4535
      %6006 = vmatprep.subr.mxu0 %v4538
      %6007 = vmatpush1.msra.mxu0 %v4537
      %6008 = vmatprep.subr.mxu0 %v4540
      %6009 = vmatpush1.msra.mxu0 %v4539
      %6010 = vmatprep.subr.mxu0 %v4542
      %6011 = vmatpush1.msra.mxu0 %v4541
      %6012 = vmatprep.subr.mxu0 %v4544
      %6013 = vmatpush1.msra.mxu0 %v4543
      %6014 = vmatprep.subr.mxu0 %v4546
      %6015 = vmatpush1.msra.mxu0 %v4545
      %6016 = vmatprep.subr.mxu0 %v4548
      %6017 = vmatpush1.msra.mxu0 %v4547
      %6018 = vmatprep.subr.mxu0 %v4550
      %6019 = vmatpush1.msra.mxu0 %v4549
      %6020 = vmatprep.subr.mxu0 %v4552
      %6021 = vmatpush1.msra.mxu0 %v4551
      %6022 = vmatprep.subr.mxu0 %v4554
      %6023 = vmatpush1.msra.mxu0 %v4553
      %6024 = vmatprep.subr.mxu0 %v4556
      %6025 = vmatpush1.msra.mxu0 %v4555
      %6026 = vmatprep.subr.mxu0 %v4558
      %6027 = vmatpush1.msra.mxu0 %v4557
      %6028 = vmatprep.subr.mxu0 %v4560
      %6029 = vmatpush1.msra.mxu0 %v4559
      %6030 = vmatprep.subr.mxu0 %v4562
      %6031 = vmatpush1.msra.mxu0 %v4561
      %6032 = vmatprep.subr.mxu0 %v4564
      %6033 = vmatpush1.msra.mxu0 %v4563
      %6034 = vmatprep.subr.mxu0 %v4566
      %6035 = vmatpush1.msra.mxu0 %v4565
      %6036 = vmatprep.subr.mxu0 %v4568
      %6037 = vmatpush1.msra.mxu0 %v4567
      %6038 = vmatprep.subr.mxu0 %v4570
      %6039 = vmatpush1.msra.mxu0 %v4569
      %6040 = vmatprep.subr.mxu0 %v4572
      %6041 = vmatpush1.msra.mxu0 %v4571
      %6042 = vmatprep.subr.mxu0 %v4574
      %6043 = vmatpush1.msra.mxu0 %v4573
      %6044 = vmatprep.subr.mxu0 %v4576
      %6045 = vmatpush1.msra.mxu0 %v4575
      %6046 = vmatprep.subr.mxu0 %v4578
      %6047 = vmatpush1.msra.mxu0 %v4577
      %6048 = vmatprep.subr.mxu0 %v4580
      %6049 = vmatpush1.msra.mxu0 %v4579
      %6050 = vmatprep.subr.mxu0 %v4582
      %6051 = vmatpush1.msra.mxu0 %v4581
      %6052 = vmatprep.subr.mxu0 %v4584
      %6053 = vmatpush1.msra.mxu0 %v4583
      %6054 = vmatprep.subr.mxu0 %v4586
      %6055 = vmatpush1.msra.mxu0 %v4585
      %6056 = vmatprep.mubr.f32.mxu0 %v3666
      %6057 = vmatmul.mubr.f32.gmra.mrb[0].mxu0 %v3665
      %v6058 = vpop.f32.mrb[0].mxu0
      %v6059 = vadd.f32 %v5922, %v6058
      %v6060 = vpop.f32.mrb[0].mxu0
      %v6061 = vadd.f32 %v5924, %v6060
      %6062 = vmatprep.mubr.f32.mxu0 %v3691
      %6063 = vmatmul.mubr.f32.gmra.mrb[0].mxu0 %v3690
      %v6064 = vpop.f32.mrb[0].mxu0
      %v6065 = vadd.f32 %v5928, %v6064
      %v6066 = vpop.f32.mrb[0].mxu0
      %v6067 = vadd.f32 %v5930, %v6066
      %6068 = vmatprep.mubr.f32.mxu0 %v3716
      %6069 = vmatmul.mubr.f32.gmra.mrb[0].mxu0 %v3715
      %v6070 = vpop.f32.mrb[0].mxu0
      %v6071 = vadd.f32 %v5934, %v6070
      %v6072 = vpop.f32.mrb[0].mxu0
      %v6073 = vadd.f32 %v5936, %v6072
      %6074 = vmatprep.mubr.f32.mxu0 %v3741
      %6075 = vmatmul.mubr.f32.gmra.mrb[0].mxu0 %v3740
      %v6076 = vpop.f32.mrb[0].mxu0
      %v6077 = vadd.f32 %v5940, %v6076
      %v6078 = vpop.f32.mrb[0].mxu0
      %v6079 = vadd.f32 %v5942, %v6078
      %6080 = vmatprep.mubr.f32.mxu0 %v3766
      %6081 = vmatmul.mubr.f32.gmra.mrb[0].mxu0 %v3765
      %v6082 = vpop.f32.mrb[0].mxu0
      %v6083 = vadd.f32 %v5946, %v6082
      %v6084 = vpop.f32.mrb[0].mxu0
      %v6085 = vadd.f32 %v5948, %v6084
      %6086 = vmatprep.mubr.f32.mxu0 %v3791
      %6087 = vmatmul.mubr.f32.gmra.mrb[0].mxu0 %v3790
      %v6088 = vpop.f32.mrb[0].mxu0
      %v6089 = vadd.f32 %v5952, %v6088
      %v6090 = vpop.f32.mrb[0].mxu0
      %v6091 = vadd.f32 %v5954, %v6090
      %6092 = vmatprep.mubr.f32.mxu0 %v3816
      %6093 = vmatmul.mubr.f32.gmra.mrb[0].mxu0 %v3815
      %v6094 = vpop.f32.mrb[0].mxu0
      %v6095 = vadd.f32 %v5958, %v6094
      %v6096 = vpop.f32.mrb[0].mxu0
      %v6097 = vadd.f32 %v5960, %v6096
      %6098 = vmatprep.mubr.f32.mxu0 %v3841
      %6099 = vmatmul.mubr.f32.gmra.mrb[0].mxu0 %v3840
      %v6100 = vpop.f32.mrb[0].mxu0
      %v6101 = vadd.f32 %v5964, %v6100
      %v6102 = vpop.f32.mrb[0].mxu0
      %v6103 = vadd.f32 %v5966, %v6102
      %6104 = vmatprep.mubr.f32.mxu0 %v3866
      %6105 = vmatmul.mubr.f32.gmra.mrb[0].mxu0 %v3865
      %v6106 = vpop.f32.mrb[0].mxu0
      %v6107 = vadd.f32 %v5970, %v6106
      %v6108 = vpop.f32.mrb[0].mxu0
      %v6109 = vadd.f32 %v5972, %v6108
      %6110 = vmatprep.mubr.f32.mxu0 %v3891
      %6111 = vmatmul.mubr.f32.gmra.mrb[0].mxu0 %v3890
      %v6112 = vpop.f32.mrb[0].mxu0
      %v6113 = vadd.f32 %v5976, %v6112
      %v6114 = vpop.f32.mrb[0].mxu0
      %v6115 = vadd.f32 %v5978, %v6114
      %6116 = vmatprep.mubr.f32.mxu0 %v3916
      %6117 = vmatmul.mubr.f32.gmra.mrb[0].mxu0 %v3915
      %v6118 = vpop.f32.mrb[0].mxu0
      %v6119 = vadd.f32 %v5982, %v6118
      %v6120 = vpop.f32.mrb[0].mxu0
      %v6121 = vadd.f32 %v5984, %v6120
      %6122 = vmatprep.mubr.f32.mxu0 %v3941
      %6123 = vmatmul.mubr.f32.gmra.mrb[0].mxu0 %v3940
      %v6124 = vpop.f32.mrb[0].mxu0
      %v6125 = vadd.f32 %v5988, %v6124
      %v6126 = vpop.f32.mrb[0].mxu0
      %v6127 = vadd.f32 %v5990, %v6126
      %6128 = vdwg.mxu0
      %6129 = vmatprep.subr.mxu0 %v4588
      %6130 = vmatpush1.msra.mxu0 %v4587
      %6131 = vmatprep.subr.mxu0 %v4590
      %6132 = vmatpush1.msra.mxu0 %v4589
      %6133 = vmatprep.subr.mxu0 %v4592
      %6134 = vmatpush1.msra.mxu0 %v4591
      %6135 = vmatprep.subr.mxu0 %v4594
      %6136 = vmatpush1.msra.mxu0 %v4593
      %6137 = vmatprep.subr.mxu0 %v4596
      %6138 = vmatpush1.msra.mxu0 %v4595
      %6139 = vmatprep.subr.mxu0 %v4598
      %6140 = vmatpush1.msra.mxu0 %v4597
      %6141 = vmatprep.subr.mxu0 %v4600
      %6142 = vmatpush1.msra.mxu0 %v4599
      %6143 = vmatprep.subr.mxu0 %v4602
      %6144 = vmatpush1.msra.mxu0 %v4601
      %6145 = vmatprep.subr.mxu0 %v4604
      %6146 = vmatpush1.msra.mxu0 %v4603
      %6147 = vmatprep.subr.mxu0 %v4606
      %6148 = vmatpush1.msra.mxu0 %v4605
      %6149 = vmatprep.subr.mxu0 %v4608
      %6150 = vmatpush1.msra.mxu0 %v4607
      %6151 = vmatprep.subr.mxu0 %v4610
      %6152 = vmatpush1.msra.mxu0 %v4609
      %6153 = vmatprep.subr.mxu0 %v4612
      %6154 = vmatpush1.msra.mxu0 %v4611
      %6155 = vmatprep.subr.mxu0 %v4614
      %6156 = vmatpush1.msra.mxu0 %v4613
      %6157 = vmatprep.subr.mxu0 %v4616
      %6158 = vmatpush1.msra.mxu0 %v4615
      %6159 = vmatprep.subr.mxu0 %v4618
      %6160 = vmatpush1.msra.mxu0 %v4617
      %6161 = vmatprep.subr.mxu0 %v4620
      %6162 = vmatpush1.msra.mxu0 %v4619
      %6163 = vmatprep.subr.mxu0 %v4622
      %6164 = vmatpush1.msra.mxu0 %v4621
      %6165 = vmatprep.subr.mxu0 %v4624
      %6166 = vmatpush1.msra.mxu0 %v4623
      %6167 = vmatprep.subr.mxu0 %v4626
      %6168 = vmatpush1.msra.mxu0 %v4625
      %6169 = vmatprep.subr.mxu0 %v4628
      %6170 = vmatpush1.msra.mxu0 %v4627
      %6171 = vmatprep.subr.mxu0 %v4630
      %6172 = vmatpush1.msra.mxu0 %v4629
      %6173 = vmatprep.subr.mxu0 %v4632
      %6174 = vmatpush1.msra.mxu0 %v4631
      %6175 = vmatprep.subr.mxu0 %v4634
      %6176 = vmatpush1.msra.mxu0 %v4633
      %6177 = vmatprep.subr.mxu0 %v4636
      %6178 = vmatpush1.msra.mxu0 %v4635
      %6179 = vmatprep.subr.mxu0 %v4638
      %6180 = vmatpush1.msra.mxu0 %v4637
      %6181 = vmatprep.subr.mxu0 %v4640
      %6182 = vmatpush1.msra.mxu0 %v4639
      %6183 = vmatprep.subr.mxu0 %v4642
      %6184 = vmatpush1.msra.mxu0 %v4641
      %6185 = vmatprep.subr.mxu0 %v4644
      %6186 = vmatpush1.msra.mxu0 %v4643
      %6187 = vmatprep.subr.mxu0 %v4646
      %6188 = vmatpush1.msra.mxu0 %v4645
      %6189 = vmatprep.subr.mxu0 %v4648
      %6190 = vmatpush1.msra.mxu0 %v4647
      %6191 = vmatprep.subr.mxu0 %v4650
      %6192 = vmatpush1.msra.mxu0 %v4649
      %6193 = vmatprep.mubr.f32.mxu0 %v3668
      %6194 = vmatmul.mubr.f32.gmra.mrb[0].mxu0 %v3667
      %v6195 = vpop.f32.mrb[0].mxu0
      %v6196 = vadd.f32 %v6059, %v6195
      %v6197 = vpop.f32.mrb[0].mxu0
      %v6198 = vadd.f32 %v6061, %v6197
      %6199 = vmatprep.mubr.f32.mxu0 %v3693
      %6200 = vmatmul.mubr.f32.gmra.mrb[0].mxu0 %v3692
      %v6201 = vpop.f32.mrb[0].mxu0
      %v6202 = vadd.f32 %v6065, %v6201
      %v6203 = vpop.f32.mrb[0].mxu0
      %v6204 = vadd.f32 %v6067, %v6203
      %6205 = vmatprep.mubr.f32.mxu0 %v3718
      %6206 = vmatmul.mubr.f32.gmra.mrb[0].mxu0 %v3717
      %v6207 = vpop.f32.mrb[0].mxu0
      %v6208 = vadd.f32 %v6071, %v6207
      %v6209 = vpop.f32.mrb[0].mxu0
      %v6210 = vadd.f32 %v6073, %v6209
      %6211 = vmatprep.mubr.f32.mxu0 %v3743
      %6212 = vmatmul.mubr.f32.gmra.mrb[0].mxu0 %v3742
      %v6213 = vpop.f32.mrb[0].mxu0
      %v6214 = vadd.f32 %v6077, %v6213
      %v6215 = vpop.f32.mrb[0].mxu0
      %v6216 = vadd.f32 %v6079, %v6215
      %6217 = vmatprep.mubr.f32.mxu0 %v3768
      %6218 = vmatmul.mubr.f32.gmra.mrb[0].mxu0 %v3767
      %v6219 = vpop.f32.mrb[0].mxu0
      %v6220 = vadd.f32 %v6083, %v6219
      %v6221 = vpop.f32.mrb[0].mxu0
      %v6222 = vadd.f32 %v6085, %v6221
      %6223 = vmatprep.mubr.f32.mxu0 %v3793
      %6224 = vmatmul.mubr.f32.gmra.mrb[0].mxu0 %v3792
      %v6225 = vpop.f32.mrb[0].mxu0
      %v6226 = vadd.f32 %v6089, %v6225
      %v6227 = vpop.f32.mrb[0].mxu0
      %v6228 = vadd.f32 %v6091, %v6227
      %6229 = vmatprep.mubr.f32.mxu0 %v3818
      %6230 = vmatmul.mubr.f32.gmra.mrb[0].mxu0 %v3817
      %v6231 = vpop.f32.mrb[0].mxu0
      %v6232 = vadd.f32 %v6095, %v6231
      %v6233 = vpop.f32.mrb[0].mxu0
      %v6234 = vadd.f32 %v6097, %v6233
      %6235 = vmatprep.mubr.f32.mxu0 %v3843
      %6236 = vmatmul.mubr.f32.gmra.mrb[0].mxu0 %v3842
      %v6237 = vpop.f32.mrb[0].mxu0
      %v6238 = vadd.f32 %v6101, %v6237
      %v6239 = vpop.f32.mrb[0].mxu0
      %v6240 = vadd.f32 %v6103, %v6239
      %6241 = vmatprep.mubr.f32.mxu0 %v3868
      %6242 = vmatmul.mubr.f32.gmra.mrb[0].mxu0 %v3867
      %v6243 = vpop.f32.mrb[0].mxu0
      %v6244 = vadd.f32 %v6107, %v6243
      %v6245 = vpop.f32.mrb[0].mxu0
      %v6246 = vadd.f32 %v6109, %v6245
      %6247 = vmatprep.mubr.f32.mxu0 %v3893
      %6248 = vmatmul.mubr.f32.gmra.mrb[0].mxu0 %v3892
      %v6249 = vpop.f32.mrb[0].mxu0
      %v6250 = vadd.f32 %v6113, %v6249
      %v6251 = vpop.f32.mrb[0].mxu0
      %v6252 = vadd.f32 %v6115, %v6251
      %6253 = vmatprep.mubr.f32.mxu0 %v3918
      %6254 = vmatmul.mubr.f32.gmra.mrb[0].mxu0 %v3917
      %v6255 = vpop.f32.mrb[0].mxu0
      %v6256 = vadd.f32 %v6119, %v6255
      %v6257 = vpop.f32.mrb[0].mxu0
      %v6258 = vadd.f32 %v6121, %v6257
      %6259 = vmatprep.mubr.f32.mxu0 %v3943
      %6260 = vmatmul.mubr.f32.gmra.mrb[0].mxu0 %v3942
      %v6261 = vpop.f32.mrb[0].mxu0
      %v6262 = vadd.f32 %v6125, %v6261
      %v6263 = vpop.f32.mrb[0].mxu0
      %v6264 = vadd.f32 %v6127, %v6263
      %6265 = vdwg.mxu0
      %6266 = vmatprep.subr.mxu0 %v4652
      %6267 = vmatpush1.msra.mxu0 %v4651
      %6268 = vmatprep.subr.mxu0 %v4654
      %6269 = vmatpush1.msra.mxu0 %v4653
      %6270 = vmatprep.subr.mxu0 %v4656
      %6271 = vmatpush1.msra.mxu0 %v4655
      %6272 = vmatprep.subr.mxu0 %v4658
      %6273 = vmatpush1.msra.mxu0 %v4657
      %6274 = vmatprep.subr.mxu0 %v4660
      %6275 = vmatpush1.msra.mxu0 %v4659
      %6276 = vmatprep.subr.mxu0 %v4662
      %6277 = vmatpush1.msra.mxu0 %v4661
      %6278 = vmatprep.subr.mxu0 %v4664
      %6279 = vmatpush1.msra.mxu0 %v4663
      %6280 = vmatprep.subr.mxu0 %v4666
      %6281 = vmatpush1.msra.mxu0 %v4665
      %6282 = vmatprep.subr.mxu0 %v4668
      %6283 = vmatpush1.msra.mxu0 %v4667
      %6284 = vmatprep.subr.mxu0 %v4670
      %6285 = vmatpush1.msra.mxu0 %v4669
      %6286 = vmatprep.subr.mxu0 %v4672
      %6287 = vmatpush1.msra.mxu0 %v4671
      %6288 = vmatprep.subr.mxu0 %v4674
      %6289 = vmatpush1.msra.mxu0 %v4673
      %6290 = vmatprep.subr.mxu0 %v4676
      %6291 = vmatpush1.msra.mxu0 %v4675
      %6292 = vmatprep.subr.mxu0 %v4678
      %6293 = vmatpush1.msra.mxu0 %v4677
      %6294 = vmatprep.subr.mxu0 %v4680
      %6295 = vmatpush1.msra.mxu0 %v4679
      %6296 = vmatprep.subr.mxu0 %v4682
      %6297 = vmatpush1.msra.mxu0 %v4681
      %6298 = vmatprep.subr.mxu0 %v4684
      %6299 = vmatpush1.msra.mxu0 %v4683
      %6300 = vmatprep.subr.mxu0 %v4686
      %6301 = vmatpush1.msra.mxu0 %v4685
      %6302 = vmatprep.subr.mxu0 %v4688
      %6303 = vmatpush1.msra.mxu0 %v4687
      %6304 = vmatprep.subr.mxu0 %v4690
      %6305 = vmatpush1.msra.mxu0 %v4689
      %6306 = vmatprep.subr.mxu0 %v4692
      %6307 = vmatpush1.msra.mxu0 %v4691
      %6308 = vmatprep.subr.mxu0 %v4694
      %6309 = vmatpush1.msra.mxu0 %v4693
      %6310 = vmatprep.subr.mxu0 %v4696
      %6311 = vmatpush1.msra.mxu0 %v4695
      %6312 = vmatprep.subr.mxu0 %v4698
      %6313 = vmatpush1.msra.mxu0 %v4697
      %6314 = vmatprep.subr.mxu0 %v4700
      %6315 = vmatpush1.msra.mxu0 %v4699
      %6316 = vmatprep.subr.mxu0 %v4702
      %6317 = vmatpush1.msra.mxu0 %v4701
      %6318 = vmatprep.subr.mxu0 %v4704
      %6319 = vmatpush1.msra.mxu0 %v4703
      %6320 = vmatprep.subr.mxu0 %v4706
      %6321 = vmatpush1.msra.mxu0 %v4705
      %6322 = vmatprep.subr.mxu0 %v4708
      %6323 = vmatpush1.msra.mxu0 %v4707
      %6324 = vmatprep.subr.mxu0 %v4710
      %6325 = vmatpush1.msra.mxu0 %v4709
      %6326 = vmatprep.subr.mxu0 %v4712
      %6327 = vmatpush1.msra.mxu0 %v4711
      %6328 = vmatprep.subr.mxu0 %v4714
      %6329 = vmatpush1.msra.mxu0 %v4713
      %6330 = vmatprep.mubr.f32.mxu0 %v3670
      %6331 = vmatmul.mubr.f32.gmra.mrb[0].mxu0 %v3669
      %v6332 = vpop.f32.mrb[0].mxu0
      %v6333 = vadd.f32 %v6196, %v6332
      %v6334 = vpop.f32.mrb[0].mxu0
      %v6335 = vadd.f32 %v6198, %v6334
      %6336 = vmatprep.mubr.f32.mxu0 %v3695
      %6337 = vmatmul.mubr.f32.gmra.mrb[0].mxu0 %v3694
      %v6338 = vpop.f32.mrb[0].mxu0
      %v6339 = vadd.f32 %v6202, %v6338
      %v6340 = vpop.f32.mrb[0].mxu0
      %v6341 = vadd.f32 %v6204, %v6340
      %6342 = vmatprep.mubr.f32.mxu0 %v3720
      %6343 = vmatmul.mubr.f32.gmra.mrb[0].mxu0 %v3719
      %v6344 = vpop.f32.mrb[0].mxu0
      %v6345 = vadd.f32 %v6208, %v6344
      %v6346 = vpop.f32.mrb[0].mxu0
      %v6347 = vadd.f32 %v6210, %v6346
      %6348 = vmatprep.mubr.f32.mxu0 %v3745
      %6349 = vmatmul.mubr.f32.gmra.mrb[0].mxu0 %v3744
      %v6350 = vpop.f32.mrb[0].mxu0
      %v6351 = vadd.f32 %v6214, %v6350
      %v6352 = vpop.f32.mrb[0].mxu0
      %v6353 = vadd.f32 %v6216, %v6352
      %6354 = vmatprep.mubr.f32.mxu0 %v3770
      %6355 = vmatmul.mubr.f32.gmra.mrb[0].mxu0 %v3769
      %v6356 = vpop.f32.mrb[0].mxu0
      %v6357 = vadd.f32 %v6220, %v6356
      %v6358 = vpop.f32.mrb[0].mxu0
      %v6359 = vadd.f32 %v6222, %v6358
      %6360 = vmatprep.mubr.f32.mxu0 %v3795
      %6361 = vmatmul.mubr.f32.gmra.mrb[0].mxu0 %v3794
      %v6362 = vpop.f32.mrb[0].mxu0
      %v6363 = vadd.f32 %v6226, %v6362
      %v6364 = vpop.f32.mrb[0].mxu0
      %v6365 = vadd.f32 %v6228, %v6364
      %6366 = vmatprep.mubr.f32.mxu0 %v3820
      %6367 = vmatmul.mubr.f32.gmra.mrb[0].mxu0 %v3819
      %v6368 = vpop.f32.mrb[0].mxu0
      %v6369 = vadd.f32 %v6232, %v6368
      %v6370 = vpop.f32.mrb[0].mxu0
      %v6371 = vadd.f32 %v6234, %v6370
      %6372 = vmatprep.mubr.f32.mxu0 %v3845
      %6373 = vmatmul.mubr.f32.gmra.mrb[0].mxu0 %v3844
      %v6374 = vpop.f32.mrb[0].mxu0
      %v6375 = vadd.f32 %v6238, %v6374
      %v6376 = vpop.f32.mrb[0].mxu0
      %v6377 = vadd.f32 %v6240, %v6376
      %6378 = vmatprep.mubr.f32.mxu0 %v3870
      %6379 = vmatmul.mubr.f32.gmra.mrb[0].mxu0 %v3869
      %v6380 = vpop.f32.mrb[0].mxu0
      %v6381 = vadd.f32 %v6244, %v6380
      %v6382 = vpop.f32.mrb[0].mxu0
      %v6383 = vadd.f32 %v6246, %v6382
      %6384 = vmatprep.mubr.f32.mxu0 %v3895
      %6385 = vmatmul.mubr.f32.gmra.mrb[0].mxu0 %v3894
      %v6386 = vpop.f32.mrb[0].mxu0
      %v6387 = vadd.f32 %v6250, %v6386
      %v6388 = vpop.f32.mrb[0].mxu0
      %v6389 = vadd.f32 %v6252, %v6388
      %6390 = vmatprep.mubr.f32.mxu0 %v3920
      %6391 = vmatmul.mubr.f32.gmra.mrb[0].mxu0 %v3919
      %v6392 = vpop.f32.mrb[0].mxu0
      %v6393 = vadd.f32 %v6256, %v6392
      %v6394 = vpop.f32.mrb[0].mxu0
      %v6395 = vadd.f32 %v6258, %v6394
      %6396 = vmatprep.mubr.f32.mxu0 %v3945
      %6397 = vmatmul.mubr.f32.gmra.mrb[0].mxu0 %v3944
      %v6398 = vpop.f32.mrb[0].mxu0
      %v6399 = vadd.f32 %v6262, %v6398
      %v6400 = vpop.f32.mrb[0].mxu0
      %v6401 = vadd.f32 %v6264, %v6400
      %6402 = vdwg.mxu0
      %6403 = vmatprep.subr.mxu0 %v4716
      %6404 = vmatpush1.msra.mxu0 %v4715
      %6405 = vmatprep.subr.mxu0 %v4718
      %6406 = vmatpush1.msra.mxu0 %v4717
      %6407 = vmatprep.subr.mxu0 %v4720
      %6408 = vmatpush1.msra.mxu0 %v4719
      %6409 = vmatprep.subr.mxu0 %v4722
      %6410 = vmatpush1.msra.mxu0 %v4721
      %6411 = vmatprep.subr.mxu0 %v4724
      %6412 = vmatpush1.msra.mxu0 %v4723
      %6413 = vmatprep.subr.mxu0 %v4726
      %6414 = vmatpush1.msra.mxu0 %v4725
      %6415 = vmatprep.subr.mxu0 %v4728
      %6416 = vmatpush1.msra.mxu0 %v4727
      %6417 = vmatprep.subr.mxu0 %v4730
      %6418 = vmatpush1.msra.mxu0 %v4729
      %6419 = vmatprep.subr.mxu0 %v4732
      %6420 = vmatpush1.msra.mxu0 %v4731
      %6421 = vmatprep.subr.mxu0 %v4734
      %6422 = vmatpush1.msra.mxu0 %v4733
      %6423 = vmatprep.subr.mxu0 %v4736
      %6424 = vmatpush1.msra.mxu0 %v4735
      %6425 = vmatprep.subr.mxu0 %v4738
      %6426 = vmatpush1.msra.mxu0 %v4737
      %6427 = vmatprep.subr.mxu0 %v4740
      %6428 = vmatpush1.msra.mxu0 %v4739
      %6429 = vmatprep.subr.mxu0 %v4742
      %6430 = vmatpush1.msra.mxu0 %v4741
      %6431 = vmatprep.subr.mxu0 %v4744
      %6432 = vmatpush1.msra.mxu0 %v4743
      %6433 = vmatprep.subr.mxu0 %v4746
      %6434 = vmatpush1.msra.mxu0 %v4745
      %6435 = vmatprep.subr.mxu0 0.0
      %6436 = vmatpush1.msra.mxu0 0.0
      %6437 = vmatprep.subr.mxu0 0.0
      %6438 = vmatpush1.msra.mxu0 0.0
      %6439 = vmatprep.subr.mxu0 0.0
      %6440 = vmatpush1.msra.mxu0 0.0
      %6441 = vmatprep.subr.mxu0 0.0
      %6442 = vmatpush1.msra.mxu0 0.0
      %6443 = vmatprep.subr.mxu0 0.0
      %6444 = vmatpush1.msra.mxu0 0.0
      %6445 = vmatprep.subr.mxu0 0.0
      %6446 = vmatpush1.msra.mxu0 0.0
      %6447 = vmatprep.subr.mxu0 0.0
      %6448 = vmatpush1.msra.mxu0 0.0
      %6449 = vmatprep.subr.mxu0 0.0
      %6450 = vmatpush1.msra.mxu0 0.0
      %6451 = vmatprep.subr.mxu0 0.0
      %6452 = vmatpush1.msra.mxu0 0.0
      %6453 = vmatprep.subr.mxu0 0.0
      %6454 = vmatpush1.msra.mxu0 0.0
      %6455 = vmatprep.subr.mxu0 0.0
      %6456 = vmatpush1.msra.mxu0 0.0
      %6457 = vmatprep.subr.mxu0 0.0
      %6458 = vmatpush1.msra.mxu0 0.0
      %6459 = vmatprep.subr.mxu0 0.0
      %6460 = vmatpush1.msra.mxu0 0.0
      %6461 = vmatprep.subr.mxu0 0.0
      %6462 = vmatpush1.msra.mxu0 0.0
      %6463 = vmatprep.subr.mxu0 0.0
      %6464 = vmatpush1.msra.mxu0 0.0
      %6465 = vmatprep.subr.mxu0 0.0
      %6466 = vmatpush1.msra.mxu0 0.0
      %6467 = vmatprep.mubr.f32.mxu0 0.0
      %6468 = vmatmul.mubr.f32.gmra.mrb[0].mxu0 %v3671
      %v6469 = vpop.f32.mrb[0].mxu0
      %v6470 = vadd.f32 %v6333, %v6469
      %v6471 = vpop.f32.mrb[0].mxu0
      %v6472 = vadd.f32 %v6335, %v6471
      %6473 = vmatprep.mubr.f32.mxu0 0.0
      %6474 = vmatmul.mubr.f32.gmra.mrb[0].mxu0 %v3696
      %v6475 = vpop.f32.mrb[0].mxu0
      %v6476 = vadd.f32 %v6339, %v6475
      %v6477 = vpop.f32.mrb[0].mxu0
      %v6478 = vadd.f32 %v6341, %v6477
      %6479 = vmatprep.mubr.f32.mxu0 0.0
      %6480 = vmatmul.mubr.f32.gmra.mrb[0].mxu0 %v3721
      %v6481 = vpop.f32.mrb[0].mxu0
      %v6482 = vadd.f32 %v6345, %v6481
      %v6483 = vpop.f32.mrb[0].mxu0
      %v6484 = vadd.f32 %v6347, %v6483
      %6485 = vmatprep.mubr.f32.mxu0 0.0
      %6486 = vmatmul.mubr.f32.gmra.mrb[0].mxu0 %v3746
      %v6487 = vpop.f32.mrb[0].mxu0
      %v6488 = vadd.f32 %v6351, %v6487
      %v6489 = vpop.f32.mrb[0].mxu0
      %v6490 = vadd.f32 %v6353, %v6489
      %6491 = vmatprep.mubr.f32.mxu0 0.0
      %6492 = vmatmul.mubr.f32.gmra.mrb[0].mxu0 %v3771
      %v6493 = vpop.f32.mrb[0].mxu0
      %v6494 = vadd.f32 %v6357, %v6493
      %v6495 = vpop.f32.mrb[0].mxu0
      %v6496 = vadd.f32 %v6359, %v6495
      %6497 = vmatprep.mubr.f32.mxu0 0.0
      %6498 = vmatmul.mubr.f32.gmra.mrb[0].mxu0 %v3796
      %v6499 = vpop.f32.mrb[0].mxu0
      %v6500 = vadd.f32 %v6363, %v6499
      %v6501 = vpop.f32.mrb[0].mxu0
      %v6502 = vadd.f32 %v6365, %v6501
      %6503 = vmatprep.mubr.f32.mxu0 0.0
      %6504 = vmatmul.mubr.f32.gmra.mrb[0].mxu0 %v3821
      %v6505 = vpop.f32.mrb[0].mxu0
      %v6506 = vadd.f32 %v6369, %v6505
      %v6507 = vpop.f32.mrb[0].mxu0
      %v6508 = vadd.f32 %v6371, %v6507
      %6509 = vmatprep.mubr.f32.mxu0 0.0
      %6510 = vmatmul.mubr.f32.gmra.mrb[0].mxu0 %v3846
      %v6511 = vpop.f32.mrb[0].mxu0
      %v6512 = vadd.f32 %v6375, %v6511
      %v6513 = vpop.f32.mrb[0].mxu0
      %v6514 = vadd.f32 %v6377, %v6513
      %6515 = vmatprep.mubr.f32.mxu0 0.0
      %6516 = vmatmul.mubr.f32.gmra.mrb[0].mxu0 %v3871
      %v6517 = vpop.f32.mrb[0].mxu0
      %v6518 = vadd.f32 %v6381, %v6517
      %v6519 = vpop.f32.mrb[0].mxu0
      %v6520 = vadd.f32 %v6383, %v6519
      %6521 = vmatprep.mubr.f32.mxu0 0.0
      %6522 = vmatmul.mubr.f32.gmra.mrb[0].mxu0 %v3896
      %v6523 = vpop.f32.mrb[0].mxu0
      %v6524 = vadd.f32 %v6387, %v6523
      %v6525 = vpop.f32.mrb[0].mxu0
      %v6526 = vadd.f32 %v6389, %v6525
      %6527 = vmatprep.mubr.f32.mxu0 0.0
      %6528 = vmatmul.mubr.f32.gmra.mrb[0].mxu0 %v3921
      %v6529 = vpop.f32.mrb[0].mxu0
      %v6530 = vadd.f32 %v6393, %v6529
      %v6531 = vpop.f32.mrb[0].mxu0
      %v6532 = vadd.f32 %v6395, %v6531
      %6533 = vmatprep.mubr.f32.mxu0 0.0
      %6534 = vmatmul.mubr.f32.gmra.mrb[0].mxu0 %v3946
      %v6535 = vpop.f32.mrb[0].mxu0
      %v6536 = vadd.f32 %v6399, %v6535
      %v6537 = vpop.f32.mrb[0].mxu0
      %v6538 = vadd.f32 %v6401, %v6537
      %6539 = vdwg.mxu0
      %v6540 = vmax.f32 %v6470, 0.0
      %v6541 = vmax.f32 %v6472, 0.0
      %v6542 = vmax.f32 %v6476, 0.0
      %v6543 = vmax.f32 %v6478, 0.0
      %v6544 = vmax.f32 %v6482, 0.0
      %v6545 = vmax.f32 %v6484, 0.0
      %v6546 = vmax.f32 %v6488, 0.0
      %v6547 = vmax.f32 %v6490, 0.0
      %v6548 = vmax.f32 %v6494, 0.0
      %v6549 = vmax.f32 %v6496, 0.0
      %v6550 = vmax.f32 %v6500, 0.0
      %v6551 = vmax.f32 %v6502, 0.0
      %v6552 = vmax.f32 %v6506, 0.0
      %v6553 = vmax.f32 %v6508, 0.0
      %v6554 = vmax.f32 %v6512, 0.0
      %v6555 = vmax.f32 %v6514, 0.0
      %v6556 = vmax.f32 %v6518, 0.0
      %v6557 = vmax.f32 %v6520, 0.0
      %v6558 = vmax.f32 %v6524, 0.0
      %v6559 = vmax.f32 %v6526, 0.0
      %v6560 = vmax.f32 %v6530, 0.0
      %v6561 = vmax.f32 %v6532, 0.0
      %v6562 = vmax.f32 %v6536, 0.0
      %v6563 = vmax.f32 %v6538, 0.0
      %v6584 = vrot.slane %v6540, 1
      %v6585 = vrot.slane %v6542, 1
      %v6586 = vsel %vm2560, %v6584, %v6585
      %v6587 = vrot.slane %v6541, 1
      %v6588 = vrot.slane %v6543, 1
      %v6589 = vsel %vm2560, %v6587, %v6588
      %v6590 = vrot.slane %v6544, 1
      %v6591 = vsel %vm2560, %v6585, %v6590
      %v6592 = vrot.slane %v6545, 1
      %v6593 = vsel %vm2560, %v6588, %v6592
      %v6594 = vrot.slane %v6546, 1
      %v6595 = vsel %vm2560, %v6590, %v6594
      %v6596 = vrot.slane %v6547, 1
      %v6597 = vsel %vm2560, %v6592, %v6596
      %v6598 = vrot.slane %v6548, 1
      %v6599 = vsel %vm2560, %v6594, %v6598
      %v6600 = vrot.slane %v6549, 1
      %v6601 = vsel %vm2560, %v6596, %v6600
      %v6602 = vrot.slane %v6550, 1
      %v6603 = vsel %vm2560, %v6598, %v6602
      %v6604 = vrot.slane %v6551, 1
      %v6605 = vsel %vm2560, %v6600, %v6604
      %v6606 = vrot.slane %v6552, 1
      %v6607 = vsel %vm2560, %v6602, %v6606
      %v6608 = vrot.slane %v6553, 1
      %v6609 = vsel %vm2560, %v6604, %v6608
      %v6610 = vrot.slane %v6554, 1
      %v6611 = vsel %vm2560, %v6606, %v6610
      %v6612 = vrot.slane %v6555, 1
      %v6613 = vsel %vm2560, %v6608, %v6612
      %v6614 = vrot.slane %v6556, 1
      %v6615 = vsel %vm2560, %v6610, %v6614
      %v6616 = vrot.slane %v6557, 1
      %v6617 = vsel %vm2560, %v6612, %v6616
      %v6618 = vrot.slane %v6558, 1
      %v6619 = vsel %vm2560, %v6614, %v6618
      %v6620 = vrot.slane %v6559, 1
      %v6621 = vsel %vm2560, %v6616, %v6620
      %v6642 = vmax.f32 %v6540, %v6586
      %v6643 = vmax.f32 %v6541, %v6589
      %v6644 = vmax.f32 %v6542, %v6591
      %v6645 = vmax.f32 %v6543, %v6593
      %v6646 = vmax.f32 %v6544, %v6595
      %v6647 = vmax.f32 %v6545, %v6597
      %v6648 = vmax.f32 %v6546, %v6599
      %v6649 = vmax.f32 %v6547, %v6601
      %v6650 = vmax.f32 %v6548, %v6603
      %v6651 = vmax.f32 %v6549, %v6605
      %v6652 = vmax.f32 %v6550, %v6607
      %v6653 = vmax.f32 %v6551, %v6609
      %v6654 = vmax.f32 %v6552, %v6611
      %v6655 = vmax.f32 %v6553, %v6613
      %v6656 = vmax.f32 %v6554, %v6615
      %v6657 = vmax.f32 %v6555, %v6617
      %v6658 = vmax.f32 %v6556, %v6619
      %v6659 = vmax.f32 %v6557, %v6621
      %v6660 = vmax.f32 %v6558, %v6618
      %v6661 = vmax.f32 %v6559, %v6620
      %v6666 = vrot.slane %v6560, 1
      %v6667 = vsel %vm2560, %v6618, %v6666
      %v6668 = vrot.slane %v6561, 1
      %v6669 = vsel %vm2560, %v6620, %v6668
      %v6670 = vrot.slane %v6562, 1
      %v6671 = vsel %vm2560, %v6666, %v6670
      %v6672 = vrot.slane %v6563, 1
      %v6673 = vsel %vm2560, %v6668, %v6672
      %v6680 = vmax.f32 %v6558, %v6667
      %v6681 = vmax.f32 %v6559, %v6669
      %v6682 = vmax.f32 %v6560, %v6671
      %v6683 = vmax.f32 %v6561, %v6673
      %v6684 = vmax.f32 %v6562, %v6670
      %v6685 = vmax.f32 %v6563, %v6672
      %vm6708 = vcmask 1043456
      %v6709 = vrot.slane %v6644, 4
      %v6710 = vrot.slane %v6646, 4
      %v6711 = vsel %vm6708, %v6709, %v6710
      %v6712 = vrot.slane %v6645, 4
      %v6713 = vrot.slane %v6647, 4
      %v6714 = vsel %vm6708, %v6712, %v6713
      %v6715 = vrot.slane %v6648, 4
      %v6716 = vsel %vm6708, %v6710, %v6715
      %v6717 = vrot.slane %v6649, 4
      %v6718 = vsel %vm6708, %v6713, %v6717
      %v6719 = vrot.slane %v6650, 4
      %v6720 = vsel %vm6708, %v6715, %v6719
      %v6721 = vrot.slane %v6651, 4
      %v6722 = vsel %vm6708, %v6717, %v6721
      %v6723 = vrot.slane %v6652, 4
      %v6724 = vsel %vm6708, %v6719, %v6723
      %v6725 = vrot.slane %v6653, 4
      %v6726 = vsel %vm6708, %v6721, %v6725
      %v6727 = vrot.slane %v6654, 4
      %v6728 = vsel %vm6708, %v6723, %v6727
      %v6729 = vrot.slane %v6655, 4
      %v6730 = vsel %vm6708, %v6725, %v6729
      %v6731 = vrot.slane %v6656, 4
      %v6732 = vsel %vm6708, %v6727, %v6731
      %v6733 = vrot.slane %v6657, 4
      %v6734 = vsel %vm6708, %v6729, %v6733
      %v6735 = vrot.slane %v6658, 4
      %v6736 = vsel %vm6708, %v6731, %v6735
      %v6737 = vrot.slane %v6659, 4
      %v6738 = vsel %vm6708, %v6733, %v6737
      %v6739 = vrot.slane %v6680, 4
      %v6740 = vsel %vm6708, %v6735, %v6739
      %v6741 = vrot.slane %v6681, 4
      %v6742 = vsel %vm6708, %v6737, %v6741
      %v6743 = vrot.slane %v6682, 4
      %v6744 = vsel %vm6708, %v6739, %v6743
      %v6745 = vrot.slane %v6683, 4
      %v6746 = vsel %vm6708, %v6741, %v6745
      %v6747 = vrot.slane %v6684, 4
      %v6748 = vsel %vm6708, %v6743, %v6747
      %v6749 = vrot.slane %v6685, 4
      %v6750 = vsel %vm6708, %v6745, %v6749
      %v6771 = vmax.f32 %v6642, %v6711
      %v6772 = vmax.f32 %v6643, %v6714
      %v6773 = vmax.f32 %v6644, %v6716
      %v6774 = vmax.f32 %v6645, %v6718
      %v6775 = vmax.f32 %v6646, %v6720
      %v6776 = vmax.f32 %v6647, %v6722
      %v6777 = vmax.f32 %v6648, %v6724
      %v6778 = vmax.f32 %v6649, %v6726
      %v6779 = vmax.f32 %v6650, %v6728
      %v6780 = vmax.f32 %v6651, %v6730
      %v6781 = vmax.f32 %v6652, %v6732
      %v6782 = vmax.f32 %v6653, %v6734
      %v6783 = vmax.f32 %v6654, %v6736
      %v6784 = vmax.f32 %v6655, %v6738
      %v6785 = vmax.f32 %v6656, %v6740
      %v6786 = vmax.f32 %v6657, %v6742
      %v6787 = vmax.f32 %v6658, %v6744
      %v6788 = vmax.f32 %v6659, %v6746
      %v6789 = vmax.f32 %v6660, %v6748
      %v6790 = vmax.f32 %v6661, %v6750
      %v6791 = vld [vmem:[%s6] sm:$0xff]
      %v6792 = vld [vmem:[%s6 + $0x8] sm:$0xff]
      %vm6793 = vcmask 646144
      %v6795 = vsel %vm6793, %v6791, 0
      %v6798 = vsel %vm6793, %v6792, 0
      %v6801 = vsel %vm2560, %v6789, 0
      %v6804 = vsel %vm2560, %v6790, 0
      %6806 = vmatprep.subr.mxu0 %v6772
      %6807 = vmatpush1.msra.mxu0 %v6771
      %6808 = vmatprep.subr.mxu0 %v6774
      %6809 = vmatpush1.msra.mxu0 %v6773
      %6810 = vmatprep.subr.mxu0 %v6776
      %6811 = vmatpush1.msra.mxu0 %v6775
      %6812 = vmatprep.subr.mxu0 %v6778
      %6813 = vmatpush1.msra.mxu0 %v6777
      %6814 = vmatprep.subr.mxu0 %v6780
      %6815 = vmatpush1.msra.mxu0 %v6779
      %6816 = vmatprep.subr.mxu0 %v6782
      %6817 = vmatpush1.msra.mxu0 %v6781
      %6818 = vmatprep.subr.mxu0 %v6784
      %6819 = vmatpush1.msra.mxu0 %v6783
      %6820 = vmatprep.subr.mxu0 %v6786
      %6821 = vmatpush1.msra.mxu0 %v6785
      %6822 = vmatprep.subr.mxu0 %v6788
      %6823 = vmatpush1.msra.mxu0 %v6787
      %6824 = vmatprep.subr.mxu0 %v6804
      %6825 = vmatpush1.msra.mxu0 %v6801
      %6826 = vmatprep.subr.mxu0 0.0
      %6827 = vmatpush1.msra.mxu0 0.0
      %6828 = vmatprep.subr.mxu0 0.0
      %6829 = vmatpush1.msra.mxu0 0.0
      %6830 = vmatprep.subr.mxu0 0.0
      %6831 = vmatpush1.msra.mxu0 0.0
      %6832 = vmatprep.subr.mxu0 0.0
      %6833 = vmatpush1.msra.mxu0 0.0
      %6834 = vmatprep.subr.mxu0 0.0
      %6835 = vmatpush1.msra.mxu0 0.0
      %6836 = vmatprep.subr.mxu0 0.0
      %6837 = vmatpush1.msra.mxu0 0.0
      %6838 = vmatprep.subr.mxu0 0.0
      %6839 = vmatpush1.msra.mxu0 0.0
      %6840 = vmatprep.subr.mxu0 0.0
      %6841 = vmatpush1.msra.mxu0 0.0
      %6842 = vmatprep.subr.mxu0 0.0
      %6843 = vmatpush1.msra.mxu0 0.0
      %6844 = vmatprep.subr.mxu0 0.0
      %6845 = vmatpush1.msra.mxu0 0.0
      %6846 = vmatprep.subr.mxu0 0.0
      %6847 = vmatpush1.msra.mxu0 0.0
      %6848 = vmatprep.subr.mxu0 0.0
      %6849 = vmatpush1.msra.mxu0 0.0
      %6850 = vmatprep.subr.mxu0 0.0
      %6851 = vmatpush1.msra.mxu0 0.0
      %6852 = vmatprep.subr.mxu0 0.0
      %6853 = vmatpush1.msra.mxu0 0.0
      %6854 = vmatprep.subr.mxu0 0.0
      %6855 = vmatpush1.msra.mxu0 0.0
      %6856 = vmatprep.subr.mxu0 0.0
      %6857 = vmatpush1.msra.mxu0 0.0
      %6858 = vmatprep.subr.mxu0 0.0
      %6859 = vmatpush1.msra.mxu0 0.0
      %6860 = vmatprep.subr.mxu0 0.0
      %6861 = vmatpush1.msra.mxu0 0.0
      %6862 = vmatprep.subr.mxu0 0.0
      %6863 = vmatpush1.msra.mxu0 0.0
      %6864 = vmatprep.subr.mxu0 0.0
      %6865 = vmatpush1.msra.mxu0 0.0
      %6866 = vmatprep.subr.mxu0 0.0
      %6867 = vmatpush1.msra.mxu0 0.0
      %6868 = vmatprep.subr.mxu0 0.0
      %6869 = vmatpush1.msra.mxu0 0.0
      %6870 = vmatprep.mubr.f32.mxu0 0.0
      %6871 = vmatmul.mubr.f32.gmra.mrb[0].mxu0 %v6795
      %v6872 = vpop.f32.mrb[0].mxu0
      %v6873 = vadd.f32 0.0, %v6872
      %v6874 = vpop.f32.mrb[0].mxu0
      %v6875 = vadd.f32 0.0, %v6874
      %6876 = vmatprep.mubr.f32.mxu0 0.0
      %6877 = vmatmul.mubr.f32.gmra.mrb[0].mxu0 %v6798
      %v6878 = vpop.f32.mrb[0].mxu0
      %v6879 = vadd.f32 0.0, %v6878
      %v6880 = vpop.f32.mrb[0].mxu0
      %v6881 = vadd.f32 0.0, %v6880
      %6882 = vdwg.mxu0
      %6885 = vrot.lane.b32.xlu0 %v6873, 112
      %v6886 = vpop.permute.xlu0 %6885
      %6887 = vrot.lane.b32.xlu0 %v6879, 112
      %v6888 = vpop.permute.xlu0 %6887
      %6891 = vrot.lane.b32.xlu0 %v6873, 96
      %v6892 = vpop.permute.xlu0 %6891
      %6893 = vrot.lane.b32.xlu0 %v6879, 96
      %v6894 = vpop.permute.xlu0 %6893
      %6897 = vrot.lane.b32.xlu0 %v6873, 80
      %v6898 = vpop.permute.xlu0 %6897
      %6899 = vrot.lane.b32.xlu0 %v6879, 80
      %v6900 = vpop.permute.xlu0 %6899
      %6903 = vrot.lane.b32.xlu0 %v6873, 64
      %v6904 = vpop.permute.xlu0 %6903
      %6905 = vrot.lane.b32.xlu0 %v6879, 64
      %v6906 = vpop.permute.xlu0 %6905
      %6909 = vrot.lane.b32.xlu0 %v6873, 48
      %v6910 = vpop.permute.xlu0 %6909
      %6911 = vrot.lane.b32.xlu0 %v6879, 48
      %v6912 = vpop.permute.xlu0 %6911
      %6915 = vrot.lane.b32.xlu0 %v6873, 32
      %v6916 = vpop.permute.xlu0 %6915
      %6917 = vrot.lane.b32.xlu0 %v6879, 32
      %v6918 = vpop.permute.xlu0 %6917
      %6921 = vrot.lane.b32.xlu0 %v6873, 16
      %v6922 = vpop.permute.xlu0 %6921
      %6923 = vrot.lane.b32.xlu0 %v6879, 16
      %v6924 = vpop.permute.xlu0 %6923
      %6929 = vrot.lane.b32.xlu0 %v6875, 112
      %v6930 = vpop.permute.xlu0 %6929
      %6931 = vrot.lane.b32.xlu0 %v6881, 112
      %v6932 = vpop.permute.xlu0 %6931
      %6935 = vrot.lane.b32.xlu0 %v6875, 96
      %v6936 = vpop.permute.xlu0 %6935
      %6937 = vrot.lane.b32.xlu0 %v6881, 96
      %v6938 = vpop.permute.xlu0 %6937
      %6941 = vrot.lane.b32.xlu0 %v6875, 80
      %v6942 = vpop.permute.xlu0 %6941
      %6943 = vrot.lane.b32.xlu0 %v6881, 80
      %v6944 = vpop.permute.xlu0 %6943
      %6947 = vrot.lane.b32.xlu0 %v6875, 64
      %v6948 = vpop.permute.xlu0 %6947
      %6949 = vrot.lane.b32.xlu0 %v6881, 64
      %v6950 = vpop.permute.xlu0 %6949
      %6953 = vrot.lane.b32.xlu0 %v6875, 48
      %v6954 = vpop.permute.xlu0 %6953
      %6955 = vrot.lane.b32.xlu0 %v6881, 48
      %v6956 = vpop.permute.xlu0 %6955
      %6959 = vrot.lane.b32.xlu0 %v6875, 32
      %v6960 = vpop.permute.xlu0 %6959
      %6961 = vrot.lane.b32.xlu0 %v6881, 32
      %v6962 = vpop.permute.xlu0 %6961
      %6965 = vrot.lane.b32.xlu0 %v6875, 16
      %v6966 = vpop.permute.xlu0 %6965
      %6967 = vrot.lane.b32.xlu0 %v6881, 16
      %v6968 = vpop.permute.xlu0 %6967
      %v6971 = vld [vmem:[%s7] sm:$0xff]
      %v6972 = vld [vmem:[%s7 + $0x8] sm:$0xff]
      %v6973 = vld [vmem:[%s7 + $0x10] sm:$0xff]
      %v6974 = vld [vmem:[%s7 + $0x18] sm:$0xff]
      %v6975 = vld [vmem:[%s7 + $0x20] sm:$0xff]
      %v6976 = vld [vmem:[%s7 + $0x28] sm:$0xff]
      %v6977 = vld [vmem:[%s7 + $0x30] sm:$0xff]
      %v6978 = vld [vmem:[%s7 + $0x38] sm:$0xff]
      %v6979 = vld [vmem:[%s7 + $0x40] sm:$0xff]
      %v6980 = vld [vmem:[%s7 + $0x48] sm:$0xff]
      %v6981 = vld [vmem:[%s7 + $0x50] sm:$0xff]
      %v6982 = vld [vmem:[%s7 + $0x58] sm:$0xff]
      %v6983 = vld [vmem:[%s7 + $0x60] sm:$0xff]
      %v6984 = vld [vmem:[%s7 + $0x68] sm:$0xff]
      %v6985 = vld [vmem:[%s7 + $0x70] sm:$0xff]
      %v6986 = vld [vmem:[%s7 + $0x78] sm:$0xff]
      %v6987 = vld [vmem:[%s7 + $0x80] sm:$0xff]
      %v6988 = vld [vmem:[%s7 + $0x88] sm:$0xff]
      %v6989 = vld [vmem:[%s7 + $0x90] sm:$0xff]
      %v6990 = vld [vmem:[%s7 + $0x98] sm:$0xff]
      %v6991 = vld [vmem:[%s7 + $0xa0] sm:$0xff]
      %v6992 = vld [vmem:[%s7 + $0xa8] sm:$0xff]
      %v6993 = vld [vmem:[%s7 + $0xb0] sm:$0xff]
      %v6994 = vld [vmem:[%s7 + $0xb8] sm:$0xff]
      %v6995 = vld [vmem:[%s7 + $0xc0] sm:$0xff]
      %v6996 = vld [vmem:[%s7 + $0xc8] sm:$0xff]
      %v6997 = vld [vmem:[%s7 + $0xd0] sm:$0xff]
      %v6998 = vld [vmem:[%s7 + $0xd8] sm:$0xff]
      %v6999 = vld [vmem:[%s7 + $0xe0] sm:$0xff]
      %v7000 = vld [vmem:[%s7 + $0xe8] sm:$0xff]
      %v7001 = vld [vmem:[%s7 + $0xf0] sm:$0xff]
      %v7002 = vld [vmem:[%s7 + $0xf8] sm:$0xff]
      %v7003 = vld [vmem:[%s8] sm:$0xff]
      %v7004 = vld [vmem:[%s8 + $0x8] sm:$0xff]
      %v7005 = vld [vmem:[%s8 + $0x10] sm:$0xff]
      %v7006 = vld [vmem:[%s8 + $0x18] sm:$0xff]
      %v7007 = vld [vmem:[%s8 + $0x20] sm:$0xff]
      %v7008 = vld [vmem:[%s8 + $0x28] sm:$0xff]
      %v7009 = vld [vmem:[%s8 + $0x30] sm:$0xff]
      %v7010 = vld [vmem:[%s8 + $0x38] sm:$0xff]
      %v7011 = vld [vmem:[%s8 + $0x40] sm:$0xff]
      %v7012 = vld [vmem:[%s8 + $0x48] sm:$0xff]
      %v7013 = vld [vmem:[%s8 + $0x50] sm:$0xff]
      %v7014 = vld [vmem:[%s8 + $0x58] sm:$0xff]
      %v7015 = vld [vmem:[%s8 + $0x60] sm:$0xff]
      %v7016 = vld [vmem:[%s8 + $0x68] sm:$0xff]
      %v7017 = vld [vmem:[%s8 + $0x70] sm:$0xff]
      %v7018 = vld [vmem:[%s8 + $0x78] sm:$0xff]
      %7020 = vset.pattern.permute.xlu0 0
      %7021 = vperm.xlu0 %7020, %v7003
      %v7022 = vpop.permute.xlu0 %7021
      %7025 = vset.pattern.permute.xlu0 0
      %7026 = vperm.xlu0 %7025, %v7004
      %v7027 = vpop.permute.xlu0 %7026
      %7030 = vset.pattern.permute.xlu0 0
      %7031 = vperm.xlu0 %7030, %v7005
      %v7032 = vpop.permute.xlu0 %7031
      %7035 = vset.pattern.permute.xlu0 0
      %7036 = vperm.xlu0 %7035, %v7006
      %v7037 = vpop.permute.xlu0 %7036
      %7040 = vset.pattern.permute.xlu0 0
      %7041 = vperm.xlu0 %7040, %v7007
      %v7042 = vpop.permute.xlu0 %7041
      %7045 = vset.pattern.permute.xlu0 0
      %7046 = vperm.xlu0 %7045, %v7008
      %v7047 = vpop.permute.xlu0 %7046
      %7050 = vset.pattern.permute.xlu0 0
      %7051 = vperm.xlu0 %7050, %v7009
      %v7052 = vpop.permute.xlu0 %7051
      %7055 = vset.pattern.permute.xlu0 0
      %7056 = vperm.xlu0 %7055, %v7010
      %v7057 = vpop.permute.xlu0 %7056
      %7060 = vset.pattern.permute.xlu0 0
      %7061 = vperm.xlu0 %7060, %v7011
      %v7062 = vpop.permute.xlu0 %7061
      %7065 = vset.pattern.permute.xlu0 0
      %7066 = vperm.xlu0 %7065, %v7012
      %v7067 = vpop.permute.xlu0 %7066
      %7070 = vset.pattern.permute.xlu0 0
      %7071 = vperm.xlu0 %7070, %v7013
      %v7072 = vpop.permute.xlu0 %7071
      %7075 = vset.pattern.permute.xlu0 0
      %7076 = vperm.xlu0 %7075, %v7014
      %v7077 = vpop.permute.xlu0 %7076
      %7080 = vset.pattern.permute.xlu0 0
      %7081 = vperm.xlu0 %7080, %v7015
      %v7082 = vpop.permute.xlu0 %7081
      %7085 = vset.pattern.permute.xlu0 0
      %7086 = vperm.xlu0 %7085, %v7016
      %v7087 = vpop.permute.xlu0 %7086
      %7090 = vset.pattern.permute.xlu0 0
      %7091 = vperm.xlu0 %7090, %v7017
      %v7092 = vpop.permute.xlu0 %7091
      %7095 = vset.pattern.permute.xlu0 0
      %7096 = vperm.xlu0 %7095, %v7018
      %v7097 = vpop.permute.xlu0 %7096
      %7099 = vmatprep.subr.mxu0 0.0
      %7100 = vmatpush1.msra.mxu0 %v6873
      %7101 = vmatprep.subr.mxu0 0.0
      %7102 = vmatpush1.msra.mxu0 %v6879
      %7103 = vmatprep.subr.mxu0 0.0
      %7104 = vmatpush1.msra.mxu0 %v6886
      %7105 = vmatprep.subr.mxu0 0.0
      %7106 = vmatpush1.msra.mxu0 %v6888
      %7107 = vmatprep.subr.mxu0 0.0
      %7108 = vmatpush1.msra.mxu0 %v6892
      %7109 = vmatprep.subr.mxu0 0.0
      %7110 = vmatpush1.msra.mxu0 %v6894
      %7111 = vmatprep.subr.mxu0 0.0
      %7112 = vmatpush1.msra.mxu0 %v6898
      %7113 = vmatprep.subr.mxu0 0.0
      %7114 = vmatpush1.msra.mxu0 %v6900
      %7115 = vmatprep.subr.mxu0 0.0
      %7116 = vmatpush1.msra.mxu0 %v6904
      %7117 = vmatprep.subr.mxu0 0.0
      %7118 = vmatpush1.msra.mxu0 %v6906
      %7119 = vmatprep.subr.mxu0 0.0
      %7120 = vmatpush1.msra.mxu0 %v6910
      %7121 = vmatprep.subr.mxu0 0.0
      %7122 = vmatpush1.msra.mxu0 %v6912
      %7123 = vmatprep.subr.mxu0 0.0
      %7124 = vmatpush1.msra.mxu0 %v6916
      %7125 = vmatprep.subr.mxu0 0.0
      %7126 = vmatpush1.msra.mxu0 %v6918
      %7127 = vmatprep.subr.mxu0 0.0
      %7128 = vmatpush1.msra.mxu0 %v6922
      %7129 = vmatprep.subr.mxu0 0.0
      %7130 = vmatpush1.msra.mxu0 %v6924
      %7131 = vmatprep.subr.mxu0 0.0
      %7132 = vmatpush1.msra.mxu0 %v6875
      %7133 = vmatprep.subr.mxu0 0.0
      %7134 = vmatpush1.msra.mxu0 %v6881
      %7135 = vmatprep.subr.mxu0 0.0
      %7136 = vmatpush1.msra.mxu0 %v6930
      %7137 = vmatprep.subr.mxu0 0.0
      %7138 = vmatpush1.msra.mxu0 %v6932
      %7139 = vmatprep.subr.mxu0 0.0
      %7140 = vmatpush1.msra.mxu0 %v6936
      %7141 = vmatprep.subr.mxu0 0.0
      %7142 = vmatpush1.msra.mxu0 %v6938
      %7143 = vmatprep.subr.mxu0 0.0
      %7144 = vmatpush1.msra.mxu0 %v6942
      %7145 = vmatprep.subr.mxu0 0.0
      %7146 = vmatpush1.msra.mxu0 %v6944
      %7147 = vmatprep.subr.mxu0 0.0
      %7148 = vmatpush1.msra.mxu0 %v6948
      %7149 = vmatprep.subr.mxu0 0.0
      %7150 = vmatpush1.msra.mxu0 %v6950
      %7151 = vmatprep.subr.mxu0 0.0
      %7152 = vmatpush1.msra.mxu0 %v6954
      %7153 = vmatprep.subr.mxu0 0.0
      %7154 = vmatpush1.msra.mxu0 %v6956
      %7155 = vmatprep.subr.mxu0 0.0
      %7156 = vmatpush1.msra.mxu0 %v6960
      %7157 = vmatprep.subr.mxu0 0.0
      %7158 = vmatpush1.msra.mxu0 %v6962
      %7159 = vmatprep.subr.mxu0 0.0
      %7160 = vmatpush1.msra.mxu0 %v6966
      %7161 = vmatprep.subr.mxu0 0.0
      %7162 = vmatpush1.msra.mxu0 %v6968
      %7163 = vmatprep.mubr.f32.mxu0 %v6972
      %7164 = vmatmul.mubr.f32.gmra.mrb[0].mxu0 %v6971
      %v7165 = vpop.f32.mrb[0].mxu0
      %v7166 = vadd.f32 %v7022, %v7165
      %v7167 = vpop.f32.mrb[0].mxu0
      %7168 = vmatprep.mubr.f32.mxu0 %v6974
      %7169 = vmatmul.mubr.f32.gmra.mrb[0].mxu0 %v6973
      %v7170 = vpop.f32.mrb[0].mxu0
      %v7171 = vadd.f32 %v7027, %v7170
      %v7172 = vpop.f32.mrb[0].mxu0
      %7173 = vmatprep.mubr.f32.mxu0 %v6976
      %7174 = vmatmul.mubr.f32.gmra.mrb[0].mxu0 %v6975
      %v7175 = vpop.f32.mrb[0].mxu0
      %v7176 = vadd.f32 %v7032, %v7175
      %v7177 = vpop.f32.mrb[0].mxu0
      %7178 = vmatprep.mubr.f32.mxu0 %v6978
      %7179 = vmatmul.mubr.f32.gmra.mrb[0].mxu0 %v6977
      %v7180 = vpop.f32.mrb[0].mxu0
      %v7181 = vadd.f32 %v7037, %v7180
      %v7182 = vpop.f32.mrb[0].mxu0
      %7183 = vmatprep.mubr.f32.mxu0 %v6980
      %7184 = vmatmul.mubr.f32.gmra.mrb[0].mxu0 %v6979
      %v7185 = vpop.f32.mrb[0].mxu0
      %v7186 = vadd.f32 %v7042, %v7185
      %v7187 = vpop.f32.mrb[0].mxu0
      %7188 = vmatprep.mubr.f32.mxu0 %v6982
      %7189 = vmatmul.mubr.f32.gmra.mrb[0].mxu0 %v6981
      %v7190 = vpop.f32.mrb[0].mxu0
      %v7191 = vadd.f32 %v7047, %v7190
      %v7192 = vpop.f32.mrb[0].mxu0
      %7193 = vmatprep.mubr.f32.mxu0 %v6984
      %7194 = vmatmul.mubr.f32.gmra.mrb[0].mxu0 %v6983
      %v7195 = vpop.f32.mrb[0].mxu0
      %v7196 = vadd.f32 %v7052, %v7195
      %v7197 = vpop.f32.mrb[0].mxu0
      %7198 = vmatprep.mubr.f32.mxu0 %v6986
      %7199 = vmatmul.mubr.f32.gmra.mrb[0].mxu0 %v6985
      %v7200 = vpop.f32.mrb[0].mxu0
      %v7201 = vadd.f32 %v7057, %v7200
      %v7202 = vpop.f32.mrb[0].mxu0
      %7203 = vmatprep.mubr.f32.mxu0 %v6988
      %7204 = vmatmul.mubr.f32.gmra.mrb[0].mxu0 %v6987
      %v7205 = vpop.f32.mrb[0].mxu0
      %v7206 = vadd.f32 %v7062, %v7205
      %v7207 = vpop.f32.mrb[0].mxu0
      %7208 = vmatprep.mubr.f32.mxu0 %v6990
      %7209 = vmatmul.mubr.f32.gmra.mrb[0].mxu0 %v6989
      %v7210 = vpop.f32.mrb[0].mxu0
      %v7211 = vadd.f32 %v7067, %v7210
      %v7212 = vpop.f32.mrb[0].mxu0
      %7213 = vmatprep.mubr.f32.mxu0 %v6992
      %7214 = vmatmul.mubr.f32.gmra.mrb[0].mxu0 %v6991
      %v7215 = vpop.f32.mrb[0].mxu0
      %v7216 = vadd.f32 %v7072, %v7215
      %v7217 = vpop.f32.mrb[0].mxu0
      %7218 = vmatprep.mubr.f32.mxu0 %v6994
      %7219 = vmatmul.mubr.f32.gmra.mrb[0].mxu0 %v6993
      %v7220 = vpop.f32.mrb[0].mxu0
      %v7221 = vadd.f32 %v7077, %v7220
      %v7222 = vpop.f32.mrb[0].mxu0
      %7223 = vmatprep.mubr.f32.mxu0 %v6996
      %7224 = vmatmul.mubr.f32.gmra.mrb[0].mxu0 %v6995
      %v7225 = vpop.f32.mrb[0].mxu0
      %v7226 = vadd.f32 %v7082, %v7225
      %v7227 = vpop.f32.mrb[0].mxu0
      %7228 = vmatprep.mubr.f32.mxu0 %v6998
      %7229 = vmatmul.mubr.f32.gmra.mrb[0].mxu0 %v6997
      %v7230 = vpop.f32.mrb[0].mxu0
      %v7231 = vadd.f32 %v7087, %v7230
      %v7232 = vpop.f32.mrb[0].mxu0
      %7233 = vmatprep.mubr.f32.mxu0 %v7000
      %7234 = vmatmul.mubr.f32.gmra.mrb[0].mxu0 %v6999
      %v7235 = vpop.f32.mrb[0].mxu0
      %v7236 = vadd.f32 %v7092, %v7235
      %v7237 = vpop.f32.mrb[0].mxu0
      %7238 = vmatprep.mubr.f32.mxu0 %v7002
      %7239 = vmatmul.mubr.f32.gmra.mrb[0].mxu0 %v7001
      %v7240 = vpop.f32.mrb[0].mxu0
      %v7241 = vadd.f32 %v7097, %v7240
      %v7242 = vpop.f32.mrb[0].mxu0
      %7243 = vdwg.mxu0
      %v7244 = vmax.f32 %v7166, 0.0
      %v7245 = vmax.f32 %v7171, 0.0
      %v7246 = vmax.f32 %v7176, 0.0
      %v7247 = vmax.f32 %v7181, 0.0
      %v7248 = vmax.f32 %v7186, 0.0
      %v7249 = vmax.f32 %v7191, 0.0
      %v7250 = vmax.f32 %v7196, 0.0
      %v7251 = vmax.f32 %v7201, 0.0
      %v7252 = vmax.f32 %v7206, 0.0
      %v7253 = vmax.f32 %v7211, 0.0
      %v7254 = vmax.f32 %v7216, 0.0
      %v7255 = vmax.f32 %v7221, 0.0
      %v7256 = vmax.f32 %v7226, 0.0
      %v7257 = vmax.f32 %v7231, 0.0
      %v7258 = vmax.f32 %v7236, 0.0
      %v7259 = vmax.f32 %v7241, 0.0
      %v7260 = vld [vmem:[%s9] sm:$0xff]
      %v7261 = vld [vmem:[%s9 + $0x8] sm:$0xff]
      %v7262 = vld [vmem:[%s9 + $0x10] sm:$0xff]
      %v7263 = vld [vmem:[%s9 + $0x18] sm:$0xff]
      %v7264 = vld [vmem:[%s9 + $0x20] sm:$0xff]
      %v7265 = vld [vmem:[%s9 + $0x28] sm:$0xff]
      %v7266 = vld [vmem:[%s9 + $0x30] sm:$0xff]
      %v7267 = vld [vmem:[%s9 + $0x38] sm:$0xff]
      %v7268 = vld [vmem:[%s9 + $0x40] sm:$0xff]
      %v7269 = vld [vmem:[%s9 + $0x48] sm:$0xff]
      %v7270 = vld [vmem:[%s9 + $0x50] sm:$0xff]
      %v7271 = vld [vmem:[%s9 + $0x58] sm:$0xff]
      %v7272 = vld [vmem:[%s9 + $0x60] sm:$0xff]
      %v7273 = vld [vmem:[%s9 + $0x68] sm:$0xff]
      %v7274 = vld [vmem:[%s9 + $0x70] sm:$0xff]
      %v7275 = vld [vmem:[%s9 + $0x78] sm:$0xff]
      %v7276 = vld [vmem:[%s10] sm:$0xff]
      %v7277 = vld [vmem:[%s10 + $0x8] sm:$0xff]
      %v7278 = vld [vmem:[%s10 + $0x10] sm:$0xff]
      %v7279 = vld [vmem:[%s10 + $0x18] sm:$0xff]
      %v7280 = vld [vmem:[%s10 + $0x20] sm:$0xff]
      %v7281 = vld [vmem:[%s10 + $0x28] sm:$0xff]
      %v7282 = vld [vmem:[%s10 + $0x30] sm:$0xff]
      %v7283 = vld [vmem:[%s10 + $0x38] sm:$0xff]
      %v7284 = vld [vmem:[%s10 + $0x40] sm:$0xff]
      %v7285 = vld [vmem:[%s10 + $0x48] sm:$0xff]
      %v7286 = vld [vmem:[%s10 + $0x50] sm:$0xff]
      %v7287 = vld [vmem:[%s10 + $0x58] sm:$0xff]
      %v7288 = vld [vmem:[%s10 + $0x60] sm:$0xff]
      %v7289 = vld [vmem:[%s10 + $0x68] sm:$0xff]
      %v7290 = vld [vmem:[%s10 + $0x70] sm:$0xff]
      %v7291 = vld [vmem:[%s10 + $0x78] sm:$0xff]
      %7293 = vset.pattern.permute.xlu0 0
      %7294 = vperm.xlu0 %7293, %v7276
      %v7295 = vpop.permute.xlu0 %7294
      %7298 = vset.pattern.permute.xlu0 0
      %7299 = vperm.xlu0 %7298, %v7277
      %v7300 = vpop.permute.xlu0 %7299
      %7303 = vset.pattern.permute.xlu0 0
      %7304 = vperm.xlu0 %7303, %v7278
      %v7305 = vpop.permute.xlu0 %7304
      %7308 = vset.pattern.permute.xlu0 0
      %7309 = vperm.xlu0 %7308, %v7279
      %v7310 = vpop.permute.xlu0 %7309
      %7313 = vset.pattern.permute.xlu0 0
      %7314 = vperm.xlu0 %7313, %v7280
      %v7315 = vpop.permute.xlu0 %7314
      %7318 = vset.pattern.permute.xlu0 0
      %7319 = vperm.xlu0 %7318, %v7281
      %v7320 = vpop.permute.xlu0 %7319
      %7323 = vset.pattern.permute.xlu0 0
      %7324 = vperm.xlu0 %7323, %v7282
      %v7325 = vpop.permute.xlu0 %7324
      %7328 = vset.pattern.permute.xlu0 0
      %7329 = vperm.xlu0 %7328, %v7283
      %v7330 = vpop.permute.xlu0 %7329
      %7333 = vset.pattern.permute.xlu0 0
      %7334 = vperm.xlu0 %7333, %v7284
      %v7335 = vpop.permute.xlu0 %7334
      %7338 = vset.pattern.permute.xlu0 0
      %7339 = vperm.xlu0 %7338, %v7285
      %v7340 = vpop.permute.xlu0 %7339
      %7343 = vset.pattern.permute.xlu0 0
      %7344 = vperm.xlu0 %7343, %v7286
      %v7345 = vpop.permute.xlu0 %7344
      %7348 = vset.pattern.permute.xlu0 0
      %7349 = vperm.xlu0 %7348, %v7287
      %v7350 = vpop.permute.xlu0 %7349
      %7353 = vset.pattern.permute.xlu0 0
      %7354 = vperm.xlu0 %7353, %v7288
      %v7355 = vpop.permute.xlu0 %7354
      %7358 = vset.pattern.permute.xlu0 0
      %7359 = vperm.xlu0 %7358, %v7289
      %v7360 = vpop.permute.xlu0 %7359
      %7363 = vset.pattern.permute.xlu0 0
      %7364 = vperm.xlu0 %7363, %v7290
      %v7365 = vpop.permute.xlu0 %7364
      %7368 = vset.pattern.permute.xlu0 0
      %7369 = vperm.xlu0 %7368, %v7291
      %v7370 = vpop.permute.xlu0 %7369
      %7372 = vmatprep.subr.mxu0 0.0
      %7373 = vmatpush1.msra.mxu0 %v7244
      %7374 = vmatprep.subr.mxu0 0.0
      %7375 = vmatpush1.msra.mxu0 %v7245
      %7376 = vmatprep.subr.mxu0 0.0
      %7377 = vmatpush1.msra.mxu0 %v7246
      %7378 = vmatprep.subr.mxu0 0.0
      %7379 = vmatpush1.msra.mxu0 %v7247
      %7380 = vmatprep.subr.mxu0 0.0
      %7381 = vmatpush1.msra.mxu0 %v7248
      %7382 = vmatprep.subr.mxu0 0.0
      %7383 = vmatpush1.msra.mxu0 %v7249
      %7384 = vmatprep.subr.mxu0 0.0
      %7385 = vmatpush1.msra.mxu0 %v7250
      %7386 = vmatprep.subr.mxu0 0.0
      %7387 = vmatpush1.msra.mxu0 %v7251
      %7388 = vmatprep.subr.mxu0 0.0
      %7389 = vmatpush1.msra.mxu0 %v7252
      %7390 = vmatprep.subr.mxu0 0.0
      %7391 = vmatpush1.msra.mxu0 %v7253
      %7392 = vmatprep.subr.mxu0 0.0
      %7393 = vmatpush1.msra.mxu0 %v7254
      %7394 = vmatprep.subr.mxu0 0.0
      %7395 = vmatpush1.msra.mxu0 %v7255
      %7396 = vmatprep.subr.mxu0 0.0
      %7397 = vmatpush1.msra.mxu0 %v7256
      %7398 = vmatprep.subr.mxu0 0.0
      %7399 = vmatpush1.msra.mxu0 %v7257
      %7400 = vmatprep.subr.mxu0 0.0
      %7401 = vmatpush1.msra.mxu0 %v7258
      %7402 = vmatprep.subr.mxu0 0.0
      %7403 = vmatpush1.msra.mxu0 %v7259
      %7404 = vmatprep.subr.mxu0 0.0
      %7405 = vmatpush1.msra.mxu0 0.0
      %7406 = vmatprep.subr.mxu0 0.0
      %7407 = vmatpush1.msra.mxu0 0.0
      %7408 = vmatprep.subr.mxu0 0.0
      %7409 = vmatpush1.msra.mxu0 0.0
      %7410 = vmatprep.subr.mxu0 0.0
      %7411 = vmatpush1.msra.mxu0 0.0
      %7412 = vmatprep.subr.mxu0 0.0
      %7413 = vmatpush1.msra.mxu0 0.0
      %7414 = vmatprep.subr.mxu0 0.0
      %7415 = vmatpush1.msra.mxu0 0.0
      %7416 = vmatprep.subr.mxu0 0.0
      %7417 = vmatpush1.msra.mxu0 0.0
      %7418 = vmatprep.subr.mxu0 0.0
      %7419 = vmatpush1.msra.mxu0 0.0
      %7420 = vmatprep.subr.mxu0 0.0
      %7421 = vmatpush1.msra.mxu0 0.0
      %7422 = vmatprep.subr.mxu0 0.0
      %7423 = vmatpush1.msra.mxu0 0.0
      %7424 = vmatprep.subr.mxu0 0.0
      %7425 = vmatpush1.msra.mxu0 0.0
      %7426 = vmatprep.subr.mxu0 0.0
      %7427 = vmatpush1.msra.mxu0 0.0
      %7428 = vmatprep.subr.mxu0 0.0
      %7429 = vmatpush1.msra.mxu0 0.0
      %7430 = vmatprep.subr.mxu0 0.0
      %7431 = vmatpush1.msra.mxu0 0.0
      %7432 = vmatprep.subr.mxu0 0.0
      %7433 = vmatpush1.msra.mxu0 0.0
      %7434 = vmatprep.subr.mxu0 0.0
      %7435 = vmatpush1.msra.mxu0 0.0
      %7436 = vmatprep.mubr.f32.mxu0 0.0
      %7437 = vmatmul.mubr.f32.gmra.mrb[0].mxu0 %v7260
      %v7438 = vpop.f32.mrb[0].mxu0
      %v7439 = vadd.f32 %v7295, %v7438
      %v7440 = vpop.f32.mrb[0].mxu0
      %7441 = vmatprep.mubr.f32.mxu0 0.0
      %7442 = vmatmul.mubr.f32.gmra.mrb[0].mxu0 %v7261
      %v7443 = vpop.f32.mrb[0].mxu0
      %v7444 = vadd.f32 %v7300, %v7443
      %v7445 = vpop.f32.mrb[0].mxu0
      %7446 = vmatprep.mubr.f32.mxu0 0.0
      %7447 = vmatmul.mubr.f32.gmra.mrb[0].mxu0 %v7262
      %v7448 = vpop.f32.mrb[0].mxu0
      %v7449 = vadd.f32 %v7305, %v7448
      %v7450 = vpop.f32.mrb[0].mxu0
      %7451 = vmatprep.mubr.f32.mxu0 0.0
      %7452 = vmatmul.mubr.f32.gmra.mrb[0].mxu0 %v7263
      %v7453 = vpop.f32.mrb[0].mxu0
      %v7454 = vadd.f32 %v7310, %v7453
      %v7455 = vpop.f32.mrb[0].mxu0
      %7456 = vmatprep.mubr.f32.mxu0 0.0
      %7457 = vmatmul.mubr.f32.gmra.mrb[0].mxu0 %v7264
      %v7458 = vpop.f32.mrb[0].mxu0
      %v7459 = vadd.f32 %v7315, %v7458
      %v7460 = vpop.f32.mrb[0].mxu0
      %7461 = vmatprep.mubr.f32.mxu0 0.0
      %7462 = vmatmul.mubr.f32.gmra.mrb[0].mxu0 %v7265
      %v7463 = vpop.f32.mrb[0].mxu0
      %v7464 = vadd.f32 %v7320, %v7463
      %v7465 = vpop.f32.mrb[0].mxu0
      %7466 = vmatprep.mubr.f32.mxu0 0.0
      %7467 = vmatmul.mubr.f32.gmra.mrb[0].mxu0 %v7266
      %v7468 = vpop.f32.mrb[0].mxu0
      %v7469 = vadd.f32 %v7325, %v7468
      %v7470 = vpop.f32.mrb[0].mxu0
      %7471 = vmatprep.mubr.f32.mxu0 0.0
      %7472 = vmatmul.mubr.f32.gmra.mrb[0].mxu0 %v7267
      %v7473 = vpop.f32.mrb[0].mxu0
      %v7474 = vadd.f32 %v7330, %v7473
      %v7475 = vpop.f32.mrb[0].mxu0
      %7476 = vmatprep.mubr.f32.mxu0 0.0
      %7477 = vmatmul.mubr.f32.gmra.mrb[0].mxu0 %v7268
      %v7478 = vpop.f32.mrb[0].mxu0
      %v7479 = vadd.f32 %v7335, %v7478
      %v7480 = vpop.f32.mrb[0].mxu0
      %7481 = vmatprep.mubr.f32.mxu0 0.0
      %7482 = vmatmul.mubr.f32.gmra.mrb[0].mxu0 %v7269
      %v7483 = vpop.f32.mrb[0].mxu0
      %v7484 = vadd.f32 %v7340, %v7483
      %v7485 = vpop.f32.mrb[0].mxu0
      %7486 = vmatprep.mubr.f32.mxu0 0.0
      %7487 = vmatmul.mubr.f32.gmra.mrb[0].mxu0 %v7270
      %v7488 = vpop.f32.mrb[0].mxu0
      %v7489 = vadd.f32 %v7345, %v7488
      %v7490 = vpop.f32.mrb[0].mxu0
      %7491 = vmatprep.mubr.f32.mxu0 0.0
      %7492 = vmatmul.mubr.f32.gmra.mrb[0].mxu0 %v7271
      %v7493 = vpop.f32.mrb[0].mxu0
      %v7494 = vadd.f32 %v7350, %v7493
      %v7495 = vpop.f32.mrb[0].mxu0
      %7496 = vmatprep.mubr.f32.mxu0 0.0
      %7497 = vmatmul.mubr.f32.gmra.mrb[0].mxu0 %v7272
      %v7498 = vpop.f32.mrb[0].mxu0
      %v7499 = vadd.f32 %v7355, %v7498
      %v7500 = vpop.f32.mrb[0].mxu0
      %7501 = vmatprep.mubr.f32.mxu0 0.0
      %7502 = vmatmul.mubr.f32.gmra.mrb[0].mxu0 %v7273
      %v7503 = vpop.f32.mrb[0].mxu0
      %v7504 = vadd.f32 %v7360, %v7503
      %v7505 = vpop.f32.mrb[0].mxu0
      %7506 = vmatprep.mubr.f32.mxu0 0.0
      %7507 = vmatmul.mubr.f32.gmra.mrb[0].mxu0 %v7274
      %v7508 = vpop.f32.mrb[0].mxu0
      %v7509 = vadd.f32 %v7365, %v7508
      %v7510 = vpop.f32.mrb[0].mxu0
      %7511 = vmatprep.mubr.f32.mxu0 0.0
      %7512 = vmatmul.mubr.f32.gmra.mrb[0].mxu0 %v7275
      %v7513 = vpop.f32.mrb[0].mxu0
      %v7514 = vadd.f32 %v7370, %v7513
      %v7515 = vpop.f32.mrb[0].mxu0
      %7516 = vdwg.mxu0
      %v7517 = vmax.f32 %v7439, 0.0
      %v7518 = vmax.f32 %v7444, 0.0
      %v7519 = vmax.f32 %v7449, 0.0
      %v7520 = vmax.f32 %v7454, 0.0
      %v7521 = vmax.f32 %v7459, 0.0
      %v7522 = vmax.f32 %v7464, 0.0
      %v7523 = vmax.f32 %v7469, 0.0
      %v7524 = vmax.f32 %v7474, 0.0
      %v7525 = vmax.f32 %v7479, 0.0
      %v7526 = vmax.f32 %v7484, 0.0
      %v7527 = vmax.f32 %v7489, 0.0
      %v7528 = vmax.f32 %v7494, 0.0
      %v7529 = vmax.f32 %v7499, 0.0
      %v7530 = vmax.f32 %v7504, 0.0
      %v7531 = vmax.f32 %v7509, 0.0
      %v7532 = vmax.f32 %v7514, 0.0
      %v7533 = vld [vmem:[%s11] sm:$0xff]
      %v7534 = vld [vmem:[%s11 + $0x8] sm:$0xff]
      %v7535 = vld [vmem:[%s11 + $0x10] sm:$0xff]
      %v7536 = vld [vmem:[%s11 + $0x18] sm:$0xff]
      %v7537 = vld [vmem:[%s11 + $0x20] sm:$0xff]
      %v7538 = vld [vmem:[%s11 + $0x28] sm:$0xff]
      %v7539 = vld [vmem:[%s11 + $0x30] sm:$0xff]
      %v7540 = vld [vmem:[%s11 + $0x38] sm:$0xff]
      %v7541 = vld [vmem:[%s11 + $0x40] sm:$0xff]
      %v7542 = vld [vmem:[%s11 + $0x48] sm:$0xff]
      %v7543 = vld [vmem:[%s11 + $0x50] sm:$0xff]
      %v7544 = vld [vmem:[%s11 + $0x58] sm:$0xff]
      %v7545 = vld [vmem:[%s11 + $0x60] sm:$0xff]
      %v7546 = vld [vmem:[%s11 + $0x68] sm:$0xff]
      %v7547 = vld [vmem:[%s11 + $0x70] sm:$0xff]
      %v7548 = vld [vmem:[%s11 + $0x78] sm:$0xff]
      %v7549 = vld [vmem:[%s12] sm:$0xff]
      %v7550 = vld [vmem:[%s12 + $0x8] sm:$0xff]
      %v7551 = vld [vmem:[%s12 + $0x10] sm:$0xff]
      %v7552 = vld [vmem:[%s12 + $0x18] sm:$0xff]
      %v7553 = vld [vmem:[%s12 + $0x20] sm:$0xff]
      %v7554 = vld [vmem:[%s12 + $0x28] sm:$0xff]
      %v7555 = vld [vmem:[%s12 + $0x30] sm:$0xff]
      %v7556 = vld [vmem:[%s12 + $0x38] sm:$0xff]
      %v7557 = vld [vmem:[%s12 + $0x40] sm:$0xff]
      %v7558 = vld [vmem:[%s12 + $0x48] sm:$0xff]
      %v7559 = vld [vmem:[%s12 + $0x50] sm:$0xff]
      %v7560 = vld [vmem:[%s12 + $0x58] sm:$0xff]
      %v7561 = vld [vmem:[%s12 + $0x60] sm:$0xff]
      %v7562 = vld [vmem:[%s12 + $0x68] sm:$0xff]
      %v7563 = vld [vmem:[%s12 + $0x70] sm:$0xff]
      %v7564 = vld [vmem:[%s12 + $0x78] sm:$0xff]
      %7566 = vset.pattern.permute.xlu0 0
      %7567 = vperm.xlu0 %7566, %v7549
      %v7568 = vpop.permute.xlu0 %7567
      %7571 = vset.pattern.permute.xlu0 0
      %7572 = vperm.xlu0 %7571, %v7550
      %v7573 = vpop.permute.xlu0 %7572
      %7576 = vset.pattern.permute.xlu0 0
      %7577 = vperm.xlu0 %7576, %v7551
      %v7578 = vpop.permute.xlu0 %7577
      %7581 = vset.pattern.permute.xlu0 0
      %7582 = vperm.xlu0 %7581, %v7552
      %v7583 = vpop.permute.xlu0 %7582
      %7586 = vset.pattern.permute.xlu0 0
      %7587 = vperm.xlu0 %7586, %v7553
      %v7588 = vpop.permute.xlu0 %7587
      %7591 = vset.pattern.permute.xlu0 0
      %7592 = vperm.xlu0 %7591, %v7554
      %v7593 = vpop.permute.xlu0 %7592
      %7596 = vset.pattern.permute.xlu0 0
      %7597 = vperm.xlu0 %7596, %v7555
      %v7598 = vpop.permute.xlu0 %7597
      %7601 = vset.pattern.permute.xlu0 0
      %7602 = vperm.xlu0 %7601, %v7556
      %v7603 = vpop.permute.xlu0 %7602
      %7606 = vset.pattern.permute.xlu0 0
      %7607 = vperm.xlu0 %7606, %v7557
      %v7608 = vpop.permute.xlu0 %7607
      %7611 = vset.pattern.permute.xlu0 0
      %7612 = vperm.xlu0 %7611, %v7558
      %v7613 = vpop.permute.xlu0 %7612
      %7616 = vset.pattern.permute.xlu0 0
      %7617 = vperm.xlu0 %7616, %v7559
      %v7618 = vpop.permute.xlu0 %7617
      %7621 = vset.pattern.permute.xlu0 0
      %7622 = vperm.xlu0 %7621, %v7560
      %v7623 = vpop.permute.xlu0 %7622
      %7626 = vset.pattern.permute.xlu0 0
      %7627 = vperm.xlu0 %7626, %v7561
      %v7628 = vpop.permute.xlu0 %7627
      %7631 = vset.pattern.permute.xlu0 0
      %7632 = vperm.xlu0 %7631, %v7562
      %v7633 = vpop.permute.xlu0 %7632
      %7636 = vset.pattern.permute.xlu0 0
      %7637 = vperm.xlu0 %7636, %v7563
      %v7638 = vpop.permute.xlu0 %7637
      %7641 = vset.pattern.permute.xlu0 0
      %7642 = vperm.xlu0 %7641, %v7564
      %v7643 = vpop.permute.xlu0 %7642
      %7645 = vmatprep.subr.mxu0 0.0
      %7646 = vmatpush1.msra.mxu0 %v7517
      %7647 = vmatprep.subr.mxu0 0.0
      %7648 = vmatpush1.msra.mxu0 %v7518
      %7649 = vmatprep.subr.mxu0 0.0
      %7650 = vmatpush1.msra.mxu0 %v7519
      %7651 = vmatprep.subr.mxu0 0.0
      %7652 = vmatpush1.msra.mxu0 %v7520
      %7653 = vmatprep.subr.mxu0 0.0
      %7654 = vmatpush1.msra.mxu0 %v7521
      %7655 = vmatprep.subr.mxu0 0.0
      %7656 = vmatpush1.msra.mxu0 %v7522
      %7657 = vmatprep.subr.mxu0 0.0
      %7658 = vmatpush1.msra.mxu0 %v7523
      %7659 = vmatprep.subr.mxu0 0.0
      %7660 = vmatpush1.msra.mxu0 %v7524
      %7661 = vmatprep.subr.mxu0 0.0
      %7662 = vmatpush1.msra.mxu0 %v7525
      %7663 = vmatprep.subr.mxu0 0.0
      %7664 = vmatpush1.msra.mxu0 %v7526
      %7665 = vmatprep.subr.mxu0 0.0
      %7666 = vmatpush1.msra.mxu0 %v7527
      %7667 = vmatprep.subr.mxu0 0.0
      %7668 = vmatpush1.msra.mxu0 %v7528
      %7669 = vmatprep.subr.mxu0 0.0
      %7670 = vmatpush1.msra.mxu0 %v7529
      %7671 = vmatprep.subr.mxu0 0.0
      %7672 = vmatpush1.msra.mxu0 %v7530
      %7673 = vmatprep.subr.mxu0 0.0
      %7674 = vmatpush1.msra.mxu0 %v7531
      %7675 = vmatprep.subr.mxu0 0.0
      %7676 = vmatpush1.msra.mxu0 %v7532
      %7677 = vmatprep.subr.mxu0 0.0
      %7678 = vmatpush1.msra.mxu0 0.0
      %7679 = vmatprep.subr.mxu0 0.0
      %7680 = vmatpush1.msra.mxu0 0.0
      %7681 = vmatprep.subr.mxu0 0.0
      %7682 = vmatpush1.msra.mxu0 0.0
      %7683 = vmatprep.subr.mxu0 0.0
      %7684 = vmatpush1.msra.mxu0 0.0
      %7685 = vmatprep.subr.mxu0 0.0
      %7686 = vmatpush1.msra.mxu0 0.0
      %7687 = vmatprep.subr.mxu0 0.0
      %7688 = vmatpush1.msra.mxu0 0.0
      %7689 = vmatprep.subr.mxu0 0.0
      %7690 = vmatpush1.msra.mxu0 0.0
      %7691 = vmatprep.subr.mxu0 0.0
      %7692 = vmatpush1.msra.mxu0 0.0
      %7693 = vmatprep.subr.mxu0 0.0
      %7694 = vmatpush1.msra.mxu0 0.0
      %7695 = vmatprep.subr.mxu0 0.0
      %7696 = vmatpush1.msra.mxu0 0.0
      %7697 = vmatprep.subr.mxu0 0.0
      %7698 = vmatpush1.msra.mxu0 0.0
      %7699 = vmatprep.subr.mxu0 0.0
      %7700 = vmatpush1.msra.mxu0 0.0
      %7701 = vmatprep.subr.mxu0 0.0
      %7702 = vmatpush1.msra.mxu0 0.0
      %7703 = vmatprep.subr.mxu0 0.0
      %7704 = vmatpush1.msra.mxu0 0.0
      %7705 = vmatprep.subr.mxu0 0.0
      %7706 = vmatpush1.msra.mxu0 0.0
      %7707 = vmatprep.subr.mxu0 0.0
      %7708 = vmatpush1.msra.mxu0 0.0
      %7709 = vmatprep.mubr.f32.mxu0 0.0
      %7710 = vmatmul.mubr.f32.gmra.mrb[0].mxu0 %v7533
      %v7711 = vpop.f32.mrb[0].mxu0
      %v7712 = vadd.f32 %v7568, %v7711
      %v7713 = vpop.f32.mrb[0].mxu0
      %7714 = vmatprep.mubr.f32.mxu0 0.0
      %7715 = vmatmul.mubr.f32.gmra.mrb[0].mxu0 %v7534
      %v7716 = vpop.f32.mrb[0].mxu0
      %v7717 = vadd.f32 %v7573, %v7716
      %v7718 = vpop.f32.mrb[0].mxu0
      %7719 = vmatprep.mubr.f32.mxu0 0.0
      %7720 = vmatmul.mubr.f32.gmra.mrb[0].mxu0 %v7535
      %v7721 = vpop.f32.mrb[0].mxu0
      %v7722 = vadd.f32 %v7578, %v7721
      %v7723 = vpop.f32.mrb[0].mxu0
      %7724 = vmatprep.mubr.f32.mxu0 0.0
      %7725 = vmatmul.mubr.f32.gmra.mrb[0].mxu0 %v7536
      %v7726 = vpop.f32.mrb[0].mxu0
      %v7727 = vadd.f32 %v7583, %v7726
      %v7728 = vpop.f32.mrb[0].mxu0
      %7729 = vmatprep.mubr.f32.mxu0 0.0
      %7730 = vmatmul.mubr.f32.gmra.mrb[0].mxu0 %v7537
      %v7731 = vpop.f32.mrb[0].mxu0
      %v7732 = vadd.f32 %v7588, %v7731
      %v7733 = vpop.f32.mrb[0].mxu0
      %7734 = vmatprep.mubr.f32.mxu0 0.0
      %7735 = vmatmul.mubr.f32.gmra.mrb[0].mxu0 %v7538
      %v7736 = vpop.f32.mrb[0].mxu0
      %v7737 = vadd.f32 %v7593, %v7736
      %v7738 = vpop.f32.mrb[0].mxu0
      %7739 = vmatprep.mubr.f32.mxu0 0.0
      %7740 = vmatmul.mubr.f32.gmra.mrb[0].mxu0 %v7539
      %v7741 = vpop.f32.mrb[0].mxu0
      %v7742 = vadd.f32 %v7598, %v7741
      %v7743 = vpop.f32.mrb[0].mxu0
      %7744 = vmatprep.mubr.f32.mxu0 0.0
      %7745 = vmatmul.mubr.f32.gmra.mrb[0].mxu0 %v7540
      %v7746 = vpop.f32.mrb[0].mxu0
      %v7747 = vadd.f32 %v7603, %v7746
      %v7748 = vpop.f32.mrb[0].mxu0
      %7749 = vmatprep.mubr.f32.mxu0 0.0
      %7750 = vmatmul.mubr.f32.gmra.mrb[0].mxu0 %v7541
      %v7751 = vpop.f32.mrb[0].mxu0
      %v7752 = vadd.f32 %v7608, %v7751
      %v7753 = vpop.f32.mrb[0].mxu0
      %7754 = vmatprep.mubr.f32.mxu0 0.0
      %7755 = vmatmul.mubr.f32.gmra.mrb[0].mxu0 %v7542
      %v7756 = vpop.f32.mrb[0].mxu0
      %v7757 = vadd.f32 %v7613, %v7756
      %v7758 = vpop.f32.mrb[0].mxu0
      %7759 = vmatprep.mubr.f32.mxu0 0.0
      %7760 = vmatmul.mubr.f32.gmra.mrb[0].mxu0 %v7543
      %v7761 = vpop.f32.mrb[0].mxu0
      %v7762 = vadd.f32 %v7618, %v7761
      %v7763 = vpop.f32.mrb[0].mxu0
      %7764 = vmatprep.mubr.f32.mxu0 0.0
      %7765 = vmatmul.mubr.f32.gmra.mrb[0].mxu0 %v7544
      %v7766 = vpop.f32.mrb[0].mxu0
      %v7767 = vadd.f32 %v7623, %v7766
      %v7768 = vpop.f32.mrb[0].mxu0
      %7769 = vmatprep.mubr.f32.mxu0 0.0
      %7770 = vmatmul.mubr.f32.gmra.mrb[0].mxu0 %v7545
      %v7771 = vpop.f32.mrb[0].mxu0
      %v7772 = vadd.f32 %v7628, %v7771
      %v7773 = vpop.f32.mrb[0].mxu0
      %7774 = vmatprep.mubr.f32.mxu0 0.0
      %7775 = vmatmul.mubr.f32.gmra.mrb[0].mxu0 %v7546
      %v7776 = vpop.f32.mrb[0].mxu0
      %v7777 = vadd.f32 %v7633, %v7776
      %v7778 = vpop.f32.mrb[0].mxu0
      %7779 = vmatprep.mubr.f32.mxu0 0.0
      %7780 = vmatmul.mubr.f32.gmra.mrb[0].mxu0 %v7547
      %v7781 = vpop.f32.mrb[0].mxu0
      %v7782 = vadd.f32 %v7638, %v7781
      %v7783 = vpop.f32.mrb[0].mxu0
      %7784 = vmatprep.mubr.f32.mxu0 0.0
      %7785 = vmatmul.mubr.f32.gmra.mrb[0].mxu0 %v7548
      %v7786 = vpop.f32.mrb[0].mxu0
      %v7787 = vadd.f32 %v7643, %v7786
      %v7788 = vpop.f32.mrb[0].mxu0
      %7789 = vdwg.mxu0
      %7790 = vst.msk [vmem:[%s440] sm:$0xff] %vm786, %v7712
      %7791 = vst.msk [vmem:[%s440 + $0x8] sm:$0xff] %vm786, %v7717
      %7792 = vst.msk [vmem:[%s440 + $0x10] sm:$0xff] %vm786, %v7722
      %7793 = vst.msk [vmem:[%s440 + $0x18] sm:$0xff] %vm786, %v7727
      %7794 = vst.msk [vmem:[%s440 + $0x20] sm:$0xff] %vm786, %v7732
      %7795 = vst.msk [vmem:[%s440 + $0x28] sm:$0xff] %vm786, %v7737
      %7796 = vst.msk [vmem:[%s440 + $0x30] sm:$0xff] %vm786, %v7742
      %7797 = vst.msk [vmem:[%s440 + $0x38] sm:$0xff] %vm786, %v7747
      %7798 = vst.msk [vmem:[%s440 + $0x40] sm:$0xff] %vm786, %v7752
      %7799 = vst.msk [vmem:[%s440 + $0x48] sm:$0xff] %vm786, %v7757
      %7800 = vst.msk [vmem:[%s440 + $0x50] sm:$0xff] %vm786, %v7762
      %7801 = vst.msk [vmem:[%s440 + $0x58] sm:$0xff] %vm786, %v7767
      %7802 = vst.msk [vmem:[%s440 + $0x60] sm:$0xff] %vm786, %v7772
      %7803 = vst.msk [vmem:[%s440 + $0x68] sm:$0xff] %vm786, %v7777
      %7804 = vst.msk [vmem:[%s440 + $0x70] sm:$0xff] %vm786, %v7782
      %7805 = vst.msk [vmem:[%s440 + $0x78] sm:$0xff] %vm786, %v7787
      %p7806 = scmp.lt.s32.totalorder %s24, 1
      %s7807 = scalar_select %p7806, %s24, 1
      %s7808 = smul.addr %s7807, 16
      %s7809 = smul.addr %s7808, 8
      %s7810 = scalar_lea.vmem %s13, %s7809
      // Predicated region
      $region73: #{lenet5_forward.1} parent=71 // pred_check
        %p7811 = pneg %p320
      $region74: #{lenet5_forward.1} parent=71 // pred_check_branch
        %7813 = sbr.rel (%p7811) target = $region76
      $region75: #{lenet5_forward.1} parent=71 // pred_region
        _
      $region76: #{lenet5_forward.1} parent=71 // pred_fallthru
        _
    $region72: #{lenet5_forward.1} parent=5 // pred_fallthru
      _
    %p7814 = scmp.le.s32.totalorder 2, %s19
    // Predicated region
    $region77: #{lenet5_forward.1} parent=5 // pred_check
      %p7815 = pneg %p7814
    $region78: #{lenet5_forward.1} parent=5 // pred_check_branch
      %7817 = sbr.rel (%p7815) target = $region80
    $region79: #{lenet5_forward.1} parent=5 // pred_region
      %s7818 = ssub.s32 %s19, 2
      // Predicated region
      $region81: #{lenet5_forward.1} parent=79 // pred_check
        %p7819 = pneg %p326
      $region82: #{lenet5_forward.1} parent=79 // pred_check_branch
        %7821 = sbr.rel (%p7819) target = $region84
      $region83: #{lenet5_forward.1} parent=79 // pred_region
        %p7822 = scmp.lt.s32.totalorder %s25, 1
        %s7823 = scalar_select %p7822, %s25, 1
        %s7824 = smul.addr %s7823, 16
        %s7825 = smul.addr %s7824, 8
        %s7826 = scalar_lea.vmem %s13, %s7825
      $region84: #{lenet5_forward.1} parent=79 // pred_fallthru
        _
    $region80: #{lenet5_forward.1} parent=5 // pred_fallthru
      _
  $region6: #{lenet5_forward.1} parent=0 // loop_footer
    %s23 = sadd.s32 1, %s19
  $region7: #{lenet5_forward.1} parent=0 // loop_footer_branch
    %18 = sbr.rel target = $region3
  $region8: #{lenet5_forward.1} parent=0 // loop_exit
    _

</llo_original>
